<compile_context>
chip_gen: v6e
topology: v6e:2x2x1
jax: 0.10.0
libtpu: 0.0.40
codegen_flags: <defaults>
</compile_context>

<pallas_src>
import jax
import jax.numpy as jnp
from jax.experimental import pallas as pl
from jax.experimental.pallas import tpu as pltpu

# ---------------------------- configuration ---------------------------------
B = 2
IN_CH = 3
IMG = 56
PATCH = 14
HP = IMG // PATCH            # 4
NPATCH = HP * HP             # 16
T = NPATCH + 1               # 17 valid tokens (patches + cls)
TP = 24                      # padded tokens per batch (multiple of 8)
D = 32                       # embed dim (ViT-S/14 uses 384; scaled down)
HEADS = 2
HEAD_DIM = D // HEADS        # 16
MLP = 4 * D                  # 128
DEPTH = 4                    # in_index = [0, 1, 2, 3] -> concat channels = 4*D
NUM_CLASSES = 21
NUM_CLASSES_PAD = 128        # lane-dense padded class dim (sliced back to 21)
C_CAT = DEPTH * D            # 128 (stands in for the original 1536)
PATCH_DIM = IN_CH * PATCH * PATCH   # 588
BTP = B * TP                 # 48
BP = B * NPATCH              # 32
EPS_LN = 1e-6
EPS_BN = 1e-5
NEG_INF = -1e30


# ------------------------------ fused kernel ---------------------------------
def _dinov2_seg_kernel(
    patches_ref, patch_w_ref, patch_b_ref, pos_patch_ref, suffix_ref,
    ln1_g_ref, ln1_b_ref,
    w_q_ref, w_k_ref, w_v_ref, b_q_ref, b_k_ref, b_v_ref,
    w_proj_ref, b_proj_ref,
    ln2_g_ref, ln2_b_ref, w_fc1_ref, b_fc1_ref, w_fc2_ref, b_fc2_ref,
    norm_g_ref, norm_b_ref, bn_g_ref, bn_b_ref, seg_w_ref, seg_b_ref,
    o_ref):
  f32 = jnp.float32
  bf16 = jnp.bfloat16

  def ln(z, g, b):
    mu = jnp.mean(z, axis=-1, keepdims=True)
    var = jnp.mean((z - mu) ** 2, axis=-1, keepdims=True)
    return (z - mu) * jax.lax.rsqrt(var + EPS_LN) * g + b

  # --- patch embed: conv(k=14, s=14) expressed as unfold + matmul (bf16 MXU) --
  emb = jnp.dot(patches_ref[...], patch_w_ref[...],
                preferred_element_type=f32) + patch_b_ref[0, :]     # (BP, D)
  emb = emb.reshape(B, NPATCH, D) + pos_patch_ref[...][None, :, :]  # (B,16,D)

  # --- token layout per batch: [16 patch | cls | 7 zero-pad] = 24 rows ------
  # suffix = [cls + pos_cls, zeros(7, D)] precomputed from params (aligned
  # 16/8-row concat -> no sublane relayout).
  x = jnp.concatenate([emb, suffix_ref[...]], axis=1)               # (B,TP,D)
  x = x.reshape(BTP, D)                                             # (48, D)

  # key-padding bias: token index >= T within each batch is padding.
  kidx = jax.lax.broadcasted_iota(jnp.int32, (1, TP), 1)
  kbias = jnp.where(kidx < T, 0.0, NEG_INF).astype(f32)             # (1, TP)
  kbias3 = kbias[None, :, :]                                        # (1,1,TP)

  scale = HEAD_DIM ** -0.5
  levels = []
  for blk in range(DEPTH):
    # ---- multi-head self attention ----
    h = ln(x, ln1_g_ref[blk], ln1_b_ref[blk])                       # f32
    hb = h.astype(bf16)
    q = jnp.dot(hb, w_q_ref[blk], preferred_element_type=f32) + b_q_ref[blk]
    k = jnp.dot(hb, w_k_ref[blk], preferred_element_type=f32) + b_k_ref[blk]
    v = jnp.dot(hb, w_v_ref[blk], preferred_element_type=f32) + b_v_ref[blk]
    q3 = q.reshape(B, TP, D).astype(bf16)
    k3 = k.reshape(B, TP, D).astype(bf16)
    v3 = v.reshape(B, TP, D).astype(bf16)

    heads_out = []
    for hh in range(HEADS):                                         # 2 heads
      sl = slice(hh * HEAD_DIM, (hh + 1) * HEAD_DIM)
      s = jnp.einsum('bqd,bkd->bqk', q3[:, :, sl], k3[:, :, sl],
                     preferred_element_type=f32) * scale            # (B,TP,TP)
      s = s + kbias3                                                # mask pads
      s = s - jnp.max(s, axis=-1, keepdims=True)
      p = jnp.exp(s)
      p = p * pl.reciprocal(jnp.sum(p, axis=-1, keepdims=True), approx=True)
      oh = jnp.einsum('bqk,bkd->bqd', p.astype(bf16), v3[:, :, sl],
                      preferred_element_type=f32)                   # (B,TP,HD)
      heads_out.append(oh)

    # lane-concat heads (two 16-lane slabs in one vreg row), single K=32 proj.
    attn = jnp.concatenate(heads_out, axis=-1).reshape(BTP, D)      # (BTP, D)
    attn = jnp.dot(attn.astype(bf16), w_proj_ref[blk],
                   preferred_element_type=f32) + b_proj_ref[blk]
    x = x + attn

    # ---- MLP ----
    h2 = ln(x, ln2_g_ref[blk], ln2_b_ref[blk])
    h2 = jnp.dot(h2.astype(bf16), w_fc1_ref[blk],
                 preferred_element_type=f32) + b_fc1_ref[blk]
    h2 = jax.nn.gelu(h2, approximate=True)  # TODO(synk): exact erf in torch
    h2 = jnp.dot(h2.astype(bf16), w_fc2_ref[blk],
                 preferred_element_type=f32) + b_fc2_ref[blk]
    x = x + h2
    levels.append(x)

  # --- decode head (BNHead) -------------------------------------------------
  # get_intermediate_layers(norm=True): final LN, drop cls/pad tokens (patch
  # rows 0..15 per batch -> aligned slice). resize_concat is a channel concat
  # (identity resize); the 4 levels are lane-concatenated into one (BP, 128)
  # slab, BN'd per channel (train-mode batch stats), then one K=128 matmul
  # against the lane-padded 1x1-conv weight.
  norm_g = norm_g_ref[0, :]
  norm_b = norm_b_ref[0, :]
  feats = []
  for lvl in range(DEPTH):
    f = levels[lvl].reshape(B, TP, D)[:, :NPATCH, :].reshape(BP, D)
    feats.append(ln(f, norm_g, norm_b))
  cat = jnp.concatenate(feats, axis=-1)                             # (BP, 128)
  mean = jnp.mean(cat, axis=0, keepdims=True)
  var = jnp.mean((cat - mean) ** 2, axis=0, keepdims=True)          # train-mode
  y = (cat - mean) * jax.lax.rsqrt(var + EPS_BN) * bn_g_ref[0, :] + bn_b_ref[0, :]
  o_ref[...] = jnp.dot(y.astype(jnp.bfloat16), seg_w_ref[...],
                       preferred_element_type=f32) + seg_b_ref[0, :]


# ------------------------------ wrapper --------------------------------------
def _full_spec(a):
  return pl.BlockSpec(a.shape, lambda i, nd=a.ndim: (0,) * nd)


def dinov2_segmentation_forward(x_nchw, params):
  """x_nchw: (B, 3, H, W) float32  ->  (B, 21, H/14, W/14) float32."""
  Bx, Cx, Hx, Wx = x_nchw.shape
  assert (Bx, Cx, Hx, Wx) == (B, IN_CH, IMG, IMG), x_nchw.shape
  hp, wp = Hx // PATCH, Wx // PATCH

  # Unfold into (B*hp*wp, C*14*14) patches for the patch-embed matmul; bf16
  # at the matmul boundary (accumulation stays f32 in-kernel).
  # TODO(synk): at real resolutions move the unfold into the kernel via a
  #   BlockSpec index_map over (hp, wp) tiles instead of an XLA-side transpose.
  patches = x_nchw.reshape(Bx, Cx, hp, PATCH, wp, PATCH)
  patches = patches.transpose(0, 2, 4, 1, 3, 5).reshape(
      Bx * hp * wp, Cx * PATCH * PATCH).astype(jnp.bfloat16)

  # Param-only preprocessing (tiny): cls+pos row and the zero pad rows that
  # complete each batch's 24-row token slab; per-patch positional embeddings.
  cls_row = params['cls_token'] + params['pos_embed'][0:1, :]       # (1, D)
  suffix = jnp.concatenate(
      [cls_row, jnp.zeros((TP - NPATCH - 1, D), jnp.float32)], axis=0)
  suffix = jnp.broadcast_to(suffix[None, :, :], (B, TP - NPATCH, D))
  pos_patch = params['pos_embed'][1:T, :]                           # (16, D)

  inputs = (
      patches,
      params['patch_w'], params['patch_b'], pos_patch, suffix,
      params['ln1_g'], params['ln1_b'],
      params['w_q'], params['w_k'], params['w_v'],
      params['b_q'], params['b_k'], params['b_v'],
      params['w_proj'], params['b_proj'],
      params['ln2_g'], params['ln2_b'],
      params['w_fc1'], params['b_fc1'],
      params['w_fc2'], params['b_fc2'],
      params['norm_g'], params['norm_b'],
      params['bn_g'], params['bn_b'],
      params['seg_w_pad'], params['seg_b_pad'],
  )

  logits_pad = pl.pallas_call(
      _dinov2_seg_kernel,
      grid=(1,),
      in_specs=[_full_spec(a) for a in inputs],
      out_specs=pl.BlockSpec((BP, NUM_CLASSES_PAD), lambda i: (0, 0)),
      out_shape=jax.ShapeDtypeStruct((BP, NUM_CLASSES_PAD), jnp.float32),
      compiler_params=pltpu.CompilerParams(
          dimension_semantics=("arbitrary",)),
  )(*inputs)

  logits = logits_pad[:, :NUM_CLASSES]                          # drop lane pad
  out = logits.reshape(Bx, hp, wp, NUM_CLASSES).transpose(0, 3, 1, 2)  # NCHW
  return out


# ------------------------------ parameters -----------------------------------
def init_params(key):
  keys = iter(jax.random.split(key, 64))
  bf16 = jnp.bfloat16

  def nrm(shape, scale=0.02, dtype=jnp.float32):
    return (scale * jax.random.normal(next(keys), shape)).astype(dtype)

  seg_w = nrm((C_CAT, NUM_CLASSES))
  seg_w_pad = jnp.zeros((C_CAT, NUM_CLASSES_PAD), jnp.float32)
  seg_w_pad = seg_w_pad.at[:, :NUM_CLASSES].set(seg_w).astype(bf16)
  seg_b_pad = jnp.zeros((1, NUM_CLASSES_PAD), jnp.float32)

  params = {
      # MXU weights stored in bf16 (operand cast once, f32 accumulation).
      'patch_w': nrm((PATCH_DIM, D), dtype=bf16),
      'patch_b': jnp.zeros((1, D), jnp.float32),
      'cls_token': nrm((1, D)),
      'pos_embed': nrm((T, D)),
      # transformer block weights stacked along a leading DEPTH axis so the
      # fused kernel indexes them with a static leading index. QKV pre-split
      # into per-projection (D, D) weights to avoid sub-vreg lane slices of a
      # fused 96-lane qkv output.
      'ln1_g': jnp.ones((DEPTH, D), jnp.float32),
      'ln1_b': jnp.zeros((DEPTH, D), jnp.float32),
      'w_q': nrm((DEPTH, D, D), dtype=bf16),
      'w_k': nrm((DEPTH, D, D), dtype=bf16),
      'w_v': nrm((DEPTH, D, D), dtype=bf16),
      'b_q': jnp.zeros((DEPTH, D), jnp.float32),
      'b_k': jnp.zeros((DEPTH, D), jnp.float32),
      'b_v': jnp.zeros((DEPTH, D), jnp.float32),
      'w_proj': nrm((DEPTH, D, D), dtype=bf16),
      'b_proj': jnp.zeros((DEPTH, D), jnp.float32),
      'ln2_g': jnp.ones((DEPTH, D), jnp.float32),
      'ln2_b': jnp.zeros((DEPTH, D), jnp.float32),
      'w_fc1': nrm((DEPTH, D, MLP), dtype=bf16),
      'b_fc1': jnp.zeros((DEPTH, MLP), jnp.float32),
      'w_fc2': nrm((DEPTH, MLP, D), dtype=bf16),
      'b_fc2': jnp.zeros((DEPTH, D), jnp.float32),
      'norm_g': jnp.ones((1, D), jnp.float32),
      'norm_b': jnp.zeros((1, D), jnp.float32),
      'bn_g': jnp.ones((1, C_CAT), jnp.float32),
      'bn_b': jnp.zeros((1, C_CAT), jnp.float32),
      'seg_w_pad': seg_w_pad,
      'seg_b_pad': seg_b_pad,
  }
  return params


# -------------------------------- main ----------------------------------------
if __name__ == "__main__":
  key = jax.random.PRNGKey(0)
  kp, kx = jax.random.split(key)
  params = init_params(kp)
  x = jax.random.normal(kx, (B, IN_CH, IMG, IMG), jnp.float32)

  fwd = jax.jit(dinov2_segmentation_forward)
  out = jax.block_until_ready(fwd(x, params))

  assert out.shape == (B, NUM_CLASSES, HP, HP), out.shape
  assert out.dtype == jnp.float32
  assert bool(jnp.all(jnp.isfinite(out)))
  print("KERNEL_OK")
</pallas_src>

<mosaic_0001>
module attributes {stable_mosaic.version = 11 : i64} {
  func.func @_dinov2_seg_kernel(%arg0: i32, %arg1: memref<32x588xbf16, #tpu.memory_space<vmem>>, %arg2: memref<588x32xbf16, #tpu.memory_space<vmem>>, %arg3: memref<1x32xf32, #tpu.memory_space<vmem>>, %arg4: memref<16x32xf32, #tpu.memory_space<vmem>>, %arg5: memref<2x8x32xf32, #tpu.memory_space<vmem>>, %arg6: memref<4x32xf32, #tpu.memory_space<vmem>>, %arg7: memref<4x32xf32, #tpu.memory_space<vmem>>, %arg8: memref<4x32x32xbf16, #tpu.memory_space<vmem>>, %arg9: memref<4x32x32xbf16, #tpu.memory_space<vmem>>, %arg10: memref<4x32x32xbf16, #tpu.memory_space<vmem>>, %arg11: memref<4x32xf32, #tpu.memory_space<vmem>>, %arg12: memref<4x32xf32, #tpu.memory_space<vmem>>, %arg13: memref<4x32xf32, #tpu.memory_space<vmem>>, %arg14: memref<4x32x32xbf16, #tpu.memory_space<vmem>>, %arg15: memref<4x32xf32, #tpu.memory_space<vmem>>, %arg16: memref<4x32xf32, #tpu.memory_space<vmem>>, %arg17: memref<4x32xf32, #tpu.memory_space<vmem>>, %arg18: memref<4x32x128xbf16, #tpu.memory_space<vmem>>, %arg19: memref<4x128xf32, #tpu.memory_space<vmem>>, %arg20: memref<4x128x32xbf16, #tpu.memory_space<vmem>>, %arg21: memref<4x32xf32, #tpu.memory_space<vmem>>, %arg22: memref<1x32xf32, #tpu.memory_space<vmem>>, %arg23: memref<1x32xf32, #tpu.memory_space<vmem>>, %arg24: memref<1x128xf32, #tpu.memory_space<vmem>>, %arg25: memref<1x128xf32, #tpu.memory_space<vmem>>, %arg26: memref<128x128xbf16, #tpu.memory_space<vmem>>, %arg27: memref<1x128xf32, #tpu.memory_space<vmem>>, %arg28: memref<32x128xf32, #tpu.memory_space<vmem>>) attributes {dimension_semantics = [#tpu.dimension_semantics<arbitrary>], iteration_bounds = array<i64: 1>, scalar_prefetch = 0 : i64, scratch_operands = 0 : i64, tpu.core_type = #tpu.core_type<tc>, window_params = [{pipeline_mode = #tpu.pipeline_mode<synchronous>, transform_indices = @transform_0, window_bounds = array<i64: 32, 588>}, {pipeline_mode = #tpu.pipeline_mode<synchronous>, transform_indices = @transform_1, window_bounds = array<i64: 588, 32>}, {pipeline_mode = #tpu.pipeline_mode<synchronous>, transform_indices = @transform_2, window_bounds = array<i64: 1, 32>}, {pipeline_mode = #tpu.pipeline_mode<synchronous>, transform_indices = @transform_3, window_bounds = array<i64: 16, 32>}, {pipeline_mode = #tpu.pipeline_mode<synchronous>, transform_indices = @transform_4, window_bounds = array<i64: 2, 8, 32>}, {pipeline_mode = #tpu.pipeline_mode<synchronous>, transform_indices = @transform_5, window_bounds = array<i64: 4, 32>}, {pipeline_mode = #tpu.pipeline_mode<synchronous>, transform_indices = @transform_6, window_bounds = array<i64: 4, 32>}, {pipeline_mode = #tpu.pipeline_mode<synchronous>, transform_indices = @transform_7, window_bounds = array<i64: 4, 32, 32>}, {pipeline_mode = #tpu.pipeline_mode<synchronous>, transform_indices = @transform_8, window_bounds = array<i64: 4, 32, 32>}, {pipeline_mode = #tpu.pipeline_mode<synchronous>, transform_indices = @transform_9, window_bounds = array<i64: 4, 32, 32>}, {pipeline_mode = #tpu.pipeline_mode<synchronous>, transform_indices = @transform_10, window_bounds = array<i64: 4, 32>}, {pipeline_mode = #tpu.pipeline_mode<synchronous>, transform_indices = @transform_11, window_bounds = array<i64: 4, 32>}, {pipeline_mode = #tpu.pipeline_mode<synchronous>, transform_indices = @transform_12, window_bounds = array<i64: 4, 32>}, {pipeline_mode = #tpu.pipeline_mode<synchronous>, transform_indices = @transform_13, window_bounds = array<i64: 4, 32, 32>}, {pipeline_mode = #tpu.pipeline_mode<synchronous>, transform_indices = @transform_14, window_bounds = array<i64: 4, 32>}, {pipeline_mode = #tpu.pipeline_mode<synchronous>, transform_indices = @transform_15, window_bounds = array<i64: 4, 32>}, {pipeline_mode = #tpu.pipeline_mode<synchronous>, transform_indices = @transform_16, window_bounds = array<i64: 4, 32>}, {pipeline_mode = #tpu.pipeline_mode<synchronous>, transform_indices = @transform_17, window_bounds = array<i64: 4, 32, 128>}, {pipeline_mode = #tpu.pipeline_mode<synchronous>, transform_indices = @transform_18, window_bounds = array<i64: 4, 128>}, {pipeline_mode = #tpu.pipeline_mode<synchronous>, transform_indices = @transform_19, window_bounds = array<i64: 4, 128, 32>}, {pipeline_mode = #tpu.pipeline_mode<synchronous>, transform_indices = @transform_20, window_bounds = array<i64: 4, 32>}, {pipeline_mode = #tpu.pipeline_mode<synchronous>, transform_indices = @transform_21, window_bounds = array<i64: 1, 32>}, {pipeline_mode = #tpu.pipeline_mode<synchronous>, transform_indices = @transform_22, window_bounds = array<i64: 1, 32>}, {pipeline_mode = #tpu.pipeline_mode<synchronous>, transform_indices = @transform_23, window_bounds = array<i64: 1, 128>}, {pipeline_mode = #tpu.pipeline_mode<synchronous>, transform_indices = @transform_24, window_bounds = array<i64: 1, 128>}, {pipeline_mode = #tpu.pipeline_mode<synchronous>, transform_indices = @transform_25, window_bounds = array<i64: 128, 128>}, {pipeline_mode = #tpu.pipeline_mode<synchronous>, transform_indices = @transform_26, window_bounds = array<i64: 1, 128>}, {pipeline_mode = #tpu.pipeline_mode<synchronous>, transform_indices = @transform_27, window_bounds = array<i64: 32, 128>}]} {
    %c0 = arith.constant 0 : index
    %c0_0 = arith.constant 0 : index
    %0 = vector.load %arg1[%c0, %c0_0] : memref<32x588xbf16, #tpu.memory_space<vmem>>, vector<32x588xbf16>
    %c0_1 = arith.constant 0 : index
    %c0_2 = arith.constant 0 : index
    %1 = vector.load %arg2[%c0_1, %c0_2] : memref<588x32xbf16, #tpu.memory_space<vmem>>, vector<588x32xbf16>
    %cst = arith.constant dense<0.000000e+00> : vector<32x32xf32>
    %2 = tpu.matmul %0, %1, %cst {dimension_numbers = #tpu.dot_dimension_numbers<[1], [0], [0], [1], [0, 0, 1, 1], [], []>} : vector<32x588xbf16>, vector<588x32xbf16>, vector<32x32xf32> -> vector<32x32xf32>
    %c0_3 = arith.constant 0 : index
    %c0_4 = arith.constant 0 : index
    %3 = vector.load %arg3[%c0_3, %c0_4] : memref<1x32xf32, #tpu.memory_space<vmem>>, vector<1x32xf32>
    %4 = vector.shape_cast %3 : vector<1x32xf32> to vector<32xf32>
    %5 = vector.shape_cast %4 : vector<32xf32> to vector<1x32xf32>
    %6 = vector.broadcast %5 : vector<1x32xf32> to vector<32x32xf32>
    %7 = arith.addf %2, %6 : vector<32x32xf32>
    %8 = vector.shape_cast %7 : vector<32x32xf32> to vector<2x16x32xf32>
    %c0_5 = arith.constant 0 : index
    %c0_6 = arith.constant 0 : index
    %9 = vector.load %arg4[%c0_5, %c0_6] : memref<16x32xf32, #tpu.memory_space<vmem>>, vector<16x32xf32>
    %10 = vector.shape_cast %9 : vector<16x32xf32> to vector<1x16x32xf32>
    %11 = vector.broadcast %10 : vector<1x16x32xf32> to vector<2x16x32xf32>
    %12 = arith.addf %8, %11 : vector<2x16x32xf32>
    %c0_7 = arith.constant 0 : index
    %c0_8 = arith.constant 0 : index
    %c0_9 = arith.constant 0 : index
    %13 = vector.load %arg5[%c0_7, %c0_8, %c0_9] : memref<2x8x32xf32, #tpu.memory_space<vmem>>, vector<2x8x32xf32>
    %14 = tpu.concatenate %12, %13 in 1 : vector<2x16x32xf32>, vector<2x8x32xf32> -> vector<2x24x32xf32>
    %15 = vector.shape_cast %14 : vector<2x24x32xf32> to vector<48x32xf32>
    %16 = tpu.iota {dimensions = array<i32: 1>} : vector<1x24xi32>
    %c17_i32 = arith.constant 17 : i32
    %17 = vector.broadcast %c17_i32 : i32 to vector<1x24xi32>
    %18 = arith.cmpi slt, %16, %17 : vector<1x24xi32>
    %cst_10 = arith.constant 0.000000e+00 : f32
    %cst_11 = arith.constant -1.000000e+30 : f32
    %19 = vector.broadcast %cst_10 : f32 to vector<1x24xf32>
    %20 = vector.broadcast %cst_11 : f32 to vector<1x24xf32>
    %21 = arith.select %18, %19, %20 : vector<1x24xi1>, vector<1x24xf32>
    %22 = vector.shape_cast %21 : vector<1x24xf32> to vector<1x1x24xf32>
    %c0_12 = arith.constant 0 : index
    %c0_13 = arith.constant 0 : index
    %23 = vector.load %arg6[%c0_12, %c0_13] : memref<4x32xf32, #tpu.memory_space<vmem>>, vector<1x32xf32>
    %24 = vector.shape_cast %23 : vector<1x32xf32> to vector<32xf32>
    %c0_14 = arith.constant 0 : index
    %c0_15 = arith.constant 0 : index
    %25 = vector.load %arg7[%c0_14, %c0_15] : memref<4x32xf32, #tpu.memory_space<vmem>>, vector<1x32xf32>
    %26 = vector.shape_cast %25 : vector<1x32xf32> to vector<32xf32>
    %cst_16 = arith.constant dense<0.000000e+00> : vector<48xf32>
    %27 = vector.multi_reduction <add>, %15, %cst_16 [1] : vector<48x32xf32> to vector<48xf32>
    %28 = vector.shape_cast %27 : vector<48xf32> to vector<48x1xf32>
    %cst_17 = arith.constant 3.200000e+01 : f32
    %29 = vector.broadcast %cst_17 : f32 to vector<48x1xf32>
    %30 = arith.divf %28, %29 : vector<48x1xf32>
    %31 = vector.broadcast %30 : vector<48x1xf32> to vector<48x32xf32>
    %32 = arith.subf %15, %31 : vector<48x32xf32>
    %33 = arith.mulf %32, %32 : vector<48x32xf32>
    %cst_18 = arith.constant dense<0.000000e+00> : vector<48xf32>
    %34 = vector.multi_reduction <add>, %33, %cst_18 [1] : vector<48x32xf32> to vector<48xf32>
    %35 = vector.shape_cast %34 : vector<48xf32> to vector<48x1xf32>
    %cst_19 = arith.constant 3.200000e+01 : f32
    %36 = vector.broadcast %cst_19 : f32 to vector<48x1xf32>
    %37 = arith.divf %35, %36 : vector<48x1xf32>
    %38 = vector.broadcast %30 : vector<48x1xf32> to vector<48x32xf32>
    %39 = arith.subf %15, %38 : vector<48x32xf32>
    %cst_20 = arith.constant 9.99999997E-7 : f32
    %40 = vector.broadcast %cst_20 : f32 to vector<48x1xf32>
    %41 = arith.addf %37, %40 : vector<48x1xf32>
    %42 = math.rsqrt %41 : vector<48x1xf32>
    %43 = vector.broadcast %42 : vector<48x1xf32> to vector<48x32xf32>
    %44 = arith.mulf %39, %43 : vector<48x32xf32>
    %45 = vector.shape_cast %24 : vector<32xf32> to vector<1x32xf32>
    %46 = vector.broadcast %45 : vector<1x32xf32> to vector<48x32xf32>
    %47 = arith.mulf %44, %46 : vector<48x32xf32>
    %48 = vector.shape_cast %26 : vector<32xf32> to vector<1x32xf32>
    %49 = vector.broadcast %48 : vector<1x32xf32> to vector<48x32xf32>
    %50 = arith.addf %47, %49 : vector<48x32xf32>
    %51 = arith.truncf %50 : vector<48x32xf32> to vector<48x32xbf16>
    %c0_21 = arith.constant 0 : index
    %c0_22 = arith.constant 0 : index
    %c0_23 = arith.constant 0 : index
    %52 = vector.load %arg8[%c0_21, %c0_22, %c0_23] : memref<4x32x32xbf16, #tpu.memory_space<vmem>>, vector<1x32x32xbf16>
    %53 = vector.shape_cast %52 : vector<1x32x32xbf16> to vector<32x32xbf16>
    %cst_24 = arith.constant dense<0.000000e+00> : vector<48x32xf32>
    %54 = tpu.matmul %51, %53, %cst_24 {dimension_numbers = #tpu.dot_dimension_numbers<[1], [0], [0], [1], [0, 0, 1, 1], [], []>} : vector<48x32xbf16>, vector<32x32xbf16>, vector<48x32xf32> -> vector<48x32xf32>
    %c0_25 = arith.constant 0 : index
    %c0_26 = arith.constant 0 : index
    %55 = vector.load %arg11[%c0_25, %c0_26] : memref<4x32xf32, #tpu.memory_space<vmem>>, vector<1x32xf32>
    %56 = vector.shape_cast %55 : vector<1x32xf32> to vector<32xf32>
    %57 = vector.shape_cast %56 : vector<32xf32> to vector<1x32xf32>
    %58 = vector.broadcast %57 : vector<1x32xf32> to vector<48x32xf32>
    %59 = arith.addf %54, %58 : vector<48x32xf32>
    %c0_27 = arith.constant 0 : index
    %c0_28 = arith.constant 0 : index
    %c0_29 = arith.constant 0 : index
    %60 = vector.load %arg9[%c0_27, %c0_28, %c0_29] : memref<4x32x32xbf16, #tpu.memory_space<vmem>>, vector<1x32x32xbf16>
    %61 = vector.shape_cast %60 : vector<1x32x32xbf16> to vector<32x32xbf16>
    %cst_30 = arith.constant dense<0.000000e+00> : vector<48x32xf32>
    %62 = tpu.matmul %51, %61, %cst_30 {dimension_numbers = #tpu.dot_dimension_numbers<[1], [0], [0], [1], [0, 0, 1, 1], [], []>} : vector<48x32xbf16>, vector<32x32xbf16>, vector<48x32xf32> -> vector<48x32xf32>
    %c0_31 = arith.constant 0 : index
    %c0_32 = arith.constant 0 : index
    %63 = vector.load %arg12[%c0_31, %c0_32] : memref<4x32xf32, #tpu.memory_space<vmem>>, vector<1x32xf32>
    %64 = vector.shape_cast %63 : vector<1x32xf32> to vector<32xf32>
    %65 = vector.shape_cast %64 : vector<32xf32> to vector<1x32xf32>
    %66 = vector.broadcast %65 : vector<1x32xf32> to vector<48x32xf32>
    %67 = arith.addf %62, %66 : vector<48x32xf32>
    %c0_33 = arith.constant 0 : index
    %c0_34 = arith.constant 0 : index
    %c0_35 = arith.constant 0 : index
    %68 = vector.load %arg10[%c0_33, %c0_34, %c0_35] : memref<4x32x32xbf16, #tpu.memory_space<vmem>>, vector<1x32x32xbf16>
    %69 = vector.shape_cast %68 : vector<1x32x32xbf16> to vector<32x32xbf16>
    %cst_36 = arith.constant dense<0.000000e+00> : vector<48x32xf32>
    %70 = tpu.matmul %51, %69, %cst_36 {dimension_numbers = #tpu.dot_dimension_numbers<[1], [0], [0], [1], [0, 0, 1, 1], [], []>} : vector<48x32xbf16>, vector<32x32xbf16>, vector<48x32xf32> -> vector<48x32xf32>
    %c0_37 = arith.constant 0 : index
    %c0_38 = arith.constant 0 : index
    %71 = vector.load %arg13[%c0_37, %c0_38] : memref<4x32xf32, #tpu.memory_space<vmem>>, vector<1x32xf32>
    %72 = vector.shape_cast %71 : vector<1x32xf32> to vector<32xf32>
    %73 = vector.shape_cast %72 : vector<32xf32> to vector<1x32xf32>
    %74 = vector.broadcast %73 : vector<1x32xf32> to vector<48x32xf32>
    %75 = arith.addf %70, %74 : vector<48x32xf32>
    %76 = vector.shape_cast %59 : vector<48x32xf32> to vector<2x24x32xf32>
    %77 = arith.truncf %76 : vector<2x24x32xf32> to vector<2x24x32xbf16>
    %78 = vector.shape_cast %67 : vector<48x32xf32> to vector<2x24x32xf32>
    %79 = arith.truncf %78 : vector<2x24x32xf32> to vector<2x24x32xbf16>
    %80 = vector.shape_cast %75 : vector<48x32xf32> to vector<2x24x32xf32>
    %81 = arith.truncf %80 : vector<2x24x32xf32> to vector<2x24x32xbf16>
    %82 = vector.extract_strided_slice %77 {offsets = [0, 0, 0], sizes = [2, 24, 16], strides = [1, 1, 1]} : vector<2x24x32xbf16> to vector<2x24x16xbf16>
    %83 = vector.extract_strided_slice %79 {offsets = [0, 0, 0], sizes = [2, 24, 16], strides = [1, 1, 1]} : vector<2x24x32xbf16> to vector<2x24x16xbf16>
    "tpu.trace_start"() <{level = 10 : i32, message = "bqd,bkd->bqk"}> : () -> ()
    %cst_39 = arith.constant dense<0.000000e+00> : vector<2x24x24xf32>
    %84 = tpu.matmul %82, %83, %cst_39 {dimension_numbers = #tpu.dot_dimension_numbers<[2], [2], [1], [1], [0, 0, 0, 1, 1, 1], [0], [0]>} : vector<2x24x16xbf16>, vector<2x24x16xbf16>, vector<2x24x24xf32> -> vector<2x24x24xf32>
    "tpu.trace_stop"() : () -> ()
    %cst_40 = arith.constant 2.500000e-01 : f32
    %85 = vector.broadcast %cst_40 : f32 to vector<2x24x24xf32>
    %86 = arith.mulf %84, %85 : vector<2x24x24xf32>
    %87 = vector.broadcast %22 : vector<1x1x24xf32> to vector<2x24x24xf32>
    %88 = arith.addf %86, %87 : vector<2x24x24xf32>
    %cst_41 = arith.constant dense<0xFF800000> : vector<2x24xf32>
    %89 = vector.multi_reduction <maximumf>, %88, %cst_41 [2] : vector<2x24x24xf32> to vector<2x24xf32>
    %90 = vector.shape_cast %89 : vector<2x24xf32> to vector<2x24x1xf32>
    %91 = vector.broadcast %90 : vector<2x24x1xf32> to vector<2x24x24xf32>
    %92 = arith.subf %88, %91 : vector<2x24x24xf32>
    %93 = math.exp %92 : vector<2x24x24xf32>
    %cst_42 = arith.constant dense<0.000000e+00> : vector<2x24xf32>
    %94 = vector.multi_reduction <add>, %93, %cst_42 [2] : vector<2x24x24xf32> to vector<2x24xf32>
    %95 = vector.shape_cast %94 : vector<2x24xf32> to vector<2x24x1xf32>
    %96 = tpu.reciprocal %95 {approx = true} : vector<2x24x1xf32> -> vector<2x24x1xf32>
    %97 = vector.broadcast %96 : vector<2x24x1xf32> to vector<2x24x24xf32>
    %98 = arith.mulf %93, %97 : vector<2x24x24xf32>
    %99 = arith.truncf %98 : vector<2x24x24xf32> to vector<2x24x24xbf16>
    %100 = vector.extract_strided_slice %81 {offsets = [0, 0, 0], sizes = [2, 24, 16], strides = [1, 1, 1]} : vector<2x24x32xbf16> to vector<2x24x16xbf16>
    "tpu.trace_start"() <{level = 10 : i32, message = "bqk,bkd->bqd"}> : () -> ()
    %cst_43 = arith.constant dense<0.000000e+00> : vector<2x24x16xf32>
    %101 = tpu.matmul %99, %100, %cst_43 {dimension_numbers = #tpu.dot_dimension_numbers<[2], [1], [1], [2], [0, 0, 0, 1, 1, 2], [0], [0]>} : vector<2x24x24xbf16>, vector<2x24x16xbf16>, vector<2x24x16xf32> -> vector<2x24x16xf32>
    "tpu.trace_stop"() : () -> ()
    %102 = vector.extract_strided_slice %77 {offsets = [0, 0, 16], sizes = [2, 24, 16], strides = [1, 1, 1]} : vector<2x24x32xbf16> to vector<2x24x16xbf16>
    %103 = vector.extract_strided_slice %79 {offsets = [0, 0, 16], sizes = [2, 24, 16], strides = [1, 1, 1]} : vector<2x24x32xbf16> to vector<2x24x16xbf16>
    "tpu.trace_start"() <{level = 10 : i32, message = "bqd,bkd->bqk"}> : () -> ()
    %cst_44 = arith.constant dense<0.000000e+00> : vector<2x24x24xf32>
    %104 = tpu.matmul %102, %103, %cst_44 {dimension_numbers = #tpu.dot_dimension_numbers<[2], [2], [1], [1], [0, 0, 0, 1, 1, 1], [0], [0]>} : vector<2x24x16xbf16>, vector<2x24x16xbf16>, vector<2x24x24xf32> -> vector<2x24x24xf32>
    "tpu.trace_stop"() : () -> ()
    %cst_45 = arith.constant 2.500000e-01 : f32
    %105 = vector.broadcast %cst_45 : f32 to vector<2x24x24xf32>
    %106 = arith.mulf %104, %105 : vector<2x24x24xf32>
    %107 = vector.broadcast %22 : vector<1x1x24xf32> to vector<2x24x24xf32>
    %108 = arith.addf %106, %107 : vector<2x24x24xf32>
    %cst_46 = arith.constant dense<0xFF800000> : vector<2x24xf32>
    %109 = vector.multi_reduction <maximumf>, %108, %cst_46 [2] : vector<2x24x24xf32> to vector<2x24xf32>
    %110 = vector.shape_cast %109 : vector<2x24xf32> to vector<2x24x1xf32>
    %111 = vector.broadcast %110 : vector<2x24x1xf32> to vector<2x24x24xf32>
    %112 = arith.subf %108, %111 : vector<2x24x24xf32>
    %113 = math.exp %112 : vector<2x24x24xf32>
    %cst_47 = arith.constant dense<0.000000e+00> : vector<2x24xf32>
    %114 = vector.multi_reduction <add>, %113, %cst_47 [2] : vector<2x24x24xf32> to vector<2x24xf32>
    %115 = vector.shape_cast %114 : vector<2x24xf32> to vector<2x24x1xf32>
    %116 = tpu.reciprocal %115 {approx = true} : vector<2x24x1xf32> -> vector<2x24x1xf32>
    %117 = vector.broadcast %116 : vector<2x24x1xf32> to vector<2x24x24xf32>
    %118 = arith.mulf %113, %117 : vector<2x24x24xf32>
    %119 = arith.truncf %118 : vector<2x24x24xf32> to vector<2x24x24xbf16>
    %120 = vector.extract_strided_slice %81 {offsets = [0, 0, 16], sizes = [2, 24, 16], strides = [1, 1, 1]} : vector<2x24x32xbf16> to vector<2x24x16xbf16>
    "tpu.trace_start"() <{level = 10 : i32, message = "bqk,bkd->bqd"}> : () -> ()
    %cst_48 = arith.constant dense<0.000000e+00> : vector<2x24x16xf32>
    %121 = tpu.matmul %119, %120, %cst_48 {dimension_numbers = #tpu.dot_dimension_numbers<[2], [1], [1], [2], [0, 0, 0, 1, 1, 2], [0], [0]>} : vector<2x24x24xbf16>, vector<2x24x16xbf16>, vector<2x24x16xf32> -> vector<2x24x16xf32>
    "tpu.trace_stop"() : () -> ()
    %122 = tpu.concatenate %101, %121 in 2 : vector<2x24x16xf32>, vector<2x24x16xf32> -> vector<2x24x32xf32>
    %123 = vector.shape_cast %122 : vector<2x24x32xf32> to vector<48x32xf32>
    %124 = arith.truncf %123 : vector<48x32xf32> to vector<48x32xbf16>
    %c0_49 = arith.constant 0 : index
    %c0_50 = arith.constant 0 : index
    %c0_51 = arith.constant 0 : index
    %125 = vector.load %arg14[%c0_49, %c0_50, %c0_51] : memref<4x32x32xbf16, #tpu.memory_space<vmem>>, vector<1x32x32xbf16>
    %126 = vector.shape_cast %125 : vector<1x32x32xbf16> to vector<32x32xbf16>
    %cst_52 = arith.constant dense<0.000000e+00> : vector<48x32xf32>
    %127 = tpu.matmul %124, %126, %cst_52 {dimension_numbers = #tpu.dot_dimension_numbers<[1], [0], [0], [1], [0, 0, 1, 1], [], []>} : vector<48x32xbf16>, vector<32x32xbf16>, vector<48x32xf32> -> vector<48x32xf32>
    %c0_53 = arith.constant 0 : index
    %c0_54 = arith.constant 0 : index
    %128 = vector.load %arg15[%c0_53, %c0_54] : memref<4x32xf32, #tpu.memory_space<vmem>>, vector<1x32xf32>
    %129 = vector.shape_cast %128 : vector<1x32xf32> to vector<32xf32>
    %130 = vector.shape_cast %129 : vector<32xf32> to vector<1x32xf32>
    %131 = vector.broadcast %130 : vector<1x32xf32> to vector<48x32xf32>
    %132 = arith.addf %127, %131 : vector<48x32xf32>
    %133 = arith.addf %15, %132 : vector<48x32xf32>
    %c0_55 = arith.constant 0 : index
    %c0_56 = arith.constant 0 : index
    %134 = vector.load %arg16[%c0_55, %c0_56] : memref<4x32xf32, #tpu.memory_space<vmem>>, vector<1x32xf32>
    %135 = vector.shape_cast %134 : vector<1x32xf32> to vector<32xf32>
    %c0_57 = arith.constant 0 : index
    %c0_58 = arith.constant 0 : index
    %136 = vector.load %arg17[%c0_57, %c0_58] : memref<4x32xf32, #tpu.memory_space<vmem>>, vector<1x32xf32>
    %137 = vector.shape_cast %136 : vector<1x32xf32> to vector<32xf32>
    %cst_59 = arith.constant dense<0.000000e+00> : vector<48xf32>
    %138 = vector.multi_reduction <add>, %133, %cst_59 [1] : vector<48x32xf32> to vector<48xf32>
    %139 = vector.shape_cast %138 : vector<48xf32> to vector<48x1xf32>
    %cst_60 = arith.constant 3.200000e+01 : f32
    %140 = vector.broadcast %cst_60 : f32 to vector<48x1xf32>
    %141 = arith.divf %139, %140 : vector<48x1xf32>
    %142 = vector.broadcast %141 : vector<48x1xf32> to vector<48x32xf32>
    %143 = arith.subf %133, %142 : vector<48x32xf32>
    %144 = arith.mulf %143, %143 : vector<48x32xf32>
    %cst_61 = arith.constant dense<0.000000e+00> : vector<48xf32>
    %145 = vector.multi_reduction <add>, %144, %cst_61 [1] : vector<48x32xf32> to vector<48xf32>
    %146 = vector.shape_cast %145 : vector<48xf32> to vector<48x1xf32>
    %cst_62 = arith.constant 3.200000e+01 : f32
    %147 = vector.broadcast %cst_62 : f32 to vector<48x1xf32>
    %148 = arith.divf %146, %147 : vector<48x1xf32>
    %149 = vector.broadcast %141 : vector<48x1xf32> to vector<48x32xf32>
    %150 = arith.subf %133, %149 : vector<48x32xf32>
    %cst_63 = arith.constant 9.99999997E-7 : f32
    %151 = vector.broadcast %cst_63 : f32 to vector<48x1xf32>
    %152 = arith.addf %148, %151 : vector<48x1xf32>
    %153 = math.rsqrt %152 : vector<48x1xf32>
    %154 = vector.broadcast %153 : vector<48x1xf32> to vector<48x32xf32>
    %155 = arith.mulf %150, %154 : vector<48x32xf32>
    %156 = vector.shape_cast %135 : vector<32xf32> to vector<1x32xf32>
    %157 = vector.broadcast %156 : vector<1x32xf32> to vector<48x32xf32>
    %158 = arith.mulf %155, %157 : vector<48x32xf32>
    %159 = vector.shape_cast %137 : vector<32xf32> to vector<1x32xf32>
    %160 = vector.broadcast %159 : vector<1x32xf32> to vector<48x32xf32>
    %161 = arith.addf %158, %160 : vector<48x32xf32>
    %162 = arith.truncf %161 : vector<48x32xf32> to vector<48x32xbf16>
    %c0_64 = arith.constant 0 : index
    %c0_65 = arith.constant 0 : index
    %c0_66 = arith.constant 0 : index
    %163 = vector.load %arg18[%c0_64, %c0_65, %c0_66] : memref<4x32x128xbf16, #tpu.memory_space<vmem>>, vector<1x32x128xbf16>
    %164 = vector.shape_cast %163 : vector<1x32x128xbf16> to vector<32x128xbf16>
    %cst_67 = arith.constant dense<0.000000e+00> : vector<48x128xf32>
    %165 = tpu.matmul %162, %164, %cst_67 {dimension_numbers = #tpu.dot_dimension_numbers<[1], [0], [0], [1], [0, 0, 1, 1], [], []>} : vector<48x32xbf16>, vector<32x128xbf16>, vector<48x128xf32> -> vector<48x128xf32>
    %c0_68 = arith.constant 0 : index
    %c0_69 = arith.constant 0 : index
    %166 = vector.load %arg19[%c0_68, %c0_69] : memref<4x128xf32, #tpu.memory_space<vmem>>, vector<1x128xf32>
    %167 = vector.shape_cast %166 : vector<1x128xf32> to vector<128xf32>
    %168 = vector.shape_cast %167 : vector<128xf32> to vector<1x128xf32>
    %169 = vector.broadcast %168 : vector<1x128xf32> to vector<48x128xf32>
    %170 = arith.addf %165, %169 : vector<48x128xf32>
    %171 = arith.mulf %170, %170 : vector<48x128xf32>
    %172 = arith.mulf %170, %171 : vector<48x128xf32>
    %cst_70 = arith.constant 4.471500e-02 : f32
    %173 = vector.broadcast %cst_70 : f32 to vector<48x128xf32>
    %174 = arith.mulf %173, %172 : vector<48x128xf32>
    %175 = arith.addf %170, %174 : vector<48x128xf32>
    %cst_71 = arith.constant 0.797884583 : f32
    %176 = vector.broadcast %cst_71 : f32 to vector<48x128xf32>
    %177 = arith.mulf %176, %175 : vector<48x128xf32>
    %178 = math.tanh %177 : vector<48x128xf32>
    %cst_72 = arith.constant 1.000000e+00 : f32
    %179 = vector.broadcast %cst_72 : f32 to vector<48x128xf32>
    %180 = arith.addf %179, %178 : vector<48x128xf32>
    %cst_73 = arith.constant 5.000000e-01 : f32
    %181 = vector.broadcast %cst_73 : f32 to vector<48x128xf32>
    %182 = arith.mulf %181, %180 : vector<48x128xf32>
    %183 = arith.mulf %170, %182 : vector<48x128xf32>
    %184 = arith.truncf %183 : vector<48x128xf32> to vector<48x128xbf16>
    %c0_74 = arith.constant 0 : index
    %c0_75 = arith.constant 0 : index
    %c0_76 = arith.constant 0 : index
    %185 = vector.load %arg20[%c0_74, %c0_75, %c0_76] : memref<4x128x32xbf16, #tpu.memory_space<vmem>>, vector<1x128x32xbf16>
    %186 = vector.shape_cast %185 : vector<1x128x32xbf16> to vector<128x32xbf16>
    %cst_77 = arith.constant dense<0.000000e+00> : vector<48x32xf32>
    %187 = tpu.matmul %184, %186, %cst_77 {dimension_numbers = #tpu.dot_dimension_numbers<[1], [0], [0], [1], [0, 0, 1, 1], [], []>} : vector<48x128xbf16>, vector<128x32xbf16>, vector<48x32xf32> -> vector<48x32xf32>
    %c0_78 = arith.constant 0 : index
    %c0_79 = arith.constant 0 : index
    %188 = vector.load %arg21[%c0_78, %c0_79] : memref<4x32xf32, #tpu.memory_space<vmem>>, vector<1x32xf32>
    %189 = vector.shape_cast %188 : vector<1x32xf32> to vector<32xf32>
    %190 = vector.shape_cast %189 : vector<32xf32> to vector<1x32xf32>
    %191 = vector.broadcast %190 : vector<1x32xf32> to vector<48x32xf32>
    %192 = arith.addf %187, %191 : vector<48x32xf32>
    %193 = arith.addf %133, %192 : vector<48x32xf32>
    %c1 = arith.constant 1 : index
    %c0_80 = arith.constant 0 : index
    %194 = vector.load %arg6[%c1, %c0_80] : memref<4x32xf32, #tpu.memory_space<vmem>>, vector<1x32xf32>
    %195 = vector.shape_cast %194 : vector<1x32xf32> to vector<32xf32>
    %c1_81 = arith.constant 1 : index
    %c0_82 = arith.constant 0 : index
    %196 = vector.load %arg7[%c1_81, %c0_82] : memref<4x32xf32, #tpu.memory_space<vmem>>, vector<1x32xf32>
    %197 = vector.shape_cast %196 : vector<1x32xf32> to vector<32xf32>
    %cst_83 = arith.constant dense<0.000000e+00> : vector<48xf32>
    %198 = vector.multi_reduction <add>, %193, %cst_83 [1] : vector<48x32xf32> to vector<48xf32>
    %199 = vector.shape_cast %198 : vector<48xf32> to vector<48x1xf32>
    %cst_84 = arith.constant 3.200000e+01 : f32
    %200 = vector.broadcast %cst_84 : f32 to vector<48x1xf32>
    %201 = arith.divf %199, %200 : vector<48x1xf32>
    %202 = vector.broadcast %201 : vector<48x1xf32> to vector<48x32xf32>
    %203 = arith.subf %193, %202 : vector<48x32xf32>
    %204 = arith.mulf %203, %203 : vector<48x32xf32>
    %cst_85 = arith.constant dense<0.000000e+00> : vector<48xf32>
    %205 = vector.multi_reduction <add>, %204, %cst_85 [1] : vector<48x32xf32> to vector<48xf32>
    %206 = vector.shape_cast %205 : vector<48xf32> to vector<48x1xf32>
    %cst_86 = arith.constant 3.200000e+01 : f32
    %207 = vector.broadcast %cst_86 : f32 to vector<48x1xf32>
    %208 = arith.divf %206, %207 : vector<48x1xf32>
    %209 = vector.broadcast %201 : vector<48x1xf32> to vector<48x32xf32>
    %210 = arith.subf %193, %209 : vector<48x32xf32>
    %cst_87 = arith.constant 9.99999997E-7 : f32
    %211 = vector.broadcast %cst_87 : f32 to vector<48x1xf32>
    %212 = arith.addf %208, %211 : vector<48x1xf32>
    %213 = math.rsqrt %212 : vector<48x1xf32>
    %214 = vector.broadcast %213 : vector<48x1xf32> to vector<48x32xf32>
    %215 = arith.mulf %210, %214 : vector<48x32xf32>
    %216 = vector.shape_cast %195 : vector<32xf32> to vector<1x32xf32>
    %217 = vector.broadcast %216 : vector<1x32xf32> to vector<48x32xf32>
    %218 = arith.mulf %215, %217 : vector<48x32xf32>
    %219 = vector.shape_cast %197 : vector<32xf32> to vector<1x32xf32>
    %220 = vector.broadcast %219 : vector<1x32xf32> to vector<48x32xf32>
    %221 = arith.addf %218, %220 : vector<48x32xf32>
    %222 = arith.truncf %221 : vector<48x32xf32> to vector<48x32xbf16>
    %c1_88 = arith.constant 1 : index
    %c0_89 = arith.constant 0 : index
    %c0_90 = arith.constant 0 : index
    %223 = vector.load %arg8[%c1_88, %c0_89, %c0_90] : memref<4x32x32xbf16, #tpu.memory_space<vmem>>, vector<1x32x32xbf16>
    %224 = vector.shape_cast %223 : vector<1x32x32xbf16> to vector<32x32xbf16>
    %cst_91 = arith.constant dense<0.000000e+00> : vector<48x32xf32>
    %225 = tpu.matmul %222, %224, %cst_91 {dimension_numbers = #tpu.dot_dimension_numbers<[1], [0], [0], [1], [0, 0, 1, 1], [], []>} : vector<48x32xbf16>, vector<32x32xbf16>, vector<48x32xf32> -> vector<48x32xf32>
    %c1_92 = arith.constant 1 : index
    %c0_93 = arith.constant 0 : index
    %226 = vector.load %arg11[%c1_92, %c0_93] : memref<4x32xf32, #tpu.memory_space<vmem>>, vector<1x32xf32>
    %227 = vector.shape_cast %226 : vector<1x32xf32> to vector<32xf32>
    %228 = vector.shape_cast %227 : vector<32xf32> to vector<1x32xf32>
    %229 = vector.broadcast %228 : vector<1x32xf32> to vector<48x32xf32>
    %230 = arith.addf %225, %229 : vector<48x32xf32>
    %c1_94 = arith.constant 1 : index
    %c0_95 = arith.constant 0 : index
    %c0_96 = arith.constant 0 : index
    %231 = vector.load %arg9[%c1_94, %c0_95, %c0_96] : memref<4x32x32xbf16, #tpu.memory_space<vmem>>, vector<1x32x32xbf16>
    %232 = vector.shape_cast %231 : vector<1x32x32xbf16> to vector<32x32xbf16>
    %cst_97 = arith.constant dense<0.000000e+00> : vector<48x32xf32>
    %233 = tpu.matmul %222, %232, %cst_97 {dimension_numbers = #tpu.dot_dimension_numbers<[1], [0], [0], [1], [0, 0, 1, 1], [], []>} : vector<48x32xbf16>, vector<32x32xbf16>, vector<48x32xf32> -> vector<48x32xf32>
    %c1_98 = arith.constant 1 : index
    %c0_99 = arith.constant 0 : index
    %234 = vector.load %arg12[%c1_98, %c0_99] : memref<4x32xf32, #tpu.memory_space<vmem>>, vector<1x32xf32>
    %235 = vector.shape_cast %234 : vector<1x32xf32> to vector<32xf32>
    %236 = vector.shape_cast %235 : vector<32xf32> to vector<1x32xf32>
    %237 = vector.broadcast %236 : vector<1x32xf32> to vector<48x32xf32>
    %238 = arith.addf %233, %237 : vector<48x32xf32>
    %c1_100 = arith.constant 1 : index
    %c0_101 = arith.constant 0 : index
    %c0_102 = arith.constant 0 : index
    %239 = vector.load %arg10[%c1_100, %c0_101, %c0_102] : memref<4x32x32xbf16, #tpu.memory_space<vmem>>, vector<1x32x32xbf16>
    %240 = vector.shape_cast %239 : vector<1x32x32xbf16> to vector<32x32xbf16>
    %cst_103 = arith.constant dense<0.000000e+00> : vector<48x32xf32>
    %241 = tpu.matmul %222, %240, %cst_103 {dimension_numbers = #tpu.dot_dimension_numbers<[1], [0], [0], [1], [0, 0, 1, 1], [], []>} : vector<48x32xbf16>, vector<32x32xbf16>, vector<48x32xf32> -> vector<48x32xf32>
    %c1_104 = arith.constant 1 : index
    %c0_105 = arith.constant 0 : index
    %242 = vector.load %arg13[%c1_104, %c0_105] : memref<4x32xf32, #tpu.memory_space<vmem>>, vector<1x32xf32>
    %243 = vector.shape_cast %242 : vector<1x32xf32> to vector<32xf32>
    %244 = vector.shape_cast %243 : vector<32xf32> to vector<1x32xf32>
    %245 = vector.broadcast %244 : vector<1x32xf32> to vector<48x32xf32>
    %246 = arith.addf %241, %245 : vector<48x32xf32>
    %247 = vector.shape_cast %230 : vector<48x32xf32> to vector<2x24x32xf32>
    %248 = arith.truncf %247 : vector<2x24x32xf32> to vector<2x24x32xbf16>
    %249 = vector.shape_cast %238 : vector<48x32xf32> to vector<2x24x32xf32>
    %250 = arith.truncf %249 : vector<2x24x32xf32> to vector<2x24x32xbf16>
    %251 = vector.shape_cast %246 : vector<48x32xf32> to vector<2x24x32xf32>
    %252 = arith.truncf %251 : vector<2x24x32xf32> to vector<2x24x32xbf16>
    %253 = vector.extract_strided_slice %248 {offsets = [0, 0, 0], sizes = [2, 24, 16], strides = [1, 1, 1]} : vector<2x24x32xbf16> to vector<2x24x16xbf16>
    %254 = vector.extract_strided_slice %250 {offsets = [0, 0, 0], sizes = [2, 24, 16], strides = [1, 1, 1]} : vector<2x24x32xbf16> to vector<2x24x16xbf16>
    "tpu.trace_start"() <{level = 10 : i32, message = "bqd,bkd->bqk"}> : () -> ()
    %cst_106 = arith.constant dense<0.000000e+00> : vector<2x24x24xf32>
    %255 = tpu.matmul %253, %254, %cst_106 {dimension_numbers = #tpu.dot_dimension_numbers<[2], [2], [1], [1], [0, 0, 0, 1, 1, 1], [0], [0]>} : vector<2x24x16xbf16>, vector<2x24x16xbf16>, vector<2x24x24xf32> -> vector<2x24x24xf32>
    "tpu.trace_stop"() : () -> ()
    %cst_107 = arith.constant 2.500000e-01 : f32
    %256 = vector.broadcast %cst_107 : f32 to vector<2x24x24xf32>
    %257 = arith.mulf %255, %256 : vector<2x24x24xf32>
    %258 = vector.broadcast %22 : vector<1x1x24xf32> to vector<2x24x24xf32>
    %259 = arith.addf %257, %258 : vector<2x24x24xf32>
    %cst_108 = arith.constant dense<0xFF800000> : vector<2x24xf32>
    %260 = vector.multi_reduction <maximumf>, %259, %cst_108 [2] : vector<2x24x24xf32> to vector<2x24xf32>
    %261 = vector.shape_cast %260 : vector<2x24xf32> to vector<2x24x1xf32>
    %262 = vector.broadcast %261 : vector<2x24x1xf32> to vector<2x24x24xf32>
    %263 = arith.subf %259, %262 : vector<2x24x24xf32>
    %264 = math.exp %263 : vector<2x24x24xf32>
    %cst_109 = arith.constant dense<0.000000e+00> : vector<2x24xf32>
    %265 = vector.multi_reduction <add>, %264, %cst_109 [2] : vector<2x24x24xf32> to vector<2x24xf32>
    %266 = vector.shape_cast %265 : vector<2x24xf32> to vector<2x24x1xf32>
    %267 = tpu.reciprocal %266 {approx = true} : vector<2x24x1xf32> -> vector<2x24x1xf32>
    %268 = vector.broadcast %267 : vector<2x24x1xf32> to vector<2x24x24xf32>
    %269 = arith.mulf %264, %268 : vector<2x24x24xf32>
    %270 = arith.truncf %269 : vector<2x24x24xf32> to vector<2x24x24xbf16>
    %271 = vector.extract_strided_slice %252 {offsets = [0, 0, 0], sizes = [2, 24, 16], strides = [1, 1, 1]} : vector<2x24x32xbf16> to vector<2x24x16xbf16>
    "tpu.trace_start"() <{level = 10 : i32, message = "bqk,bkd->bqd"}> : () -> ()
    %cst_110 = arith.constant dense<0.000000e+00> : vector<2x24x16xf32>
    %272 = tpu.matmul %270, %271, %cst_110 {dimension_numbers = #tpu.dot_dimension_numbers<[2], [1], [1], [2], [0, 0, 0, 1, 1, 2], [0], [0]>} : vector<2x24x24xbf16>, vector<2x24x16xbf16>, vector<2x24x16xf32> -> vector<2x24x16xf32>
    "tpu.trace_stop"() : () -> ()
    %273 = vector.extract_strided_slice %248 {offsets = [0, 0, 16], sizes = [2, 24, 16], strides = [1, 1, 1]} : vector<2x24x32xbf16> to vector<2x24x16xbf16>
    %274 = vector.extract_strided_slice %250 {offsets = [0, 0, 16], sizes = [2, 24, 16], strides = [1, 1, 1]} : vector<2x24x32xbf16> to vector<2x24x16xbf16>
    "tpu.trace_start"() <{level = 10 : i32, message = "bqd,bkd->bqk"}> : () -> ()
    %cst_111 = arith.constant dense<0.000000e+00> : vector<2x24x24xf32>
    %275 = tpu.matmul %273, %274, %cst_111 {dimension_numbers = #tpu.dot_dimension_numbers<[2], [2], [1], [1], [0, 0, 0, 1, 1, 1], [0], [0]>} : vector<2x24x16xbf16>, vector<2x24x16xbf16>, vector<2x24x24xf32> -> vector<2x24x24xf32>
    "tpu.trace_stop"() : () -> ()
    %cst_112 = arith.constant 2.500000e-01 : f32
    %276 = vector.broadcast %cst_112 : f32 to vector<2x24x24xf32>
    %277 = arith.mulf %275, %276 : vector<2x24x24xf32>
    %278 = vector.broadcast %22 : vector<1x1x24xf32> to vector<2x24x24xf32>
    %279 = arith.addf %277, %278 : vector<2x24x24xf32>
    %cst_113 = arith.constant dense<0xFF800000> : vector<2x24xf32>
    %280 = vector.multi_reduction <maximumf>, %279, %cst_113 [2] : vector<2x24x24xf32> to vector<2x24xf32>
    %281 = vector.shape_cast %280 : vector<2x24xf32> to vector<2x24x1xf32>
    %282 = vector.broadcast %281 : vector<2x24x1xf32> to vector<2x24x24xf32>
    %283 = arith.subf %279, %282 : vector<2x24x24xf32>
    %284 = math.exp %283 : vector<2x24x24xf32>
    %cst_114 = arith.constant dense<0.000000e+00> : vector<2x24xf32>
    %285 = vector.multi_reduction <add>, %284, %cst_114 [2] : vector<2x24x24xf32> to vector<2x24xf32>
    %286 = vector.shape_cast %285 : vector<2x24xf32> to vector<2x24x1xf32>
    %287 = tpu.reciprocal %286 {approx = true} : vector<2x24x1xf32> -> vector<2x24x1xf32>
    %288 = vector.broadcast %287 : vector<2x24x1xf32> to vector<2x24x24xf32>
    %289 = arith.mulf %284, %288 : vector<2x24x24xf32>
    %290 = arith.truncf %289 : vector<2x24x24xf32> to vector<2x24x24xbf16>
    %291 = vector.extract_strided_slice %252 {offsets = [0, 0, 16], sizes = [2, 24, 16], strides = [1, 1, 1]} : vector<2x24x32xbf16> to vector<2x24x16xbf16>
    "tpu.trace_start"() <{level = 10 : i32, message = "bqk,bkd->bqd"}> : () -> ()
    %cst_115 = arith.constant dense<0.000000e+00> : vector<2x24x16xf32>
    %292 = tpu.matmul %290, %291, %cst_115 {dimension_numbers = #tpu.dot_dimension_numbers<[2], [1], [1], [2], [0, 0, 0, 1, 1, 2], [0], [0]>} : vector<2x24x24xbf16>, vector<2x24x16xbf16>, vector<2x24x16xf32> -> vector<2x24x16xf32>
    "tpu.trace_stop"() : () -> ()
    %293 = tpu.concatenate %272, %292 in 2 : vector<2x24x16xf32>, vector<2x24x16xf32> -> vector<2x24x32xf32>
    %294 = vector.shape_cast %293 : vector<2x24x32xf32> to vector<48x32xf32>
    %295 = arith.truncf %294 : vector<48x32xf32> to vector<48x32xbf16>
    %c1_116 = arith.constant 1 : index
    %c0_117 = arith.constant 0 : index
    %c0_118 = arith.constant 0 : index
    %296 = vector.load %arg14[%c1_116, %c0_117, %c0_118] : memref<4x32x32xbf16, #tpu.memory_space<vmem>>, vector<1x32x32xbf16>
    %297 = vector.shape_cast %296 : vector<1x32x32xbf16> to vector<32x32xbf16>
    %cst_119 = arith.constant dense<0.000000e+00> : vector<48x32xf32>
    %298 = tpu.matmul %295, %297, %cst_119 {dimension_numbers = #tpu.dot_dimension_numbers<[1], [0], [0], [1], [0, 0, 1, 1], [], []>} : vector<48x32xbf16>, vector<32x32xbf16>, vector<48x32xf32> -> vector<48x32xf32>
    %c1_120 = arith.constant 1 : index
    %c0_121 = arith.constant 0 : index
    %299 = vector.load %arg15[%c1_120, %c0_121] : memref<4x32xf32, #tpu.memory_space<vmem>>, vector<1x32xf32>
    %300 = vector.shape_cast %299 : vector<1x32xf32> to vector<32xf32>
    %301 = vector.shape_cast %300 : vector<32xf32> to vector<1x32xf32>
    %302 = vector.broadcast %301 : vector<1x32xf32> to vector<48x32xf32>
    %303 = arith.addf %298, %302 : vector<48x32xf32>
    %304 = arith.addf %193, %303 : vector<48x32xf32>
    %c1_122 = arith.constant 1 : index
    %c0_123 = arith.constant 0 : index
    %305 = vector.load %arg16[%c1_122, %c0_123] : memref<4x32xf32, #tpu.memory_space<vmem>>, vector<1x32xf32>
    %306 = vector.shape_cast %305 : vector<1x32xf32> to vector<32xf32>
    %c1_124 = arith.constant 1 : index
    %c0_125 = arith.constant 0 : index
    %307 = vector.load %arg17[%c1_124, %c0_125] : memref<4x32xf32, #tpu.memory_space<vmem>>, vector<1x32xf32>
    %308 = vector.shape_cast %307 : vector<1x32xf32> to vector<32xf32>
    %cst_126 = arith.constant dense<0.000000e+00> : vector<48xf32>
    %309 = vector.multi_reduction <add>, %304, %cst_126 [1] : vector<48x32xf32> to vector<48xf32>
    %310 = vector.shape_cast %309 : vector<48xf32> to vector<48x1xf32>
    %cst_127 = arith.constant 3.200000e+01 : f32
    %311 = vector.broadcast %cst_127 : f32 to vector<48x1xf32>
    %312 = arith.divf %310, %311 : vector<48x1xf32>
    %313 = vector.broadcast %312 : vector<48x1xf32> to vector<48x32xf32>
    %314 = arith.subf %304, %313 : vector<48x32xf32>
    %315 = arith.mulf %314, %314 : vector<48x32xf32>
    %cst_128 = arith.constant dense<0.000000e+00> : vector<48xf32>
    %316 = vector.multi_reduction <add>, %315, %cst_128 [1] : vector<48x32xf32> to vector<48xf32>
    %317 = vector.shape_cast %316 : vector<48xf32> to vector<48x1xf32>
    %cst_129 = arith.constant 3.200000e+01 : f32
    %318 = vector.broadcast %cst_129 : f32 to vector<48x1xf32>
    %319 = arith.divf %317, %318 : vector<48x1xf32>
    %320 = vector.broadcast %312 : vector<48x1xf32> to vector<48x32xf32>
    %321 = arith.subf %304, %320 : vector<48x32xf32>
    %cst_130 = arith.constant 9.99999997E-7 : f32
    %322 = vector.broadcast %cst_130 : f32 to vector<48x1xf32>
    %323 = arith.addf %319, %322 : vector<48x1xf32>
    %324 = math.rsqrt %323 : vector<48x1xf32>
    %325 = vector.broadcast %324 : vector<48x1xf32> to vector<48x32xf32>
    %326 = arith.mulf %321, %325 : vector<48x32xf32>
    %327 = vector.shape_cast %306 : vector<32xf32> to vector<1x32xf32>
    %328 = vector.broadcast %327 : vector<1x32xf32> to vector<48x32xf32>
    %329 = arith.mulf %326, %328 : vector<48x32xf32>
    %330 = vector.shape_cast %308 : vector<32xf32> to vector<1x32xf32>
    %331 = vector.broadcast %330 : vector<1x32xf32> to vector<48x32xf32>
    %332 = arith.addf %329, %331 : vector<48x32xf32>
    %333 = arith.truncf %332 : vector<48x32xf32> to vector<48x32xbf16>
    %c1_131 = arith.constant 1 : index
    %c0_132 = arith.constant 0 : index
    %c0_133 = arith.constant 0 : index
    %334 = vector.load %arg18[%c1_131, %c0_132, %c0_133] : memref<4x32x128xbf16, #tpu.memory_space<vmem>>, vector<1x32x128xbf16>
    %335 = vector.shape_cast %334 : vector<1x32x128xbf16> to vector<32x128xbf16>
    %cst_134 = arith.constant dense<0.000000e+00> : vector<48x128xf32>
    %336 = tpu.matmul %333, %335, %cst_134 {dimension_numbers = #tpu.dot_dimension_numbers<[1], [0], [0], [1], [0, 0, 1, 1], [], []>} : vector<48x32xbf16>, vector<32x128xbf16>, vector<48x128xf32> -> vector<48x128xf32>
    %c1_135 = arith.constant 1 : index
    %c0_136 = arith.constant 0 : index
    %337 = vector.load %arg19[%c1_135, %c0_136] : memref<4x128xf32, #tpu.memory_space<vmem>>, vector<1x128xf32>
    %338 = vector.shape_cast %337 : vector<1x128xf32> to vector<128xf32>
    %339 = vector.shape_cast %338 : vector<128xf32> to vector<1x128xf32>
    %340 = vector.broadcast %339 : vector<1x128xf32> to vector<48x128xf32>
    %341 = arith.addf %336, %340 : vector<48x128xf32>
    %342 = arith.mulf %341, %341 : vector<48x128xf32>
    %343 = arith.mulf %341, %342 : vector<48x128xf32>
    %cst_137 = arith.constant 4.471500e-02 : f32
    %344 = vector.broadcast %cst_137 : f32 to vector<48x128xf32>
    %345 = arith.mulf %344, %343 : vector<48x128xf32>
    %346 = arith.addf %341, %345 : vector<48x128xf32>
    %cst_138 = arith.constant 0.797884583 : f32
    %347 = vector.broadcast %cst_138 : f32 to vector<48x128xf32>
    %348 = arith.mulf %347, %346 : vector<48x128xf32>
    %349 = math.tanh %348 : vector<48x128xf32>
    %cst_139 = arith.constant 1.000000e+00 : f32
    %350 = vector.broadcast %cst_139 : f32 to vector<48x128xf32>
    %351 = arith.addf %350, %349 : vector<48x128xf32>
    %cst_140 = arith.constant 5.000000e-01 : f32
    %352 = vector.broadcast %cst_140 : f32 to vector<48x128xf32>
    %353 = arith.mulf %352, %351 : vector<48x128xf32>
    %354 = arith.mulf %341, %353 : vector<48x128xf32>
    %355 = arith.truncf %354 : vector<48x128xf32> to vector<48x128xbf16>
    %c1_141 = arith.constant 1 : index
    %c0_142 = arith.constant 0 : index
    %c0_143 = arith.constant 0 : index
    %356 = vector.load %arg20[%c1_141, %c0_142, %c0_143] : memref<4x128x32xbf16, #tpu.memory_space<vmem>>, vector<1x128x32xbf16>
    %357 = vector.shape_cast %356 : vector<1x128x32xbf16> to vector<128x32xbf16>
    %cst_144 = arith.constant dense<0.000000e+00> : vector<48x32xf32>
    %358 = tpu.matmul %355, %357, %cst_144 {dimension_numbers = #tpu.dot_dimension_numbers<[1], [0], [0], [1], [0, 0, 1, 1], [], []>} : vector<48x128xbf16>, vector<128x32xbf16>, vector<48x32xf32> -> vector<48x32xf32>
    %c1_145 = arith.constant 1 : index
    %c0_146 = arith.constant 0 : index
    %359 = vector.load %arg21[%c1_145, %c0_146] : memref<4x32xf32, #tpu.memory_space<vmem>>, vector<1x32xf32>
    %360 = vector.shape_cast %359 : vector<1x32xf32> to vector<32xf32>
    %361 = vector.shape_cast %360 : vector<32xf32> to vector<1x32xf32>
    %362 = vector.broadcast %361 : vector<1x32xf32> to vector<48x32xf32>
    %363 = arith.addf %358, %362 : vector<48x32xf32>
    %364 = arith.addf %304, %363 : vector<48x32xf32>
    %c2 = arith.constant 2 : index
    %c0_147 = arith.constant 0 : index
    %365 = vector.load %arg6[%c2, %c0_147] : memref<4x32xf32, #tpu.memory_space<vmem>>, vector<1x32xf32>
    %366 = vector.shape_cast %365 : vector<1x32xf32> to vector<32xf32>
    %c2_148 = arith.constant 2 : index
    %c0_149 = arith.constant 0 : index
    %367 = vector.load %arg7[%c2_148, %c0_149] : memref<4x32xf32, #tpu.memory_space<vmem>>, vector<1x32xf32>
    %368 = vector.shape_cast %367 : vector<1x32xf32> to vector<32xf32>
    %cst_150 = arith.constant dense<0.000000e+00> : vector<48xf32>
    %369 = vector.multi_reduction <add>, %364, %cst_150 [1] : vector<48x32xf32> to vector<48xf32>
    %370 = vector.shape_cast %369 : vector<48xf32> to vector<48x1xf32>
    %cst_151 = arith.constant 3.200000e+01 : f32
    %371 = vector.broadcast %cst_151 : f32 to vector<48x1xf32>
    %372 = arith.divf %370, %371 : vector<48x1xf32>
    %373 = vector.broadcast %372 : vector<48x1xf32> to vector<48x32xf32>
    %374 = arith.subf %364, %373 : vector<48x32xf32>
    %375 = arith.mulf %374, %374 : vector<48x32xf32>
    %cst_152 = arith.constant dense<0.000000e+00> : vector<48xf32>
    %376 = vector.multi_reduction <add>, %375, %cst_152 [1] : vector<48x32xf32> to vector<48xf32>
    %377 = vector.shape_cast %376 : vector<48xf32> to vector<48x1xf32>
    %cst_153 = arith.constant 3.200000e+01 : f32
    %378 = vector.broadcast %cst_153 : f32 to vector<48x1xf32>
    %379 = arith.divf %377, %378 : vector<48x1xf32>
    %380 = vector.broadcast %372 : vector<48x1xf32> to vector<48x32xf32>
    %381 = arith.subf %364, %380 : vector<48x32xf32>
    %cst_154 = arith.constant 9.99999997E-7 : f32
    %382 = vector.broadcast %cst_154 : f32 to vector<48x1xf32>
    %383 = arith.addf %379, %382 : vector<48x1xf32>
    %384 = math.rsqrt %383 : vector<48x1xf32>
    %385 = vector.broadcast %384 : vector<48x1xf32> to vector<48x32xf32>
    %386 = arith.mulf %381, %385 : vector<48x32xf32>
    %387 = vector.shape_cast %366 : vector<32xf32> to vector<1x32xf32>
    %388 = vector.broadcast %387 : vector<1x32xf32> to vector<48x32xf32>
    %389 = arith.mulf %386, %388 : vector<48x32xf32>
    %390 = vector.shape_cast %368 : vector<32xf32> to vector<1x32xf32>
    %391 = vector.broadcast %390 : vector<1x32xf32> to vector<48x32xf32>
    %392 = arith.addf %389, %391 : vector<48x32xf32>
    %393 = arith.truncf %392 : vector<48x32xf32> to vector<48x32xbf16>
    %c2_155 = arith.constant 2 : index
    %c0_156 = arith.constant 0 : index
    %c0_157 = arith.constant 0 : index
    %394 = vector.load %arg8[%c2_155, %c0_156, %c0_157] : memref<4x32x32xbf16, #tpu.memory_space<vmem>>, vector<1x32x32xbf16>
    %395 = vector.shape_cast %394 : vector<1x32x32xbf16> to vector<32x32xbf16>
    %cst_158 = arith.constant dense<0.000000e+00> : vector<48x32xf32>
    %396 = tpu.matmul %393, %395, %cst_158 {dimension_numbers = #tpu.dot_dimension_numbers<[1], [0], [0], [1], [0, 0, 1, 1], [], []>} : vector<48x32xbf16>, vector<32x32xbf16>, vector<48x32xf32> -> vector<48x32xf32>
    %c2_159 = arith.constant 2 : index
    %c0_160 = arith.constant 0 : index
    %397 = vector.load %arg11[%c2_159, %c0_160] : memref<4x32xf32, #tpu.memory_space<vmem>>, vector<1x32xf32>
    %398 = vector.shape_cast %397 : vector<1x32xf32> to vector<32xf32>
    %399 = vector.shape_cast %398 : vector<32xf32> to vector<1x32xf32>
    %400 = vector.broadcast %399 : vector<1x32xf32> to vector<48x32xf32>
    %401 = arith.addf %396, %400 : vector<48x32xf32>
    %c2_161 = arith.constant 2 : index
    %c0_162 = arith.constant 0 : index
    %c0_163 = arith.constant 0 : index
    %402 = vector.load %arg9[%c2_161, %c0_162, %c0_163] : memref<4x32x32xbf16, #tpu.memory_space<vmem>>, vector<1x32x32xbf16>
    %403 = vector.shape_cast %402 : vector<1x32x32xbf16> to vector<32x32xbf16>
    %cst_164 = arith.constant dense<0.000000e+00> : vector<48x32xf32>
    %404 = tpu.matmul %393, %403, %cst_164 {dimension_numbers = #tpu.dot_dimension_numbers<[1], [0], [0], [1], [0, 0, 1, 1], [], []>} : vector<48x32xbf16>, vector<32x32xbf16>, vector<48x32xf32> -> vector<48x32xf32>
    %c2_165 = arith.constant 2 : index
    %c0_166 = arith.constant 0 : index
    %405 = vector.load %arg12[%c2_165, %c0_166] : memref<4x32xf32, #tpu.memory_space<vmem>>, vector<1x32xf32>
    %406 = vector.shape_cast %405 : vector<1x32xf32> to vector<32xf32>
    %407 = vector.shape_cast %406 : vector<32xf32> to vector<1x32xf32>
    %408 = vector.broadcast %407 : vector<1x32xf32> to vector<48x32xf32>
    %409 = arith.addf %404, %408 : vector<48x32xf32>
    %c2_167 = arith.constant 2 : index
    %c0_168 = arith.constant 0 : index
    %c0_169 = arith.constant 0 : index
    %410 = vector.load %arg10[%c2_167, %c0_168, %c0_169] : memref<4x32x32xbf16, #tpu.memory_space<vmem>>, vector<1x32x32xbf16>
    %411 = vector.shape_cast %410 : vector<1x32x32xbf16> to vector<32x32xbf16>
    %cst_170 = arith.constant dense<0.000000e+00> : vector<48x32xf32>
    %412 = tpu.matmul %393, %411, %cst_170 {dimension_numbers = #tpu.dot_dimension_numbers<[1], [0], [0], [1], [0, 0, 1, 1], [], []>} : vector<48x32xbf16>, vector<32x32xbf16>, vector<48x32xf32> -> vector<48x32xf32>
    %c2_171 = arith.constant 2 : index
    %c0_172 = arith.constant 0 : index
    %413 = vector.load %arg13[%c2_171, %c0_172] : memref<4x32xf32, #tpu.memory_space<vmem>>, vector<1x32xf32>
    %414 = vector.shape_cast %413 : vector<1x32xf32> to vector<32xf32>
    %415 = vector.shape_cast %414 : vector<32xf32> to vector<1x32xf32>
    %416 = vector.broadcast %415 : vector<1x32xf32> to vector<48x32xf32>
    %417 = arith.addf %412, %416 : vector<48x32xf32>
    %418 = vector.shape_cast %401 : vector<48x32xf32> to vector<2x24x32xf32>
    %419 = arith.truncf %418 : vector<2x24x32xf32> to vector<2x24x32xbf16>
    %420 = vector.shape_cast %409 : vector<48x32xf32> to vector<2x24x32xf32>
    %421 = arith.truncf %420 : vector<2x24x32xf32> to vector<2x24x32xbf16>
    %422 = vector.shape_cast %417 : vector<48x32xf32> to vector<2x24x32xf32>
    %423 = arith.truncf %422 : vector<2x24x32xf32> to vector<2x24x32xbf16>
    %424 = vector.extract_strided_slice %419 {offsets = [0, 0, 0], sizes = [2, 24, 16], strides = [1, 1, 1]} : vector<2x24x32xbf16> to vector<2x24x16xbf16>
    %425 = vector.extract_strided_slice %421 {offsets = [0, 0, 0], sizes = [2, 24, 16], strides = [1, 1, 1]} : vector<2x24x32xbf16> to vector<2x24x16xbf16>
    "tpu.trace_start"() <{level = 10 : i32, message = "bqd,bkd->bqk"}> : () -> ()
    %cst_173 = arith.constant dense<0.000000e+00> : vector<2x24x24xf32>
    %426 = tpu.matmul %424, %425, %cst_173 {dimension_numbers = #tpu.dot_dimension_numbers<[2], [2], [1], [1], [0, 0, 0, 1, 1, 1], [0], [0]>} : vector<2x24x16xbf16>, vector<2x24x16xbf16>, vector<2x24x24xf32> -> vector<2x24x24xf32>
    "tpu.trace_stop"() : () -> ()
    %cst_174 = arith.constant 2.500000e-01 : f32
    %427 = vector.broadcast %cst_174 : f32 to vector<2x24x24xf32>
    %428 = arith.mulf %426, %427 : vector<2x24x24xf32>
    %429 = vector.broadcast %22 : vector<1x1x24xf32> to vector<2x24x24xf32>
    %430 = arith.addf %428, %429 : vector<2x24x24xf32>
    %cst_175 = arith.constant dense<0xFF800000> : vector<2x24xf32>
    %431 = vector.multi_reduction <maximumf>, %430, %cst_175 [2] : vector<2x24x24xf32> to vector<2x24xf32>
    %432 = vector.shape_cast %431 : vector<2x24xf32> to vector<2x24x1xf32>
    %433 = vector.broadcast %432 : vector<2x24x1xf32> to vector<2x24x24xf32>
    %434 = arith.subf %430, %433 : vector<2x24x24xf32>
    %435 = math.exp %434 : vector<2x24x24xf32>
    %cst_176 = arith.constant dense<0.000000e+00> : vector<2x24xf32>
    %436 = vector.multi_reduction <add>, %435, %cst_176 [2] : vector<2x24x24xf32> to vector<2x24xf32>
    %437 = vector.shape_cast %436 : vector<2x24xf32> to vector<2x24x1xf32>
    %438 = tpu.reciprocal %437 {approx = true} : vector<2x24x1xf32> -> vector<2x24x1xf32>
    %439 = vector.broadcast %438 : vector<2x24x1xf32> to vector<2x24x24xf32>
    %440 = arith.mulf %435, %439 : vector<2x24x24xf32>
    %441 = arith.truncf %440 : vector<2x24x24xf32> to vector<2x24x24xbf16>
    %442 = vector.extract_strided_slice %423 {offsets = [0, 0, 0], sizes = [2, 24, 16], strides = [1, 1, 1]} : vector<2x24x32xbf16> to vector<2x24x16xbf16>
    "tpu.trace_start"() <{level = 10 : i32, message = "bqk,bkd->bqd"}> : () -> ()
    %cst_177 = arith.constant dense<0.000000e+00> : vector<2x24x16xf32>
    %443 = tpu.matmul %441, %442, %cst_177 {dimension_numbers = #tpu.dot_dimension_numbers<[2], [1], [1], [2], [0, 0, 0, 1, 1, 2], [0], [0]>} : vector<2x24x24xbf16>, vector<2x24x16xbf16>, vector<2x24x16xf32> -> vector<2x24x16xf32>
    "tpu.trace_stop"() : () -> ()
    %444 = vector.extract_strided_slice %419 {offsets = [0, 0, 16], sizes = [2, 24, 16], strides = [1, 1, 1]} : vector<2x24x32xbf16> to vector<2x24x16xbf16>
    %445 = vector.extract_strided_slice %421 {offsets = [0, 0, 16], sizes = [2, 24, 16], strides = [1, 1, 1]} : vector<2x24x32xbf16> to vector<2x24x16xbf16>
    "tpu.trace_start"() <{level = 10 : i32, message = "bqd,bkd->bqk"}> : () -> ()
    %cst_178 = arith.constant dense<0.000000e+00> : vector<2x24x24xf32>
    %446 = tpu.matmul %444, %445, %cst_178 {dimension_numbers = #tpu.dot_dimension_numbers<[2], [2], [1], [1], [0, 0, 0, 1, 1, 1], [0], [0]>} : vector<2x24x16xbf16>, vector<2x24x16xbf16>, vector<2x24x24xf32> -> vector<2x24x24xf32>
    "tpu.trace_stop"() : () -> ()
    %cst_179 = arith.constant 2.500000e-01 : f32
    %447 = vector.broadcast %cst_179 : f32 to vector<2x24x24xf32>
    %448 = arith.mulf %446, %447 : vector<2x24x24xf32>
    %449 = vector.broadcast %22 : vector<1x1x24xf32> to vector<2x24x24xf32>
    %450 = arith.addf %448, %449 : vector<2x24x24xf32>
    %cst_180 = arith.constant dense<0xFF800000> : vector<2x24xf32>
    %451 = vector.multi_reduction <maximumf>, %450, %cst_180 [2] : vector<2x24x24xf32> to vector<2x24xf32>
    %452 = vector.shape_cast %451 : vector<2x24xf32> to vector<2x24x1xf32>
    %453 = vector.broadcast %452 : vector<2x24x1xf32> to vector<2x24x24xf32>
    %454 = arith.subf %450, %453 : vector<2x24x24xf32>
    %455 = math.exp %454 : vector<2x24x24xf32>
    %cst_181 = arith.constant dense<0.000000e+00> : vector<2x24xf32>
    %456 = vector.multi_reduction <add>, %455, %cst_181 [2] : vector<2x24x24xf32> to vector<2x24xf32>
    %457 = vector.shape_cast %456 : vector<2x24xf32> to vector<2x24x1xf32>
    %458 = tpu.reciprocal %457 {approx = true} : vector<2x24x1xf32> -> vector<2x24x1xf32>
    %459 = vector.broadcast %458 : vector<2x24x1xf32> to vector<2x24x24xf32>
    %460 = arith.mulf %455, %459 : vector<2x24x24xf32>
    %461 = arith.truncf %460 : vector<2x24x24xf32> to vector<2x24x24xbf16>
    %462 = vector.extract_strided_slice %423 {offsets = [0, 0, 16], sizes = [2, 24, 16], strides = [1, 1, 1]} : vector<2x24x32xbf16> to vector<2x24x16xbf16>
    "tpu.trace_start"() <{level = 10 : i32, message = "bqk,bkd->bqd"}> : () -> ()
    %cst_182 = arith.constant dense<0.000000e+00> : vector<2x24x16xf32>
    %463 = tpu.matmul %461, %462, %cst_182 {dimension_numbers = #tpu.dot_dimension_numbers<[2], [1], [1], [2], [0, 0, 0, 1, 1, 2], [0], [0]>} : vector<2x24x24xbf16>, vector<2x24x16xbf16>, vector<2x24x16xf32> -> vector<2x24x16xf32>
    "tpu.trace_stop"() : () -> ()
    %464 = tpu.concatenate %443, %463 in 2 : vector<2x24x16xf32>, vector<2x24x16xf32> -> vector<2x24x32xf32>
    %465 = vector.shape_cast %464 : vector<2x24x32xf32> to vector<48x32xf32>
    %466 = arith.truncf %465 : vector<48x32xf32> to vector<48x32xbf16>
    %c2_183 = arith.constant 2 : index
    %c0_184 = arith.constant 0 : index
    %c0_185 = arith.constant 0 : index
    %467 = vector.load %arg14[%c2_183, %c0_184, %c0_185] : memref<4x32x32xbf16, #tpu.memory_space<vmem>>, vector<1x32x32xbf16>
    %468 = vector.shape_cast %467 : vector<1x32x32xbf16> to vector<32x32xbf16>
    %cst_186 = arith.constant dense<0.000000e+00> : vector<48x32xf32>
    %469 = tpu.matmul %466, %468, %cst_186 {dimension_numbers = #tpu.dot_dimension_numbers<[1], [0], [0], [1], [0, 0, 1, 1], [], []>} : vector<48x32xbf16>, vector<32x32xbf16>, vector<48x32xf32> -> vector<48x32xf32>
    %c2_187 = arith.constant 2 : index
    %c0_188 = arith.constant 0 : index
    %470 = vector.load %arg15[%c2_187, %c0_188] : memref<4x32xf32, #tpu.memory_space<vmem>>, vector<1x32xf32>
    %471 = vector.shape_cast %470 : vector<1x32xf32> to vector<32xf32>
    %472 = vector.shape_cast %471 : vector<32xf32> to vector<1x32xf32>
    %473 = vector.broadcast %472 : vector<1x32xf32> to vector<48x32xf32>
    %474 = arith.addf %469, %473 : vector<48x32xf32>
    %475 = arith.addf %364, %474 : vector<48x32xf32>
    %c2_189 = arith.constant 2 : index
    %c0_190 = arith.constant 0 : index
    %476 = vector.load %arg16[%c2_189, %c0_190] : memref<4x32xf32, #tpu.memory_space<vmem>>, vector<1x32xf32>
    %477 = vector.shape_cast %476 : vector<1x32xf32> to vector<32xf32>
    %c2_191 = arith.constant 2 : index
    %c0_192 = arith.constant 0 : index
    %478 = vector.load %arg17[%c2_191, %c0_192] : memref<4x32xf32, #tpu.memory_space<vmem>>, vector<1x32xf32>
    %479 = vector.shape_cast %478 : vector<1x32xf32> to vector<32xf32>
    %cst_193 = arith.constant dense<0.000000e+00> : vector<48xf32>
    %480 = vector.multi_reduction <add>, %475, %cst_193 [1] : vector<48x32xf32> to vector<48xf32>
    %481 = vector.shape_cast %480 : vector<48xf32> to vector<48x1xf32>
    %cst_194 = arith.constant 3.200000e+01 : f32
    %482 = vector.broadcast %cst_194 : f32 to vector<48x1xf32>
    %483 = arith.divf %481, %482 : vector<48x1xf32>
    %484 = vector.broadcast %483 : vector<48x1xf32> to vector<48x32xf32>
    %485 = arith.subf %475, %484 : vector<48x32xf32>
    %486 = arith.mulf %485, %485 : vector<48x32xf32>
    %cst_195 = arith.constant dense<0.000000e+00> : vector<48xf32>
    %487 = vector.multi_reduction <add>, %486, %cst_195 [1] : vector<48x32xf32> to vector<48xf32>
    %488 = vector.shape_cast %487 : vector<48xf32> to vector<48x1xf32>
    %cst_196 = arith.constant 3.200000e+01 : f32
    %489 = vector.broadcast %cst_196 : f32 to vector<48x1xf32>
    %490 = arith.divf %488, %489 : vector<48x1xf32>
    %491 = vector.broadcast %483 : vector<48x1xf32> to vector<48x32xf32>
    %492 = arith.subf %475, %491 : vector<48x32xf32>
    %cst_197 = arith.constant 9.99999997E-7 : f32
    %493 = vector.broadcast %cst_197 : f32 to vector<48x1xf32>
    %494 = arith.addf %490, %493 : vector<48x1xf32>
    %495 = math.rsqrt %494 : vector<48x1xf32>
    %496 = vector.broadcast %495 : vector<48x1xf32> to vector<48x32xf32>
    %497 = arith.mulf %492, %496 : vector<48x32xf32>
    %498 = vector.shape_cast %477 : vector<32xf32> to vector<1x32xf32>
    %499 = vector.broadcast %498 : vector<1x32xf32> to vector<48x32xf32>
    %500 = arith.mulf %497, %499 : vector<48x32xf32>
    %501 = vector.shape_cast %479 : vector<32xf32> to vector<1x32xf32>
    %502 = vector.broadcast %501 : vector<1x32xf32> to vector<48x32xf32>
    %503 = arith.addf %500, %502 : vector<48x32xf32>
    %504 = arith.truncf %503 : vector<48x32xf32> to vector<48x32xbf16>
    %c2_198 = arith.constant 2 : index
    %c0_199 = arith.constant 0 : index
    %c0_200 = arith.constant 0 : index
    %505 = vector.load %arg18[%c2_198, %c0_199, %c0_200] : memref<4x32x128xbf16, #tpu.memory_space<vmem>>, vector<1x32x128xbf16>
    %506 = vector.shape_cast %505 : vector<1x32x128xbf16> to vector<32x128xbf16>
    %cst_201 = arith.constant dense<0.000000e+00> : vector<48x128xf32>
    %507 = tpu.matmul %504, %506, %cst_201 {dimension_numbers = #tpu.dot_dimension_numbers<[1], [0], [0], [1], [0, 0, 1, 1], [], []>} : vector<48x32xbf16>, vector<32x128xbf16>, vector<48x128xf32> -> vector<48x128xf32>
    %c2_202 = arith.constant 2 : index
    %c0_203 = arith.constant 0 : index
    %508 = vector.load %arg19[%c2_202, %c0_203] : memref<4x128xf32, #tpu.memory_space<vmem>>, vector<1x128xf32>
    %509 = vector.shape_cast %508 : vector<1x128xf32> to vector<128xf32>
    %510 = vector.shape_cast %509 : vector<128xf32> to vector<1x128xf32>
    %511 = vector.broadcast %510 : vector<1x128xf32> to vector<48x128xf32>
    %512 = arith.addf %507, %511 : vector<48x128xf32>
    %513 = arith.mulf %512, %512 : vector<48x128xf32>
    %514 = arith.mulf %512, %513 : vector<48x128xf32>
    %cst_204 = arith.constant 4.471500e-02 : f32
    %515 = vector.broadcast %cst_204 : f32 to vector<48x128xf32>
    %516 = arith.mulf %515, %514 : vector<48x128xf32>
    %517 = arith.addf %512, %516 : vector<48x128xf32>
    %cst_205 = arith.constant 0.797884583 : f32
    %518 = vector.broadcast %cst_205 : f32 to vector<48x128xf32>
    %519 = arith.mulf %518, %517 : vector<48x128xf32>
    %520 = math.tanh %519 : vector<48x128xf32>
    %cst_206 = arith.constant 1.000000e+00 : f32
    %521 = vector.broadcast %cst_206 : f32 to vector<48x128xf32>
    %522 = arith.addf %521, %520 : vector<48x128xf32>
    %cst_207 = arith.constant 5.000000e-01 : f32
    %523 = vector.broadcast %cst_207 : f32 to vector<48x128xf32>
    %524 = arith.mulf %523, %522 : vector<48x128xf32>
    %525 = arith.mulf %512, %524 : vector<48x128xf32>
    %526 = arith.truncf %525 : vector<48x128xf32> to vector<48x128xbf16>
    %c2_208 = arith.constant 2 : index
    %c0_209 = arith.constant 0 : index
    %c0_210 = arith.constant 0 : index
    %527 = vector.load %arg20[%c2_208, %c0_209, %c0_210] : memref<4x128x32xbf16, #tpu.memory_space<vmem>>, vector<1x128x32xbf16>
    %528 = vector.shape_cast %527 : vector<1x128x32xbf16> to vector<128x32xbf16>
    %cst_211 = arith.constant dense<0.000000e+00> : vector<48x32xf32>
    %529 = tpu.matmul %526, %528, %cst_211 {dimension_numbers = #tpu.dot_dimension_numbers<[1], [0], [0], [1], [0, 0, 1, 1], [], []>} : vector<48x128xbf16>, vector<128x32xbf16>, vector<48x32xf32> -> vector<48x32xf32>
    %c2_212 = arith.constant 2 : index
    %c0_213 = arith.constant 0 : index
    %530 = vector.load %arg21[%c2_212, %c0_213] : memref<4x32xf32, #tpu.memory_space<vmem>>, vector<1x32xf32>
    %531 = vector.shape_cast %530 : vector<1x32xf32> to vector<32xf32>
    %532 = vector.shape_cast %531 : vector<32xf32> to vector<1x32xf32>
    %533 = vector.broadcast %532 : vector<1x32xf32> to vector<48x32xf32>
    %534 = arith.addf %529, %533 : vector<48x32xf32>
    %535 = arith.addf %475, %534 : vector<48x32xf32>
    %c3 = arith.constant 3 : index
    %c0_214 = arith.constant 0 : index
    %536 = vector.load %arg6[%c3, %c0_214] : memref<4x32xf32, #tpu.memory_space<vmem>>, vector<1x32xf32>
    %537 = vector.shape_cast %536 : vector<1x32xf32> to vector<32xf32>
    %c3_215 = arith.constant 3 : index
    %c0_216 = arith.constant 0 : index
    %538 = vector.load %arg7[%c3_215, %c0_216] : memref<4x32xf32, #tpu.memory_space<vmem>>, vector<1x32xf32>
    %539 = vector.shape_cast %538 : vector<1x32xf32> to vector<32xf32>
    %cst_217 = arith.constant dense<0.000000e+00> : vector<48xf32>
    %540 = vector.multi_reduction <add>, %535, %cst_217 [1] : vector<48x32xf32> to vector<48xf32>
    %541 = vector.shape_cast %540 : vector<48xf32> to vector<48x1xf32>
    %cst_218 = arith.constant 3.200000e+01 : f32
    %542 = vector.broadcast %cst_218 : f32 to vector<48x1xf32>
    %543 = arith.divf %541, %542 : vector<48x1xf32>
    %544 = vector.broadcast %543 : vector<48x1xf32> to vector<48x32xf32>
    %545 = arith.subf %535, %544 : vector<48x32xf32>
    %546 = arith.mulf %545, %545 : vector<48x32xf32>
    %cst_219 = arith.constant dense<0.000000e+00> : vector<48xf32>
    %547 = vector.multi_reduction <add>, %546, %cst_219 [1] : vector<48x32xf32> to vector<48xf32>
    %548 = vector.shape_cast %547 : vector<48xf32> to vector<48x1xf32>
    %cst_220 = arith.constant 3.200000e+01 : f32
    %549 = vector.broadcast %cst_220 : f32 to vector<48x1xf32>
    %550 = arith.divf %548, %549 : vector<48x1xf32>
    %551 = vector.broadcast %543 : vector<48x1xf32> to vector<48x32xf32>
    %552 = arith.subf %535, %551 : vector<48x32xf32>
    %cst_221 = arith.constant 9.99999997E-7 : f32
    %553 = vector.broadcast %cst_221 : f32 to vector<48x1xf32>
    %554 = arith.addf %550, %553 : vector<48x1xf32>
    %555 = math.rsqrt %554 : vector<48x1xf32>
    %556 = vector.broadcast %555 : vector<48x1xf32> to vector<48x32xf32>
    %557 = arith.mulf %552, %556 : vector<48x32xf32>
    %558 = vector.shape_cast %537 : vector<32xf32> to vector<1x32xf32>
    %559 = vector.broadcast %558 : vector<1x32xf32> to vector<48x32xf32>
    %560 = arith.mulf %557, %559 : vector<48x32xf32>
    %561 = vector.shape_cast %539 : vector<32xf32> to vector<1x32xf32>
    %562 = vector.broadcast %561 : vector<1x32xf32> to vector<48x32xf32>
    %563 = arith.addf %560, %562 : vector<48x32xf32>
    %564 = arith.truncf %563 : vector<48x32xf32> to vector<48x32xbf16>
    %c3_222 = arith.constant 3 : index
    %c0_223 = arith.constant 0 : index
    %c0_224 = arith.constant 0 : index
    %565 = vector.load %arg8[%c3_222, %c0_223, %c0_224] : memref<4x32x32xbf16, #tpu.memory_space<vmem>>, vector<1x32x32xbf16>
    %566 = vector.shape_cast %565 : vector<1x32x32xbf16> to vector<32x32xbf16>
    %cst_225 = arith.constant dense<0.000000e+00> : vector<48x32xf32>
    %567 = tpu.matmul %564, %566, %cst_225 {dimension_numbers = #tpu.dot_dimension_numbers<[1], [0], [0], [1], [0, 0, 1, 1], [], []>} : vector<48x32xbf16>, vector<32x32xbf16>, vector<48x32xf32> -> vector<48x32xf32>
    %c3_226 = arith.constant 3 : index
    %c0_227 = arith.constant 0 : index
    %568 = vector.load %arg11[%c3_226, %c0_227] : memref<4x32xf32, #tpu.memory_space<vmem>>, vector<1x32xf32>
    %569 = vector.shape_cast %568 : vector<1x32xf32> to vector<32xf32>
    %570 = vector.shape_cast %569 : vector<32xf32> to vector<1x32xf32>
    %571 = vector.broadcast %570 : vector<1x32xf32> to vector<48x32xf32>
    %572 = arith.addf %567, %571 : vector<48x32xf32>
    %c3_228 = arith.constant 3 : index
    %c0_229 = arith.constant 0 : index
    %c0_230 = arith.constant 0 : index
    %573 = vector.load %arg9[%c3_228, %c0_229, %c0_230] : memref<4x32x32xbf16, #tpu.memory_space<vmem>>, vector<1x32x32xbf16>
    %574 = vector.shape_cast %573 : vector<1x32x32xbf16> to vector<32x32xbf16>
    %cst_231 = arith.constant dense<0.000000e+00> : vector<48x32xf32>
    %575 = tpu.matmul %564, %574, %cst_231 {dimension_numbers = #tpu.dot_dimension_numbers<[1], [0], [0], [1], [0, 0, 1, 1], [], []>} : vector<48x32xbf16>, vector<32x32xbf16>, vector<48x32xf32> -> vector<48x32xf32>
    %c3_232 = arith.constant 3 : index
    %c0_233 = arith.constant 0 : index
    %576 = vector.load %arg12[%c3_232, %c0_233] : memref<4x32xf32, #tpu.memory_space<vmem>>, vector<1x32xf32>
    %577 = vector.shape_cast %576 : vector<1x32xf32> to vector<32xf32>
    %578 = vector.shape_cast %577 : vector<32xf32> to vector<1x32xf32>
    %579 = vector.broadcast %578 : vector<1x32xf32> to vector<48x32xf32>
    %580 = arith.addf %575, %579 : vector<48x32xf32>
    %c3_234 = arith.constant 3 : index
    %c0_235 = arith.constant 0 : index
    %c0_236 = arith.constant 0 : index
    %581 = vector.load %arg10[%c3_234, %c0_235, %c0_236] : memref<4x32x32xbf16, #tpu.memory_space<vmem>>, vector<1x32x32xbf16>
    %582 = vector.shape_cast %581 : vector<1x32x32xbf16> to vector<32x32xbf16>
    %cst_237 = arith.constant dense<0.000000e+00> : vector<48x32xf32>
    %583 = tpu.matmul %564, %582, %cst_237 {dimension_numbers = #tpu.dot_dimension_numbers<[1], [0], [0], [1], [0, 0, 1, 1], [], []>} : vector<48x32xbf16>, vector<32x32xbf16>, vector<48x32xf32> -> vector<48x32xf32>
    %c3_238 = arith.constant 3 : index
    %c0_239 = arith.constant 0 : index
    %584 = vector.load %arg13[%c3_238, %c0_239] : memref<4x32xf32, #tpu.memory_space<vmem>>, vector<1x32xf32>
    %585 = vector.shape_cast %584 : vector<1x32xf32> to vector<32xf32>
    %586 = vector.shape_cast %585 : vector<32xf32> to vector<1x32xf32>
    %587 = vector.broadcast %586 : vector<1x32xf32> to vector<48x32xf32>
    %588 = arith.addf %583, %587 : vector<48x32xf32>
    %589 = vector.shape_cast %572 : vector<48x32xf32> to vector<2x24x32xf32>
    %590 = arith.truncf %589 : vector<2x24x32xf32> to vector<2x24x32xbf16>
    %591 = vector.shape_cast %580 : vector<48x32xf32> to vector<2x24x32xf32>
    %592 = arith.truncf %591 : vector<2x24x32xf32> to vector<2x24x32xbf16>
    %593 = vector.shape_cast %588 : vector<48x32xf32> to vector<2x24x32xf32>
    %594 = arith.truncf %593 : vector<2x24x32xf32> to vector<2x24x32xbf16>
    %595 = vector.extract_strided_slice %590 {offsets = [0, 0, 0], sizes = [2, 24, 16], strides = [1, 1, 1]} : vector<2x24x32xbf16> to vector<2x24x16xbf16>
    %596 = vector.extract_strided_slice %592 {offsets = [0, 0, 0], sizes = [2, 24, 16], strides = [1, 1, 1]} : vector<2x24x32xbf16> to vector<2x24x16xbf16>
    "tpu.trace_start"() <{level = 10 : i32, message = "bqd,bkd->bqk"}> : () -> ()
    %cst_240 = arith.constant dense<0.000000e+00> : vector<2x24x24xf32>
    %597 = tpu.matmul %595, %596, %cst_240 {dimension_numbers = #tpu.dot_dimension_numbers<[2], [2], [1], [1], [0, 0, 0, 1, 1, 1], [0], [0]>} : vector<2x24x16xbf16>, vector<2x24x16xbf16>, vector<2x24x24xf32> -> vector<2x24x24xf32>
    "tpu.trace_stop"() : () -> ()
    %cst_241 = arith.constant 2.500000e-01 : f32
    %598 = vector.broadcast %cst_241 : f32 to vector<2x24x24xf32>
    %599 = arith.mulf %597, %598 : vector<2x24x24xf32>
    %600 = vector.broadcast %22 : vector<1x1x24xf32> to vector<2x24x24xf32>
    %601 = arith.addf %599, %600 : vector<2x24x24xf32>
    %cst_242 = arith.constant dense<0xFF800000> : vector<2x24xf32>
    %602 = vector.multi_reduction <maximumf>, %601, %cst_242 [2] : vector<2x24x24xf32> to vector<2x24xf32>
    %603 = vector.shape_cast %602 : vector<2x24xf32> to vector<2x24x1xf32>
    %604 = vector.broadcast %603 : vector<2x24x1xf32> to vector<2x24x24xf32>
    %605 = arith.subf %601, %604 : vector<2x24x24xf32>
    %606 = math.exp %605 : vector<2x24x24xf32>
    %cst_243 = arith.constant dense<0.000000e+00> : vector<2x24xf32>
    %607 = vector.multi_reduction <add>, %606, %cst_243 [2] : vector<2x24x24xf32> to vector<2x24xf32>
    %608 = vector.shape_cast %607 : vector<2x24xf32> to vector<2x24x1xf32>
    %609 = tpu.reciprocal %608 {approx = true} : vector<2x24x1xf32> -> vector<2x24x1xf32>
    %610 = vector.broadcast %609 : vector<2x24x1xf32> to vector<2x24x24xf32>
    %611 = arith.mulf %606, %610 : vector<2x24x24xf32>
    %612 = arith.truncf %611 : vector<2x24x24xf32> to vector<2x24x24xbf16>
    %613 = vector.extract_strided_slice %594 {offsets = [0, 0, 0], sizes = [2, 24, 16], strides = [1, 1, 1]} : vector<2x24x32xbf16> to vector<2x24x16xbf16>
    "tpu.trace_start"() <{level = 10 : i32, message = "bqk,bkd->bqd"}> : () -> ()
    %cst_244 = arith.constant dense<0.000000e+00> : vector<2x24x16xf32>
    %614 = tpu.matmul %612, %613, %cst_244 {dimension_numbers = #tpu.dot_dimension_numbers<[2], [1], [1], [2], [0, 0, 0, 1, 1, 2], [0], [0]>} : vector<2x24x24xbf16>, vector<2x24x16xbf16>, vector<2x24x16xf32> -> vector<2x24x16xf32>
    "tpu.trace_stop"() : () -> ()
    %615 = vector.extract_strided_slice %590 {offsets = [0, 0, 16], sizes = [2, 24, 16], strides = [1, 1, 1]} : vector<2x24x32xbf16> to vector<2x24x16xbf16>
    %616 = vector.extract_strided_slice %592 {offsets = [0, 0, 16], sizes = [2, 24, 16], strides = [1, 1, 1]} : vector<2x24x32xbf16> to vector<2x24x16xbf16>
    "tpu.trace_start"() <{level = 10 : i32, message = "bqd,bkd->bqk"}> : () -> ()
    %cst_245 = arith.constant dense<0.000000e+00> : vector<2x24x24xf32>
    %617 = tpu.matmul %615, %616, %cst_245 {dimension_numbers = #tpu.dot_dimension_numbers<[2], [2], [1], [1], [0, 0, 0, 1, 1, 1], [0], [0]>} : vector<2x24x16xbf16>, vector<2x24x16xbf16>, vector<2x24x24xf32> -> vector<2x24x24xf32>
    "tpu.trace_stop"() : () -> ()
    %cst_246 = arith.constant 2.500000e-01 : f32
    %618 = vector.broadcast %cst_246 : f32 to vector<2x24x24xf32>
    %619 = arith.mulf %617, %618 : vector<2x24x24xf32>
    %620 = vector.broadcast %22 : vector<1x1x24xf32> to vector<2x24x24xf32>
    %621 = arith.addf %619, %620 : vector<2x24x24xf32>
    %cst_247 = arith.constant dense<0xFF800000> : vector<2x24xf32>
    %622 = vector.multi_reduction <maximumf>, %621, %cst_247 [2] : vector<2x24x24xf32> to vector<2x24xf32>
    %623 = vector.shape_cast %622 : vector<2x24xf32> to vector<2x24x1xf32>
    %624 = vector.broadcast %623 : vector<2x24x1xf32> to vector<2x24x24xf32>
    %625 = arith.subf %621, %624 : vector<2x24x24xf32>
    %626 = math.exp %625 : vector<2x24x24xf32>
    %cst_248 = arith.constant dense<0.000000e+00> : vector<2x24xf32>
    %627 = vector.multi_reduction <add>, %626, %cst_248 [2] : vector<2x24x24xf32> to vector<2x24xf32>
    %628 = vector.shape_cast %627 : vector<2x24xf32> to vector<2x24x1xf32>
    %629 = tpu.reciprocal %628 {approx = true} : vector<2x24x1xf32> -> vector<2x24x1xf32>
    %630 = vector.broadcast %629 : vector<2x24x1xf32> to vector<2x24x24xf32>
    %631 = arith.mulf %626, %630 : vector<2x24x24xf32>
    %632 = arith.truncf %631 : vector<2x24x24xf32> to vector<2x24x24xbf16>
    %633 = vector.extract_strided_slice %594 {offsets = [0, 0, 16], sizes = [2, 24, 16], strides = [1, 1, 1]} : vector<2x24x32xbf16> to vector<2x24x16xbf16>
    "tpu.trace_start"() <{level = 10 : i32, message = "bqk,bkd->bqd"}> : () -> ()
    %cst_249 = arith.constant dense<0.000000e+00> : vector<2x24x16xf32>
    %634 = tpu.matmul %632, %633, %cst_249 {dimension_numbers = #tpu.dot_dimension_numbers<[2], [1], [1], [2], [0, 0, 0, 1, 1, 2], [0], [0]>} : vector<2x24x24xbf16>, vector<2x24x16xbf16>, vector<2x24x16xf32> -> vector<2x24x16xf32>
    "tpu.trace_stop"() : () -> ()
    %635 = tpu.concatenate %614, %634 in 2 : vector<2x24x16xf32>, vector<2x24x16xf32> -> vector<2x24x32xf32>
    %636 = vector.shape_cast %635 : vector<2x24x32xf32> to vector<48x32xf32>
    %637 = arith.truncf %636 : vector<48x32xf32> to vector<48x32xbf16>
    %c3_250 = arith.constant 3 : index
    %c0_251 = arith.constant 0 : index
    %c0_252 = arith.constant 0 : index
    %638 = vector.load %arg14[%c3_250, %c0_251, %c0_252] : memref<4x32x32xbf16, #tpu.memory_space<vmem>>, vector<1x32x32xbf16>
    %639 = vector.shape_cast %638 : vector<1x32x32xbf16> to vector<32x32xbf16>
    %cst_253 = arith.constant dense<0.000000e+00> : vector<48x32xf32>
    %640 = tpu.matmul %637, %639, %cst_253 {dimension_numbers = #tpu.dot_dimension_numbers<[1], [0], [0], [1], [0, 0, 1, 1], [], []>} : vector<48x32xbf16>, vector<32x32xbf16>, vector<48x32xf32> -> vector<48x32xf32>
    %c3_254 = arith.constant 3 : index
    %c0_255 = arith.constant 0 : index
    %641 = vector.load %arg15[%c3_254, %c0_255] : memref<4x32xf32, #tpu.memory_space<vmem>>, vector<1x32xf32>
    %642 = vector.shape_cast %641 : vector<1x32xf32> to vector<32xf32>
    %643 = vector.shape_cast %642 : vector<32xf32> to vector<1x32xf32>
    %644 = vector.broadcast %643 : vector<1x32xf32> to vector<48x32xf32>
    %645 = arith.addf %640, %644 : vector<48x32xf32>
    %646 = arith.addf %535, %645 : vector<48x32xf32>
    %c3_256 = arith.constant 3 : index
    %c0_257 = arith.constant 0 : index
    %647 = vector.load %arg16[%c3_256, %c0_257] : memref<4x32xf32, #tpu.memory_space<vmem>>, vector<1x32xf32>
    %648 = vector.shape_cast %647 : vector<1x32xf32> to vector<32xf32>
    %c3_258 = arith.constant 3 : index
    %c0_259 = arith.constant 0 : index
    %649 = vector.load %arg17[%c3_258, %c0_259] : memref<4x32xf32, #tpu.memory_space<vmem>>, vector<1x32xf32>
    %650 = vector.shape_cast %649 : vector<1x32xf32> to vector<32xf32>
    %cst_260 = arith.constant dense<0.000000e+00> : vector<48xf32>
    %651 = vector.multi_reduction <add>, %646, %cst_260 [1] : vector<48x32xf32> to vector<48xf32>
    %652 = vector.shape_cast %651 : vector<48xf32> to vector<48x1xf32>
    %cst_261 = arith.constant 3.200000e+01 : f32
    %653 = vector.broadcast %cst_261 : f32 to vector<48x1xf32>
    %654 = arith.divf %652, %653 : vector<48x1xf32>
    %655 = vector.broadcast %654 : vector<48x1xf32> to vector<48x32xf32>
    %656 = arith.subf %646, %655 : vector<48x32xf32>
    %657 = arith.mulf %656, %656 : vector<48x32xf32>
    %cst_262 = arith.constant dense<0.000000e+00> : vector<48xf32>
    %658 = vector.multi_reduction <add>, %657, %cst_262 [1] : vector<48x32xf32> to vector<48xf32>
    %659 = vector.shape_cast %658 : vector<48xf32> to vector<48x1xf32>
    %cst_263 = arith.constant 3.200000e+01 : f32
    %660 = vector.broadcast %cst_263 : f32 to vector<48x1xf32>
    %661 = arith.divf %659, %660 : vector<48x1xf32>
    %662 = vector.broadcast %654 : vector<48x1xf32> to vector<48x32xf32>
    %663 = arith.subf %646, %662 : vector<48x32xf32>
    %cst_264 = arith.constant 9.99999997E-7 : f32
    %664 = vector.broadcast %cst_264 : f32 to vector<48x1xf32>
    %665 = arith.addf %661, %664 : vector<48x1xf32>
    %666 = math.rsqrt %665 : vector<48x1xf32>
    %667 = vector.broadcast %666 : vector<48x1xf32> to vector<48x32xf32>
    %668 = arith.mulf %663, %667 : vector<48x32xf32>
    %669 = vector.shape_cast %648 : vector<32xf32> to vector<1x32xf32>
    %670 = vector.broadcast %669 : vector<1x32xf32> to vector<48x32xf32>
    %671 = arith.mulf %668, %670 : vector<48x32xf32>
    %672 = vector.shape_cast %650 : vector<32xf32> to vector<1x32xf32>
    %673 = vector.broadcast %672 : vector<1x32xf32> to vector<48x32xf32>
    %674 = arith.addf %671, %673 : vector<48x32xf32>
    %675 = arith.truncf %674 : vector<48x32xf32> to vector<48x32xbf16>
    %c3_265 = arith.constant 3 : index
    %c0_266 = arith.constant 0 : index
    %c0_267 = arith.constant 0 : index
    %676 = vector.load %arg18[%c3_265, %c0_266, %c0_267] : memref<4x32x128xbf16, #tpu.memory_space<vmem>>, vector<1x32x128xbf16>
    %677 = vector.shape_cast %676 : vector<1x32x128xbf16> to vector<32x128xbf16>
    %cst_268 = arith.constant dense<0.000000e+00> : vector<48x128xf32>
    %678 = tpu.matmul %675, %677, %cst_268 {dimension_numbers = #tpu.dot_dimension_numbers<[1], [0], [0], [1], [0, 0, 1, 1], [], []>} : vector<48x32xbf16>, vector<32x128xbf16>, vector<48x128xf32> -> vector<48x128xf32>
    %c3_269 = arith.constant 3 : index
    %c0_270 = arith.constant 0 : index
    %679 = vector.load %arg19[%c3_269, %c0_270] : memref<4x128xf32, #tpu.memory_space<vmem>>, vector<1x128xf32>
    %680 = vector.shape_cast %679 : vector<1x128xf32> to vector<128xf32>
    %681 = vector.shape_cast %680 : vector<128xf32> to vector<1x128xf32>
    %682 = vector.broadcast %681 : vector<1x128xf32> to vector<48x128xf32>
    %683 = arith.addf %678, %682 : vector<48x128xf32>
    %684 = arith.mulf %683, %683 : vector<48x128xf32>
    %685 = arith.mulf %683, %684 : vector<48x128xf32>
    %cst_271 = arith.constant 4.471500e-02 : f32
    %686 = vector.broadcast %cst_271 : f32 to vector<48x128xf32>
    %687 = arith.mulf %686, %685 : vector<48x128xf32>
    %688 = arith.addf %683, %687 : vector<48x128xf32>
    %cst_272 = arith.constant 0.797884583 : f32
    %689 = vector.broadcast %cst_272 : f32 to vector<48x128xf32>
    %690 = arith.mulf %689, %688 : vector<48x128xf32>
    %691 = math.tanh %690 : vector<48x128xf32>
    %cst_273 = arith.constant 1.000000e+00 : f32
    %692 = vector.broadcast %cst_273 : f32 to vector<48x128xf32>
    %693 = arith.addf %692, %691 : vector<48x128xf32>
    %cst_274 = arith.constant 5.000000e-01 : f32
    %694 = vector.broadcast %cst_274 : f32 to vector<48x128xf32>
    %695 = arith.mulf %694, %693 : vector<48x128xf32>
    %696 = arith.mulf %683, %695 : vector<48x128xf32>
    %697 = arith.truncf %696 : vector<48x128xf32> to vector<48x128xbf16>
    %c3_275 = arith.constant 3 : index
    %c0_276 = arith.constant 0 : index
    %c0_277 = arith.constant 0 : index
    %698 = vector.load %arg20[%c3_275, %c0_276, %c0_277] : memref<4x128x32xbf16, #tpu.memory_space<vmem>>, vector<1x128x32xbf16>
    %699 = vector.shape_cast %698 : vector<1x128x32xbf16> to vector<128x32xbf16>
    %cst_278 = arith.constant dense<0.000000e+00> : vector<48x32xf32>
    %700 = tpu.matmul %697, %699, %cst_278 {dimension_numbers = #tpu.dot_dimension_numbers<[1], [0], [0], [1], [0, 0, 1, 1], [], []>} : vector<48x128xbf16>, vector<128x32xbf16>, vector<48x32xf32> -> vector<48x32xf32>
    %c3_279 = arith.constant 3 : index
    %c0_280 = arith.constant 0 : index
    %701 = vector.load %arg21[%c3_279, %c0_280] : memref<4x32xf32, #tpu.memory_space<vmem>>, vector<1x32xf32>
    %702 = vector.shape_cast %701 : vector<1x32xf32> to vector<32xf32>
    %703 = vector.shape_cast %702 : vector<32xf32> to vector<1x32xf32>
    %704 = vector.broadcast %703 : vector<1x32xf32> to vector<48x32xf32>
    %705 = arith.addf %700, %704 : vector<48x32xf32>
    %706 = arith.addf %646, %705 : vector<48x32xf32>
    %c0_281 = arith.constant 0 : index
    %c0_282 = arith.constant 0 : index
    %707 = vector.load %arg22[%c0_281, %c0_282] : memref<1x32xf32, #tpu.memory_space<vmem>>, vector<1x32xf32>
    %708 = vector.shape_cast %707 : vector<1x32xf32> to vector<32xf32>
    %c0_283 = arith.constant 0 : index
    %c0_284 = arith.constant 0 : index
    %709 = vector.load %arg23[%c0_283, %c0_284] : memref<1x32xf32, #tpu.memory_space<vmem>>, vector<1x32xf32>
    %710 = vector.shape_cast %709 : vector<1x32xf32> to vector<32xf32>
    %711 = vector.shape_cast %193 : vector<48x32xf32> to vector<2x24x32xf32>
    %712 = vector.extract_strided_slice %711 {offsets = [0, 0, 0], sizes = [2, 16, 32], strides = [1, 1, 1]} : vector<2x24x32xf32> to vector<2x16x32xf32>
    %713 = vector.shape_cast %712 : vector<2x16x32xf32> to vector<32x32xf32>
    %cst_285 = arith.constant dense<0.000000e+00> : vector<32xf32>
    %714 = vector.multi_reduction <add>, %713, %cst_285 [1] : vector<32x32xf32> to vector<32xf32>
    %715 = vector.shape_cast %714 : vector<32xf32> to vector<32x1xf32>
    %cst_286 = arith.constant 3.200000e+01 : f32
    %716 = vector.broadcast %cst_286 : f32 to vector<32x1xf32>
    %717 = arith.divf %715, %716 : vector<32x1xf32>
    %718 = vector.broadcast %717 : vector<32x1xf32> to vector<32x32xf32>
    %719 = arith.subf %713, %718 : vector<32x32xf32>
    %720 = arith.mulf %719, %719 : vector<32x32xf32>
    %cst_287 = arith.constant dense<0.000000e+00> : vector<32xf32>
    %721 = vector.multi_reduction <add>, %720, %cst_287 [1] : vector<32x32xf32> to vector<32xf32>
    %722 = vector.shape_cast %721 : vector<32xf32> to vector<32x1xf32>
    %cst_288 = arith.constant 3.200000e+01 : f32
    %723 = vector.broadcast %cst_288 : f32 to vector<32x1xf32>
    %724 = arith.divf %722, %723 : vector<32x1xf32>
    %725 = vector.broadcast %717 : vector<32x1xf32> to vector<32x32xf32>
    %726 = arith.subf %713, %725 : vector<32x32xf32>
    %cst_289 = arith.constant 9.99999997E-7 : f32
    %727 = vector.broadcast %cst_289 : f32 to vector<32x1xf32>
    %728 = arith.addf %724, %727 : vector<32x1xf32>
    %729 = math.rsqrt %728 : vector<32x1xf32>
    %730 = vector.broadcast %729 : vector<32x1xf32> to vector<32x32xf32>
    %731 = arith.mulf %726, %730 : vector<32x32xf32>
    %732 = vector.shape_cast %708 : vector<32xf32> to vector<1x32xf32>
    %733 = vector.broadcast %732 : vector<1x32xf32> to vector<32x32xf32>
    %734 = arith.mulf %731, %733 : vector<32x32xf32>
    %735 = vector.shape_cast %710 : vector<32xf32> to vector<1x32xf32>
    %736 = vector.broadcast %735 : vector<1x32xf32> to vector<32x32xf32>
    %737 = arith.addf %734, %736 : vector<32x32xf32>
    %738 = vector.shape_cast %364 : vector<48x32xf32> to vector<2x24x32xf32>
    %739 = vector.extract_strided_slice %738 {offsets = [0, 0, 0], sizes = [2, 16, 32], strides = [1, 1, 1]} : vector<2x24x32xf32> to vector<2x16x32xf32>
    %740 = vector.shape_cast %739 : vector<2x16x32xf32> to vector<32x32xf32>
    %cst_290 = arith.constant dense<0.000000e+00> : vector<32xf32>
    %741 = vector.multi_reduction <add>, %740, %cst_290 [1] : vector<32x32xf32> to vector<32xf32>
    %742 = vector.shape_cast %741 : vector<32xf32> to vector<32x1xf32>
    %cst_291 = arith.constant 3.200000e+01 : f32
    %743 = vector.broadcast %cst_291 : f32 to vector<32x1xf32>
    %744 = arith.divf %742, %743 : vector<32x1xf32>
    %745 = vector.broadcast %744 : vector<32x1xf32> to vector<32x32xf32>
    %746 = arith.subf %740, %745 : vector<32x32xf32>
    %747 = arith.mulf %746, %746 : vector<32x32xf32>
    %cst_292 = arith.constant dense<0.000000e+00> : vector<32xf32>
    %748 = vector.multi_reduction <add>, %747, %cst_292 [1] : vector<32x32xf32> to vector<32xf32>
    %749 = vector.shape_cast %748 : vector<32xf32> to vector<32x1xf32>
    %cst_293 = arith.constant 3.200000e+01 : f32
    %750 = vector.broadcast %cst_293 : f32 to vector<32x1xf32>
    %751 = arith.divf %749, %750 : vector<32x1xf32>
    %752 = vector.broadcast %744 : vector<32x1xf32> to vector<32x32xf32>
    %753 = arith.subf %740, %752 : vector<32x32xf32>
    %cst_294 = arith.constant 9.99999997E-7 : f32
    %754 = vector.broadcast %cst_294 : f32 to vector<32x1xf32>
    %755 = arith.addf %751, %754 : vector<32x1xf32>
    %756 = math.rsqrt %755 : vector<32x1xf32>
    %757 = vector.broadcast %756 : vector<32x1xf32> to vector<32x32xf32>
    %758 = arith.mulf %753, %757 : vector<32x32xf32>
    %759 = vector.shape_cast %708 : vector<32xf32> to vector<1x32xf32>
    %760 = vector.broadcast %759 : vector<1x32xf32> to vector<32x32xf32>
    %761 = arith.mulf %758, %760 : vector<32x32xf32>
    %762 = vector.shape_cast %710 : vector<32xf32> to vector<1x32xf32>
    %763 = vector.broadcast %762 : vector<1x32xf32> to vector<32x32xf32>
    %764 = arith.addf %761, %763 : vector<32x32xf32>
    %765 = vector.shape_cast %535 : vector<48x32xf32> to vector<2x24x32xf32>
    %766 = vector.extract_strided_slice %765 {offsets = [0, 0, 0], sizes = [2, 16, 32], strides = [1, 1, 1]} : vector<2x24x32xf32> to vector<2x16x32xf32>
    %767 = vector.shape_cast %766 : vector<2x16x32xf32> to vector<32x32xf32>
    %cst_295 = arith.constant dense<0.000000e+00> : vector<32xf32>
    %768 = vector.multi_reduction <add>, %767, %cst_295 [1] : vector<32x32xf32> to vector<32xf32>
    %769 = vector.shape_cast %768 : vector<32xf32> to vector<32x1xf32>
    %cst_296 = arith.constant 3.200000e+01 : f32
    %770 = vector.broadcast %cst_296 : f32 to vector<32x1xf32>
    %771 = arith.divf %769, %770 : vector<32x1xf32>
    %772 = vector.broadcast %771 : vector<32x1xf32> to vector<32x32xf32>
    %773 = arith.subf %767, %772 : vector<32x32xf32>
    %774 = arith.mulf %773, %773 : vector<32x32xf32>
    %cst_297 = arith.constant dense<0.000000e+00> : vector<32xf32>
    %775 = vector.multi_reduction <add>, %774, %cst_297 [1] : vector<32x32xf32> to vector<32xf32>
    %776 = vector.shape_cast %775 : vector<32xf32> to vector<32x1xf32>
    %cst_298 = arith.constant 3.200000e+01 : f32
    %777 = vector.broadcast %cst_298 : f32 to vector<32x1xf32>
    %778 = arith.divf %776, %777 : vector<32x1xf32>
    %779 = vector.broadcast %771 : vector<32x1xf32> to vector<32x32xf32>
    %780 = arith.subf %767, %779 : vector<32x32xf32>
    %cst_299 = arith.constant 9.99999997E-7 : f32
    %781 = vector.broadcast %cst_299 : f32 to vector<32x1xf32>
    %782 = arith.addf %778, %781 : vector<32x1xf32>
    %783 = math.rsqrt %782 : vector<32x1xf32>
    %784 = vector.broadcast %783 : vector<32x1xf32> to vector<32x32xf32>
    %785 = arith.mulf %780, %784 : vector<32x32xf32>
    %786 = vector.shape_cast %708 : vector<32xf32> to vector<1x32xf32>
    %787 = vector.broadcast %786 : vector<1x32xf32> to vector<32x32xf32>
    %788 = arith.mulf %785, %787 : vector<32x32xf32>
    %789 = vector.shape_cast %710 : vector<32xf32> to vector<1x32xf32>
    %790 = vector.broadcast %789 : vector<1x32xf32> to vector<32x32xf32>
    %791 = arith.addf %788, %790 : vector<32x32xf32>
    %792 = vector.shape_cast %706 : vector<48x32xf32> to vector<2x24x32xf32>
    %793 = vector.extract_strided_slice %792 {offsets = [0, 0, 0], sizes = [2, 16, 32], strides = [1, 1, 1]} : vector<2x24x32xf32> to vector<2x16x32xf32>
    %794 = vector.shape_cast %793 : vector<2x16x32xf32> to vector<32x32xf32>
    %cst_300 = arith.constant dense<0.000000e+00> : vector<32xf32>
    %795 = vector.multi_reduction <add>, %794, %cst_300 [1] : vector<32x32xf32> to vector<32xf32>
    %796 = vector.shape_cast %795 : vector<32xf32> to vector<32x1xf32>
    %cst_301 = arith.constant 3.200000e+01 : f32
    %797 = vector.broadcast %cst_301 : f32 to vector<32x1xf32>
    %798 = arith.divf %796, %797 : vector<32x1xf32>
    %799 = vector.broadcast %798 : vector<32x1xf32> to vector<32x32xf32>
    %800 = arith.subf %794, %799 : vector<32x32xf32>
    %801 = arith.mulf %800, %800 : vector<32x32xf32>
    %cst_302 = arith.constant dense<0.000000e+00> : vector<32xf32>
    %802 = vector.multi_reduction <add>, %801, %cst_302 [1] : vector<32x32xf32> to vector<32xf32>
    %803 = vector.shape_cast %802 : vector<32xf32> to vector<32x1xf32>
    %cst_303 = arith.constant 3.200000e+01 : f32
    %804 = vector.broadcast %cst_303 : f32 to vector<32x1xf32>
    %805 = arith.divf %803, %804 : vector<32x1xf32>
    %806 = vector.broadcast %798 : vector<32x1xf32> to vector<32x32xf32>
    %807 = arith.subf %794, %806 : vector<32x32xf32>
    %cst_304 = arith.constant 9.99999997E-7 : f32
    %808 = vector.broadcast %cst_304 : f32 to vector<32x1xf32>
    %809 = arith.addf %805, %808 : vector<32x1xf32>
    %810 = math.rsqrt %809 : vector<32x1xf32>
    %811 = vector.broadcast %810 : vector<32x1xf32> to vector<32x32xf32>
    %812 = arith.mulf %807, %811 : vector<32x32xf32>
    %813 = vector.shape_cast %708 : vector<32xf32> to vector<1x32xf32>
    %814 = vector.broadcast %813 : vector<1x32xf32> to vector<32x32xf32>
    %815 = arith.mulf %812, %814 : vector<32x32xf32>
    %816 = vector.shape_cast %710 : vector<32xf32> to vector<1x32xf32>
    %817 = vector.broadcast %816 : vector<1x32xf32> to vector<32x32xf32>
    %818 = arith.addf %815, %817 : vector<32x32xf32>
    %819 = tpu.concatenate %737, %764, %791, %818 in 1 : vector<32x32xf32>, vector<32x32xf32>, vector<32x32xf32>, vector<32x32xf32> -> vector<32x128xf32>
    %cst_305 = arith.constant dense<0.000000e+00> : vector<128xf32>
    %820 = vector.multi_reduction <add>, %819, %cst_305 [0] : vector<32x128xf32> to vector<128xf32>
    %821 = vector.shape_cast %820 : vector<128xf32> to vector<1x128xf32>
    %cst_306 = arith.constant 3.200000e+01 : f32
    %822 = vector.broadcast %cst_306 : f32 to vector<1x128xf32>
    %823 = arith.divf %821, %822 : vector<1x128xf32>
    %824 = vector.broadcast %823 : vector<1x128xf32> to vector<32x128xf32>
    %825 = arith.subf %819, %824 : vector<32x128xf32>
    %826 = arith.mulf %825, %825 : vector<32x128xf32>
    %cst_307 = arith.constant dense<0.000000e+00> : vector<128xf32>
    %827 = vector.multi_reduction <add>, %826, %cst_307 [0] : vector<32x128xf32> to vector<128xf32>
    %828 = vector.shape_cast %827 : vector<128xf32> to vector<1x128xf32>
    %cst_308 = arith.constant 3.200000e+01 : f32
    %829 = vector.broadcast %cst_308 : f32 to vector<1x128xf32>
    %830 = arith.divf %828, %829 : vector<1x128xf32>
    %831 = vector.broadcast %823 : vector<1x128xf32> to vector<32x128xf32>
    %832 = arith.subf %819, %831 : vector<32x128xf32>
    %cst_309 = arith.constant 9.99999974E-6 : f32
    %833 = vector.broadcast %cst_309 : f32 to vector<1x128xf32>
    %834 = arith.addf %830, %833 : vector<1x128xf32>
    %835 = math.rsqrt %834 : vector<1x128xf32>
    %836 = vector.broadcast %835 : vector<1x128xf32> to vector<32x128xf32>
    %837 = arith.mulf %832, %836 : vector<32x128xf32>
    %c0_310 = arith.constant 0 : index
    %c0_311 = arith.constant 0 : index
    %838 = vector.load %arg24[%c0_310, %c0_311] : memref<1x128xf32, #tpu.memory_space<vmem>>, vector<1x128xf32>
    %839 = vector.shape_cast %838 : vector<1x128xf32> to vector<128xf32>
    %840 = vector.shape_cast %839 : vector<128xf32> to vector<1x128xf32>
    %841 = vector.broadcast %840 : vector<1x128xf32> to vector<32x128xf32>
    %842 = arith.mulf %837, %841 : vector<32x128xf32>
    %c0_312 = arith.constant 0 : index
    %c0_313 = arith.constant 0 : index
    %843 = vector.load %arg25[%c0_312, %c0_313] : memref<1x128xf32, #tpu.memory_space<vmem>>, vector<1x128xf32>
    %844 = vector.shape_cast %843 : vector<1x128xf32> to vector<128xf32>
    %845 = vector.shape_cast %844 : vector<128xf32> to vector<1x128xf32>
    %846 = vector.broadcast %845 : vector<1x128xf32> to vector<32x128xf32>
    %847 = arith.addf %842, %846 : vector<32x128xf32>
    %848 = arith.truncf %847 : vector<32x128xf32> to vector<32x128xbf16>
    %c0_314 = arith.constant 0 : index
    %c0_315 = arith.constant 0 : index
    %849 = vector.load %arg26[%c0_314, %c0_315] : memref<128x128xbf16, #tpu.memory_space<vmem>>, vector<128x128xbf16>
    %cst_316 = arith.constant dense<0.000000e+00> : vector<32x128xf32>
    %850 = tpu.matmul %848, %849, %cst_316 {dimension_numbers = #tpu.dot_dimension_numbers<[1], [0], [0], [1], [0, 0, 1, 1], [], []>} : vector<32x128xbf16>, vector<128x128xbf16>, vector<32x128xf32> -> vector<32x128xf32>
    %c0_317 = arith.constant 0 : index
    %c0_318 = arith.constant 0 : index
    %851 = vector.load %arg27[%c0_317, %c0_318] : memref<1x128xf32, #tpu.memory_space<vmem>>, vector<1x128xf32>
    %852 = vector.shape_cast %851 : vector<1x128xf32> to vector<128xf32>
    %853 = vector.shape_cast %852 : vector<128xf32> to vector<1x128xf32>
    %854 = vector.broadcast %853 : vector<1x128xf32> to vector<32x128xf32>
    %855 = arith.addf %850, %854 : vector<32x128xf32>
    %c0_319 = arith.constant 0 : index
    %c0_320 = arith.constant 0 : index
    %856 = vector.load %arg28[%c0_319, %c0_320] : memref<32x128xf32, #tpu.memory_space<vmem>>, vector<32x128xf32>
    tpu.vector_store %arg28[%c0_319, %c0_320], %855 {strides = array<i32>} : memref<32x128xf32, #tpu.memory_space<vmem>>, vector<32x128xf32>,
    return
  }
  func.func @transform_0(%arg0: i32) -> (i32, i32) {
    %c0_i32 = arith.constant 0 : i32
    %c0_i32_0 = arith.constant 0 : i32
    %c0_i32_1 = arith.constant 0 : i32
    return %c0_i32, %c0_i32_0 : i32, i32
  }
  func.func @transform_1(%arg0: i32) -> (i32, i32) {
    %c0_i32 = arith.constant 0 : i32
    %c0_i32_0 = arith.constant 0 : i32
    %c0_i32_1 = arith.constant 0 : i32
    return %c0_i32, %c0_i32_0 : i32, i32
  }
  func.func @transform_2(%arg0: i32) -> (i32, i32) {
    %c0_i32 = arith.constant 0 : i32
    %c0_i32_0 = arith.constant 0 : i32
    %c0_i32_1 = arith.constant 0 : i32
    return %c0_i32, %c0_i32_0 : i32, i32
  }
  func.func @transform_3(%arg0: i32) -> (i32, i32) {
    %c0_i32 = arith.constant 0 : i32
    %c0_i32_0 = arith.constant 0 : i32
    %c0_i32_1 = arith.constant 0 : i32
    return %c0_i32, %c0_i32_0 : i32, i32
  }
  func.func @transform_4(%arg0: i32) -> (i32, i32, i32) {
    %c0_i32 = arith.constant 0 : i32
    %c0_i32_0 = arith.constant 0 : i32
    %c0_i32_1 = arith.constant 0 : i32
    %c0_i32_2 = arith.constant 0 : i32
    return %c0_i32, %c0_i32_0, %c0_i32_1 : i32, i32, i32
  }
  func.func @transform_5(%arg0: i32) -> (i32, i32) {
    %c0_i32 = arith.constant 0 : i32
    %c0_i32_0 = arith.constant 0 : i32
    %c0_i32_1 = arith.constant 0 : i32
    return %c0_i32, %c0_i32_0 : i32, i32
  }
  func.func @transform_6(%arg0: i32) -> (i32, i32) {
    %c0_i32 = arith.constant 0 : i32
    %c0_i32_0 = arith.constant 0 : i32
    %c0_i32_1 = arith.constant 0 : i32
    return %c0_i32, %c0_i32_0 : i32, i32
  }
  func.func @transform_7(%arg0: i32) -> (i32, i32, i32) {
    %c0_i32 = arith.constant 0 : i32
    %c0_i32_0 = arith.constant 0 : i32
    %c0_i32_1 = arith.constant 0 : i32
    %c0_i32_2 = arith.constant 0 : i32
    return %c0_i32, %c0_i32_0, %c0_i32_1 : i32, i32, i32
  }
  func.func @transform_8(%arg0: i32) -> (i32, i32, i32) {
    %c0_i32 = arith.constant 0 : i32
    %c0_i32_0 = arith.constant 0 : i32
    %c0_i32_1 = arith.constant 0 : i32
    %c0_i32_2 = arith.constant 0 : i32
    return %c0_i32, %c0_i32_0, %c0_i32_1 : i32, i32, i32
  }
  func.func @transform_9(%arg0: i32) -> (i32, i32, i32) {
    %c0_i32 = arith.constant 0 : i32
    %c0_i32_0 = arith.constant 0 : i32
    %c0_i32_1 = arith.constant 0 : i32
    %c0_i32_2 = arith.constant 0 : i32
    return %c0_i32, %c0_i32_0, %c0_i32_1 : i32, i32, i32
  }
  func.func @transform_10(%arg0: i32) -> (i32, i32) {
    %c0_i32 = arith.constant 0 : i32
    %c0_i32_0 = arith.constant 0 : i32
    %c0_i32_1 = arith.constant 0 : i32
    return %c0_i32, %c0_i32_0 : i32, i32
  }
  func.func @transform_11(%arg0: i32) -> (i32, i32) {
    %c0_i32 = arith.constant 0 : i32
    %c0_i32_0 = arith.constant 0 : i32
    %c0_i32_1 = arith.constant 0 : i32
    return %c0_i32, %c0_i32_0 : i32, i32
  }
  func.func @transform_12(%arg0: i32) -> (i32, i32) {
    %c0_i32 = arith.constant 0 : i32
    %c0_i32_0 = arith.constant 0 : i32
    %c0_i32_1 = arith.constant 0 : i32
    return %c0_i32, %c0_i32_0 : i32, i32
  }
  func.func @transform_13(%arg0: i32) -> (i32, i32, i32) {
    %c0_i32 = arith.constant 0 : i32
    %c0_i32_0 = arith.constant 0 : i32
    %c0_i32_1 = arith.constant 0 : i32
    %c0_i32_2 = arith.constant 0 : i32
    return %c0_i32, %c0_i32_0, %c0_i32_1 : i32, i32, i32
  }
  func.func @transform_14(%arg0: i32) -> (i32, i32) {
    %c0_i32 = arith.constant 0 : i32
    %c0_i32_0 = arith.constant 0 : i32
    %c0_i32_1 = arith.constant 0 : i32
    return %c0_i32, %c0_i32_0 : i32, i32
  }
  func.func @transform_15(%arg0: i32) -> (i32, i32) {
    %c0_i32 = arith.constant 0 : i32
    %c0_i32_0 = arith.constant 0 : i32
    %c0_i32_1 = arith.constant 0 : i32
    return %c0_i32, %c0_i32_0 : i32, i32
  }
  func.func @transform_16(%arg0: i32) -> (i32, i32) {
    %c0_i32 = arith.constant 0 : i32
    %c0_i32_0 = arith.constant 0 : i32
    %c0_i32_1 = arith.constant 0 : i32
    return %c0_i32, %c0_i32_0 : i32, i32
  }
  func.func @transform_17(%arg0: i32) -> (i32, i32, i32) {
    %c0_i32 = arith.constant 0 : i32
    %c0_i32_0 = arith.constant 0 : i32
    %c0_i32_1 = arith.constant 0 : i32
    %c0_i32_2 = arith.constant 0 : i32
    return %c0_i32, %c0_i32_0, %c0_i32_1 : i32, i32, i32
  }
  func.func @transform_18(%arg0: i32) -> (i32, i32) {
    %c0_i32 = arith.constant 0 : i32
    %c0_i32_0 = arith.constant 0 : i32
    %c0_i32_1 = arith.constant 0 : i32
    return %c0_i32, %c0_i32_0 : i32, i32
  }
  func.func @transform_19(%arg0: i32) -> (i32, i32, i32) {
    %c0_i32 = arith.constant 0 : i32
    %c0_i32_0 = arith.constant 0 : i32
    %c0_i32_1 = arith.constant 0 : i32
    %c0_i32_2 = arith.constant 0 : i32
    return %c0_i32, %c0_i32_0, %c0_i32_1 : i32, i32, i32
  }
  func.func @transform_20(%arg0: i32) -> (i32, i32) {
    %c0_i32 = arith.constant 0 : i32
    %c0_i32_0 = arith.constant 0 : i32
    %c0_i32_1 = arith.constant 0 : i32
    return %c0_i32, %c0_i32_0 : i32, i32
  }
  func.func @transform_21(%arg0: i32) -> (i32, i32) {
    %c0_i32 = arith.constant 0 : i32
    %c0_i32_0 = arith.constant 0 : i32
    %c0_i32_1 = arith.constant 0 : i32
    return %c0_i32, %c0_i32_0 : i32, i32
  }
  func.func @transform_22(%arg0: i32) -> (i32, i32) {
    %c0_i32 = arith.constant 0 : i32
    %c0_i32_0 = arith.constant 0 : i32
    %c0_i32_1 = arith.constant 0 : i32
    return %c0_i32, %c0_i32_0 : i32, i32
  }
  func.func @transform_23(%arg0: i32) -> (i32, i32) {
    %c0_i32 = arith.constant 0 : i32
    %c0_i32_0 = arith.constant 0 : i32
    %c0_i32_1 = arith.constant 0 : i32
    return %c0_i32, %c0_i32_0 : i32, i32
  }
  func.func @transform_24(%arg0: i32) -> (i32, i32) {
    %c0_i32 = arith.constant 0 : i32
    %c0_i32_0 = arith.constant 0 : i32
    %c0_i32_1 = arith.constant 0 : i32
    return %c0_i32, %c0_i32_0 : i32, i32
  }
  func.func @transform_25(%arg0: i32) -> (i32, i32) {
    %c0_i32 = arith.constant 0 : i32
    %c0_i32_0 = arith.constant 0 : i32
    %c0_i32_1 = arith.constant 0 : i32
    return %c0_i32, %c0_i32_0 : i32, i32
  }
  func.func @transform_26(%arg0: i32) -> (i32, i32) {
    %c0_i32 = arith.constant 0 : i32
    %c0_i32_0 = arith.constant 0 : i32
    %c0_i32_1 = arith.constant 0 : i32
    return %c0_i32, %c0_i32_0 : i32, i32
  }
  func.func @transform_27(%arg0: i32) -> (i32, i32) {
    %c0_i32 = arith.constant 0 : i32
    %c0_i32_0 = arith.constant 0 : i32
    %c0_i32_1 = arith.constant 0 : i32
    return %c0_i32, %c0_i32_0 : i32, i32
  }
}

</mosaic_0001>

<llo_original>
// kernel: dinov2_segmentation_forward.1
$region0: #{dinov2_segmentation_forward.1}
  #allocation0 [shape = 'u32[]', space=smem, size = 0x4, offset = 0x4, fixed_abs, tag = 'smem constant byte address 0x4 - core index']
  #allocation1 [shape = 'u32[144,128]{1,0:T(1,128)}', space=vmem, size = 0x12000, scoped, tag = 'internal scratch']
  %s0 = inlined_call_operand.vmem [shape: bf16[32,588], index: 0, kind: input, shape index: {}]
  %s1 = inlined_call_operand.vmem [shape: bf16[588,32], index: 1, kind: input, shape index: {}]
  %s2 = inlined_call_operand.vmem [shape: f32[1,32], index: 2, kind: input, shape index: {}]
  %s3 = inlined_call_operand.vmem [shape: f32[16,32], index: 3, kind: input, shape index: {}]
  %s4 = inlined_call_operand.vmem [shape: f32[2,8,32], index: 4, kind: input, shape index: {}]
  %s5 = inlined_call_operand.vmem [shape: f32[4,32], index: 5, kind: input, shape index: {}]
  %s6 = inlined_call_operand.vmem [shape: f32[4,32], index: 6, kind: input, shape index: {}]
  %s7 = inlined_call_operand.vmem [shape: bf16[4,32,32], index: 7, kind: input, shape index: {}]
  %s8 = inlined_call_operand.vmem [shape: bf16[4,32,32], index: 8, kind: input, shape index: {}]
  %s9 = inlined_call_operand.vmem [shape: bf16[4,32,32], index: 9, kind: input, shape index: {}]
  %s10 = inlined_call_operand.vmem [shape: f32[4,32], index: 10, kind: input, shape index: {}]
  %s11 = inlined_call_operand.vmem [shape: f32[4,32], index: 11, kind: input, shape index: {}]
  %s12 = inlined_call_operand.vmem [shape: f32[4,32], index: 12, kind: input, shape index: {}]
  %s13 = inlined_call_operand.vmem [shape: bf16[4,32,32], index: 13, kind: input, shape index: {}]
  %s14 = inlined_call_operand.vmem [shape: f32[4,32], index: 14, kind: input, shape index: {}]
  %s15 = inlined_call_operand.vmem [shape: f32[4,32], index: 15, kind: input, shape index: {}]
  %s16 = inlined_call_operand.vmem [shape: f32[4,32], index: 16, kind: input, shape index: {}]
  %s17 = inlined_call_operand.vmem [shape: bf16[4,32,128], index: 17, kind: input, shape index: {}]
  %s18 = inlined_call_operand.vmem [shape: f32[4,128], index: 18, kind: input, shape index: {}]
  %s19 = inlined_call_operand.vmem [shape: bf16[4,128,32], index: 19, kind: input, shape index: {}]
  %s20 = inlined_call_operand.vmem [shape: f32[4,32], index: 20, kind: input, shape index: {}]
  %s21 = inlined_call_operand.vmem [shape: f32[1,32], index: 21, kind: input, shape index: {}]
  %s22 = inlined_call_operand.vmem [shape: f32[1,32], index: 22, kind: input, shape index: {}]
  %s23 = inlined_call_operand.vmem [shape: f32[1,128], index: 23, kind: input, shape index: {}]
  %s24 = inlined_call_operand.vmem [shape: f32[1,128], index: 24, kind: input, shape index: {}]
  %s25 = inlined_call_operand.vmem [shape: bf16[128,128], index: 25, kind: input, shape index: {}]
  %s26 = inlined_call_operand.vmem [shape: f32[1,128], index: 26, kind: input, shape index: {}]
  %s27 = inlined_call_operand.hbm [shape: f32[32,128], index: 27, kind: output, shape index: {}]
  %s28 = sld [smem:[#allocation0]]
  $region118: #{dinov2_segmentation_forward.1} parent=0
    _
  %s30 = ssub.s32 1, %s28
  %s31 = scalar_select 0, %s30, %s28
  $region1: #{dinov2_segmentation_forward.1} parent=0
    #allocation2 [shape = 'u8[16384]{0}', space=vmem, size = 0x4000, scoped, tag = 'output window, operand 0, single buffered']
    #allocation3 [shape = 's32[1]{0}', space=sflag, size = 0x4, scoped, tag = 'scoped memory for dinov2_segmentation_forward.1']
    %32 = vsyncpa [#allocation3], 0
    // Predicated region
    $region2: #{dinov2_segmentation_forward.1} parent=1 // pred_check
      _
    $region3: #{dinov2_segmentation_forward.1} parent=1 // pred_check_branch
      %34 = sbr.rel (0) target = $region5
    $region4: #{dinov2_segmentation_forward.1} parent=1 // pred_region
      _
    $region5: #{dinov2_segmentation_forward.1} parent=1 // pred_fallthru
      _
    // Predicated region
    $region6: #{dinov2_segmentation_forward.1} parent=1 // pred_check
      _
    $region7: #{dinov2_segmentation_forward.1} parent=1 // pred_check_branch
      %36 = sbr.rel (0) target = $region9
    $region8: #{dinov2_segmentation_forward.1} parent=1 // pred_region
      _
    $region9: #{dinov2_segmentation_forward.1} parent=1 // pred_fallthru
      _
    // Predicated region
    $region10: #{dinov2_segmentation_forward.1} parent=1 // pred_check
      _
    $region11: #{dinov2_segmentation_forward.1} parent=1 // pred_check_branch
      %38 = sbr.rel (0) target = $region13
    $region12: #{dinov2_segmentation_forward.1} parent=1 // pred_region
      _
    $region13: #{dinov2_segmentation_forward.1} parent=1 // pred_fallthru
      _
    // Predicated region
    $region14: #{dinov2_segmentation_forward.1} parent=1 // pred_check
      _
    $region15: #{dinov2_segmentation_forward.1} parent=1 // pred_check_branch
      %40 = sbr.rel (0) target = $region17
    $region16: #{dinov2_segmentation_forward.1} parent=1 // pred_region
      _
    $region17: #{dinov2_segmentation_forward.1} parent=1 // pred_fallthru
      _
    // Predicated region
    $region18: #{dinov2_segmentation_forward.1} parent=1 // pred_check
      _
    $region19: #{dinov2_segmentation_forward.1} parent=1 // pred_check_branch
      %42 = sbr.rel (0) target = $region21
    $region20: #{dinov2_segmentation_forward.1} parent=1 // pred_region
      _
    $region21: #{dinov2_segmentation_forward.1} parent=1 // pred_fallthru
      _
    // Predicated region
    $region22: #{dinov2_segmentation_forward.1} parent=1 // pred_check
      _
    $region23: #{dinov2_segmentation_forward.1} parent=1 // pred_check_branch
      %44 = sbr.rel (0) target = $region25
    $region24: #{dinov2_segmentation_forward.1} parent=1 // pred_region
      _
    $region25: #{dinov2_segmentation_forward.1} parent=1 // pred_fallthru
      _
    // Predicated region
    $region26: #{dinov2_segmentation_forward.1} parent=1 // pred_check
      _
    $region27: #{dinov2_segmentation_forward.1} parent=1 // pred_check_branch
      %46 = sbr.rel (0) target = $region29
    $region28: #{dinov2_segmentation_forward.1} parent=1 // pred_region
      _
    $region29: #{dinov2_segmentation_forward.1} parent=1 // pred_fallthru
      _
    // Predicated region
    $region30: #{dinov2_segmentation_forward.1} parent=1 // pred_check
      _
    $region31: #{dinov2_segmentation_forward.1} parent=1 // pred_check_branch
      %48 = sbr.rel (0) target = $region33
    $region32: #{dinov2_segmentation_forward.1} parent=1 // pred_region
      _
    $region33: #{dinov2_segmentation_forward.1} parent=1 // pred_fallthru
      _
    // Predicated region
    $region34: #{dinov2_segmentation_forward.1} parent=1 // pred_check
      _
    $region35: #{dinov2_segmentation_forward.1} parent=1 // pred_check_branch
      %50 = sbr.rel (0) target = $region37
    $region36: #{dinov2_segmentation_forward.1} parent=1 // pred_region
      _
    $region37: #{dinov2_segmentation_forward.1} parent=1 // pred_fallthru
      _
    // Predicated region
    $region38: #{dinov2_segmentation_forward.1} parent=1 // pred_check
      _
    $region39: #{dinov2_segmentation_forward.1} parent=1 // pred_check_branch
      %52 = sbr.rel (0) target = $region41
    $region40: #{dinov2_segmentation_forward.1} parent=1 // pred_region
      _
    $region41: #{dinov2_segmentation_forward.1} parent=1 // pred_fallthru
      _
    // Predicated region
    $region42: #{dinov2_segmentation_forward.1} parent=1 // pred_check
      _
    $region43: #{dinov2_segmentation_forward.1} parent=1 // pred_check_branch
      %54 = sbr.rel (0) target = $region45
    $region44: #{dinov2_segmentation_forward.1} parent=1 // pred_region
      _
    $region45: #{dinov2_segmentation_forward.1} parent=1 // pred_fallthru
      _
    // Predicated region
    $region46: #{dinov2_segmentation_forward.1} parent=1 // pred_check
      _
    $region47: #{dinov2_segmentation_forward.1} parent=1 // pred_check_branch
      %56 = sbr.rel (0) target = $region49
    $region48: #{dinov2_segmentation_forward.1} parent=1 // pred_region
      _
    $region49: #{dinov2_segmentation_forward.1} parent=1 // pred_fallthru
      _
    // Predicated region
    $region50: #{dinov2_segmentation_forward.1} parent=1 // pred_check
      _
    $region51: #{dinov2_segmentation_forward.1} parent=1 // pred_check_branch
      %58 = sbr.rel (0) target = $region53
    $region52: #{dinov2_segmentation_forward.1} parent=1 // pred_region
      _
    $region53: #{dinov2_segmentation_forward.1} parent=1 // pred_fallthru
      _
    // Predicated region
    $region54: #{dinov2_segmentation_forward.1} parent=1 // pred_check
      _
    $region55: #{dinov2_segmentation_forward.1} parent=1 // pred_check_branch
      %60 = sbr.rel (0) target = $region57
    $region56: #{dinov2_segmentation_forward.1} parent=1 // pred_region
      _
    $region57: #{dinov2_segmentation_forward.1} parent=1 // pred_fallthru
      _
    // Predicated region
    $region58: #{dinov2_segmentation_forward.1} parent=1 // pred_check
      _
    $region59: #{dinov2_segmentation_forward.1} parent=1 // pred_check_branch
      %62 = sbr.rel (0) target = $region61
    $region60: #{dinov2_segmentation_forward.1} parent=1 // pred_region
      _
    $region61: #{dinov2_segmentation_forward.1} parent=1 // pred_fallthru
      _
    // Predicated region
    $region62: #{dinov2_segmentation_forward.1} parent=1 // pred_check
      _
    $region63: #{dinov2_segmentation_forward.1} parent=1 // pred_check_branch
      %64 = sbr.rel (0) target = $region65
    $region64: #{dinov2_segmentation_forward.1} parent=1 // pred_region
      _
    $region65: #{dinov2_segmentation_forward.1} parent=1 // pred_fallthru
      _
    // Predicated region
    $region66: #{dinov2_segmentation_forward.1} parent=1 // pred_check
      _
    $region67: #{dinov2_segmentation_forward.1} parent=1 // pred_check_branch
      %66 = sbr.rel (0) target = $region69
    $region68: #{dinov2_segmentation_forward.1} parent=1 // pred_region
      _
    $region69: #{dinov2_segmentation_forward.1} parent=1 // pred_fallthru
      _
    // Predicated region
    $region70: #{dinov2_segmentation_forward.1} parent=1 // pred_check
      _
    $region71: #{dinov2_segmentation_forward.1} parent=1 // pred_check_branch
      %68 = sbr.rel (0) target = $region73
    $region72: #{dinov2_segmentation_forward.1} parent=1 // pred_region
      _
    $region73: #{dinov2_segmentation_forward.1} parent=1 // pred_fallthru
      _
    // Predicated region
    $region74: #{dinov2_segmentation_forward.1} parent=1 // pred_check
      _
    $region75: #{dinov2_segmentation_forward.1} parent=1 // pred_check_branch
      %70 = sbr.rel (0) target = $region77
    $region76: #{dinov2_segmentation_forward.1} parent=1 // pred_region
      _
    $region77: #{dinov2_segmentation_forward.1} parent=1 // pred_fallthru
      _
    // Predicated region
    $region78: #{dinov2_segmentation_forward.1} parent=1 // pred_check
      _
    $region79: #{dinov2_segmentation_forward.1} parent=1 // pred_check_branch
      %72 = sbr.rel (0) target = $region81
    $region80: #{dinov2_segmentation_forward.1} parent=1 // pred_region
      _
    $region81: #{dinov2_segmentation_forward.1} parent=1 // pred_fallthru
      _
    // Predicated region
    $region82: #{dinov2_segmentation_forward.1} parent=1 // pred_check
      _
    $region83: #{dinov2_segmentation_forward.1} parent=1 // pred_check_branch
      %74 = sbr.rel (0) target = $region85
    $region84: #{dinov2_segmentation_forward.1} parent=1 // pred_region
      _
    $region85: #{dinov2_segmentation_forward.1} parent=1 // pred_fallthru
      _
    // Predicated region
    $region86: #{dinov2_segmentation_forward.1} parent=1 // pred_check
      _
    $region87: #{dinov2_segmentation_forward.1} parent=1 // pred_check_branch
      %76 = sbr.rel (0) target = $region89
    $region88: #{dinov2_segmentation_forward.1} parent=1 // pred_region
      _
    $region89: #{dinov2_segmentation_forward.1} parent=1 // pred_fallthru
      _
    // Predicated region
    $region90: #{dinov2_segmentation_forward.1} parent=1 // pred_check
      _
    $region91: #{dinov2_segmentation_forward.1} parent=1 // pred_check_branch
      %78 = sbr.rel (0) target = $region93
    $region92: #{dinov2_segmentation_forward.1} parent=1 // pred_region
      _
    $region93: #{dinov2_segmentation_forward.1} parent=1 // pred_fallthru
      _
    // Predicated region
    $region94: #{dinov2_segmentation_forward.1} parent=1 // pred_check
      _
    $region95: #{dinov2_segmentation_forward.1} parent=1 // pred_check_branch
      %80 = sbr.rel (0) target = $region97
    $region96: #{dinov2_segmentation_forward.1} parent=1 // pred_region
      _
    $region97: #{dinov2_segmentation_forward.1} parent=1 // pred_fallthru
      _
    // Predicated region
    $region98: #{dinov2_segmentation_forward.1} parent=1 // pred_check
      _
    $region99: #{dinov2_segmentation_forward.1} parent=1 // pred_check_branch
      %82 = sbr.rel (0) target = $region101
    $region100: #{dinov2_segmentation_forward.1} parent=1 // pred_region
      _
    $region101: #{dinov2_segmentation_forward.1} parent=1 // pred_fallthru
      _
    // Predicated region
    $region102: #{dinov2_segmentation_forward.1} parent=1 // pred_check
      _
    $region103: #{dinov2_segmentation_forward.1} parent=1 // pred_check_branch
      %84 = sbr.rel (0) target = $region105
    $region104: #{dinov2_segmentation_forward.1} parent=1 // pred_region
      _
    $region105: #{dinov2_segmentation_forward.1} parent=1 // pred_fallthru
      _
    // Predicated region
    $region106: #{dinov2_segmentation_forward.1} parent=1 // pred_check
      _
    $region107: #{dinov2_segmentation_forward.1} parent=1 // pred_check_branch
      %86 = sbr.rel (0) target = $region109
    $region108: #{dinov2_segmentation_forward.1} parent=1 // pred_region
      _
    $region109: #{dinov2_segmentation_forward.1} parent=1 // pred_fallthru
      _
    %v88 = vld [vmem:[%s0] sm:$0xff]
    %v89 = vld [vmem:[%s0 + $0x8] sm:$0xff]
    %v90 = vld [vmem:[%s0 + $0x10] sm:$0xf]
    %v91 = vld [vmem:[%s0 + $0x14] sm:$0xff]
    %v92 = vld [vmem:[%s0 + $0x1c] sm:$0xff]
    %v93 = vld [vmem:[%s0 + $0x24] sm:$0xf]
    %v94 = vld [vmem:[%s0 + $0x28] sm:$0xff]
    %v95 = vld [vmem:[%s0 + $0x30] sm:$0xff]
    %v96 = vld [vmem:[%s0 + $0x38] sm:$0xf]
    %v97 = vld [vmem:[%s0 + $0x3c] sm:$0xff]
    %v98 = vld [vmem:[%s0 + $0x44] sm:$0xff]
    %v99 = vld [vmem:[%s0 + $0x4c] sm:$0xf]
    %v100 = vld [vmem:[%s1] sm:$0xf]
    %v101 = vld [vmem:[%s1 + $0x4] sm:$0xf]
    %v102 = vld [vmem:[%s1 + $0x8] sm:$0xf]
    %v103 = vld [vmem:[%s1 + $0xc] sm:$0xf]
    %v104 = vld [vmem:[%s1 + $0x10] sm:$0xf]
    %v105 = vld [vmem:[%s1 + $0x14] sm:$0xf]
    %v106 = vld [vmem:[%s1 + $0x18] sm:$0xf]
    %v107 = vld [vmem:[%s1 + $0x1c] sm:$0xf]
    %v108 = vld [vmem:[%s1 + $0x20] sm:$0xf]
    %v109 = vld [vmem:[%s1 + $0x24] sm:$0xf]
    %v110 = vld [vmem:[%s1 + $0x28] sm:$0xf]
    %v111 = vld [vmem:[%s1 + $0x2c] sm:$0xf]
    %v112 = vld [vmem:[%s1 + $0x30] sm:$0xf]
    %v113 = vld [vmem:[%s1 + $0x34] sm:$0xf]
    %v114 = vld [vmem:[%s1 + $0x38] sm:$0xf]
    %v115 = vld [vmem:[%s1 + $0x3c] sm:$0xf]
    %v116 = vld [vmem:[%s1 + $0x40] sm:$0xf]
    %v117 = vld [vmem:[%s1 + $0x44] sm:$0xf]
    %v118 = vld [vmem:[%s1 + $0x48] sm:$0xf]
    %v119 = vld [vmem:[%s1 + $0x4c] sm:$0xf]
    %v120 = vld [vmem:[%s1 + $0x50] sm:$0xf]
    %v121 = vld [vmem:[%s1 + $0x54] sm:$0xf]
    %v122 = vld [vmem:[%s1 + $0x58] sm:$0xf]
    %v123 = vld [vmem:[%s1 + $0x5c] sm:$0xf]
    %v124 = vld [vmem:[%s1 + $0x60] sm:$0xf]
    %v125 = vld [vmem:[%s1 + $0x64] sm:$0xf]
    %v126 = vld [vmem:[%s1 + $0x68] sm:$0xf]
    %v127 = vld [vmem:[%s1 + $0x6c] sm:$0xf]
    %v128 = vld [vmem:[%s1 + $0x70] sm:$0xf]
    %v129 = vld [vmem:[%s1 + $0x74] sm:$0xf]
    %v130 = vld [vmem:[%s1 + $0x78] sm:$0xf]
    %v131 = vld [vmem:[%s1 + $0x7c] sm:$0xf]
    %v132 = vld [vmem:[%s1 + $0x80] sm:$0xf]
    %v133 = vld [vmem:[%s1 + $0x84] sm:$0xf]
    %v134 = vld [vmem:[%s1 + $0x88] sm:$0xf]
    %v135 = vld [vmem:[%s1 + $0x8c] sm:$0xf]
    %v136 = vld [vmem:[%s1 + $0x90] sm:$0xf]
    %v137 = vld [vmem:[%s1 + $0x94] sm:$0xf]
    %v138 = vld [vmem:[%s1 + $0x98] sm:$0xf]
    %v139 = vld [vmem:[%s1 + $0x9c] sm:$0xf]
    %v140 = vld [vmem:[%s1 + $0xa0] sm:$0xf]
    %v141 = vld [vmem:[%s1 + $0xa4] sm:$0xf]
    %v142 = vld [vmem:[%s1 + $0xa8] sm:$0xf]
    %v143 = vld [vmem:[%s1 + $0xac] sm:$0xf]
    %v144 = vld [vmem:[%s1 + $0xb0] sm:$0xf]
    %v145 = vld [vmem:[%s1 + $0xb4] sm:$0xf]
    %v146 = vld [vmem:[%s1 + $0xb8] sm:$0xf]
    %v147 = vld [vmem:[%s1 + $0xbc] sm:$0xf]
    %v148 = vld [vmem:[%s1 + $0xc0] sm:$0xf]
    %v149 = vld [vmem:[%s1 + $0xc4] sm:$0xf]
    %v150 = vld [vmem:[%s1 + $0xc8] sm:$0xf]
    %v151 = vld [vmem:[%s1 + $0xcc] sm:$0xf]
    %v152 = vld [vmem:[%s1 + $0xd0] sm:$0xf]
    %v153 = vld [vmem:[%s1 + $0xd4] sm:$0xf]
    %v154 = vld [vmem:[%s1 + $0xd8] sm:$0xf]
    %v155 = vld [vmem:[%s1 + $0xdc] sm:$0xf]
    %v156 = vld [vmem:[%s1 + $0xe0] sm:$0xf]
    %v157 = vld [vmem:[%s1 + $0xe4] sm:$0xf]
    %v158 = vld [vmem:[%s1 + $0xe8] sm:$0xf]
    %v159 = vld [vmem:[%s1 + $0xec] sm:$0xf]
    %v160 = vld [vmem:[%s1 + $0xf0] sm:$0xf]
    %v161 = vld [vmem:[%s1 + $0xf4] sm:$0xf]
    %v162 = vld [vmem:[%s1 + $0xf8] sm:$0xf]
    %v163 = vld [vmem:[%s1 + $0xfc] sm:$0xf]
    %v164 = vld [vmem:[%s1 + $0x100] sm:$0xf]
    %v165 = vld [vmem:[%s1 + $0x104] sm:$0xf]
    %v166 = vld [vmem:[%s1 + $0x108] sm:$0xf]
    %v167 = vld [vmem:[%s1 + $0x10c] sm:$0xf]
    %v168 = vld [vmem:[%s1 + $0x110] sm:$0xf]
    %v169 = vld [vmem:[%s1 + $0x114] sm:$0xf]
    %v170 = vld [vmem:[%s1 + $0x118] sm:$0xf]
    %v171 = vld [vmem:[%s1 + $0x11c] sm:$0xf]
    %v172 = vld [vmem:[%s1 + $0x120] sm:$0xf]
    %v173 = vld [vmem:[%s1 + $0x124] sm:$0x3]
    %v174 = vld [vmem:[%s2] sm:$0x1]
    %v176 = vlaneseq
    %v177 = vshrl.u32 %v176, 7
    %v178 = vsub.s32 0, %v177
    %v179 = vrot.slane %v174, %v178
    %v193 = vunpack.c.l.b16 %v88
    %v194 = vunpack.c.h.b16 %v88
    %v195 = vunpack.c.l.b16 %v89
    %v196 = vunpack.c.h.b16 %v89
    %v197 = vunpack.c.l.b16 %v90
    %v198 = vunpack.c.l.b16 %v91
    %v199 = vunpack.c.h.b16 %v91
    %v200 = vunpack.c.l.b16 %v92
    %v201 = vunpack.c.h.b16 %v92
    %v202 = vunpack.c.l.b16 %v93
    %v203 = vunpack.c.l.b16 %v94
    %v204 = vunpack.c.h.b16 %v94
    %v205 = vunpack.c.l.b16 %v95
    %v206 = vunpack.c.h.b16 %v95
    %v207 = vunpack.c.l.b16 %v96
    %v208 = vunpack.c.l.b16 %v97
    %v209 = vunpack.c.h.b16 %v97
    %v210 = vunpack.c.l.b16 %v98
    %v211 = vunpack.c.h.b16 %v98
    %v212 = vunpack.c.l.b16 %v99
    %v213 = vpack.c.b16 %v198, %v193
    %v214 = vpack.c.b16 %v199, %v194
    %v215 = vpack.c.b16 %v200, %v195
    %v216 = vpack.c.b16 %v201, %v196
    %v217 = vpack.c.b16 %v202, %v197
    %v218 = vpack.c.b16 %v208, %v203
    %v219 = vpack.c.b16 %v209, %v204
    %v220 = vpack.c.b16 %v210, %v205
    %v221 = vpack.c.b16 %v211, %v206
    %v222 = vpack.c.b16 %v212, %v207
    %v305 = vunpack.c.l.b16 %v100
    %v306 = vunpack.c.l.b16 %v101
    %v307 = vunpack.c.l.b16 %v102
    %v308 = vunpack.c.l.b16 %v103
    %v309 = vunpack.c.l.b16 %v104
    %v310 = vunpack.c.l.b16 %v105
    %v311 = vunpack.c.l.b16 %v106
    %v312 = vunpack.c.l.b16 %v107
    %v313 = vunpack.c.l.b16 %v108
    %v314 = vunpack.c.l.b16 %v109
    %v315 = vunpack.c.l.b16 %v110
    %v316 = vunpack.c.l.b16 %v111
    %v317 = vunpack.c.l.b16 %v112
    %v318 = vunpack.c.l.b16 %v113
    %v319 = vunpack.c.l.b16 %v114
    %v320 = vunpack.c.l.b16 %v115
    %v321 = vunpack.c.l.b16 %v116
    %v322 = vunpack.c.l.b16 %v117
    %v323 = vunpack.c.l.b16 %v118
    %v324 = vunpack.c.l.b16 %v119
    %v325 = vunpack.c.l.b16 %v120
    %v326 = vunpack.c.l.b16 %v121
    %v327 = vunpack.c.l.b16 %v122
    %v328 = vunpack.c.l.b16 %v123
    %v329 = vunpack.c.l.b16 %v124
    %v330 = vunpack.c.l.b16 %v125
    %v331 = vunpack.c.l.b16 %v126
    %v332 = vunpack.c.l.b16 %v127
    %v333 = vunpack.c.l.b16 %v128
    %v334 = vunpack.c.l.b16 %v129
    %v335 = vunpack.c.l.b16 %v130
    %v336 = vunpack.c.l.b16 %v131
    %v337 = vunpack.c.l.b16 %v132
    %v338 = vunpack.c.l.b16 %v133
    %v339 = vunpack.c.l.b16 %v134
    %v340 = vunpack.c.l.b16 %v135
    %v341 = vunpack.c.l.b16 %v136
    %v342 = vunpack.c.l.b16 %v137
    %v343 = vunpack.c.l.b16 %v138
    %v344 = vunpack.c.l.b16 %v139
    %v345 = vunpack.c.l.b16 %v140
    %v346 = vunpack.c.l.b16 %v141
    %v347 = vunpack.c.l.b16 %v142
    %v348 = vunpack.c.l.b16 %v143
    %v349 = vunpack.c.l.b16 %v144
    %v350 = vunpack.c.l.b16 %v145
    %v351 = vunpack.c.l.b16 %v146
    %v352 = vunpack.c.l.b16 %v147
    %v353 = vunpack.c.l.b16 %v148
    %v354 = vunpack.c.l.b16 %v149
    %v355 = vunpack.c.l.b16 %v150
    %v356 = vunpack.c.l.b16 %v151
    %v357 = vunpack.c.l.b16 %v152
    %v358 = vunpack.c.l.b16 %v153
    %v359 = vunpack.c.l.b16 %v154
    %v360 = vunpack.c.l.b16 %v155
    %v361 = vunpack.c.l.b16 %v156
    %v362 = vunpack.c.l.b16 %v157
    %v363 = vunpack.c.l.b16 %v158
    %v364 = vunpack.c.l.b16 %v159
    %v365 = vunpack.c.l.b16 %v160
    %v366 = vunpack.c.l.b16 %v161
    %v367 = vunpack.c.l.b16 %v162
    %v368 = vunpack.c.l.b16 %v163
    %v369 = vunpack.c.l.b16 %v164
    %v370 = vunpack.c.l.b16 %v165
    %v371 = vunpack.c.l.b16 %v166
    %v372 = vunpack.c.l.b16 %v167
    %v373 = vunpack.c.l.b16 %v168
    %v374 = vunpack.c.l.b16 %v169
    %v375 = vunpack.c.l.b16 %v170
    %v376 = vunpack.c.l.b16 %v171
    %v377 = vunpack.c.l.b16 %v172
    %v378 = vunpack.c.l.b16 %v173
    %v379 = vpack.c.b16 %v306, %v305
    %v380 = vpack.c.b16 %v308, %v307
    %v381 = vpack.c.b16 %v310, %v309
    %v382 = vpack.c.b16 %v312, %v311
    %v383 = vpack.c.b16 %v314, %v313
    %v384 = vpack.c.b16 %v316, %v315
    %v385 = vpack.c.b16 %v318, %v317
    %v386 = vpack.c.b16 %v320, %v319
    %v387 = vpack.c.b16 %v322, %v321
    %v388 = vpack.c.b16 %v324, %v323
    %v389 = vpack.c.b16 %v326, %v325
    %v390 = vpack.c.b16 %v328, %v327
    %v391 = vpack.c.b16 %v330, %v329
    %v392 = vpack.c.b16 %v332, %v331
    %v393 = vpack.c.b16 %v334, %v333
    %v394 = vpack.c.b16 %v336, %v335
    %v395 = vpack.c.b16 %v338, %v337
    %v396 = vpack.c.b16 %v340, %v339
    %v397 = vpack.c.b16 %v342, %v341
    %v398 = vpack.c.b16 %v344, %v343
    %v399 = vpack.c.b16 %v346, %v345
    %v400 = vpack.c.b16 %v348, %v347
    %v401 = vpack.c.b16 %v350, %v349
    %v402 = vpack.c.b16 %v352, %v351
    %v403 = vpack.c.b16 %v354, %v353
    %v404 = vpack.c.b16 %v356, %v355
    %v405 = vpack.c.b16 %v358, %v357
    %v406 = vpack.c.b16 %v360, %v359
    %v407 = vpack.c.b16 %v362, %v361
    %v408 = vpack.c.b16 %v364, %v363
    %v409 = vpack.c.b16 %v366, %v365
    %v410 = vpack.c.b16 %v368, %v367
    %v411 = vpack.c.b16 %v370, %v369
    %v412 = vpack.c.b16 %v372, %v371
    %v413 = vpack.c.b16 %v374, %v373
    %v414 = vpack.c.b16 %v376, %v375
    %v415 = vpack.c.b16 %v378, %v377
    %vm452 = vcmask 621568
    %v454 = vsel %vm452, %v217, 0
    %v457 = vsel %vm452, %v222, 0
    %vm459 = vcmask 1045504
    %v461 = vsel %vm459, %v415, 0
    %463 = vmatprep.subr.bf16.mxu0 0
    %464 = vmatpush1.bf16.msra.mxu0 %v386
    %465 = vmatprep.subr.bf16.mxu0 0
    %466 = vmatpush1.bf16.msra.mxu0 %v385
    %467 = vmatprep.subr.bf16.mxu0 0
    %468 = vmatpush1.bf16.msra.mxu0 %v384
    %469 = vmatprep.subr.bf16.mxu0 0
    %470 = vmatpush1.bf16.msra.mxu0 %v383
    %471 = vmatprep.subr.bf16.mxu0 0
    %472 = vmatpush1.bf16.msra.mxu0 %v382
    %473 = vmatprep.subr.bf16.mxu0 0
    %474 = vmatpush1.bf16.msra.mxu0 %v381
    %475 = vmatprep.subr.bf16.mxu0 0
    %476 = vmatpush1.bf16.msra.mxu0 %v380
    %477 = vmatprep.subr.bf16.mxu0 0
    %478 = vmatpush1.bf16.msra.mxu0 %v379
    %479 = vmatprep.subr.bf16.mxu0 0
    %480 = vmatpush2.bf16.msra.mxu0 %v394
    %481 = vmatprep.subr.bf16.mxu0 0
    %482 = vmatpush2.bf16.msra.mxu0 %v393
    %483 = vmatprep.subr.bf16.mxu0 0
    %484 = vmatpush2.bf16.msra.mxu0 %v392
    %485 = vmatprep.subr.bf16.mxu0 0
    %486 = vmatpush2.bf16.msra.mxu0 %v391
    %487 = vmatprep.subr.bf16.mxu0 0
    %488 = vmatpush2.bf16.msra.mxu0 %v390
    %489 = vmatprep.subr.bf16.mxu0 0
    %490 = vmatpush2.bf16.msra.mxu0 %v389
    %491 = vmatprep.subr.bf16.mxu0 0
    %492 = vmatpush2.bf16.msra.mxu0 %v388
    %493 = vmatprep.subr.bf16.mxu0 0
    %494 = vmatpush2.bf16.msra.mxu0 %v387
    %495 = vmatprep.mubr.bf16.mxu0 %v214
    %496 = vmatmul.mubr.bf16.gmra.mxu0 %v213
    %v497 = vpop.f32.mrf.mxu0
    %v498 = vadd.f32 %v179, %v497
    %v499 = vpop.f32.mrf.mxu0
    %v500 = vpop.f32.mrf.mxu0
    %v501 = vadd.f32 %v179, %v500
    %v502 = vpop.f32.mrf.mxu0
    %503 = vmatprep.mubr.bf16.mxu0 %v219
    %504 = vmatmul.mubr.bf16.gmra.mxu0 %v218
    %v505 = vpop.f32.mrf.mxu0
    %v506 = vadd.f32 %v179, %v505
    %v507 = vpop.f32.mrf.mxu0
    %v508 = vpop.f32.mrf.mxu0
    %v509 = vadd.f32 %v179, %v508
    %v510 = vpop.f32.mrf.mxu0
    %511 = vdwg.mxu0
    %512 = vmatprep.subr.bf16.mxu0 0
    %513 = vmatpush1.bf16.msra.mxu0 %v402
    %514 = vmatprep.subr.bf16.mxu0 0
    %515 = vmatpush1.bf16.msra.mxu0 %v401
    %516 = vmatprep.subr.bf16.mxu0 0
    %517 = vmatpush1.bf16.msra.mxu0 %v400
    %518 = vmatprep.subr.bf16.mxu0 0
    %519 = vmatpush1.bf16.msra.mxu0 %v399
    %520 = vmatprep.subr.bf16.mxu0 0
    %521 = vmatpush1.bf16.msra.mxu0 %v398
    %522 = vmatprep.subr.bf16.mxu0 0
    %523 = vmatpush1.bf16.msra.mxu0 %v397
    %524 = vmatprep.subr.bf16.mxu0 0
    %525 = vmatpush1.bf16.msra.mxu0 %v396
    %526 = vmatprep.subr.bf16.mxu0 0
    %527 = vmatpush1.bf16.msra.mxu0 %v395
    %528 = vmatprep.subr.bf16.mxu0 0
    %529 = vmatpush2.bf16.msra.mxu0 %v410
    %530 = vmatprep.subr.bf16.mxu0 0
    %531 = vmatpush2.bf16.msra.mxu0 %v409
    %532 = vmatprep.subr.bf16.mxu0 0
    %533 = vmatpush2.bf16.msra.mxu0 %v408
    %534 = vmatprep.subr.bf16.mxu0 0
    %535 = vmatpush2.bf16.msra.mxu0 %v407
    %536 = vmatprep.subr.bf16.mxu0 0
    %537 = vmatpush2.bf16.msra.mxu0 %v406
    %538 = vmatprep.subr.bf16.mxu0 0
    %539 = vmatpush2.bf16.msra.mxu0 %v405
    %540 = vmatprep.subr.bf16.mxu0 0
    %541 = vmatpush2.bf16.msra.mxu0 %v404
    %542 = vmatprep.subr.bf16.mxu0 0
    %543 = vmatpush2.bf16.msra.mxu0 %v403
    %544 = vmatprep.mubr.bf16.mxu0 %v216
    %545 = vmatmul.mubr.bf16.gmra.mxu0 %v215
    %v546 = vpop.f32.mrf.mxu0
    %v547 = vadd.f32 %v498, %v546
    %v548 = vpop.f32.mrf.mxu0
    %v549 = vpop.f32.mrf.mxu0
    %v550 = vadd.f32 %v501, %v549
    %v551 = vpop.f32.mrf.mxu0
    %552 = vmatprep.mubr.bf16.mxu0 %v221
    %553 = vmatmul.mubr.bf16.gmra.mxu0 %v220
    %v554 = vpop.f32.mrf.mxu0
    %v555 = vadd.f32 %v506, %v554
    %v556 = vpop.f32.mrf.mxu0
    %v557 = vpop.f32.mrf.mxu0
    %v558 = vadd.f32 %v509, %v557
    %v559 = vpop.f32.mrf.mxu0
    %560 = vdwg.mxu0
    %561 = vmatprep.subr.bf16.mxu0 0
    %562 = vmatpush1.bf16.msra.mxu0 0
    %563 = vmatprep.subr.bf16.mxu0 0
    %564 = vmatpush1.bf16.msra.mxu0 0
    %565 = vmatprep.subr.bf16.mxu0 0
    %566 = vmatpush1.bf16.msra.mxu0 0
    %567 = vmatprep.subr.bf16.mxu0 0
    %568 = vmatpush1.bf16.msra.mxu0 %v461
    %569 = vmatprep.subr.bf16.mxu0 0
    %570 = vmatpush1.bf16.msra.mxu0 %v414
    %571 = vmatprep.subr.bf16.mxu0 0
    %572 = vmatpush1.bf16.msra.mxu0 %v413
    %573 = vmatprep.subr.bf16.mxu0 0
    %574 = vmatpush1.bf16.msra.mxu0 %v412
    %575 = vmatprep.subr.bf16.mxu0 0
    %576 = vmatpush1.bf16.msra.mxu0 %v411
    %577 = vmatprep.subr.bf16.mxu0 0
    %578 = vmatpush2.bf16.msra.mxu0 0
    %579 = vmatprep.subr.bf16.mxu0 0
    %580 = vmatpush2.bf16.msra.mxu0 0
    %581 = vmatprep.subr.bf16.mxu0 0
    %582 = vmatpush2.bf16.msra.mxu0 0
    %583 = vmatprep.subr.bf16.mxu0 0
    %584 = vmatpush2.bf16.msra.mxu0 0
    %585 = vmatprep.subr.bf16.mxu0 0
    %586 = vmatpush2.bf16.msra.mxu0 0
    %587 = vmatprep.subr.bf16.mxu0 0
    %588 = vmatpush2.bf16.msra.mxu0 0
    %589 = vmatprep.subr.bf16.mxu0 0
    %590 = vmatpush2.bf16.msra.mxu0 0
    %591 = vmatprep.subr.bf16.mxu0 0
    %592 = vmatpush2.bf16.msra.mxu0 0
    %593 = vmatprep.mubr.bf16.mxu0 0
    %594 = vmatmul.mubr.bf16.gmra.mxu0 %v454
    %v595 = vpop.f32.mrf.mxu0
    %v596 = vadd.f32 %v547, %v595
    %v597 = vpop.f32.mrf.mxu0
    %v598 = vpop.f32.mrf.mxu0
    %v599 = vadd.f32 %v550, %v598
    %v600 = vpop.f32.mrf.mxu0
    %601 = vmatprep.mubr.bf16.mxu0 0
    %602 = vmatmul.mubr.bf16.gmra.mxu0 %v457
    %v603 = vpop.f32.mrf.mxu0
    %v604 = vadd.f32 %v555, %v603
    %v605 = vpop.f32.mrf.mxu0
    %v606 = vpop.f32.mrf.mxu0
    %v607 = vadd.f32 %v558, %v606
    %v608 = vpop.f32.mrf.mxu0
    %609 = vdwg.mxu0
    %v610 = vld [vmem:[%s3] sm:$0xff]
    %v611 = vld [vmem:[%s3 + $0x8] sm:$0xff]
    %v612 = vadd.f32 %v596, %v610
    %v613 = vadd.f32 %v599, %v611
    %v614 = vadd.f32 %v604, %v610
    %v615 = vadd.f32 %v607, %v611
    %v616 = vld [vmem:[%s4] sm:$0xff]
    %v617 = vld [vmem:[%s4 + $0x8] sm:$0xff]
    %v618 = vlaneseq
    %v619 = vand.u32 %v618, 127
    %vm620 = vcmp.lt.s32.totalorder %v619, 17
    %v621 = vsel %vm620, 0.0, -1e+30
    %v622 = vld [vmem:[%s5] sm:$0x1]
    %v623 = vld [vmem:[%s6] sm:$0x1]
    %vm624 = vcmask 261120
    %v625 = vsel %vm624, %v612, 0.0
    %626 = vadd.xlane.f32.xlu0 %v625
    %v627 = vpop.xlane.xlu0 %626
    %v628 = vsel %vm624, %v613, 0.0
    %629 = vadd.xlane.f32.xlu0 %v628
    %v630 = vpop.xlane.xlu0 %629
    %v631 = vsel %vm624, %v616, 0.0
    %632 = vadd.xlane.f32.xlu0 %v631
    %v633 = vpop.xlane.xlu0 %632
    %v634 = vsel %vm624, %v614, 0.0
    %635 = vadd.xlane.f32.xlu0 %v634
    %v636 = vpop.xlane.xlu0 %635
    %v637 = vsel %vm624, %v615, 0.0
    %638 = vadd.xlane.f32.xlu0 %v637
    %v639 = vpop.xlane.xlu0 %638
    %v640 = vsel %vm624, %v617, 0.0
    %641 = vadd.xlane.f32.xlu0 %v640
    %v642 = vpop.xlane.xlu0 %641
    %v643 = vrcp.pop 32.0
    %v644 = vmul.f32 %v627, %v643
    %v645 = vmul.f32 %v630, %v643
    %v646 = vmul.f32 %v633, %v643
    %v647 = vmul.f32 %v636, %v643
    %v648 = vmul.f32 %v639, %v643
    %v649 = vmul.f32 %v642, %v643
    %v650 = vsub.f32 %v612, %v644
    %v651 = vsub.f32 %v613, %v645
    %v652 = vsub.f32 %v616, %v646
    %v653 = vsub.f32 %v614, %v647
    %v654 = vsub.f32 %v615, %v648
    %v655 = vsub.f32 %v617, %v649
    %v656 = vmul.f32 %v650, %v650
    %v657 = vmul.f32 %v651, %v651
    %v658 = vmul.f32 %v652, %v652
    %v659 = vmul.f32 %v653, %v653
    %v660 = vmul.f32 %v654, %v654
    %v661 = vmul.f32 %v655, %v655
    %v662 = vsel %vm624, %v656, 0.0
    %663 = vadd.xlane.f32.xlu0 %v662
    %v664 = vpop.xlane.xlu0 %663
    %v665 = vsel %vm624, %v657, 0.0
    %666 = vadd.xlane.f32.xlu0 %v665
    %v667 = vpop.xlane.xlu0 %666
    %v668 = vsel %vm624, %v658, 0.0
    %669 = vadd.xlane.f32.xlu0 %v668
    %v670 = vpop.xlane.xlu0 %669
    %v671 = vsel %vm624, %v659, 0.0
    %672 = vadd.xlane.f32.xlu0 %v671
    %v673 = vpop.xlane.xlu0 %672
    %v674 = vsel %vm624, %v660, 0.0
    %675 = vadd.xlane.f32.xlu0 %v674
    %v676 = vpop.xlane.xlu0 %675
    %v677 = vsel %vm624, %v661, 0.0
    %678 = vadd.xlane.f32.xlu0 %v677
    %v679 = vpop.xlane.xlu0 %678
    %v680 = vmul.f32 %v664, %v643
    %v681 = vmul.f32 %v667, %v643
    %v682 = vmul.f32 %v670, %v643
    %v683 = vmul.f32 %v673, %v643
    %v684 = vmul.f32 %v676, %v643
    %v685 = vmul.f32 %v679, %v643
    %v686 = vadd.f32 %v680, 1e-06
    %v687 = vadd.f32 %v681, 1e-06
    %v688 = vadd.f32 %v682, 1e-06
    %v689 = vadd.f32 %v683, 1e-06
    %v690 = vadd.f32 %v684, 1e-06
    %v691 = vadd.f32 %v685, 1e-06
    %v692 = vrsqrt.pop %v686
    %v693 = vrsqrt.pop %v687
    %v694 = vrsqrt.pop %v688
    %v695 = vrsqrt.pop %v689
    %v696 = vrsqrt.pop %v690
    %v697 = vrsqrt.pop %v691
    %v698 = vmul.f32 %v650, %v692
    %v699 = vmul.f32 %v651, %v693
    %v700 = vmul.f32 %v652, %v694
    %v701 = vmul.f32 %v653, %v695
    %v702 = vmul.f32 %v654, %v696
    %v703 = vmul.f32 %v655, %v697
    %v704 = vlaneseq
    %v705 = vshrl.u32 %v704, 7
    %v706 = vsub.s32 0, %v705
    %v707 = vrot.slane %v622, %v706
    %v708 = vmul.f32 %v698, %v707
    %v709 = vmul.f32 %v699, %v707
    %v710 = vmul.f32 %v700, %v707
    %v711 = vmul.f32 %v701, %v707
    %v712 = vmul.f32 %v702, %v707
    %v713 = vmul.f32 %v703, %v707
    %v714 = vlaneseq
    %v715 = vshrl.u32 %v714, 7
    %v716 = vsub.s32 0, %v715
    %v717 = vrot.slane %v623, %v716
    %v718 = vadd.f32 %v708, %v717
    %v719 = vadd.f32 %v709, %v717
    %v720 = vadd.f32 %v710, %v717
    %v721 = vadd.f32 %v711, %v717
    %v722 = vadd.f32 %v712, %v717
    %v723 = vadd.f32 %v713, %v717
    %v724 = vpack.c.bf16 %v719, %v718
    %v725 = vpack.c.bf16 %v721, %v720
    %v726 = vpack.c.bf16 %v723, %v722
    %v727 = vld [vmem:[%s7] sm:$0xf]
    %v728 = vld [vmem:[%s7 + $0x4] sm:$0xf]
    %v729 = vld [vmem:[%s7 + $0x8] sm:$0xf]
    %v730 = vld [vmem:[%s7 + $0xc] sm:$0xf]
    %v731 = vld [vmem:[%s10] sm:$0x1]
    %v732 = vlaneseq
    %v733 = vshrl.u32 %v732, 7
    %v734 = vsub.s32 0, %v733
    %v735 = vrot.slane %v731, %v734
    %v740 = vunpack.c.l.b16 %v727
    %v741 = vunpack.c.l.b16 %v728
    %v742 = vunpack.c.l.b16 %v729
    %v743 = vunpack.c.l.b16 %v730
    %v744 = vpack.c.b16 %v741, %v740
    %v745 = vpack.c.b16 %v743, %v742
    %v749 = vsel %vm624, %v724, 0
    %v752 = vsel %vm624, %v725, 0
    %v755 = vsel %vm624, %v726, 0
    %757 = vmatprep.subr.bf16.mxu0 0
    %758 = vmatpush1.bf16.msra.mxu0 0
    %759 = vmatprep.subr.bf16.mxu0 0
    %760 = vmatpush1.bf16.msra.mxu0 0
    %761 = vmatprep.subr.bf16.mxu0 0
    %762 = vmatpush1.bf16.msra.mxu0 0
    %763 = vmatprep.subr.bf16.mxu0 0
    %764 = vmatpush1.bf16.msra.mxu0 0
    %765 = vmatprep.subr.bf16.mxu0 0
    %766 = vmatpush1.bf16.msra.mxu0 0
    %767 = vmatprep.subr.bf16.mxu0 0
    %768 = vmatpush1.bf16.msra.mxu0 0
    %769 = vmatprep.subr.bf16.mxu0 0
    %770 = vmatpush1.bf16.msra.mxu0 %v745
    %771 = vmatprep.subr.bf16.mxu0 0
    %772 = vmatpush1.bf16.msra.mxu0 %v744
    %773 = vmatprep.subr.bf16.mxu0 0
    %774 = vmatpush2.bf16.msra.mxu0 0
    %775 = vmatprep.subr.bf16.mxu0 0
    %776 = vmatpush2.bf16.msra.mxu0 0
    %777 = vmatprep.subr.bf16.mxu0 0
    %778 = vmatpush2.bf16.msra.mxu0 0
    %779 = vmatprep.subr.bf16.mxu0 0
    %780 = vmatpush2.bf16.msra.mxu0 0
    %781 = vmatprep.subr.bf16.mxu0 0
    %782 = vmatpush2.bf16.msra.mxu0 0
    %783 = vmatprep.subr.bf16.mxu0 0
    %784 = vmatpush2.bf16.msra.mxu0 0
    %785 = vmatprep.subr.bf16.mxu0 0
    %786 = vmatpush2.bf16.msra.mxu0 0
    %787 = vmatprep.subr.bf16.mxu0 0
    %788 = vmatpush2.bf16.msra.mxu0 0
    %789 = vmatprep.mubr.bf16.mxu0 0
    %790 = vmatmul.mubr.bf16.gmra.mxu0 %v749
    %v791 = vpop.f32.mrf.mxu0
    %v792 = vadd.f32 %v735, %v791
    %v793 = vpop.f32.mrf.mxu0
    %v794 = vpop.f32.mrf.mxu0
    %v795 = vadd.f32 %v735, %v794
    %v796 = vpop.f32.mrf.mxu0
    %797 = vmatprep.mubr.bf16.mxu0 0
    %798 = vmatmul.mubr.bf16.gmra.mxu0 %v752
    %v799 = vpop.f32.mrf.mxu0
    %v800 = vadd.f32 %v735, %v799
    %v801 = vpop.f32.mrf.mxu0
    %v802 = vpop.f32.mrf.mxu0
    %v803 = vadd.f32 %v735, %v802
    %v804 = vpop.f32.mrf.mxu0
    %805 = vmatprep.mubr.bf16.mxu0 0
    %806 = vmatmul.mubr.bf16.gmra.mxu0 %v755
    %v807 = vpop.f32.mrf.mxu0
    %v808 = vadd.f32 %v735, %v807
    %v809 = vpop.f32.mrf.mxu0
    %v810 = vpop.f32.mrf.mxu0
    %v811 = vadd.f32 %v735, %v810
    %v812 = vpop.f32.mrf.mxu0
    %813 = vdwg.mxu0
    %v814 = vld [vmem:[%s8] sm:$0xf]
    %v815 = vld [vmem:[%s8 + $0x4] sm:$0xf]
    %v816 = vld [vmem:[%s8 + $0x8] sm:$0xf]
    %v817 = vld [vmem:[%s8 + $0xc] sm:$0xf]
    %v818 = vld [vmem:[%s11] sm:$0x1]
    %v819 = vlaneseq
    %v820 = vshrl.u32 %v819, 7
    %v821 = vsub.s32 0, %v820
    %v822 = vrot.slane %v818, %v821
    %v827 = vunpack.c.l.b16 %v814
    %v828 = vunpack.c.l.b16 %v815
    %v829 = vunpack.c.l.b16 %v816
    %v830 = vunpack.c.l.b16 %v817
    %v831 = vpack.c.b16 %v828, %v827
    %v832 = vpack.c.b16 %v830, %v829
    %835 = vmatprep.subr.bf16.mxu0 0
    %836 = vmatpush1.bf16.msra.mxu0 0
    %837 = vmatprep.subr.bf16.mxu0 0
    %838 = vmatpush1.bf16.msra.mxu0 0
    %839 = vmatprep.subr.bf16.mxu0 0
    %840 = vmatpush1.bf16.msra.mxu0 0
    %841 = vmatprep.subr.bf16.mxu0 0
    %842 = vmatpush1.bf16.msra.mxu0 0
    %843 = vmatprep.subr.bf16.mxu0 0
    %844 = vmatpush1.bf16.msra.mxu0 0
    %845 = vmatprep.subr.bf16.mxu0 0
    %846 = vmatpush1.bf16.msra.mxu0 0
    %847 = vmatprep.subr.bf16.mxu0 0
    %848 = vmatpush1.bf16.msra.mxu0 %v832
    %849 = vmatprep.subr.bf16.mxu0 0
    %850 = vmatpush1.bf16.msra.mxu0 %v831
    %851 = vmatprep.subr.bf16.mxu0 0
    %852 = vmatpush2.bf16.msra.mxu0 0
    %853 = vmatprep.subr.bf16.mxu0 0
    %854 = vmatpush2.bf16.msra.mxu0 0
    %855 = vmatprep.subr.bf16.mxu0 0
    %856 = vmatpush2.bf16.msra.mxu0 0
    %857 = vmatprep.subr.bf16.mxu0 0
    %858 = vmatpush2.bf16.msra.mxu0 0
    %859 = vmatprep.subr.bf16.mxu0 0
    %860 = vmatpush2.bf16.msra.mxu0 0
    %861 = vmatprep.subr.bf16.mxu0 0
    %862 = vmatpush2.bf16.msra.mxu0 0
    %863 = vmatprep.subr.bf16.mxu0 0
    %864 = vmatpush2.bf16.msra.mxu0 0
    %865 = vmatprep.subr.bf16.mxu0 0
    %866 = vmatpush2.bf16.msra.mxu0 0
    %867 = vmatprep.mubr.bf16.mxu0 0
    %868 = vmatmul.mubr.bf16.gmra.mxu0 %v749
    %v869 = vpop.f32.mrf.mxu0
    %v870 = vadd.f32 %v822, %v869
    %v871 = vpop.f32.mrf.mxu0
    %v872 = vpop.f32.mrf.mxu0
    %v873 = vadd.f32 %v822, %v872
    %v874 = vpop.f32.mrf.mxu0
    %875 = vmatprep.mubr.bf16.mxu0 0
    %876 = vmatmul.mubr.bf16.gmra.mxu0 %v752
    %v877 = vpop.f32.mrf.mxu0
    %v878 = vadd.f32 %v822, %v877
    %v879 = vpop.f32.mrf.mxu0
    %v880 = vpop.f32.mrf.mxu0
    %v881 = vadd.f32 %v822, %v880
    %v882 = vpop.f32.mrf.mxu0
    %883 = vmatprep.mubr.bf16.mxu0 0
    %884 = vmatmul.mubr.bf16.gmra.mxu0 %v755
    %v885 = vpop.f32.mrf.mxu0
    %v886 = vadd.f32 %v822, %v885
    %v887 = vpop.f32.mrf.mxu0
    %v888 = vpop.f32.mrf.mxu0
    %v889 = vadd.f32 %v822, %v888
    %v890 = vpop.f32.mrf.mxu0
    %891 = vdwg.mxu0
    %v892 = vld [vmem:[%s9] sm:$0xf]
    %v893 = vld [vmem:[%s9 + $0x4] sm:$0xf]
    %v894 = vld [vmem:[%s9 + $0x8] sm:$0xf]
    %v895 = vld [vmem:[%s9 + $0xc] sm:$0xf]
    %v896 = vld [vmem:[%s12] sm:$0x1]
    %v897 = vlaneseq
    %v898 = vshrl.u32 %v897, 7
    %v899 = vsub.s32 0, %v898
    %v900 = vrot.slane %v896, %v899
    %v905 = vunpack.c.l.b16 %v892
    %v906 = vunpack.c.l.b16 %v893
    %v907 = vunpack.c.l.b16 %v894
    %v908 = vunpack.c.l.b16 %v895
    %v909 = vpack.c.b16 %v906, %v905
    %v910 = vpack.c.b16 %v908, %v907
    %913 = vmatprep.subr.bf16.mxu0 0
    %914 = vmatpush1.bf16.msra.mxu0 0
    %915 = vmatprep.subr.bf16.mxu0 0
    %916 = vmatpush1.bf16.msra.mxu0 0
    %917 = vmatprep.subr.bf16.mxu0 0
    %918 = vmatpush1.bf16.msra.mxu0 0
    %919 = vmatprep.subr.bf16.mxu0 0
    %920 = vmatpush1.bf16.msra.mxu0 0
    %921 = vmatprep.subr.bf16.mxu0 0
    %922 = vmatpush1.bf16.msra.mxu0 0
    %923 = vmatprep.subr.bf16.mxu0 0
    %924 = vmatpush1.bf16.msra.mxu0 0
    %925 = vmatprep.subr.bf16.mxu0 0
    %926 = vmatpush1.bf16.msra.mxu0 %v910
    %927 = vmatprep.subr.bf16.mxu0 0
    %928 = vmatpush1.bf16.msra.mxu0 %v909
    %929 = vmatprep.subr.bf16.mxu0 0
    %930 = vmatpush2.bf16.msra.mxu0 0
    %931 = vmatprep.subr.bf16.mxu0 0
    %932 = vmatpush2.bf16.msra.mxu0 0
    %933 = vmatprep.subr.bf16.mxu0 0
    %934 = vmatpush2.bf16.msra.mxu0 0
    %935 = vmatprep.subr.bf16.mxu0 0
    %936 = vmatpush2.bf16.msra.mxu0 0
    %937 = vmatprep.subr.bf16.mxu0 0
    %938 = vmatpush2.bf16.msra.mxu0 0
    %939 = vmatprep.subr.bf16.mxu0 0
    %940 = vmatpush2.bf16.msra.mxu0 0
    %941 = vmatprep.subr.bf16.mxu0 0
    %942 = vmatpush2.bf16.msra.mxu0 0
    %943 = vmatprep.subr.bf16.mxu0 0
    %944 = vmatpush2.bf16.msra.mxu0 0
    %945 = vmatprep.mubr.bf16.mxu0 0
    %946 = vmatmul.mubr.bf16.gmra.mxu0 %v749
    %v947 = vpop.f32.mrf.mxu0
    %v948 = vadd.f32 %v900, %v947
    %v949 = vpop.f32.mrf.mxu0
    %v950 = vpop.f32.mrf.mxu0
    %v951 = vadd.f32 %v900, %v950
    %v952 = vpop.f32.mrf.mxu0
    %953 = vmatprep.mubr.bf16.mxu0 0
    %954 = vmatmul.mubr.bf16.gmra.mxu0 %v752
    %v955 = vpop.f32.mrf.mxu0
    %v956 = vadd.f32 %v900, %v955
    %v957 = vpop.f32.mrf.mxu0
    %v958 = vpop.f32.mrf.mxu0
    %v959 = vadd.f32 %v900, %v958
    %v960 = vpop.f32.mrf.mxu0
    %961 = vmatprep.mubr.bf16.mxu0 0
    %962 = vmatmul.mubr.bf16.gmra.mxu0 %v755
    %v963 = vpop.f32.mrf.mxu0
    %v964 = vadd.f32 %v900, %v963
    %v965 = vpop.f32.mrf.mxu0
    %v966 = vpop.f32.mrf.mxu0
    %v967 = vadd.f32 %v900, %v966
    %v968 = vpop.f32.mrf.mxu0
    %969 = vdwg.mxu0
    %v970 = vpack.c.bf16 %v795, %v792
    %v971 = vpack.c.bf16 %v800, %v800
    %v972 = vpack.c.bf16 %v808, %v803
    %v973 = vpack.c.bf16 %v811, %v811
    %v974 = vpack.c.bf16 %v873, %v870
    %v975 = vpack.c.bf16 %v878, %v878
    %v976 = vpack.c.bf16 %v886, %v881
    %v977 = vpack.c.bf16 %v889, %v889
    %v978 = vpack.c.bf16 %v951, %v948
    %v979 = vpack.c.bf16 %v956, %v956
    %v980 = vpack.c.bf16 %v964, %v959
    %v981 = vpack.c.bf16 %v967, %v967
    %vm982 = vcmask 130048
    %v984 = vsel %vm982, %v970, 0
    %v987 = vsel %vm982, %v971, 0
    %v990 = vsel %vm982, %v974, 0
    %v993 = vsel %vm982, %v975, 0
    %995 = vmatprep.subr.bf16.mxu0 0
    %996 = vmatpush1.bf16.xpose.msra.mxu0 0
    %997 = vmatprep.subr.bf16.mxu0 0
    %998 = vmatpush1.bf16.xpose.msra.mxu0 0
    %999 = vmatprep.subr.bf16.mxu0 0
    %1000 = vmatpush1.bf16.xpose.msra.mxu0 0
    %1001 = vmatprep.subr.bf16.mxu0 0
    %1002 = vmatpush1.bf16.xpose.msra.mxu0 0
    %1003 = vmatprep.subr.bf16.mxu0 0
    %1004 = vmatpush1.bf16.xpose.msra.mxu0 0
    %1005 = vmatprep.subr.bf16.mxu0 0
    %1006 = vmatpush1.bf16.xpose.msra.mxu0 0
    %1007 = vmatprep.subr.bf16.mxu0 0
    %1008 = vmatpush1.bf16.xpose.msra.mxu0 %v993
    %1009 = vmatprep.subr.bf16.mxu0 0
    %1010 = vmatpush1.bf16.xpose.msra.mxu0 %v990
    %1011 = vmatprep.subr.bf16.mxu0 0
    %1012 = vmatpush2.bf16.xpose.msra.mxu0 0
    %1013 = vmatprep.subr.bf16.mxu0 0
    %1014 = vmatpush2.bf16.xpose.msra.mxu0 0
    %1015 = vmatprep.subr.bf16.mxu0 0
    %1016 = vmatpush2.bf16.xpose.msra.mxu0 0
    %1017 = vmatprep.subr.bf16.mxu0 0
    %1018 = vmatpush2.bf16.xpose.msra.mxu0 0
    %1019 = vmatprep.subr.bf16.mxu0 0
    %1020 = vmatpush2.bf16.xpose.msra.mxu0 0
    %1021 = vmatprep.subr.bf16.mxu0 0
    %1022 = vmatpush2.bf16.xpose.msra.mxu0 0
    %1023 = vmatprep.subr.bf16.mxu0 0
    %1024 = vmatpush2.bf16.xpose.msra.mxu0 0
    %1025 = vmatprep.subr.bf16.mxu0 0
    %1026 = vmatpush2.bf16.xpose.msra.mxu0 0
    %1027 = vmatprep.mubr.bf16.mxu0 0
    %1028 = vmatmul.mubr.bf16.gmra.mxu0 %v984
    %v1029 = vpop.f32.mrf.mxu0
    %v1030 = vadd.f32 0.0, %v1029
    %v1031 = vpop.f32.mrf.mxu0
    %v1032 = vpop.f32.mrf.mxu0
    %v1033 = vadd.f32 0.0, %v1032
    %v1034 = vpop.f32.mrf.mxu0
    %1035 = vmatprep.mubr.bf16.mxu0 0
    %1036 = vmatmul.mubr.bf16.gmra.mxu0 %v987
    %v1037 = vpop.f32.mrf.mxu0
    %v1038 = vadd.f32 0.0, %v1037
    %v1039 = vpop.f32.mrf.mxu0
    %v1040 = vpop.f32.mrf.mxu0
    %v1041 = vpop.f32.mrf.mxu0
    %1042 = vdwg.mxu0
    %v1044 = vsel %vm982, %v972, 0
    %v1047 = vsel %vm982, %v973, 0
    %v1050 = vsel %vm982, %v976, 0
    %v1053 = vsel %vm982, %v977, 0
    %1055 = vmatprep.subr.bf16.mxu0 0
    %1056 = vmatpush1.bf16.xpose.msra.mxu0 0
    %1057 = vmatprep.subr.bf16.mxu0 0
    %1058 = vmatpush1.bf16.xpose.msra.mxu0 0
    %1059 = vmatprep.subr.bf16.mxu0 0
    %1060 = vmatpush1.bf16.xpose.msra.mxu0 0
    %1061 = vmatprep.subr.bf16.mxu0 0
    %1062 = vmatpush1.bf16.xpose.msra.mxu0 0
    %1063 = vmatprep.subr.bf16.mxu0 0
    %1064 = vmatpush1.bf16.xpose.msra.mxu0 0
    %1065 = vmatprep.subr.bf16.mxu0 0
    %1066 = vmatpush1.bf16.xpose.msra.mxu0 0
    %1067 = vmatprep.subr.bf16.mxu0 0
    %1068 = vmatpush1.bf16.xpose.msra.mxu0 %v1053
    %1069 = vmatprep.subr.bf16.mxu0 0
    %1070 = vmatpush1.bf16.xpose.msra.mxu0 %v1050
    %1071 = vmatprep.subr.bf16.mxu0 0
    %1072 = vmatpush2.bf16.xpose.msra.mxu0 0
    %1073 = vmatprep.subr.bf16.mxu0 0
    %1074 = vmatpush2.bf16.xpose.msra.mxu0 0
    %1075 = vmatprep.subr.bf16.mxu0 0
    %1076 = vmatpush2.bf16.xpose.msra.mxu0 0
    %1077 = vmatprep.subr.bf16.mxu0 0
    %1078 = vmatpush2.bf16.xpose.msra.mxu0 0
    %1079 = vmatprep.subr.bf16.mxu0 0
    %1080 = vmatpush2.bf16.xpose.msra.mxu0 0
    %1081 = vmatprep.subr.bf16.mxu0 0
    %1082 = vmatpush2.bf16.xpose.msra.mxu0 0
    %1083 = vmatprep.subr.bf16.mxu0 0
    %1084 = vmatpush2.bf16.xpose.msra.mxu0 0
    %1085 = vmatprep.subr.bf16.mxu0 0
    %1086 = vmatpush2.bf16.xpose.msra.mxu0 0
    %1087 = vmatprep.mubr.bf16.mxu0 0
    %1088 = vmatmul.mubr.bf16.gmra.mxu0 %v1044
    %v1089 = vpop.f32.mrf.mxu0
    %v1090 = vadd.f32 0.0, %v1089
    %v1091 = vpop.f32.mrf.mxu0
    %v1092 = vpop.f32.mrf.mxu0
    %v1093 = vadd.f32 0.0, %v1092
    %v1094 = vpop.f32.mrf.mxu0
    %1095 = vmatprep.mubr.bf16.mxu0 0
    %1096 = vmatmul.mubr.bf16.gmra.mxu0 %v1047
    %v1097 = vpop.f32.mrf.mxu0
    %v1098 = vadd.f32 0.0, %v1097
    %v1099 = vpop.f32.mrf.mxu0
    %v1100 = vpop.f32.mrf.mxu0
    %v1101 = vpop.f32.mrf.mxu0
    %1102 = vdwg.mxu0
    %v1103 = vmul.f32 %v1030, 0.25
    %v1104 = vmul.f32 %v1033, 0.25
    %v1105 = vmul.f32 %v1038, 0.25
    %v1106 = vmul.f32 %v1090, 0.25
    %v1107 = vmul.f32 %v1093, 0.25
    %v1108 = vmul.f32 %v1098, 0.25
    %v1109 = vadd.f32 %v1103, %v621
    %v1110 = vadd.f32 %v1104, %v621
    %v1111 = vadd.f32 %v1105, %v621
    %v1112 = vadd.f32 %v1106, %v621
    %v1113 = vadd.f32 %v1107, %v621
    %v1114 = vadd.f32 %v1108, %v621
    %vm1115 = vcmask 195584
    %v1116 = vsel %vm1115, %v1109, -inf
    %1117 = vmax.xlane.f32.xlu0 %v1116
    %v1118 = vpop.xlane.xlu0 %1117
    %v1119 = vsel %vm1115, %v1110, -inf
    %1120 = vmax.xlane.f32.xlu0 %v1119
    %v1121 = vpop.xlane.xlu0 %1120
    %v1122 = vsel %vm1115, %v1111, -inf
    %1123 = vmax.xlane.f32.xlu0 %v1122
    %v1124 = vpop.xlane.xlu0 %1123
    %v1125 = vsel %vm1115, %v1112, -inf
    %1126 = vmax.xlane.f32.xlu0 %v1125
    %v1127 = vpop.xlane.xlu0 %1126
    %v1128 = vsel %vm1115, %v1113, -inf
    %1129 = vmax.xlane.f32.xlu0 %v1128
    %v1130 = vpop.xlane.xlu0 %1129
    %v1131 = vsel %vm1115, %v1114, -inf
    %1132 = vmax.xlane.f32.xlu0 %v1131
    %v1133 = vpop.xlane.xlu0 %1132
    %v1134 = vsub.f32 %v1109, %v1118
    %v1135 = vsub.f32 %v1110, %v1121
    %v1136 = vsub.f32 %v1111, %v1124
    %v1137 = vsub.f32 %v1112, %v1127
    %v1138 = vsub.f32 %v1113, %v1130
    %v1139 = vsub.f32 %v1114, %v1133
    %v1140 = vmul.f32 %v1134, 1.442695
    %v1141 = vpow.pop %v1140
    %v1142 = vmul.f32 %v1135, 1.442695
    %v1143 = vpow.pop %v1142
    %v1144 = vmul.f32 %v1136, 1.442695
    %v1145 = vpow.pop %v1144
    %v1146 = vmul.f32 %v1137, 1.442695
    %v1147 = vpow.pop %v1146
    %v1148 = vmul.f32 %v1138, 1.442695
    %v1149 = vpow.pop %v1148
    %v1150 = vmul.f32 %v1139, 1.442695
    %v1151 = vpow.pop %v1150
    %v1152 = vsel %vm1115, %v1141, 0.0
    %1153 = vadd.xlane.f32.xlu0 %v1152
    %v1154 = vpop.xlane.xlu0 %1153
    %v1155 = vsel %vm1115, %v1143, 0.0
    %1156 = vadd.xlane.f32.xlu0 %v1155
    %v1157 = vpop.xlane.xlu0 %1156
    %v1158 = vsel %vm1115, %v1145, 0.0
    %1159 = vadd.xlane.f32.xlu0 %v1158
    %v1160 = vpop.xlane.xlu0 %1159
    %v1161 = vsel %vm1115, %v1147, 0.0
    %1162 = vadd.xlane.f32.xlu0 %v1161
    %v1163 = vpop.xlane.xlu0 %1162
    %v1164 = vsel %vm1115, %v1149, 0.0
    %1165 = vadd.xlane.f32.xlu0 %v1164
    %v1166 = vpop.xlane.xlu0 %1165
    %v1167 = vsel %vm1115, %v1151, 0.0
    %1168 = vadd.xlane.f32.xlu0 %v1167
    %v1169 = vpop.xlane.xlu0 %1168
    %v1170 = vrcp.pop %v1154
    %v1171 = vrcp.pop %v1157
    %v1172 = vrcp.pop %v1160
    %v1173 = vrcp.pop %v1163
    %v1174 = vrcp.pop %v1166
    %v1175 = vrcp.pop %v1169
    %v1176 = vmul.f32 %v1141, %v1170
    %v1177 = vmul.f32 %v1143, %v1171
    %v1178 = vmul.f32 %v1145, %v1172
    %v1179 = vmul.f32 %v1147, %v1173
    %v1180 = vmul.f32 %v1149, %v1174
    %v1181 = vmul.f32 %v1151, %v1175
    %v1182 = vpack.c.bf16 %v1177, %v1176
    %v1183 = vpack.c.bf16 %v1178, %v1178
    %v1184 = vpack.c.bf16 %v1180, %v1179
    %v1185 = vpack.c.bf16 %v1181, %v1181
    %v1187 = vsel %vm1115, %v1182, 0
    %v1190 = vsel %vm1115, %v1183, 0
    %vm1192 = vcmask 1043456
    %v1194 = vsel %vm1192, %v979, 0
    %1196 = vmatprep.subr.bf16.mxu0 0
    %1197 = vmatpush1.bf16.msra.mxu0 0
    %1198 = vmatprep.subr.bf16.mxu0 0
    %1199 = vmatpush1.bf16.msra.mxu0 0
    %1200 = vmatprep.subr.bf16.mxu0 0
    %1201 = vmatpush1.bf16.msra.mxu0 0
    %1202 = vmatprep.subr.bf16.mxu0 0
    %1203 = vmatpush1.bf16.msra.mxu0 0
    %1204 = vmatprep.subr.bf16.mxu0 0
    %1205 = vmatpush1.bf16.msra.mxu0 0
    %1206 = vmatprep.subr.bf16.mxu0 0
    %1207 = vmatpush1.bf16.msra.mxu0 0
    %1208 = vmatprep.subr.bf16.mxu0 0
    %1209 = vmatpush1.bf16.msra.mxu0 %v1194
    %1210 = vmatprep.subr.bf16.mxu0 0
    %1211 = vmatpush1.bf16.msra.mxu0 %v978
    %1212 = vmatprep.subr.bf16.mxu0 0
    %1213 = vmatpush2.bf16.msra.mxu0 0
    %1214 = vmatprep.subr.bf16.mxu0 0
    %1215 = vmatpush2.bf16.msra.mxu0 0
    %1216 = vmatprep.subr.bf16.mxu0 0
    %1217 = vmatpush2.bf16.msra.mxu0 0
    %1218 = vmatprep.subr.bf16.mxu0 0
    %1219 = vmatpush2.bf16.msra.mxu0 0
    %1220 = vmatprep.subr.bf16.mxu0 0
    %1221 = vmatpush2.bf16.msra.mxu0 0
    %1222 = vmatprep.subr.bf16.mxu0 0
    %1223 = vmatpush2.bf16.msra.mxu0 0
    %1224 = vmatprep.subr.bf16.mxu0 0
    %1225 = vmatpush2.bf16.msra.mxu0 0
    %1226 = vmatprep.subr.bf16.mxu0 0
    %1227 = vmatpush2.bf16.msra.mxu0 0
    %1228 = vmatprep.mubr.bf16.mxu0 0
    %1229 = vmatmul.mubr.bf16.gmra.mxu0 %v1187
    %v1230 = vpop.f32.mrf.mxu0
    %v1231 = vadd.f32 0.0, %v1230
    %v1232 = vpop.f32.mrf.mxu0
    %v1233 = vpop.f32.mrf.mxu0
    %v1234 = vadd.f32 0.0, %v1233
    %v1235 = vpop.f32.mrf.mxu0
    %1236 = vmatprep.mubr.bf16.mxu0 0
    %1237 = vmatmul.mubr.bf16.gmra.mxu0 %v1190
    %v1238 = vpop.f32.mrf.mxu0
    %v1239 = vadd.f32 0.0, %v1238
    %v1240 = vpop.f32.mrf.mxu0
    %v1241 = vpop.f32.mrf.mxu0
    %v1242 = vpop.f32.mrf.mxu0
    %1243 = vdwg.mxu0
    %v1245 = vsel %vm1115, %v1184, 0
    %v1248 = vsel %vm1115, %v1185, 0
    %v1251 = vsel %vm1192, %v981, 0
    %1253 = vmatprep.subr.bf16.mxu0 0
    %1254 = vmatpush1.bf16.msra.mxu0 0
    %1255 = vmatprep.subr.bf16.mxu0 0
    %1256 = vmatpush1.bf16.msra.mxu0 0
    %1257 = vmatprep.subr.bf16.mxu0 0
    %1258 = vmatpush1.bf16.msra.mxu0 0
    %1259 = vmatprep.subr.bf16.mxu0 0
    %1260 = vmatpush1.bf16.msra.mxu0 0
    %1261 = vmatprep.subr.bf16.mxu0 0
    %1262 = vmatpush1.bf16.msra.mxu0 0
    %1263 = vmatprep.subr.bf16.mxu0 0
    %1264 = vmatpush1.bf16.msra.mxu0 0
    %1265 = vmatprep.subr.bf16.mxu0 0
    %1266 = vmatpush1.bf16.msra.mxu0 %v1251
    %1267 = vmatprep.subr.bf16.mxu0 0
    %1268 = vmatpush1.bf16.msra.mxu0 %v980
    %1269 = vmatprep.subr.bf16.mxu0 0
    %1270 = vmatpush2.bf16.msra.mxu0 0
    %1271 = vmatprep.subr.bf16.mxu0 0
    %1272 = vmatpush2.bf16.msra.mxu0 0
    %1273 = vmatprep.subr.bf16.mxu0 0
    %1274 = vmatpush2.bf16.msra.mxu0 0
    %1275 = vmatprep.subr.bf16.mxu0 0
    %1276 = vmatpush2.bf16.msra.mxu0 0
    %1277 = vmatprep.subr.bf16.mxu0 0
    %1278 = vmatpush2.bf16.msra.mxu0 0
    %1279 = vmatprep.subr.bf16.mxu0 0
    %1280 = vmatpush2.bf16.msra.mxu0 0
    %1281 = vmatprep.subr.bf16.mxu0 0
    %1282 = vmatpush2.bf16.msra.mxu0 0
    %1283 = vmatprep.subr.bf16.mxu0 0
    %1284 = vmatpush2.bf16.msra.mxu0 0
    %1285 = vmatprep.mubr.bf16.mxu0 0
    %1286 = vmatmul.mubr.bf16.gmra.mxu0 %v1245
    %v1287 = vpop.f32.mrf.mxu0
    %v1288 = vadd.f32 0.0, %v1287
    %v1289 = vpop.f32.mrf.mxu0
    %v1290 = vpop.f32.mrf.mxu0
    %v1291 = vadd.f32 0.0, %v1290
    %v1292 = vpop.f32.mrf.mxu0
    %1293 = vmatprep.mubr.bf16.mxu0 0
    %1294 = vmatmul.mubr.bf16.gmra.mxu0 %v1248
    %v1295 = vpop.f32.mrf.mxu0
    %v1296 = vadd.f32 0.0, %v1295
    %v1297 = vpop.f32.mrf.mxu0
    %v1298 = vpop.f32.mrf.mxu0
    %v1299 = vpop.f32.mrf.mxu0
    %1300 = vdwg.mxu0
    %1303 = vrot.lane.b32.xlu0 %v970, 112
    %v1304 = vpop.permute.xlu0 %1303
    %1305 = vrot.lane.b32.xlu0 %v971, 112
    %v1306 = vpop.permute.xlu0 %1305
    %1309 = vrot.lane.b32.xlu0 %v974, 112
    %v1310 = vpop.permute.xlu0 %1309
    %1311 = vrot.lane.b32.xlu0 %v975, 112
    %v1312 = vpop.permute.xlu0 %1311
    %v1314 = vsel %vm982, %v1304, 0
    %v1317 = vsel %vm982, %v1306, 0
    %v1320 = vsel %vm982, %v1310, 0
    %v1323 = vsel %vm982, %v1312, 0
    %1325 = vmatprep.subr.bf16.mxu0 0
    %1326 = vmatpush1.bf16.xpose.msra.mxu0 0
    %1327 = vmatprep.subr.bf16.mxu0 0
    %1328 = vmatpush1.bf16.xpose.msra.mxu0 0
    %1329 = vmatprep.subr.bf16.mxu0 0
    %1330 = vmatpush1.bf16.xpose.msra.mxu0 0
    %1331 = vmatprep.subr.bf16.mxu0 0
    %1332 = vmatpush1.bf16.xpose.msra.mxu0 0
    %1333 = vmatprep.subr.bf16.mxu0 0
    %1334 = vmatpush1.bf16.xpose.msra.mxu0 0
    %1335 = vmatprep.subr.bf16.mxu0 0
    %1336 = vmatpush1.bf16.xpose.msra.mxu0 0
    %1337 = vmatprep.subr.bf16.mxu0 0
    %1338 = vmatpush1.bf16.xpose.msra.mxu0 %v1323
    %1339 = vmatprep.subr.bf16.mxu0 0
    %1340 = vmatpush1.bf16.xpose.msra.mxu0 %v1320
    %1341 = vmatprep.subr.bf16.mxu0 0
    %1342 = vmatpush2.bf16.xpose.msra.mxu0 0
    %1343 = vmatprep.subr.bf16.mxu0 0
    %1344 = vmatpush2.bf16.xpose.msra.mxu0 0
    %1345 = vmatprep.subr.bf16.mxu0 0
    %1346 = vmatpush2.bf16.xpose.msra.mxu0 0
    %1347 = vmatprep.subr.bf16.mxu0 0
    %1348 = vmatpush2.bf16.xpose.msra.mxu0 0
    %1349 = vmatprep.subr.bf16.mxu0 0
    %1350 = vmatpush2.bf16.xpose.msra.mxu0 0
    %1351 = vmatprep.subr.bf16.mxu0 0
    %1352 = vmatpush2.bf16.xpose.msra.mxu0 0
    %1353 = vmatprep.subr.bf16.mxu0 0
    %1354 = vmatpush2.bf16.xpose.msra.mxu0 0
    %1355 = vmatprep.subr.bf16.mxu0 0
    %1356 = vmatpush2.bf16.xpose.msra.mxu0 0
    %1357 = vmatprep.mubr.bf16.mxu0 0
    %1358 = vmatmul.mubr.bf16.gmra.mxu0 %v1314
    %v1359 = vpop.f32.mrf.mxu0
    %v1360 = vadd.f32 0.0, %v1359
    %v1361 = vpop.f32.mrf.mxu0
    %v1362 = vpop.f32.mrf.mxu0
    %v1363 = vadd.f32 0.0, %v1362
    %v1364 = vpop.f32.mrf.mxu0
    %1365 = vmatprep.mubr.bf16.mxu0 0
    %1366 = vmatmul.mubr.bf16.gmra.mxu0 %v1317
    %v1367 = vpop.f32.mrf.mxu0
    %v1368 = vadd.f32 0.0, %v1367
    %v1369 = vpop.f32.mrf.mxu0
    %v1370 = vpop.f32.mrf.mxu0
    %v1371 = vpop.f32.mrf.mxu0
    %1372 = vdwg.mxu0
    %1375 = vrot.lane.b32.xlu0 %v972, 112
    %v1376 = vpop.permute.xlu0 %1375
    %1377 = vrot.lane.b32.xlu0 %v973, 112
    %v1378 = vpop.permute.xlu0 %1377
    %1381 = vrot.lane.b32.xlu0 %v976, 112
    %v1382 = vpop.permute.xlu0 %1381
    %1383 = vrot.lane.b32.xlu0 %v977, 112
    %v1384 = vpop.permute.xlu0 %1383
    %v1386 = vsel %vm982, %v1376, 0
    %v1389 = vsel %vm982, %v1378, 0
    %v1392 = vsel %vm982, %v1382, 0
    %v1395 = vsel %vm982, %v1384, 0
    %1397 = vmatprep.subr.bf16.mxu0 0
    %1398 = vmatpush1.bf16.xpose.msra.mxu0 0
    %1399 = vmatprep.subr.bf16.mxu0 0
    %1400 = vmatpush1.bf16.xpose.msra.mxu0 0
    %1401 = vmatprep.subr.bf16.mxu0 0
    %1402 = vmatpush1.bf16.xpose.msra.mxu0 0
    %1403 = vmatprep.subr.bf16.mxu0 0
    %1404 = vmatpush1.bf16.xpose.msra.mxu0 0
    %1405 = vmatprep.subr.bf16.mxu0 0
    %1406 = vmatpush1.bf16.xpose.msra.mxu0 0
    %1407 = vmatprep.subr.bf16.mxu0 0
    %1408 = vmatpush1.bf16.xpose.msra.mxu0 0
    %1409 = vmatprep.subr.bf16.mxu0 0
    %1410 = vmatpush1.bf16.xpose.msra.mxu0 %v1395
    %1411 = vmatprep.subr.bf16.mxu0 0
    %1412 = vmatpush1.bf16.xpose.msra.mxu0 %v1392
    %1413 = vmatprep.subr.bf16.mxu0 0
    %1414 = vmatpush2.bf16.xpose.msra.mxu0 0
    %1415 = vmatprep.subr.bf16.mxu0 0
    %1416 = vmatpush2.bf16.xpose.msra.mxu0 0
    %1417 = vmatprep.subr.bf16.mxu0 0
    %1418 = vmatpush2.bf16.xpose.msra.mxu0 0
    %1419 = vmatprep.subr.bf16.mxu0 0
    %1420 = vmatpush2.bf16.xpose.msra.mxu0 0
    %1421 = vmatprep.subr.bf16.mxu0 0
    %1422 = vmatpush2.bf16.xpose.msra.mxu0 0
    %1423 = vmatprep.subr.bf16.mxu0 0
    %1424 = vmatpush2.bf16.xpose.msra.mxu0 0
    %1425 = vmatprep.subr.bf16.mxu0 0
    %1426 = vmatpush2.bf16.xpose.msra.mxu0 0
    %1427 = vmatprep.subr.bf16.mxu0 0
    %1428 = vmatpush2.bf16.xpose.msra.mxu0 0
    %1429 = vmatprep.mubr.bf16.mxu0 0
    %1430 = vmatmul.mubr.bf16.gmra.mxu0 %v1386
    %v1431 = vpop.f32.mrf.mxu0
    %v1432 = vadd.f32 0.0, %v1431
    %v1433 = vpop.f32.mrf.mxu0
    %v1434 = vpop.f32.mrf.mxu0
    %v1435 = vadd.f32 0.0, %v1434
    %v1436 = vpop.f32.mrf.mxu0
    %1437 = vmatprep.mubr.bf16.mxu0 0
    %1438 = vmatmul.mubr.bf16.gmra.mxu0 %v1389
    %v1439 = vpop.f32.mrf.mxu0
    %v1440 = vadd.f32 0.0, %v1439
    %v1441 = vpop.f32.mrf.mxu0
    %v1442 = vpop.f32.mrf.mxu0
    %v1443 = vpop.f32.mrf.mxu0
    %1444 = vdwg.mxu0
    %v1445 = vmul.f32 %v1360, 0.25
    %v1446 = vmul.f32 %v1363, 0.25
    %v1447 = vmul.f32 %v1368, 0.25
    %v1448 = vmul.f32 %v1432, 0.25
    %v1449 = vmul.f32 %v1435, 0.25
    %v1450 = vmul.f32 %v1440, 0.25
    %v1451 = vadd.f32 %v1445, %v621
    %v1452 = vadd.f32 %v1446, %v621
    %v1453 = vadd.f32 %v1447, %v621
    %v1454 = vadd.f32 %v1448, %v621
    %v1455 = vadd.f32 %v1449, %v621
    %v1456 = vadd.f32 %v1450, %v621
    %v1457 = vsel %vm1115, %v1451, -inf
    %1458 = vmax.xlane.f32.xlu0 %v1457
    %v1459 = vpop.xlane.xlu0 %1458
    %v1460 = vsel %vm1115, %v1452, -inf
    %1461 = vmax.xlane.f32.xlu0 %v1460
    %v1462 = vpop.xlane.xlu0 %1461
    %v1463 = vsel %vm1115, %v1453, -inf
    %1464 = vmax.xlane.f32.xlu0 %v1463
    %v1465 = vpop.xlane.xlu0 %1464
    %v1466 = vsel %vm1115, %v1454, -inf
    %1467 = vmax.xlane.f32.xlu0 %v1466
    %v1468 = vpop.xlane.xlu0 %1467
    %v1469 = vsel %vm1115, %v1455, -inf
    %1470 = vmax.xlane.f32.xlu0 %v1469
    %v1471 = vpop.xlane.xlu0 %1470
    %v1472 = vsel %vm1115, %v1456, -inf
    %1473 = vmax.xlane.f32.xlu0 %v1472
    %v1474 = vpop.xlane.xlu0 %1473
    %v1475 = vsub.f32 %v1451, %v1459
    %v1476 = vsub.f32 %v1452, %v1462
    %v1477 = vsub.f32 %v1453, %v1465
    %v1478 = vsub.f32 %v1454, %v1468
    %v1479 = vsub.f32 %v1455, %v1471
    %v1480 = vsub.f32 %v1456, %v1474
    %v1481 = vmul.f32 %v1475, 1.442695
    %v1482 = vpow.pop %v1481
    %v1483 = vmul.f32 %v1476, 1.442695
    %v1484 = vpow.pop %v1483
    %v1485 = vmul.f32 %v1477, 1.442695
    %v1486 = vpow.pop %v1485
    %v1487 = vmul.f32 %v1478, 1.442695
    %v1488 = vpow.pop %v1487
    %v1489 = vmul.f32 %v1479, 1.442695
    %v1490 = vpow.pop %v1489
    %v1491 = vmul.f32 %v1480, 1.442695
    %v1492 = vpow.pop %v1491
    %v1493 = vsel %vm1115, %v1482, 0.0
    %1494 = vadd.xlane.f32.xlu0 %v1493
    %v1495 = vpop.xlane.xlu0 %1494
    %v1496 = vsel %vm1115, %v1484, 0.0
    %1497 = vadd.xlane.f32.xlu0 %v1496
    %v1498 = vpop.xlane.xlu0 %1497
    %v1499 = vsel %vm1115, %v1486, 0.0
    %1500 = vadd.xlane.f32.xlu0 %v1499
    %v1501 = vpop.xlane.xlu0 %1500
    %v1502 = vsel %vm1115, %v1488, 0.0
    %1503 = vadd.xlane.f32.xlu0 %v1502
    %v1504 = vpop.xlane.xlu0 %1503
    %v1505 = vsel %vm1115, %v1490, 0.0
    %1506 = vadd.xlane.f32.xlu0 %v1505
    %v1507 = vpop.xlane.xlu0 %1506
    %v1508 = vsel %vm1115, %v1492, 0.0
    %1509 = vadd.xlane.f32.xlu0 %v1508
    %v1510 = vpop.xlane.xlu0 %1509
    %v1511 = vrcp.pop %v1495
    %v1512 = vrcp.pop %v1498
    %v1513 = vrcp.pop %v1501
    %v1514 = vrcp.pop %v1504
    %v1515 = vrcp.pop %v1507
    %v1516 = vrcp.pop %v1510
    %v1517 = vmul.f32 %v1482, %v1511
    %v1518 = vmul.f32 %v1484, %v1512
    %v1519 = vmul.f32 %v1486, %v1513
    %v1520 = vmul.f32 %v1488, %v1514
    %v1521 = vmul.f32 %v1490, %v1515
    %v1522 = vmul.f32 %v1492, %v1516
    %v1523 = vpack.c.bf16 %v1518, %v1517
    %v1524 = vpack.c.bf16 %v1519, %v1519
    %v1525 = vpack.c.bf16 %v1521, %v1520
    %v1526 = vpack.c.bf16 %v1522, %v1522
    %1529 = vrot.lane.b32.xlu0 %v978, 112
    %v1530 = vpop.permute.xlu0 %1529
    %1531 = vrot.lane.b32.xlu0 %v979, 112
    %v1532 = vpop.permute.xlu0 %1531
    %v1535 = vsel %vm1115, %v1523, 0
    %v1538 = vsel %vm1115, %v1524, 0
    %v1541 = vsel %vm1192, %v1532, 0
    %1543 = vmatprep.subr.bf16.mxu0 0
    %1544 = vmatpush1.bf16.msra.mxu0 0
    %1545 = vmatprep.subr.bf16.mxu0 0
    %1546 = vmatpush1.bf16.msra.mxu0 0
    %1547 = vmatprep.subr.bf16.mxu0 0
    %1548 = vmatpush1.bf16.msra.mxu0 0
    %1549 = vmatprep.subr.bf16.mxu0 0
    %1550 = vmatpush1.bf16.msra.mxu0 0
    %1551 = vmatprep.subr.bf16.mxu0 0
    %1552 = vmatpush1.bf16.msra.mxu0 0
    %1553 = vmatprep.subr.bf16.mxu0 0
    %1554 = vmatpush1.bf16.msra.mxu0 0
    %1555 = vmatprep.subr.bf16.mxu0 0
    %1556 = vmatpush1.bf16.msra.mxu0 %v1541
    %1557 = vmatprep.subr.bf16.mxu0 0
    %1558 = vmatpush1.bf16.msra.mxu0 %v1530
    %1559 = vmatprep.subr.bf16.mxu0 0
    %1560 = vmatpush2.bf16.msra.mxu0 0
    %1561 = vmatprep.subr.bf16.mxu0 0
    %1562 = vmatpush2.bf16.msra.mxu0 0
    %1563 = vmatprep.subr.bf16.mxu0 0
    %1564 = vmatpush2.bf16.msra.mxu0 0
    %1565 = vmatprep.subr.bf16.mxu0 0
    %1566 = vmatpush2.bf16.msra.mxu0 0
    %1567 = vmatprep.subr.bf16.mxu0 0
    %1568 = vmatpush2.bf16.msra.mxu0 0
    %1569 = vmatprep.subr.bf16.mxu0 0
    %1570 = vmatpush2.bf16.msra.mxu0 0
    %1571 = vmatprep.subr.bf16.mxu0 0
    %1572 = vmatpush2.bf16.msra.mxu0 0
    %1573 = vmatprep.subr.bf16.mxu0 0
    %1574 = vmatpush2.bf16.msra.mxu0 0
    %1575 = vmatprep.mubr.bf16.mxu0 0
    %1576 = vmatmul.mubr.bf16.gmra.mxu0 %v1535
    %v1577 = vpop.f32.mrf.mxu0
    %v1578 = vadd.f32 0.0, %v1577
    %v1579 = vpop.f32.mrf.mxu0
    %v1580 = vpop.f32.mrf.mxu0
    %v1581 = vadd.f32 0.0, %v1580
    %v1582 = vpop.f32.mrf.mxu0
    %1583 = vmatprep.mubr.bf16.mxu0 0
    %1584 = vmatmul.mubr.bf16.gmra.mxu0 %v1538
    %v1585 = vpop.f32.mrf.mxu0
    %v1586 = vadd.f32 0.0, %v1585
    %v1587 = vpop.f32.mrf.mxu0
    %v1588 = vpop.f32.mrf.mxu0
    %v1589 = vpop.f32.mrf.mxu0
    %1590 = vdwg.mxu0
    %1593 = vrot.lane.b32.xlu0 %v980, 112
    %v1594 = vpop.permute.xlu0 %1593
    %1595 = vrot.lane.b32.xlu0 %v981, 112
    %v1596 = vpop.permute.xlu0 %1595
    %v1599 = vsel %vm1115, %v1525, 0
    %v1602 = vsel %vm1115, %v1526, 0
    %v1605 = vsel %vm1192, %v1596, 0
    %1607 = vmatprep.subr.bf16.mxu0 0
    %1608 = vmatpush1.bf16.msra.mxu0 0
    %1609 = vmatprep.subr.bf16.mxu0 0
    %1610 = vmatpush1.bf16.msra.mxu0 0
    %1611 = vmatprep.subr.bf16.mxu0 0
    %1612 = vmatpush1.bf16.msra.mxu0 0
    %1613 = vmatprep.subr.bf16.mxu0 0
    %1614 = vmatpush1.bf16.msra.mxu0 0
    %1615 = vmatprep.subr.bf16.mxu0 0
    %1616 = vmatpush1.bf16.msra.mxu0 0
    %1617 = vmatprep.subr.bf16.mxu0 0
    %1618 = vmatpush1.bf16.msra.mxu0 0
    %1619 = vmatprep.subr.bf16.mxu0 0
    %1620 = vmatpush1.bf16.msra.mxu0 %v1605
    %1621 = vmatprep.subr.bf16.mxu0 0
    %1622 = vmatpush1.bf16.msra.mxu0 %v1594
    %1623 = vmatprep.subr.bf16.mxu0 0
    %1624 = vmatpush2.bf16.msra.mxu0 0
    %1625 = vmatprep.subr.bf16.mxu0 0
    %1626 = vmatpush2.bf16.msra.mxu0 0
    %1627 = vmatprep.subr.bf16.mxu0 0
    %1628 = vmatpush2.bf16.msra.mxu0 0
    %1629 = vmatprep.subr.bf16.mxu0 0
    %1630 = vmatpush2.bf16.msra.mxu0 0
    %1631 = vmatprep.subr.bf16.mxu0 0
    %1632 = vmatpush2.bf16.msra.mxu0 0
    %1633 = vmatprep.subr.bf16.mxu0 0
    %1634 = vmatpush2.bf16.msra.mxu0 0
    %1635 = vmatprep.subr.bf16.mxu0 0
    %1636 = vmatpush2.bf16.msra.mxu0 0
    %1637 = vmatprep.subr.bf16.mxu0 0
    %1638 = vmatpush2.bf16.msra.mxu0 0
    %1639 = vmatprep.mubr.bf16.mxu0 0
    %1640 = vmatmul.mubr.bf16.gmra.mxu0 %v1599
    %v1641 = vpop.f32.mrf.mxu0
    %v1642 = vadd.f32 0.0, %v1641
    %v1643 = vpop.f32.mrf.mxu0
    %v1644 = vpop.f32.mrf.mxu0
    %v1645 = vadd.f32 0.0, %v1644
    %v1646 = vpop.f32.mrf.mxu0
    %1647 = vmatprep.mubr.bf16.mxu0 0
    %1648 = vmatmul.mubr.bf16.gmra.mxu0 %v1602
    %v1649 = vpop.f32.mrf.mxu0
    %v1650 = vadd.f32 0.0, %v1649
    %v1651 = vpop.f32.mrf.mxu0
    %v1652 = vpop.f32.mrf.mxu0
    %v1653 = vpop.f32.mrf.mxu0
    %1654 = vdwg.mxu0
    %1661 = vrot.lane.b32.xlu0 %v1578, 16
    %v1662 = vpop.permute.xlu0 %1661
    %1663 = vrot.lane.b32.xlu0 %v1581, 16
    %v1664 = vpop.permute.xlu0 %1663
    %1665 = vrot.lane.b32.xlu0 %v1586, 16
    %v1666 = vpop.permute.xlu0 %1665
    %1667 = vrot.lane.b32.xlu0 %v1642, 16
    %v1668 = vpop.permute.xlu0 %1667
    %1669 = vrot.lane.b32.xlu0 %v1645, 16
    %v1670 = vpop.permute.xlu0 %1669
    %1671 = vrot.lane.b32.xlu0 %v1650, 16
    %v1672 = vpop.permute.xlu0 %1671
    %v1679 = vsel %vm982, %v1231, %v1662
    %v1680 = vsel %vm982, %v1234, %v1664
    %v1681 = vsel %vm982, %v1239, %v1666
    %v1682 = vsel %vm982, %v1288, %v1668
    %v1683 = vsel %vm982, %v1291, %v1670
    %v1684 = vsel %vm982, %v1296, %v1672
    %v1685 = vpack.c.bf16 %v1680, %v1679
    %v1686 = vpack.c.bf16 %v1682, %v1681
    %v1687 = vpack.c.bf16 %v1684, %v1683
    %v1688 = vld [vmem:[%s13] sm:$0xf]
    %v1689 = vld [vmem:[%s13 + $0x4] sm:$0xf]
    %v1690 = vld [vmem:[%s13 + $0x8] sm:$0xf]
    %v1691 = vld [vmem:[%s13 + $0xc] sm:$0xf]
    %v1692 = vld [vmem:[%s14] sm:$0x1]
    %v1693 = vlaneseq
    %v1694 = vshrl.u32 %v1693, 7
    %v1695 = vsub.s32 0, %v1694
    %v1696 = vrot.slane %v1692, %v1695
    %v1701 = vunpack.c.l.b16 %v1688
    %v1702 = vunpack.c.l.b16 %v1689
    %v1703 = vunpack.c.l.b16 %v1690
    %v1704 = vunpack.c.l.b16 %v1691
    %v1705 = vpack.c.b16 %v1702, %v1701
    %v1706 = vpack.c.b16 %v1704, %v1703
    %v1710 = vsel %vm624, %v1685, 0
    %v1713 = vsel %vm624, %v1686, 0
    %v1716 = vsel %vm624, %v1687, 0
    %1718 = vmatprep.subr.bf16.mxu0 0
    %1719 = vmatpush1.bf16.msra.mxu0 0
    %1720 = vmatprep.subr.bf16.mxu0 0
    %1721 = vmatpush1.bf16.msra.mxu0 0
    %1722 = vmatprep.subr.bf16.mxu0 0
    %1723 = vmatpush1.bf16.msra.mxu0 0
    %1724 = vmatprep.subr.bf16.mxu0 0
    %1725 = vmatpush1.bf16.msra.mxu0 0
    %1726 = vmatprep.subr.bf16.mxu0 0
    %1727 = vmatpush1.bf16.msra.mxu0 0
    %1728 = vmatprep.subr.bf16.mxu0 0
    %1729 = vmatpush1.bf16.msra.mxu0 0
    %1730 = vmatprep.subr.bf16.mxu0 0
    %1731 = vmatpush1.bf16.msra.mxu0 %v1706
    %1732 = vmatprep.subr.bf16.mxu0 0
    %1733 = vmatpush1.bf16.msra.mxu0 %v1705
    %1734 = vmatprep.subr.bf16.mxu0 0
    %1735 = vmatpush2.bf16.msra.mxu0 0
    %1736 = vmatprep.subr.bf16.mxu0 0
    %1737 = vmatpush2.bf16.msra.mxu0 0
    %1738 = vmatprep.subr.bf16.mxu0 0
    %1739 = vmatpush2.bf16.msra.mxu0 0
    %1740 = vmatprep.subr.bf16.mxu0 0
    %1741 = vmatpush2.bf16.msra.mxu0 0
    %1742 = vmatprep.subr.bf16.mxu0 0
    %1743 = vmatpush2.bf16.msra.mxu0 0
    %1744 = vmatprep.subr.bf16.mxu0 0
    %1745 = vmatpush2.bf16.msra.mxu0 0
    %1746 = vmatprep.subr.bf16.mxu0 0
    %1747 = vmatpush2.bf16.msra.mxu0 0
    %1748 = vmatprep.subr.bf16.mxu0 0
    %1749 = vmatpush2.bf16.msra.mxu0 0
    %1750 = vmatprep.mubr.bf16.mxu0 0
    %1751 = vmatmul.mubr.bf16.gmra.mxu0 %v1710
    %v1752 = vpop.f32.mrf.mxu0
    %v1753 = vadd.f32 %v1696, %v1752
    %v1754 = vpop.f32.mrf.mxu0
    %v1755 = vpop.f32.mrf.mxu0
    %v1756 = vadd.f32 %v1696, %v1755
    %v1757 = vpop.f32.mrf.mxu0
    %1758 = vmatprep.mubr.bf16.mxu0 0
    %1759 = vmatmul.mubr.bf16.gmra.mxu0 %v1713
    %v1760 = vpop.f32.mrf.mxu0
    %v1761 = vadd.f32 %v1696, %v1760
    %v1762 = vpop.f32.mrf.mxu0
    %v1763 = vpop.f32.mrf.mxu0
    %v1764 = vadd.f32 %v1696, %v1763
    %v1765 = vpop.f32.mrf.mxu0
    %1766 = vmatprep.mubr.bf16.mxu0 0
    %1767 = vmatmul.mubr.bf16.gmra.mxu0 %v1716
    %v1768 = vpop.f32.mrf.mxu0
    %v1769 = vadd.f32 %v1696, %v1768
    %v1770 = vpop.f32.mrf.mxu0
    %v1771 = vpop.f32.mrf.mxu0
    %v1772 = vadd.f32 %v1696, %v1771
    %v1773 = vpop.f32.mrf.mxu0
    %1774 = vdwg.mxu0
    %v1775 = vadd.f32 %v612, %v1753
    %v1776 = vadd.f32 %v613, %v1756
    %v1777 = vadd.f32 %v616, %v1761
    %v1778 = vadd.f32 %v614, %v1764
    %v1779 = vadd.f32 %v615, %v1769
    %v1780 = vadd.f32 %v617, %v1772
    %v1781 = vld [vmem:[%s15] sm:$0x1]
    %v1782 = vld [vmem:[%s16] sm:$0x1]
    %v1783 = vsel %vm624, %v1775, 0.0
    %1784 = vadd.xlane.f32.xlu0 %v1783
    %v1785 = vpop.xlane.xlu0 %1784
    %v1786 = vsel %vm624, %v1776, 0.0
    %1787 = vadd.xlane.f32.xlu0 %v1786
    %v1788 = vpop.xlane.xlu0 %1787
    %v1789 = vsel %vm624, %v1777, 0.0
    %1790 = vadd.xlane.f32.xlu0 %v1789
    %v1791 = vpop.xlane.xlu0 %1790
    %v1792 = vsel %vm624, %v1778, 0.0
    %1793 = vadd.xlane.f32.xlu0 %v1792
    %v1794 = vpop.xlane.xlu0 %1793
    %v1795 = vsel %vm624, %v1779, 0.0
    %1796 = vadd.xlane.f32.xlu0 %v1795
    %v1797 = vpop.xlane.xlu0 %1796
    %v1798 = vsel %vm624, %v1780, 0.0
    %1799 = vadd.xlane.f32.xlu0 %v1798
    %v1800 = vpop.xlane.xlu0 %1799
    %v1801 = vmul.f32 %v1785, %v643
    %v1802 = vmul.f32 %v1788, %v643
    %v1803 = vmul.f32 %v1791, %v643
    %v1804 = vmul.f32 %v1794, %v643
    %v1805 = vmul.f32 %v1797, %v643
    %v1806 = vmul.f32 %v1800, %v643
    %v1807 = vsub.f32 %v1775, %v1801
    %v1808 = vsub.f32 %v1776, %v1802
    %v1809 = vsub.f32 %v1777, %v1803
    %v1810 = vsub.f32 %v1778, %v1804
    %v1811 = vsub.f32 %v1779, %v1805
    %v1812 = vsub.f32 %v1780, %v1806
    %v1813 = vmul.f32 %v1807, %v1807
    %v1814 = vmul.f32 %v1808, %v1808
    %v1815 = vmul.f32 %v1809, %v1809
    %v1816 = vmul.f32 %v1810, %v1810
    %v1817 = vmul.f32 %v1811, %v1811
    %v1818 = vmul.f32 %v1812, %v1812
    %v1819 = vsel %vm624, %v1813, 0.0
    %1820 = vadd.xlane.f32.xlu0 %v1819
    %v1821 = vpop.xlane.xlu0 %1820
    %v1822 = vsel %vm624, %v1814, 0.0
    %1823 = vadd.xlane.f32.xlu0 %v1822
    %v1824 = vpop.xlane.xlu0 %1823
    %v1825 = vsel %vm624, %v1815, 0.0
    %1826 = vadd.xlane.f32.xlu0 %v1825
    %v1827 = vpop.xlane.xlu0 %1826
    %v1828 = vsel %vm624, %v1816, 0.0
    %1829 = vadd.xlane.f32.xlu0 %v1828
    %v1830 = vpop.xlane.xlu0 %1829
    %v1831 = vsel %vm624, %v1817, 0.0
    %1832 = vadd.xlane.f32.xlu0 %v1831
    %v1833 = vpop.xlane.xlu0 %1832
    %v1834 = vsel %vm624, %v1818, 0.0
    %1835 = vadd.xlane.f32.xlu0 %v1834
    %v1836 = vpop.xlane.xlu0 %1835
    %v1837 = vmul.f32 %v1821, %v643
    %v1838 = vmul.f32 %v1824, %v643
    %v1839 = vmul.f32 %v1827, %v643
    %v1840 = vmul.f32 %v1830, %v643
    %v1841 = vmul.f32 %v1833, %v643
    %v1842 = vmul.f32 %v1836, %v643
    %v1843 = vadd.f32 %v1837, 1e-06
    %v1844 = vadd.f32 %v1838, 1e-06
    %v1845 = vadd.f32 %v1839, 1e-06
    %v1846 = vadd.f32 %v1840, 1e-06
    %v1847 = vadd.f32 %v1841, 1e-06
    %v1848 = vadd.f32 %v1842, 1e-06
    %v1849 = vrsqrt.pop %v1843
    %v1850 = vrsqrt.pop %v1844
    %v1851 = vrsqrt.pop %v1845
    %v1852 = vrsqrt.pop %v1846
    %v1853 = vrsqrt.pop %v1847
    %v1854 = vrsqrt.pop %v1848
    %v1855 = vmul.f32 %v1807, %v1849
    %v1856 = vmul.f32 %v1808, %v1850
    %v1857 = vmul.f32 %v1809, %v1851
    %v1858 = vmul.f32 %v1810, %v1852
    %v1859 = vmul.f32 %v1811, %v1853
    %v1860 = vmul.f32 %v1812, %v1854
    %v1861 = vlaneseq
    %v1862 = vshrl.u32 %v1861, 7
    %v1863 = vsub.s32 0, %v1862
    %v1864 = vrot.slane %v1781, %v1863
    %v1865 = vmul.f32 %v1855, %v1864
    %v1866 = vmul.f32 %v1856, %v1864
    %v1867 = vmul.f32 %v1857, %v1864
    %v1868 = vmul.f32 %v1858, %v1864
    %v1869 = vmul.f32 %v1859, %v1864
    %v1870 = vmul.f32 %v1860, %v1864
    %v1871 = vlaneseq
    %v1872 = vshrl.u32 %v1871, 7
    %v1873 = vsub.s32 0, %v1872
    %v1874 = vrot.slane %v1782, %v1873
    %v1875 = vadd.f32 %v1865, %v1874
    %v1876 = vadd.f32 %v1866, %v1874
    %v1877 = vadd.f32 %v1867, %v1874
    %v1878 = vadd.f32 %v1868, %v1874
    %v1879 = vadd.f32 %v1869, %v1874
    %v1880 = vadd.f32 %v1870, %v1874
    %v1881 = vpack.c.bf16 %v1876, %v1875
    %v1882 = vpack.c.bf16 %v1878, %v1877
    %v1883 = vpack.c.bf16 %v1880, %v1879
    %v1884 = vld [vmem:[%s17] sm:$0xf]
    %v1885 = vld [vmem:[%s17 + $0x4] sm:$0xf]
    %v1886 = vld [vmem:[%s17 + $0x8] sm:$0xf]
    %v1887 = vld [vmem:[%s17 + $0xc] sm:$0xf]
    %v1888 = vld [vmem:[%s18] sm:$0x1]
    %v1889 = vlaneseq
    %v1890 = vshrl.u32 %v1889, 7
    %v1891 = vsub.s32 0, %v1890
    %v1892 = vrot.slane %v1888, %v1891
    %v1897 = vunpack.c.l.b16 %v1884
    %v1898 = vunpack.c.l.b16 %v1885
    %v1899 = vunpack.c.l.b16 %v1886
    %v1900 = vunpack.c.l.b16 %v1887
    %v1901 = vpack.c.b16 %v1898, %v1897
    %v1902 = vpack.c.b16 %v1900, %v1899
    %v1906 = vsel %vm624, %v1881, 0
    %v1909 = vsel %vm624, %v1882, 0
    %v1912 = vsel %vm624, %v1883, 0
    %1914 = vmatprep.subr.bf16.mxu0 0
    %1915 = vmatpush1.bf16.msra.mxu0 0
    %1916 = vmatprep.subr.bf16.mxu0 0
    %1917 = vmatpush1.bf16.msra.mxu0 0
    %1918 = vmatprep.subr.bf16.mxu0 0
    %1919 = vmatpush1.bf16.msra.mxu0 0
    %1920 = vmatprep.subr.bf16.mxu0 0
    %1921 = vmatpush1.bf16.msra.mxu0 0
    %1922 = vmatprep.subr.bf16.mxu0 0
    %1923 = vmatpush1.bf16.msra.mxu0 0
    %1924 = vmatprep.subr.bf16.mxu0 0
    %1925 = vmatpush1.bf16.msra.mxu0 0
    %1926 = vmatprep.subr.bf16.mxu0 0
    %1927 = vmatpush1.bf16.msra.mxu0 %v1902
    %1928 = vmatprep.subr.bf16.mxu0 0
    %1929 = vmatpush1.bf16.msra.mxu0 %v1901
    %1930 = vmatprep.subr.bf16.mxu0 0
    %1931 = vmatpush2.bf16.msra.mxu0 0
    %1932 = vmatprep.subr.bf16.mxu0 0
    %1933 = vmatpush2.bf16.msra.mxu0 0
    %1934 = vmatprep.subr.bf16.mxu0 0
    %1935 = vmatpush2.bf16.msra.mxu0 0
    %1936 = vmatprep.subr.bf16.mxu0 0
    %1937 = vmatpush2.bf16.msra.mxu0 0
    %1938 = vmatprep.subr.bf16.mxu0 0
    %1939 = vmatpush2.bf16.msra.mxu0 0
    %1940 = vmatprep.subr.bf16.mxu0 0
    %1941 = vmatpush2.bf16.msra.mxu0 0
    %1942 = vmatprep.subr.bf16.mxu0 0
    %1943 = vmatpush2.bf16.msra.mxu0 0
    %1944 = vmatprep.subr.bf16.mxu0 0
    %1945 = vmatpush2.bf16.msra.mxu0 0
    %1946 = vmatprep.mubr.bf16.mxu0 0
    %1947 = vmatmul.mubr.bf16.gmra.mxu0 %v1906
    %v1948 = vpop.f32.mrf.mxu0
    %v1949 = vadd.f32 %v1892, %v1948
    %v1950 = vpop.f32.mrf.mxu0
    %v1951 = vpop.f32.mrf.mxu0
    %v1952 = vadd.f32 %v1892, %v1951
    %v1953 = vpop.f32.mrf.mxu0
    %1954 = vmatprep.mubr.bf16.mxu0 0
    %1955 = vmatmul.mubr.bf16.gmra.mxu0 %v1909
    %v1956 = vpop.f32.mrf.mxu0
    %v1957 = vadd.f32 %v1892, %v1956
    %v1958 = vpop.f32.mrf.mxu0
    %v1959 = vpop.f32.mrf.mxu0
    %v1960 = vadd.f32 %v1892, %v1959
    %v1961 = vpop.f32.mrf.mxu0
    %1962 = vmatprep.mubr.bf16.mxu0 0
    %1963 = vmatmul.mubr.bf16.gmra.mxu0 %v1912
    %v1964 = vpop.f32.mrf.mxu0
    %v1965 = vadd.f32 %v1892, %v1964
    %v1966 = vpop.f32.mrf.mxu0
    %v1967 = vpop.f32.mrf.mxu0
    %v1968 = vadd.f32 %v1892, %v1967
    %v1969 = vpop.f32.mrf.mxu0
    %1970 = vdwg.mxu0
    %v1971 = vmul.f32 %v1949, %v1949
    %v1972 = vmul.f32 %v1952, %v1952
    %v1973 = vmul.f32 %v1957, %v1957
    %v1974 = vmul.f32 %v1960, %v1960
    %v1975 = vmul.f32 %v1965, %v1965
    %v1976 = vmul.f32 %v1968, %v1968
    %v1977 = vmul.f32 %v1949, %v1971
    %v1978 = vmul.f32 %v1952, %v1972
    %v1979 = vmul.f32 %v1957, %v1973
    %v1980 = vmul.f32 %v1960, %v1974
    %v1981 = vmul.f32 %v1965, %v1975
    %v1982 = vmul.f32 %v1968, %v1976
    %v1983 = vmul.f32 %v1977, 0.044715
    %v1984 = vmul.f32 %v1978, 0.044715
    %v1985 = vmul.f32 %v1979, 0.044715
    %v1986 = vmul.f32 %v1980, 0.044715
    %v1987 = vmul.f32 %v1981, 0.044715
    %v1988 = vmul.f32 %v1982, 0.044715
    %v1989 = vadd.f32 %v1949, %v1983
    %v1990 = vadd.f32 %v1952, %v1984
    %v1991 = vadd.f32 %v1957, %v1985
    %v1992 = vadd.f32 %v1960, %v1986
    %v1993 = vadd.f32 %v1965, %v1987
    %v1994 = vadd.f32 %v1968, %v1988
    %v1995 = vmul.f32 %v1989, 0.7978846
    %v1996 = vmul.f32 %v1990, 0.7978846
    %v1997 = vmul.f32 %v1991, 0.7978846
    %v1998 = vmul.f32 %v1992, 0.7978846
    %v1999 = vmul.f32 %v1993, 0.7978846
    %v2000 = vmul.f32 %v1994, 0.7978846
    %v2001 = vtanh.pop %v1995
    %v2002 = vtanh.pop %v1996
    %v2003 = vtanh.pop %v1997
    %v2004 = vtanh.pop %v1998
    %v2005 = vtanh.pop %v1999
    %v2006 = vtanh.pop %v2000
    %v2007 = vadd.f32 %v2001, 1.0
    %v2008 = vadd.f32 %v2002, 1.0
    %v2009 = vadd.f32 %v2003, 1.0
    %v2010 = vadd.f32 %v2004, 1.0
    %v2011 = vadd.f32 %v2005, 1.0
    %v2012 = vadd.f32 %v2006, 1.0
    %v2013 = vmul.f32 %v2007, 0.5
    %v2014 = vmul.f32 %v2008, 0.5
    %v2015 = vmul.f32 %v2009, 0.5
    %v2016 = vmul.f32 %v2010, 0.5
    %v2017 = vmul.f32 %v2011, 0.5
    %v2018 = vmul.f32 %v2012, 0.5
    %v2019 = vmul.f32 %v1949, %v2013
    %v2020 = vmul.f32 %v1952, %v2014
    %v2021 = vmul.f32 %v1957, %v2015
    %v2022 = vmul.f32 %v1960, %v2016
    %v2023 = vmul.f32 %v1965, %v2017
    %v2024 = vmul.f32 %v1968, %v2018
    %v2025 = vpack.c.bf16 %v2020, %v2019
    %v2026 = vpack.c.bf16 %v2022, %v2021
    %v2027 = vpack.c.bf16 %v2024, %v2023
    %v2028 = vld [vmem:[%s19] sm:$0xf]
    %v2029 = vld [vmem:[%s19 + $0x4] sm:$0xf]
    %v2030 = vld [vmem:[%s19 + $0x8] sm:$0xf]
    %v2031 = vld [vmem:[%s19 + $0xc] sm:$0xf]
    %v2032 = vld [vmem:[%s19 + $0x10] sm:$0xf]
    %v2033 = vld [vmem:[%s19 + $0x14] sm:$0xf]
    %v2034 = vld [vmem:[%s19 + $0x18] sm:$0xf]
    %v2035 = vld [vmem:[%s19 + $0x1c] sm:$0xf]
    %v2036 = vld [vmem:[%s19 + $0x20] sm:$0xf]
    %v2037 = vld [vmem:[%s19 + $0x24] sm:$0xf]
    %v2038 = vld [vmem:[%s19 + $0x28] sm:$0xf]
    %v2039 = vld [vmem:[%s19 + $0x2c] sm:$0xf]
    %v2040 = vld [vmem:[%s19 + $0x30] sm:$0xf]
    %v2041 = vld [vmem:[%s19 + $0x34] sm:$0xf]
    %v2042 = vld [vmem:[%s19 + $0x38] sm:$0xf]
    %v2043 = vld [vmem:[%s19 + $0x3c] sm:$0xf]
    %v2044 = vld [vmem:[%s20] sm:$0x1]
    %v2045 = vlaneseq
    %v2046 = vshrl.u32 %v2045, 7
    %v2047 = vsub.s32 0, %v2046
    %v2048 = vrot.slane %v2044, %v2047
    %v2065 = vunpack.c.l.b16 %v2028
    %v2066 = vunpack.c.l.b16 %v2029
    %v2067 = vunpack.c.l.b16 %v2030
    %v2068 = vunpack.c.l.b16 %v2031
    %v2069 = vunpack.c.l.b16 %v2032
    %v2070 = vunpack.c.l.b16 %v2033
    %v2071 = vunpack.c.l.b16 %v2034
    %v2072 = vunpack.c.l.b16 %v2035
    %v2073 = vunpack.c.l.b16 %v2036
    %v2074 = vunpack.c.l.b16 %v2037
    %v2075 = vunpack.c.l.b16 %v2038
    %v2076 = vunpack.c.l.b16 %v2039
    %v2077 = vunpack.c.l.b16 %v2040
    %v2078 = vunpack.c.l.b16 %v2041
    %v2079 = vunpack.c.l.b16 %v2042
    %v2080 = vunpack.c.l.b16 %v2043
    %v2081 = vpack.c.b16 %v2066, %v2065
    %v2082 = vpack.c.b16 %v2068, %v2067
    %v2083 = vpack.c.b16 %v2070, %v2069
    %v2084 = vpack.c.b16 %v2072, %v2071
    %v2085 = vpack.c.b16 %v2074, %v2073
    %v2086 = vpack.c.b16 %v2076, %v2075
    %v2087 = vpack.c.b16 %v2078, %v2077
    %v2088 = vpack.c.b16 %v2080, %v2079
    %2097 = vmatprep.subr.bf16.mxu0 0
    %2098 = vmatpush1.bf16.msra.mxu0 %v2088
    %2099 = vmatprep.subr.bf16.mxu0 0
    %2100 = vmatpush1.bf16.msra.mxu0 %v2087
    %2101 = vmatprep.subr.bf16.mxu0 0
    %2102 = vmatpush1.bf16.msra.mxu0 %v2086
    %2103 = vmatprep.subr.bf16.mxu0 0
    %2104 = vmatpush1.bf16.msra.mxu0 %v2085
    %2105 = vmatprep.subr.bf16.mxu0 0
    %2106 = vmatpush1.bf16.msra.mxu0 %v2084
    %2107 = vmatprep.subr.bf16.mxu0 0
    %2108 = vmatpush1.bf16.msra.mxu0 %v2083
    %2109 = vmatprep.subr.bf16.mxu0 0
    %2110 = vmatpush1.bf16.msra.mxu0 %v2082
    %2111 = vmatprep.subr.bf16.mxu0 0
    %2112 = vmatpush1.bf16.msra.mxu0 %v2081
    %2113 = vmatprep.subr.bf16.mxu0 0
    %2114 = vmatpush2.bf16.msra.mxu0 0
    %2115 = vmatprep.subr.bf16.mxu0 0
    %2116 = vmatpush2.bf16.msra.mxu0 0
    %2117 = vmatprep.subr.bf16.mxu0 0
    %2118 = vmatpush2.bf16.msra.mxu0 0
    %2119 = vmatprep.subr.bf16.mxu0 0
    %2120 = vmatpush2.bf16.msra.mxu0 0
    %2121 = vmatprep.subr.bf16.mxu0 0
    %2122 = vmatpush2.bf16.msra.mxu0 0
    %2123 = vmatprep.subr.bf16.mxu0 0
    %2124 = vmatpush2.bf16.msra.mxu0 0
    %2125 = vmatprep.subr.bf16.mxu0 0
    %2126 = vmatpush2.bf16.msra.mxu0 0
    %2127 = vmatprep.subr.bf16.mxu0 0
    %2128 = vmatpush2.bf16.msra.mxu0 0
    %2129 = vmatprep.mubr.bf16.mxu0 0
    %2130 = vmatmul.mubr.bf16.gmra.mxu0 %v2025
    %v2131 = vpop.f32.mrf.mxu0
    %v2132 = vadd.f32 %v2048, %v2131
    %v2133 = vpop.f32.mrf.mxu0
    %v2134 = vpop.f32.mrf.mxu0
    %v2135 = vadd.f32 %v2048, %v2134
    %v2136 = vpop.f32.mrf.mxu0
    %2137 = vmatprep.mubr.bf16.mxu0 0
    %2138 = vmatmul.mubr.bf16.gmra.mxu0 %v2026
    %v2139 = vpop.f32.mrf.mxu0
    %v2140 = vadd.f32 %v2048, %v2139
    %v2141 = vpop.f32.mrf.mxu0
    %v2142 = vpop.f32.mrf.mxu0
    %v2143 = vadd.f32 %v2048, %v2142
    %v2144 = vpop.f32.mrf.mxu0
    %2145 = vmatprep.mubr.bf16.mxu0 0
    %2146 = vmatmul.mubr.bf16.gmra.mxu0 %v2027
    %v2147 = vpop.f32.mrf.mxu0
    %v2148 = vadd.f32 %v2048, %v2147
    %v2149 = vpop.f32.mrf.mxu0
    %v2150 = vpop.f32.mrf.mxu0
    %v2151 = vadd.f32 %v2048, %v2150
    %v2152 = vpop.f32.mrf.mxu0
    %2153 = vdwg.mxu0
    %v2154 = vadd.f32 %v1775, %v2132
    %v2155 = vadd.f32 %v1776, %v2135
    %v2156 = vadd.f32 %v1777, %v2140
    %v2157 = vadd.f32 %v1778, %v2143
    %v2158 = vadd.f32 %v1779, %v2148
    %v2159 = vadd.f32 %v1780, %v2151
    %v2160 = vld [vmem:[%s5 + $0x1] sm:$0x1]
    %v2161 = vld [vmem:[%s6 + $0x1] sm:$0x1]
    %v2162 = vsel %vm624, %v2154, 0.0
    %2163 = vadd.xlane.f32.xlu0 %v2162
    %v2164 = vpop.xlane.xlu0 %2163
    %v2165 = vsel %vm624, %v2155, 0.0
    %2166 = vadd.xlane.f32.xlu0 %v2165
    %v2167 = vpop.xlane.xlu0 %2166
    %v2168 = vsel %vm624, %v2156, 0.0
    %2169 = vadd.xlane.f32.xlu0 %v2168
    %v2170 = vpop.xlane.xlu0 %2169
    %v2171 = vsel %vm624, %v2157, 0.0
    %2172 = vadd.xlane.f32.xlu0 %v2171
    %v2173 = vpop.xlane.xlu0 %2172
    %v2174 = vsel %vm624, %v2158, 0.0
    %2175 = vadd.xlane.f32.xlu0 %v2174
    %v2176 = vpop.xlane.xlu0 %2175
    %v2177 = vsel %vm624, %v2159, 0.0
    %2178 = vadd.xlane.f32.xlu0 %v2177
    %v2179 = vpop.xlane.xlu0 %2178
    %v2180 = vmul.f32 %v2164, %v643
    %v2181 = vmul.f32 %v2167, %v643
    %v2182 = vmul.f32 %v2170, %v643
    %v2183 = vmul.f32 %v2173, %v643
    %v2184 = vmul.f32 %v2176, %v643
    %v2185 = vmul.f32 %v2179, %v643
    %v2186 = vsub.f32 %v2154, %v2180
    %v2187 = vsub.f32 %v2155, %v2181
    %v2188 = vsub.f32 %v2156, %v2182
    %v2189 = vsub.f32 %v2157, %v2183
    %v2190 = vsub.f32 %v2158, %v2184
    %v2191 = vsub.f32 %v2159, %v2185
    %v2192 = vmul.f32 %v2186, %v2186
    %v2193 = vmul.f32 %v2187, %v2187
    %v2194 = vmul.f32 %v2188, %v2188
    %v2195 = vmul.f32 %v2189, %v2189
    %v2196 = vmul.f32 %v2190, %v2190
    %v2197 = vmul.f32 %v2191, %v2191
    %v2198 = vsel %vm624, %v2192, 0.0
    %2199 = vadd.xlane.f32.xlu0 %v2198
    %v2200 = vpop.xlane.xlu0 %2199
    %v2201 = vsel %vm624, %v2193, 0.0
    %2202 = vadd.xlane.f32.xlu0 %v2201
    %v2203 = vpop.xlane.xlu0 %2202
    %v2204 = vsel %vm624, %v2194, 0.0
    %2205 = vadd.xlane.f32.xlu0 %v2204
    %v2206 = vpop.xlane.xlu0 %2205
    %v2207 = vsel %vm624, %v2195, 0.0
    %2208 = vadd.xlane.f32.xlu0 %v2207
    %v2209 = vpop.xlane.xlu0 %2208
    %v2210 = vsel %vm624, %v2196, 0.0
    %2211 = vadd.xlane.f32.xlu0 %v2210
    %v2212 = vpop.xlane.xlu0 %2211
    %v2213 = vsel %vm624, %v2197, 0.0
    %2214 = vadd.xlane.f32.xlu0 %v2213
    %v2215 = vpop.xlane.xlu0 %2214
    %v2216 = vmul.f32 %v2200, %v643
    %v2217 = vmul.f32 %v2203, %v643
    %v2218 = vmul.f32 %v2206, %v643
    %v2219 = vmul.f32 %v2209, %v643
    %v2220 = vmul.f32 %v2212, %v643
    %v2221 = vmul.f32 %v2215, %v643
    %v2222 = vadd.f32 %v2216, 1e-06
    %v2223 = vadd.f32 %v2217, 1e-06
    %v2224 = vadd.f32 %v2218, 1e-06
    %v2225 = vadd.f32 %v2219, 1e-06
    %v2226 = vadd.f32 %v2220, 1e-06
    %v2227 = vadd.f32 %v2221, 1e-06
    %v2228 = vrsqrt.pop %v2222
    %v2229 = vrsqrt.pop %v2223
    %v2230 = vrsqrt.pop %v2224
    %v2231 = vrsqrt.pop %v2225
    %v2232 = vrsqrt.pop %v2226
    %v2233 = vrsqrt.pop %v2227
    %v2234 = vmul.f32 %v2186, %v2228
    %v2235 = vmul.f32 %v2187, %v2229
    %v2236 = vmul.f32 %v2188, %v2230
    %v2237 = vmul.f32 %v2189, %v2231
    %v2238 = vmul.f32 %v2190, %v2232
    %v2239 = vmul.f32 %v2191, %v2233
    %v2240 = vlaneseq
    %v2241 = vshrl.u32 %v2240, 7
    %v2242 = vsub.s32 0, %v2241
    %v2243 = vrot.slane %v2160, %v2242
    %v2244 = vmul.f32 %v2234, %v2243
    %v2245 = vmul.f32 %v2235, %v2243
    %v2246 = vmul.f32 %v2236, %v2243
    %v2247 = vmul.f32 %v2237, %v2243
    %v2248 = vmul.f32 %v2238, %v2243
    %v2249 = vmul.f32 %v2239, %v2243
    %v2250 = vlaneseq
    %v2251 = vshrl.u32 %v2250, 7
    %v2252 = vsub.s32 0, %v2251
    %v2253 = vrot.slane %v2161, %v2252
    %v2254 = vadd.f32 %v2244, %v2253
    %v2255 = vadd.f32 %v2245, %v2253
    %v2256 = vadd.f32 %v2246, %v2253
    %v2257 = vadd.f32 %v2247, %v2253
    %v2258 = vadd.f32 %v2248, %v2253
    %v2259 = vadd.f32 %v2249, %v2253
    %v2260 = vpack.c.bf16 %v2255, %v2254
    %v2261 = vpack.c.bf16 %v2257, %v2256
    %v2262 = vpack.c.bf16 %v2259, %v2258
    %s2263 = scalar_lea.vmem %s7, 16
    %v2264 = vld [vmem:[%s2263] sm:$0xf]
    %v2265 = vld [vmem:[%s2263 + $0x4] sm:$0xf]
    %v2266 = vld [vmem:[%s2263 + $0x8] sm:$0xf]
    %v2267 = vld [vmem:[%s2263 + $0xc] sm:$0xf]
    %v2268 = vld [vmem:[%s10 + $0x1] sm:$0x1]
    %v2269 = vlaneseq
    %v2270 = vshrl.u32 %v2269, 7
    %v2271 = vsub.s32 0, %v2270
    %v2272 = vrot.slane %v2268, %v2271
    %v2277 = vunpack.c.l.b16 %v2264
    %v2278 = vunpack.c.l.b16 %v2265
    %v2279 = vunpack.c.l.b16 %v2266
    %v2280 = vunpack.c.l.b16 %v2267
    %v2281 = vpack.c.b16 %v2278, %v2277
    %v2282 = vpack.c.b16 %v2280, %v2279
    %v2286 = vsel %vm624, %v2260, 0
    %v2289 = vsel %vm624, %v2261, 0
    %v2292 = vsel %vm624, %v2262, 0
    %2294 = vmatprep.subr.bf16.mxu0 0
    %2295 = vmatpush1.bf16.msra.mxu0 0
    %2296 = vmatprep.subr.bf16.mxu0 0
    %2297 = vmatpush1.bf16.msra.mxu0 0
    %2298 = vmatprep.subr.bf16.mxu0 0
    %2299 = vmatpush1.bf16.msra.mxu0 0
    %2300 = vmatprep.subr.bf16.mxu0 0
    %2301 = vmatpush1.bf16.msra.mxu0 0
    %2302 = vmatprep.subr.bf16.mxu0 0
    %2303 = vmatpush1.bf16.msra.mxu0 0
    %2304 = vmatprep.subr.bf16.mxu0 0
    %2305 = vmatpush1.bf16.msra.mxu0 0
    %2306 = vmatprep.subr.bf16.mxu0 0
    %2307 = vmatpush1.bf16.msra.mxu0 %v2282
    %2308 = vmatprep.subr.bf16.mxu0 0
    %2309 = vmatpush1.bf16.msra.mxu0 %v2281
    %2310 = vmatprep.subr.bf16.mxu0 0
    %2311 = vmatpush2.bf16.msra.mxu0 0
    %2312 = vmatprep.subr.bf16.mxu0 0
    %2313 = vmatpush2.bf16.msra.mxu0 0
    %2314 = vmatprep.subr.bf16.mxu0 0
    %2315 = vmatpush2.bf16.msra.mxu0 0
    %2316 = vmatprep.subr.bf16.mxu0 0
    %2317 = vmatpush2.bf16.msra.mxu0 0
    %2318 = vmatprep.subr.bf16.mxu0 0
    %2319 = vmatpush2.bf16.msra.mxu0 0
    %2320 = vmatprep.subr.bf16.mxu0 0
    %2321 = vmatpush2.bf16.msra.mxu0 0
    %2322 = vmatprep.subr.bf16.mxu0 0
    %2323 = vmatpush2.bf16.msra.mxu0 0
    %2324 = vmatprep.subr.bf16.mxu0 0
    %2325 = vmatpush2.bf16.msra.mxu0 0
    %2326 = vmatprep.mubr.bf16.mxu0 0
    %2327 = vmatmul.mubr.bf16.gmra.mxu0 %v2286
    %v2328 = vpop.f32.mrf.mxu0
    %v2329 = vadd.f32 %v2272, %v2328
    %v2330 = vpop.f32.mrf.mxu0
    %v2331 = vpop.f32.mrf.mxu0
    %v2332 = vadd.f32 %v2272, %v2331
    %v2333 = vpop.f32.mrf.mxu0
    %2334 = vmatprep.mubr.bf16.mxu0 0
    %2335 = vmatmul.mubr.bf16.gmra.mxu0 %v2289
    %v2336 = vpop.f32.mrf.mxu0
    %v2337 = vadd.f32 %v2272, %v2336
    %v2338 = vpop.f32.mrf.mxu0
    %v2339 = vpop.f32.mrf.mxu0
    %v2340 = vadd.f32 %v2272, %v2339
    %v2341 = vpop.f32.mrf.mxu0
    %2342 = vmatprep.mubr.bf16.mxu0 0
    %2343 = vmatmul.mubr.bf16.gmra.mxu0 %v2292
    %v2344 = vpop.f32.mrf.mxu0
    %v2345 = vadd.f32 %v2272, %v2344
    %v2346 = vpop.f32.mrf.mxu0
    %v2347 = vpop.f32.mrf.mxu0
    %v2348 = vadd.f32 %v2272, %v2347
    %v2349 = vpop.f32.mrf.mxu0
    %2350 = vdwg.mxu0
    %s2351 = scalar_lea.vmem %s8, 16
    %v2352 = vld [vmem:[%s2351] sm:$0xf]
    %v2353 = vld [vmem:[%s2351 + $0x4] sm:$0xf]
    %v2354 = vld [vmem:[%s2351 + $0x8] sm:$0xf]
    %v2355 = vld [vmem:[%s2351 + $0xc] sm:$0xf]
    %v2356 = vld [vmem:[%s11 + $0x1] sm:$0x1]
    %v2357 = vlaneseq
    %v2358 = vshrl.u32 %v2357, 7
    %v2359 = vsub.s32 0, %v2358
    %v2360 = vrot.slane %v2356, %v2359
    %v2365 = vunpack.c.l.b16 %v2352
    %v2366 = vunpack.c.l.b16 %v2353
    %v2367 = vunpack.c.l.b16 %v2354
    %v2368 = vunpack.c.l.b16 %v2355
    %v2369 = vpack.c.b16 %v2366, %v2365
    %v2370 = vpack.c.b16 %v2368, %v2367
    %2373 = vmatprep.subr.bf16.mxu0 0
    %2374 = vmatpush1.bf16.msra.mxu0 0
    %2375 = vmatprep.subr.bf16.mxu0 0
    %2376 = vmatpush1.bf16.msra.mxu0 0
    %2377 = vmatprep.subr.bf16.mxu0 0
    %2378 = vmatpush1.bf16.msra.mxu0 0
    %2379 = vmatprep.subr.bf16.mxu0 0
    %2380 = vmatpush1.bf16.msra.mxu0 0
    %2381 = vmatprep.subr.bf16.mxu0 0
    %2382 = vmatpush1.bf16.msra.mxu0 0
    %2383 = vmatprep.subr.bf16.mxu0 0
    %2384 = vmatpush1.bf16.msra.mxu0 0
    %2385 = vmatprep.subr.bf16.mxu0 0
    %2386 = vmatpush1.bf16.msra.mxu0 %v2370
    %2387 = vmatprep.subr.bf16.mxu0 0
    %2388 = vmatpush1.bf16.msra.mxu0 %v2369
    %2389 = vmatprep.subr.bf16.mxu0 0
    %2390 = vmatpush2.bf16.msra.mxu0 0
    %2391 = vmatprep.subr.bf16.mxu0 0
    %2392 = vmatpush2.bf16.msra.mxu0 0
    %2393 = vmatprep.subr.bf16.mxu0 0
    %2394 = vmatpush2.bf16.msra.mxu0 0
    %2395 = vmatprep.subr.bf16.mxu0 0
    %2396 = vmatpush2.bf16.msra.mxu0 0
    %2397 = vmatprep.subr.bf16.mxu0 0
    %2398 = vmatpush2.bf16.msra.mxu0 0
    %2399 = vmatprep.subr.bf16.mxu0 0
    %2400 = vmatpush2.bf16.msra.mxu0 0
    %2401 = vmatprep.subr.bf16.mxu0 0
    %2402 = vmatpush2.bf16.msra.mxu0 0
    %2403 = vmatprep.subr.bf16.mxu0 0
    %2404 = vmatpush2.bf16.msra.mxu0 0
    %2405 = vmatprep.mubr.bf16.mxu0 0
    %2406 = vmatmul.mubr.bf16.gmra.mxu0 %v2286
    %v2407 = vpop.f32.mrf.mxu0
    %v2408 = vadd.f32 %v2360, %v2407
    %v2409 = vpop.f32.mrf.mxu0
    %v2410 = vpop.f32.mrf.mxu0
    %v2411 = vadd.f32 %v2360, %v2410
    %v2412 = vpop.f32.mrf.mxu0
    %2413 = vmatprep.mubr.bf16.mxu0 0
    %2414 = vmatmul.mubr.bf16.gmra.mxu0 %v2289
    %v2415 = vpop.f32.mrf.mxu0
    %v2416 = vadd.f32 %v2360, %v2415
    %v2417 = vpop.f32.mrf.mxu0
    %v2418 = vpop.f32.mrf.mxu0
    %v2419 = vadd.f32 %v2360, %v2418
    %v2420 = vpop.f32.mrf.mxu0
    %2421 = vmatprep.mubr.bf16.mxu0 0
    %2422 = vmatmul.mubr.bf16.gmra.mxu0 %v2292
    %v2423 = vpop.f32.mrf.mxu0
    %v2424 = vadd.f32 %v2360, %v2423
    %v2425 = vpop.f32.mrf.mxu0
    %v2426 = vpop.f32.mrf.mxu0
    %v2427 = vadd.f32 %v2360, %v2426
    %v2428 = vpop.f32.mrf.mxu0
    %2429 = vdwg.mxu0
    %s2430 = scalar_lea.vmem %s9, 16
    %v2431 = vld [vmem:[%s2430] sm:$0xf]
    %v2432 = vld [vmem:[%s2430 + $0x4] sm:$0xf]
    %v2433 = vld [vmem:[%s2430 + $0x8] sm:$0xf]
    %v2434 = vld [vmem:[%s2430 + $0xc] sm:$0xf]
    %v2435 = vld [vmem:[%s12 + $0x1] sm:$0x1]
    %v2436 = vlaneseq
    %v2437 = vshrl.u32 %v2436, 7
    %v2438 = vsub.s32 0, %v2437
    %v2439 = vrot.slane %v2435, %v2438
    %v2444 = vunpack.c.l.b16 %v2431
    %v2445 = vunpack.c.l.b16 %v2432
    %v2446 = vunpack.c.l.b16 %v2433
    %v2447 = vunpack.c.l.b16 %v2434
    %v2448 = vpack.c.b16 %v2445, %v2444
    %v2449 = vpack.c.b16 %v2447, %v2446
    %2452 = vmatprep.subr.bf16.mxu0 0
    %2453 = vmatpush1.bf16.msra.mxu0 0
    %2454 = vmatprep.subr.bf16.mxu0 0
    %2455 = vmatpush1.bf16.msra.mxu0 0
    %2456 = vmatprep.subr.bf16.mxu0 0
    %2457 = vmatpush1.bf16.msra.mxu0 0
    %2458 = vmatprep.subr.bf16.mxu0 0
    %2459 = vmatpush1.bf16.msra.mxu0 0
    %2460 = vmatprep.subr.bf16.mxu0 0
    %2461 = vmatpush1.bf16.msra.mxu0 0
    %2462 = vmatprep.subr.bf16.mxu0 0
    %2463 = vmatpush1.bf16.msra.mxu0 0
    %2464 = vmatprep.subr.bf16.mxu0 0
    %2465 = vmatpush1.bf16.msra.mxu0 %v2449
    %2466 = vmatprep.subr.bf16.mxu0 0
    %2467 = vmatpush1.bf16.msra.mxu0 %v2448
    %2468 = vmatprep.subr.bf16.mxu0 0
    %2469 = vmatpush2.bf16.msra.mxu0 0
    %2470 = vmatprep.subr.bf16.mxu0 0
    %2471 = vmatpush2.bf16.msra.mxu0 0
    %2472 = vmatprep.subr.bf16.mxu0 0
    %2473 = vmatpush2.bf16.msra.mxu0 0
    %2474 = vmatprep.subr.bf16.mxu0 0
    %2475 = vmatpush2.bf16.msra.mxu0 0
    %2476 = vmatprep.subr.bf16.mxu0 0
    %2477 = vmatpush2.bf16.msra.mxu0 0
    %2478 = vmatprep.subr.bf16.mxu0 0
    %2479 = vmatpush2.bf16.msra.mxu0 0
    %2480 = vmatprep.subr.bf16.mxu0 0
    %2481 = vmatpush2.bf16.msra.mxu0 0
    %2482 = vmatprep.subr.bf16.mxu0 0
    %2483 = vmatpush2.bf16.msra.mxu0 0
    %2484 = vmatprep.mubr.bf16.mxu0 0
    %2485 = vmatmul.mubr.bf16.gmra.mxu0 %v2286
    %v2486 = vpop.f32.mrf.mxu0
    %v2487 = vadd.f32 %v2439, %v2486
    %v2488 = vpop.f32.mrf.mxu0
    %v2489 = vpop.f32.mrf.mxu0
    %v2490 = vadd.f32 %v2439, %v2489
    %v2491 = vpop.f32.mrf.mxu0
    %2492 = vmatprep.mubr.bf16.mxu0 0
    %2493 = vmatmul.mubr.bf16.gmra.mxu0 %v2289
    %v2494 = vpop.f32.mrf.mxu0
    %v2495 = vadd.f32 %v2439, %v2494
    %v2496 = vpop.f32.mrf.mxu0
    %v2497 = vpop.f32.mrf.mxu0
    %v2498 = vadd.f32 %v2439, %v2497
    %v2499 = vpop.f32.mrf.mxu0
    %2500 = vmatprep.mubr.bf16.mxu0 0
    %2501 = vmatmul.mubr.bf16.gmra.mxu0 %v2292
    %v2502 = vpop.f32.mrf.mxu0
    %v2503 = vadd.f32 %v2439, %v2502
    %v2504 = vpop.f32.mrf.mxu0
    %v2505 = vpop.f32.mrf.mxu0
    %v2506 = vadd.f32 %v2439, %v2505
    %v2507 = vpop.f32.mrf.mxu0
    %2508 = vdwg.mxu0
    %v2509 = vpack.c.bf16 %v2332, %v2329
    %v2510 = vpack.c.bf16 %v2337, %v2337
    %v2511 = vpack.c.bf16 %v2345, %v2340
    %v2512 = vpack.c.bf16 %v2348, %v2348
    %v2513 = vpack.c.bf16 %v2411, %v2408
    %v2514 = vpack.c.bf16 %v2416, %v2416
    %v2515 = vpack.c.bf16 %v2424, %v2419
    %v2516 = vpack.c.bf16 %v2427, %v2427
    %v2517 = vpack.c.bf16 %v2490, %v2487
    %v2518 = vpack.c.bf16 %v2495, %v2495
    %v2519 = vpack.c.bf16 %v2503, %v2498
    %v2520 = vpack.c.bf16 %v2506, %v2506
    %v2522 = vsel %vm982, %v2509, 0
    %v2525 = vsel %vm982, %v2510, 0
    %v2528 = vsel %vm982, %v2513, 0
    %v2531 = vsel %vm982, %v2514, 0
    %2533 = vmatprep.subr.bf16.mxu0 0
    %2534 = vmatpush1.bf16.xpose.msra.mxu0 0
    %2535 = vmatprep.subr.bf16.mxu0 0
    %2536 = vmatpush1.bf16.xpose.msra.mxu0 0
    %2537 = vmatprep.subr.bf16.mxu0 0
    %2538 = vmatpush1.bf16.xpose.msra.mxu0 0
    %2539 = vmatprep.subr.bf16.mxu0 0
    %2540 = vmatpush1.bf16.xpose.msra.mxu0 0
    %2541 = vmatprep.subr.bf16.mxu0 0
    %2542 = vmatpush1.bf16.xpose.msra.mxu0 0
    %2543 = vmatprep.subr.bf16.mxu0 0
    %2544 = vmatpush1.bf16.xpose.msra.mxu0 0
    %2545 = vmatprep.subr.bf16.mxu0 0
    %2546 = vmatpush1.bf16.xpose.msra.mxu0 %v2531
    %2547 = vmatprep.subr.bf16.mxu0 0
    %2548 = vmatpush1.bf16.xpose.msra.mxu0 %v2528
    %2549 = vmatprep.subr.bf16.mxu0 0
    %2550 = vmatpush2.bf16.xpose.msra.mxu0 0
    %2551 = vmatprep.subr.bf16.mxu0 0
    %2552 = vmatpush2.bf16.xpose.msra.mxu0 0
    %2553 = vmatprep.subr.bf16.mxu0 0
    %2554 = vmatpush2.bf16.xpose.msra.mxu0 0
    %2555 = vmatprep.subr.bf16.mxu0 0
    %2556 = vmatpush2.bf16.xpose.msra.mxu0 0
    %2557 = vmatprep.subr.bf16.mxu0 0
    %2558 = vmatpush2.bf16.xpose.msra.mxu0 0
    %2559 = vmatprep.subr.bf16.mxu0 0
    %2560 = vmatpush2.bf16.xpose.msra.mxu0 0
    %2561 = vmatprep.subr.bf16.mxu0 0
    %2562 = vmatpush2.bf16.xpose.msra.mxu0 0
    %2563 = vmatprep.subr.bf16.mxu0 0
    %2564 = vmatpush2.bf16.xpose.msra.mxu0 0
    %2565 = vmatprep.mubr.bf16.mxu0 0
    %2566 = vmatmul.mubr.bf16.gmra.mxu0 %v2522
    %v2567 = vpop.f32.mrf.mxu0
    %v2568 = vadd.f32 0.0, %v2567
    %v2569 = vpop.f32.mrf.mxu0
    %v2570 = vpop.f32.mrf.mxu0
    %v2571 = vadd.f32 0.0, %v2570
    %v2572 = vpop.f32.mrf.mxu0
    %2573 = vmatprep.mubr.bf16.mxu0 0
    %2574 = vmatmul.mubr.bf16.gmra.mxu0 %v2525
    %v2575 = vpop.f32.mrf.mxu0
    %v2576 = vadd.f32 0.0, %v2575
    %v2577 = vpop.f32.mrf.mxu0
    %v2578 = vpop.f32.mrf.mxu0
    %v2579 = vpop.f32.mrf.mxu0
    %2580 = vdwg.mxu0
    %v2582 = vsel %vm982, %v2511, 0
    %v2585 = vsel %vm982, %v2512, 0
    %v2588 = vsel %vm982, %v2515, 0
    %v2591 = vsel %vm982, %v2516, 0
    %2593 = vmatprep.subr.bf16.mxu0 0
    %2594 = vmatpush1.bf16.xpose.msra.mxu0 0
    %2595 = vmatprep.subr.bf16.mxu0 0
    %2596 = vmatpush1.bf16.xpose.msra.mxu0 0
    %2597 = vmatprep.subr.bf16.mxu0 0
    %2598 = vmatpush1.bf16.xpose.msra.mxu0 0
    %2599 = vmatprep.subr.bf16.mxu0 0
    %2600 = vmatpush1.bf16.xpose.msra.mxu0 0
    %2601 = vmatprep.subr.bf16.mxu0 0
    %2602 = vmatpush1.bf16.xpose.msra.mxu0 0
    %2603 = vmatprep.subr.bf16.mxu0 0
    %2604 = vmatpush1.bf16.xpose.msra.mxu0 0
    %2605 = vmatprep.subr.bf16.mxu0 0
    %2606 = vmatpush1.bf16.xpose.msra.mxu0 %v2591
    %2607 = vmatprep.subr.bf16.mxu0 0
    %2608 = vmatpush1.bf16.xpose.msra.mxu0 %v2588
    %2609 = vmatprep.subr.bf16.mxu0 0
    %2610 = vmatpush2.bf16.xpose.msra.mxu0 0
    %2611 = vmatprep.subr.bf16.mxu0 0
    %2612 = vmatpush2.bf16.xpose.msra.mxu0 0
    %2613 = vmatprep.subr.bf16.mxu0 0
    %2614 = vmatpush2.bf16.xpose.msra.mxu0 0
    %2615 = vmatprep.subr.bf16.mxu0 0
    %2616 = vmatpush2.bf16.xpose.msra.mxu0 0
    %2617 = vmatprep.subr.bf16.mxu0 0
    %2618 = vmatpush2.bf16.xpose.msra.mxu0 0
    %2619 = vmatprep.subr.bf16.mxu0 0
    %2620 = vmatpush2.bf16.xpose.msra.mxu0 0
    %2621 = vmatprep.subr.bf16.mxu0 0
    %2622 = vmatpush2.bf16.xpose.msra.mxu0 0
    %2623 = vmatprep.subr.bf16.mxu0 0
    %2624 = vmatpush2.bf16.xpose.msra.mxu0 0
    %2625 = vmatprep.mubr.bf16.mxu0 0
    %2626 = vmatmul.mubr.bf16.gmra.mxu0 %v2582
    %v2627 = vpop.f32.mrf.mxu0
    %v2628 = vadd.f32 0.0, %v2627
    %v2629 = vpop.f32.mrf.mxu0
    %v2630 = vpop.f32.mrf.mxu0
    %v2631 = vadd.f32 0.0, %v2630
    %v2632 = vpop.f32.mrf.mxu0
    %2633 = vmatprep.mubr.bf16.mxu0 0
    %2634 = vmatmul.mubr.bf16.gmra.mxu0 %v2585
    %v2635 = vpop.f32.mrf.mxu0
    %v2636 = vadd.f32 0.0, %v2635
    %v2637 = vpop.f32.mrf.mxu0
    %v2638 = vpop.f32.mrf.mxu0
    %v2639 = vpop.f32.mrf.mxu0
    %2640 = vdwg.mxu0
    %v2641 = vmul.f32 %v2568, 0.25
    %v2642 = vmul.f32 %v2571, 0.25
    %v2643 = vmul.f32 %v2576, 0.25
    %v2644 = vmul.f32 %v2628, 0.25
    %v2645 = vmul.f32 %v2631, 0.25
    %v2646 = vmul.f32 %v2636, 0.25
    %v2647 = vadd.f32 %v2641, %v621
    %v2648 = vadd.f32 %v2642, %v621
    %v2649 = vadd.f32 %v2643, %v621
    %v2650 = vadd.f32 %v2644, %v621
    %v2651 = vadd.f32 %v2645, %v621
    %v2652 = vadd.f32 %v2646, %v621
    %v2653 = vsel %vm1115, %v2647, -inf
    %2654 = vmax.xlane.f32.xlu0 %v2653
    %v2655 = vpop.xlane.xlu0 %2654
    %v2656 = vsel %vm1115, %v2648, -inf
    %2657 = vmax.xlane.f32.xlu0 %v2656
    %v2658 = vpop.xlane.xlu0 %2657
    %v2659 = vsel %vm1115, %v2649, -inf
    %2660 = vmax.xlane.f32.xlu0 %v2659
    %v2661 = vpop.xlane.xlu0 %2660
    %v2662 = vsel %vm1115, %v2650, -inf
    %2663 = vmax.xlane.f32.xlu0 %v2662
    %v2664 = vpop.xlane.xlu0 %2663
    %v2665 = vsel %vm1115, %v2651, -inf
    %2666 = vmax.xlane.f32.xlu0 %v2665
    %v2667 = vpop.xlane.xlu0 %2666
    %v2668 = vsel %vm1115, %v2652, -inf
    %2669 = vmax.xlane.f32.xlu0 %v2668
    %v2670 = vpop.xlane.xlu0 %2669
    %v2671 = vsub.f32 %v2647, %v2655
    %v2672 = vsub.f32 %v2648, %v2658
    %v2673 = vsub.f32 %v2649, %v2661
    %v2674 = vsub.f32 %v2650, %v2664
    %v2675 = vsub.f32 %v2651, %v2667
    %v2676 = vsub.f32 %v2652, %v2670
    %v2677 = vmul.f32 %v2671, 1.442695
    %v2678 = vpow.pop %v2677
    %v2679 = vmul.f32 %v2672, 1.442695
    %v2680 = vpow.pop %v2679
    %v2681 = vmul.f32 %v2673, 1.442695
    %v2682 = vpow.pop %v2681
    %v2683 = vmul.f32 %v2674, 1.442695
    %v2684 = vpow.pop %v2683
    %v2685 = vmul.f32 %v2675, 1.442695
    %v2686 = vpow.pop %v2685
    %v2687 = vmul.f32 %v2676, 1.442695
    %v2688 = vpow.pop %v2687
    %v2689 = vsel %vm1115, %v2678, 0.0
    %2690 = vadd.xlane.f32.xlu0 %v2689
    %v2691 = vpop.xlane.xlu0 %2690
    %v2692 = vsel %vm1115, %v2680, 0.0
    %2693 = vadd.xlane.f32.xlu0 %v2692
    %v2694 = vpop.xlane.xlu0 %2693
    %v2695 = vsel %vm1115, %v2682, 0.0
    %2696 = vadd.xlane.f32.xlu0 %v2695
    %v2697 = vpop.xlane.xlu0 %2696
    %v2698 = vsel %vm1115, %v2684, 0.0
    %2699 = vadd.xlane.f32.xlu0 %v2698
    %v2700 = vpop.xlane.xlu0 %2699
    %v2701 = vsel %vm1115, %v2686, 0.0
    %2702 = vadd.xlane.f32.xlu0 %v2701
    %v2703 = vpop.xlane.xlu0 %2702
    %v2704 = vsel %vm1115, %v2688, 0.0
    %2705 = vadd.xlane.f32.xlu0 %v2704
    %v2706 = vpop.xlane.xlu0 %2705
    %v2707 = vrcp.pop %v2691
    %v2708 = vrcp.pop %v2694
    %v2709 = vrcp.pop %v2697
    %v2710 = vrcp.pop %v2700
    %v2711 = vrcp.pop %v2703
    %v2712 = vrcp.pop %v2706
    %v2713 = vmul.f32 %v2678, %v2707
    %v2714 = vmul.f32 %v2680, %v2708
    %v2715 = vmul.f32 %v2682, %v2709
    %v2716 = vmul.f32 %v2684, %v2710
    %v2717 = vmul.f32 %v2686, %v2711
    %v2718 = vmul.f32 %v2688, %v2712
    %v2719 = vpack.c.bf16 %v2714, %v2713
    %v2720 = vpack.c.bf16 %v2715, %v2715
    %v2721 = vpack.c.bf16 %v2717, %v2716
    %v2722 = vpack.c.bf16 %v2718, %v2718
    %v2724 = vsel %vm1115, %v2719, 0
    %v2727 = vsel %vm1115, %v2720, 0
    %v2730 = vsel %vm1192, %v2518, 0
    %2732 = vmatprep.subr.bf16.mxu0 0
    %2733 = vmatpush1.bf16.msra.mxu0 0
    %2734 = vmatprep.subr.bf16.mxu0 0
    %2735 = vmatpush1.bf16.msra.mxu0 0
    %2736 = vmatprep.subr.bf16.mxu0 0
    %2737 = vmatpush1.bf16.msra.mxu0 0
    %2738 = vmatprep.subr.bf16.mxu0 0
    %2739 = vmatpush1.bf16.msra.mxu0 0
    %2740 = vmatprep.subr.bf16.mxu0 0
    %2741 = vmatpush1.bf16.msra.mxu0 0
    %2742 = vmatprep.subr.bf16.mxu0 0
    %2743 = vmatpush1.bf16.msra.mxu0 0
    %2744 = vmatprep.subr.bf16.mxu0 0
    %2745 = vmatpush1.bf16.msra.mxu0 %v2730
    %2746 = vmatprep.subr.bf16.mxu0 0
    %2747 = vmatpush1.bf16.msra.mxu0 %v2517
    %2748 = vmatprep.subr.bf16.mxu0 0
    %2749 = vmatpush2.bf16.msra.mxu0 0
    %2750 = vmatprep.subr.bf16.mxu0 0
    %2751 = vmatpush2.bf16.msra.mxu0 0
    %2752 = vmatprep.subr.bf16.mxu0 0
    %2753 = vmatpush2.bf16.msra.mxu0 0
    %2754 = vmatprep.subr.bf16.mxu0 0
    %2755 = vmatpush2.bf16.msra.mxu0 0
    %2756 = vmatprep.subr.bf16.mxu0 0
    %2757 = vmatpush2.bf16.msra.mxu0 0
    %2758 = vmatprep.subr.bf16.mxu0 0
    %2759 = vmatpush2.bf16.msra.mxu0 0
    %2760 = vmatprep.subr.bf16.mxu0 0
    %2761 = vmatpush2.bf16.msra.mxu0 0
    %2762 = vmatprep.subr.bf16.mxu0 0
    %2763 = vmatpush2.bf16.msra.mxu0 0
    %2764 = vmatprep.mubr.bf16.mxu0 0
    %2765 = vmatmul.mubr.bf16.gmra.mxu0 %v2724
    %v2766 = vpop.f32.mrf.mxu0
    %v2767 = vadd.f32 0.0, %v2766
    %v2768 = vpop.f32.mrf.mxu0
    %v2769 = vpop.f32.mrf.mxu0
    %v2770 = vadd.f32 0.0, %v2769
    %v2771 = vpop.f32.mrf.mxu0
    %2772 = vmatprep.mubr.bf16.mxu0 0
    %2773 = vmatmul.mubr.bf16.gmra.mxu0 %v2727
    %v2774 = vpop.f32.mrf.mxu0
    %v2775 = vadd.f32 0.0, %v2774
    %v2776 = vpop.f32.mrf.mxu0
    %v2777 = vpop.f32.mrf.mxu0
    %v2778 = vpop.f32.mrf.mxu0
    %2779 = vdwg.mxu0
    %v2781 = vsel %vm1115, %v2721, 0
    %v2784 = vsel %vm1115, %v2722, 0
    %v2787 = vsel %vm1192, %v2520, 0
    %2789 = vmatprep.subr.bf16.mxu0 0
    %2790 = vmatpush1.bf16.msra.mxu0 0
    %2791 = vmatprep.subr.bf16.mxu0 0
    %2792 = vmatpush1.bf16.msra.mxu0 0
    %2793 = vmatprep.subr.bf16.mxu0 0
    %2794 = vmatpush1.bf16.msra.mxu0 0
    %2795 = vmatprep.subr.bf16.mxu0 0
    %2796 = vmatpush1.bf16.msra.mxu0 0
    %2797 = vmatprep.subr.bf16.mxu0 0
    %2798 = vmatpush1.bf16.msra.mxu0 0
    %2799 = vmatprep.subr.bf16.mxu0 0
    %2800 = vmatpush1.bf16.msra.mxu0 0
    %2801 = vmatprep.subr.bf16.mxu0 0
    %2802 = vmatpush1.bf16.msra.mxu0 %v2787
    %2803 = vmatprep.subr.bf16.mxu0 0
    %2804 = vmatpush1.bf16.msra.mxu0 %v2519
    %2805 = vmatprep.subr.bf16.mxu0 0
    %2806 = vmatpush2.bf16.msra.mxu0 0
    %2807 = vmatprep.subr.bf16.mxu0 0
    %2808 = vmatpush2.bf16.msra.mxu0 0
    %2809 = vmatprep.subr.bf16.mxu0 0
    %2810 = vmatpush2.bf16.msra.mxu0 0
    %2811 = vmatprep.subr.bf16.mxu0 0
    %2812 = vmatpush2.bf16.msra.mxu0 0
    %2813 = vmatprep.subr.bf16.mxu0 0
    %2814 = vmatpush2.bf16.msra.mxu0 0
    %2815 = vmatprep.subr.bf16.mxu0 0
    %2816 = vmatpush2.bf16.msra.mxu0 0
    %2817 = vmatprep.subr.bf16.mxu0 0
    %2818 = vmatpush2.bf16.msra.mxu0 0
    %2819 = vmatprep.subr.bf16.mxu0 0
    %2820 = vmatpush2.bf16.msra.mxu0 0
    %2821 = vmatprep.mubr.bf16.mxu0 0
    %2822 = vmatmul.mubr.bf16.gmra.mxu0 %v2781
    %v2823 = vpop.f32.mrf.mxu0
    %v2824 = vadd.f32 0.0, %v2823
    %v2825 = vpop.f32.mrf.mxu0
    %v2826 = vpop.f32.mrf.mxu0
    %v2827 = vadd.f32 0.0, %v2826
    %v2828 = vpop.f32.mrf.mxu0
    %2829 = vmatprep.mubr.bf16.mxu0 0
    %2830 = vmatmul.mubr.bf16.gmra.mxu0 %v2784
    %v2831 = vpop.f32.mrf.mxu0
    %v2832 = vadd.f32 0.0, %v2831
    %v2833 = vpop.f32.mrf.mxu0
    %v2834 = vpop.f32.mrf.mxu0
    %v2835 = vpop.f32.mrf.mxu0
    %2836 = vdwg.mxu0
    %2839 = vrot.lane.b32.xlu0 %v2509, 112
    %v2840 = vpop.permute.xlu0 %2839
    %2841 = vrot.lane.b32.xlu0 %v2510, 112
    %v2842 = vpop.permute.xlu0 %2841
    %2845 = vrot.lane.b32.xlu0 %v2513, 112
    %v2846 = vpop.permute.xlu0 %2845
    %2847 = vrot.lane.b32.xlu0 %v2514, 112
    %v2848 = vpop.permute.xlu0 %2847
    %v2850 = vsel %vm982, %v2840, 0
    %v2853 = vsel %vm982, %v2842, 0
    %v2856 = vsel %vm982, %v2846, 0
    %v2859 = vsel %vm982, %v2848, 0
    %2861 = vmatprep.subr.bf16.mxu0 0
    %2862 = vmatpush1.bf16.xpose.msra.mxu0 0
    %2863 = vmatprep.subr.bf16.mxu0 0
    %2864 = vmatpush1.bf16.xpose.msra.mxu0 0
    %2865 = vmatprep.subr.bf16.mxu0 0
    %2866 = vmatpush1.bf16.xpose.msra.mxu0 0
    %2867 = vmatprep.subr.bf16.mxu0 0
    %2868 = vmatpush1.bf16.xpose.msra.mxu0 0
    %2869 = vmatprep.subr.bf16.mxu0 0
    %2870 = vmatpush1.bf16.xpose.msra.mxu0 0
    %2871 = vmatprep.subr.bf16.mxu0 0
    %2872 = vmatpush1.bf16.xpose.msra.mxu0 0
    %2873 = vmatprep.subr.bf16.mxu0 0
    %2874 = vmatpush1.bf16.xpose.msra.mxu0 %v2859
    %2875 = vmatprep.subr.bf16.mxu0 0
    %2876 = vmatpush1.bf16.xpose.msra.mxu0 %v2856
    %2877 = vmatprep.subr.bf16.mxu0 0
    %2878 = vmatpush2.bf16.xpose.msra.mxu0 0
    %2879 = vmatprep.subr.bf16.mxu0 0
    %2880 = vmatpush2.bf16.xpose.msra.mxu0 0
    %2881 = vmatprep.subr.bf16.mxu0 0
    %2882 = vmatpush2.bf16.xpose.msra.mxu0 0
    %2883 = vmatprep.subr.bf16.mxu0 0
    %2884 = vmatpush2.bf16.xpose.msra.mxu0 0
    %2885 = vmatprep.subr.bf16.mxu0 0
    %2886 = vmatpush2.bf16.xpose.msra.mxu0 0
    %2887 = vmatprep.subr.bf16.mxu0 0
    %2888 = vmatpush2.bf16.xpose.msra.mxu0 0
    %2889 = vmatprep.subr.bf16.mxu0 0
    %2890 = vmatpush2.bf16.xpose.msra.mxu0 0
    %2891 = vmatprep.subr.bf16.mxu0 0
    %2892 = vmatpush2.bf16.xpose.msra.mxu0 0
    %2893 = vmatprep.mubr.bf16.mxu0 0
    %2894 = vmatmul.mubr.bf16.gmra.mxu0 %v2850
    %v2895 = vpop.f32.mrf.mxu0
    %v2896 = vadd.f32 0.0, %v2895
    %v2897 = vpop.f32.mrf.mxu0
    %v2898 = vpop.f32.mrf.mxu0
    %v2899 = vadd.f32 0.0, %v2898
    %v2900 = vpop.f32.mrf.mxu0
    %2901 = vmatprep.mubr.bf16.mxu0 0
    %2902 = vmatmul.mubr.bf16.gmra.mxu0 %v2853
    %v2903 = vpop.f32.mrf.mxu0
    %v2904 = vadd.f32 0.0, %v2903
    %v2905 = vpop.f32.mrf.mxu0
    %v2906 = vpop.f32.mrf.mxu0
    %v2907 = vpop.f32.mrf.mxu0
    %2908 = vdwg.mxu0
    %2911 = vrot.lane.b32.xlu0 %v2511, 112
    %v2912 = vpop.permute.xlu0 %2911
    %2913 = vrot.lane.b32.xlu0 %v2512, 112
    %v2914 = vpop.permute.xlu0 %2913
    %2917 = vrot.lane.b32.xlu0 %v2515, 112
    %v2918 = vpop.permute.xlu0 %2917
    %2919 = vrot.lane.b32.xlu0 %v2516, 112
    %v2920 = vpop.permute.xlu0 %2919
    %v2922 = vsel %vm982, %v2912, 0
    %v2925 = vsel %vm982, %v2914, 0
    %v2928 = vsel %vm982, %v2918, 0
    %v2931 = vsel %vm982, %v2920, 0
    %2933 = vmatprep.subr.bf16.mxu0 0
    %2934 = vmatpush1.bf16.xpose.msra.mxu0 0
    %2935 = vmatprep.subr.bf16.mxu0 0
    %2936 = vmatpush1.bf16.xpose.msra.mxu0 0
    %2937 = vmatprep.subr.bf16.mxu0 0
    %2938 = vmatpush1.bf16.xpose.msra.mxu0 0
    %2939 = vmatprep.subr.bf16.mxu0 0
    %2940 = vmatpush1.bf16.xpose.msra.mxu0 0
    %2941 = vmatprep.subr.bf16.mxu0 0
    %2942 = vmatpush1.bf16.xpose.msra.mxu0 0
    %2943 = vmatprep.subr.bf16.mxu0 0
    %2944 = vmatpush1.bf16.xpose.msra.mxu0 0
    %2945 = vmatprep.subr.bf16.mxu0 0
    %2946 = vmatpush1.bf16.xpose.msra.mxu0 %v2931
    %2947 = vmatprep.subr.bf16.mxu0 0
    %2948 = vmatpush1.bf16.xpose.msra.mxu0 %v2928
    %2949 = vmatprep.subr.bf16.mxu0 0
    %2950 = vmatpush2.bf16.xpose.msra.mxu0 0
    %2951 = vmatprep.subr.bf16.mxu0 0
    %2952 = vmatpush2.bf16.xpose.msra.mxu0 0
    %2953 = vmatprep.subr.bf16.mxu0 0
    %2954 = vmatpush2.bf16.xpose.msra.mxu0 0
    %2955 = vmatprep.subr.bf16.mxu0 0
    %2956 = vmatpush2.bf16.xpose.msra.mxu0 0
    %2957 = vmatprep.subr.bf16.mxu0 0
    %2958 = vmatpush2.bf16.xpose.msra.mxu0 0
    %2959 = vmatprep.subr.bf16.mxu0 0
    %2960 = vmatpush2.bf16.xpose.msra.mxu0 0
    %2961 = vmatprep.subr.bf16.mxu0 0
    %2962 = vmatpush2.bf16.xpose.msra.mxu0 0
    %2963 = vmatprep.subr.bf16.mxu0 0
    %2964 = vmatpush2.bf16.xpose.msra.mxu0 0
    %2965 = vmatprep.mubr.bf16.mxu0 0
    %2966 = vmatmul.mubr.bf16.gmra.mxu0 %v2922
    %v2967 = vpop.f32.mrf.mxu0
    %v2968 = vadd.f32 0.0, %v2967
    %v2969 = vpop.f32.mrf.mxu0
    %v2970 = vpop.f32.mrf.mxu0
    %v2971 = vadd.f32 0.0, %v2970
    %v2972 = vpop.f32.mrf.mxu0
    %2973 = vmatprep.mubr.bf16.mxu0 0
    %2974 = vmatmul.mubr.bf16.gmra.mxu0 %v2925
    %v2975 = vpop.f32.mrf.mxu0
    %v2976 = vadd.f32 0.0, %v2975
    %v2977 = vpop.f32.mrf.mxu0
    %v2978 = vpop.f32.mrf.mxu0
    %v2979 = vpop.f32.mrf.mxu0
    %2980 = vdwg.mxu0
    %v2981 = vmul.f32 %v2896, 0.25
    %v2982 = vmul.f32 %v2899, 0.25
    %v2983 = vmul.f32 %v2904, 0.25
    %v2984 = vmul.f32 %v2968, 0.25
    %v2985 = vmul.f32 %v2971, 0.25
    %v2986 = vmul.f32 %v2976, 0.25
    %v2987 = vadd.f32 %v2981, %v621
    %v2988 = vadd.f32 %v2982, %v621
    %v2989 = vadd.f32 %v2983, %v621
    %v2990 = vadd.f32 %v2984, %v621
    %v2991 = vadd.f32 %v2985, %v621
    %v2992 = vadd.f32 %v2986, %v621
    %v2993 = vsel %vm1115, %v2987, -inf
    %2994 = vmax.xlane.f32.xlu0 %v2993
    %v2995 = vpop.xlane.xlu0 %2994
    %v2996 = vsel %vm1115, %v2988, -inf
    %2997 = vmax.xlane.f32.xlu0 %v2996
    %v2998 = vpop.xlane.xlu0 %2997
    %v2999 = vsel %vm1115, %v2989, -inf
    %3000 = vmax.xlane.f32.xlu0 %v2999
    %v3001 = vpop.xlane.xlu0 %3000
    %v3002 = vsel %vm1115, %v2990, -inf
    %3003 = vmax.xlane.f32.xlu0 %v3002
    %v3004 = vpop.xlane.xlu0 %3003
    %v3005 = vsel %vm1115, %v2991, -inf
    %3006 = vmax.xlane.f32.xlu0 %v3005
    %v3007 = vpop.xlane.xlu0 %3006
    %v3008 = vsel %vm1115, %v2992, -inf
    %3009 = vmax.xlane.f32.xlu0 %v3008
    %v3010 = vpop.xlane.xlu0 %3009
    %v3011 = vsub.f32 %v2987, %v2995
    %v3012 = vsub.f32 %v2988, %v2998
    %v3013 = vsub.f32 %v2989, %v3001
    %v3014 = vsub.f32 %v2990, %v3004
    %v3015 = vsub.f32 %v2991, %v3007
    %v3016 = vsub.f32 %v2992, %v3010
    %v3017 = vmul.f32 %v3011, 1.442695
    %v3018 = vpow.pop %v3017
    %v3019 = vmul.f32 %v3012, 1.442695
    %v3020 = vpow.pop %v3019
    %v3021 = vmul.f32 %v3013, 1.442695
    %v3022 = vpow.pop %v3021
    %v3023 = vmul.f32 %v3014, 1.442695
    %v3024 = vpow.pop %v3023
    %v3025 = vmul.f32 %v3015, 1.442695
    %v3026 = vpow.pop %v3025
    %v3027 = vmul.f32 %v3016, 1.442695
    %v3028 = vpow.pop %v3027
    %v3029 = vsel %vm1115, %v3018, 0.0
    %3030 = vadd.xlane.f32.xlu0 %v3029
    %v3031 = vpop.xlane.xlu0 %3030
    %v3032 = vsel %vm1115, %v3020, 0.0
    %3033 = vadd.xlane.f32.xlu0 %v3032
    %v3034 = vpop.xlane.xlu0 %3033
    %v3035 = vsel %vm1115, %v3022, 0.0
    %3036 = vadd.xlane.f32.xlu0 %v3035
    %v3037 = vpop.xlane.xlu0 %3036
    %v3038 = vsel %vm1115, %v3024, 0.0
    %3039 = vadd.xlane.f32.xlu0 %v3038
    %v3040 = vpop.xlane.xlu0 %3039
    %v3041 = vsel %vm1115, %v3026, 0.0
    %3042 = vadd.xlane.f32.xlu0 %v3041
    %v3043 = vpop.xlane.xlu0 %3042
    %v3044 = vsel %vm1115, %v3028, 0.0
    %3045 = vadd.xlane.f32.xlu0 %v3044
    %v3046 = vpop.xlane.xlu0 %3045
    %v3047 = vrcp.pop %v3031
    %v3048 = vrcp.pop %v3034
    %v3049 = vrcp.pop %v3037
    %v3050 = vrcp.pop %v3040
    %v3051 = vrcp.pop %v3043
    %v3052 = vrcp.pop %v3046
    %v3053 = vmul.f32 %v3018, %v3047
    %v3054 = vmul.f32 %v3020, %v3048
    %v3055 = vmul.f32 %v3022, %v3049
    %v3056 = vmul.f32 %v3024, %v3050
    %v3057 = vmul.f32 %v3026, %v3051
    %v3058 = vmul.f32 %v3028, %v3052
    %v3059 = vpack.c.bf16 %v3054, %v3053
    %v3060 = vpack.c.bf16 %v3055, %v3055
    %v3061 = vpack.c.bf16 %v3057, %v3056
    %v3062 = vpack.c.bf16 %v3058, %v3058
    %3065 = vrot.lane.b32.xlu0 %v2517, 112
    %v3066 = vpop.permute.xlu0 %3065
    %3067 = vrot.lane.b32.xlu0 %v2518, 112
    %v3068 = vpop.permute.xlu0 %3067
    %v3071 = vsel %vm1115, %v3059, 0
    %v3074 = vsel %vm1115, %v3060, 0
    %v3077 = vsel %vm1192, %v3068, 0
    %3079 = vmatprep.subr.bf16.mxu0 0
    %3080 = vmatpush1.bf16.msra.mxu0 0
    %3081 = vmatprep.subr.bf16.mxu0 0
    %3082 = vmatpush1.bf16.msra.mxu0 0
    %3083 = vmatprep.subr.bf16.mxu0 0
    %3084 = vmatpush1.bf16.msra.mxu0 0
    %3085 = vmatprep.subr.bf16.mxu0 0
    %3086 = vmatpush1.bf16.msra.mxu0 0
    %3087 = vmatprep.subr.bf16.mxu0 0
    %3088 = vmatpush1.bf16.msra.mxu0 0
    %3089 = vmatprep.subr.bf16.mxu0 0
    %3090 = vmatpush1.bf16.msra.mxu0 0
    %3091 = vmatprep.subr.bf16.mxu0 0
    %3092 = vmatpush1.bf16.msra.mxu0 %v3077
    %3093 = vmatprep.subr.bf16.mxu0 0
    %3094 = vmatpush1.bf16.msra.mxu0 %v3066
    %3095 = vmatprep.subr.bf16.mxu0 0
    %3096 = vmatpush2.bf16.msra.mxu0 0
    %3097 = vmatprep.subr.bf16.mxu0 0
    %3098 = vmatpush2.bf16.msra.mxu0 0
    %3099 = vmatprep.subr.bf16.mxu0 0
    %3100 = vmatpush2.bf16.msra.mxu0 0
    %3101 = vmatprep.subr.bf16.mxu0 0
    %3102 = vmatpush2.bf16.msra.mxu0 0
    %3103 = vmatprep.subr.bf16.mxu0 0
    %3104 = vmatpush2.bf16.msra.mxu0 0
    %3105 = vmatprep.subr.bf16.mxu0 0
    %3106 = vmatpush2.bf16.msra.mxu0 0
    %3107 = vmatprep.subr.bf16.mxu0 0
    %3108 = vmatpush2.bf16.msra.mxu0 0
    %3109 = vmatprep.subr.bf16.mxu0 0
    %3110 = vmatpush2.bf16.msra.mxu0 0
    %3111 = vmatprep.mubr.bf16.mxu0 0
    %3112 = vmatmul.mubr.bf16.gmra.mxu0 %v3071
    %v3113 = vpop.f32.mrf.mxu0
    %v3114 = vadd.f32 0.0, %v3113
    %v3115 = vpop.f32.mrf.mxu0
    %v3116 = vpop.f32.mrf.mxu0
    %v3117 = vadd.f32 0.0, %v3116
    %v3118 = vpop.f32.mrf.mxu0
    %3119 = vmatprep.mubr.bf16.mxu0 0
    %3120 = vmatmul.mubr.bf16.gmra.mxu0 %v3074
    %v3121 = vpop.f32.mrf.mxu0
    %v3122 = vadd.f32 0.0, %v3121
    %v3123 = vpop.f32.mrf.mxu0
    %v3124 = vpop.f32.mrf.mxu0
    %v3125 = vpop.f32.mrf.mxu0
    %3126 = vdwg.mxu0
    %3129 = vrot.lane.b32.xlu0 %v2519, 112
    %v3130 = vpop.permute.xlu0 %3129
    %3131 = vrot.lane.b32.xlu0 %v2520, 112
    %v3132 = vpop.permute.xlu0 %3131
    %v3135 = vsel %vm1115, %v3061, 0
    %v3138 = vsel %vm1115, %v3062, 0
    %v3141 = vsel %vm1192, %v3132, 0
    %3143 = vmatprep.subr.bf16.mxu0 0
    %3144 = vmatpush1.bf16.msra.mxu0 0
    %3145 = vmatprep.subr.bf16.mxu0 0
    %3146 = vmatpush1.bf16.msra.mxu0 0
    %3147 = vmatprep.subr.bf16.mxu0 0
    %3148 = vmatpush1.bf16.msra.mxu0 0
    %3149 = vmatprep.subr.bf16.mxu0 0
    %3150 = vmatpush1.bf16.msra.mxu0 0
    %3151 = vmatprep.subr.bf16.mxu0 0
    %3152 = vmatpush1.bf16.msra.mxu0 0
    %3153 = vmatprep.subr.bf16.mxu0 0
    %3154 = vmatpush1.bf16.msra.mxu0 0
    %3155 = vmatprep.subr.bf16.mxu0 0
    %3156 = vmatpush1.bf16.msra.mxu0 %v3141
    %3157 = vmatprep.subr.bf16.mxu0 0
    %3158 = vmatpush1.bf16.msra.mxu0 %v3130
    %3159 = vmatprep.subr.bf16.mxu0 0
    %3160 = vmatpush2.bf16.msra.mxu0 0
    %3161 = vmatprep.subr.bf16.mxu0 0
    %3162 = vmatpush2.bf16.msra.mxu0 0
    %3163 = vmatprep.subr.bf16.mxu0 0
    %3164 = vmatpush2.bf16.msra.mxu0 0
    %3165 = vmatprep.subr.bf16.mxu0 0
    %3166 = vmatpush2.bf16.msra.mxu0 0
    %3167 = vmatprep.subr.bf16.mxu0 0
    %3168 = vmatpush2.bf16.msra.mxu0 0
    %3169 = vmatprep.subr.bf16.mxu0 0
    %3170 = vmatpush2.bf16.msra.mxu0 0
    %3171 = vmatprep.subr.bf16.mxu0 0
    %3172 = vmatpush2.bf16.msra.mxu0 0
    %3173 = vmatprep.subr.bf16.mxu0 0
    %3174 = vmatpush2.bf16.msra.mxu0 0
    %3175 = vmatprep.mubr.bf16.mxu0 0
    %3176 = vmatmul.mubr.bf16.gmra.mxu0 %v3135
    %v3177 = vpop.f32.mrf.mxu0
    %v3178 = vadd.f32 0.0, %v3177
    %v3179 = vpop.f32.mrf.mxu0
    %v3180 = vpop.f32.mrf.mxu0
    %v3181 = vadd.f32 0.0, %v3180
    %v3182 = vpop.f32.mrf.mxu0
    %3183 = vmatprep.mubr.bf16.mxu0 0
    %3184 = vmatmul.mubr.bf16.gmra.mxu0 %v3138
    %v3185 = vpop.f32.mrf.mxu0
    %v3186 = vadd.f32 0.0, %v3185
    %v3187 = vpop.f32.mrf.mxu0
    %v3188 = vpop.f32.mrf.mxu0
    %v3189 = vpop.f32.mrf.mxu0
    %3190 = vdwg.mxu0
    %3197 = vrot.lane.b32.xlu0 %v3114, 16
    %v3198 = vpop.permute.xlu0 %3197
    %3199 = vrot.lane.b32.xlu0 %v3117, 16
    %v3200 = vpop.permute.xlu0 %3199
    %3201 = vrot.lane.b32.xlu0 %v3122, 16
    %v3202 = vpop.permute.xlu0 %3201
    %3203 = vrot.lane.b32.xlu0 %v3178, 16
    %v3204 = vpop.permute.xlu0 %3203
    %3205 = vrot.lane.b32.xlu0 %v3181, 16
    %v3206 = vpop.permute.xlu0 %3205
    %3207 = vrot.lane.b32.xlu0 %v3186, 16
    %v3208 = vpop.permute.xlu0 %3207
    %v3215 = vsel %vm982, %v2767, %v3198
    %v3216 = vsel %vm982, %v2770, %v3200
    %v3217 = vsel %vm982, %v2775, %v3202
    %v3218 = vsel %vm982, %v2824, %v3204
    %v3219 = vsel %vm982, %v2827, %v3206
    %v3220 = vsel %vm982, %v2832, %v3208
    %v3221 = vpack.c.bf16 %v3216, %v3215
    %v3222 = vpack.c.bf16 %v3218, %v3217
    %v3223 = vpack.c.bf16 %v3220, %v3219
    %s3224 = scalar_lea.vmem %s13, 16
    %v3225 = vld [vmem:[%s3224] sm:$0xf]
    %v3226 = vld [vmem:[%s3224 + $0x4] sm:$0xf]
    %v3227 = vld [vmem:[%s3224 + $0x8] sm:$0xf]
    %v3228 = vld [vmem:[%s3224 + $0xc] sm:$0xf]
    %v3229 = vld [vmem:[%s14 + $0x1] sm:$0x1]
    %v3230 = vlaneseq
    %v3231 = vshrl.u32 %v3230, 7
    %v3232 = vsub.s32 0, %v3231
    %v3233 = vrot.slane %v3229, %v3232
    %v3238 = vunpack.c.l.b16 %v3225
    %v3239 = vunpack.c.l.b16 %v3226
    %v3240 = vunpack.c.l.b16 %v3227
    %v3241 = vunpack.c.l.b16 %v3228
    %v3242 = vpack.c.b16 %v3239, %v3238
    %v3243 = vpack.c.b16 %v3241, %v3240
    %v3247 = vsel %vm624, %v3221, 0
    %v3250 = vsel %vm624, %v3222, 0
    %v3253 = vsel %vm624, %v3223, 0
    %3255 = vmatprep.subr.bf16.mxu0 0
    %3256 = vmatpush1.bf16.msra.mxu0 0
    %3257 = vmatprep.subr.bf16.mxu0 0
    %3258 = vmatpush1.bf16.msra.mxu0 0
    %3259 = vmatprep.subr.bf16.mxu0 0
    %3260 = vmatpush1.bf16.msra.mxu0 0
    %3261 = vmatprep.subr.bf16.mxu0 0
    %3262 = vmatpush1.bf16.msra.mxu0 0
    %3263 = vmatprep.subr.bf16.mxu0 0
    %3264 = vmatpush1.bf16.msra.mxu0 0
    %3265 = vmatprep.subr.bf16.mxu0 0
    %3266 = vmatpush1.bf16.msra.mxu0 0
    %3267 = vmatprep.subr.bf16.mxu0 0
    %3268 = vmatpush1.bf16.msra.mxu0 %v3243
    %3269 = vmatprep.subr.bf16.mxu0 0
    %3270 = vmatpush1.bf16.msra.mxu0 %v3242
    %3271 = vmatprep.subr.bf16.mxu0 0
    %3272 = vmatpush2.bf16.msra.mxu0 0
    %3273 = vmatprep.subr.bf16.mxu0 0
    %3274 = vmatpush2.bf16.msra.mxu0 0
    %3275 = vmatprep.subr.bf16.mxu0 0
    %3276 = vmatpush2.bf16.msra.mxu0 0
    %3277 = vmatprep.subr.bf16.mxu0 0
    %3278 = vmatpush2.bf16.msra.mxu0 0
    %3279 = vmatprep.subr.bf16.mxu0 0
    %3280 = vmatpush2.bf16.msra.mxu0 0
    %3281 = vmatprep.subr.bf16.mxu0 0
    %3282 = vmatpush2.bf16.msra.mxu0 0
    %3283 = vmatprep.subr.bf16.mxu0 0
    %3284 = vmatpush2.bf16.msra.mxu0 0
    %3285 = vmatprep.subr.bf16.mxu0 0
    %3286 = vmatpush2.bf16.msra.mxu0 0
    %3287 = vmatprep.mubr.bf16.mxu0 0
    %3288 = vmatmul.mubr.bf16.gmra.mxu0 %v3247
    %v3289 = vpop.f32.mrf.mxu0
    %v3290 = vadd.f32 %v3233, %v3289
    %v3291 = vpop.f32.mrf.mxu0
    %v3292 = vpop.f32.mrf.mxu0
    %v3293 = vadd.f32 %v3233, %v3292
    %v3294 = vpop.f32.mrf.mxu0
    %3295 = vmatprep.mubr.bf16.mxu0 0
    %3296 = vmatmul.mubr.bf16.gmra.mxu0 %v3250
    %v3297 = vpop.f32.mrf.mxu0
    %v3298 = vadd.f32 %v3233, %v3297
    %v3299 = vpop.f32.mrf.mxu0
    %v3300 = vpop.f32.mrf.mxu0
    %v3301 = vadd.f32 %v3233, %v3300
    %v3302 = vpop.f32.mrf.mxu0
    %3303 = vmatprep.mubr.bf16.mxu0 0
    %3304 = vmatmul.mubr.bf16.gmra.mxu0 %v3253
    %v3305 = vpop.f32.mrf.mxu0
    %v3306 = vadd.f32 %v3233, %v3305
    %v3307 = vpop.f32.mrf.mxu0
    %v3308 = vpop.f32.mrf.mxu0
    %v3309 = vadd.f32 %v3233, %v3308
    %v3310 = vpop.f32.mrf.mxu0
    %3311 = vdwg.mxu0
    %v3312 = vadd.f32 %v2154, %v3290
    %v3313 = vadd.f32 %v2155, %v3293
    %v3314 = vadd.f32 %v2156, %v3298
    %v3315 = vadd.f32 %v2157, %v3301
    %v3316 = vadd.f32 %v2158, %v3306
    %v3317 = vadd.f32 %v2159, %v3309
    %v3318 = vld [vmem:[%s15 + $0x1] sm:$0x1]
    %v3319 = vld [vmem:[%s16 + $0x1] sm:$0x1]
    %v3320 = vsel %vm624, %v3312, 0.0
    %3321 = vadd.xlane.f32.xlu0 %v3320
    %v3322 = vpop.xlane.xlu0 %3321
    %v3323 = vsel %vm624, %v3313, 0.0
    %3324 = vadd.xlane.f32.xlu0 %v3323
    %v3325 = vpop.xlane.xlu0 %3324
    %v3326 = vsel %vm624, %v3314, 0.0
    %3327 = vadd.xlane.f32.xlu0 %v3326
    %v3328 = vpop.xlane.xlu0 %3327
    %v3329 = vsel %vm624, %v3315, 0.0
    %3330 = vadd.xlane.f32.xlu0 %v3329
    %v3331 = vpop.xlane.xlu0 %3330
    %v3332 = vsel %vm624, %v3316, 0.0
    %3333 = vadd.xlane.f32.xlu0 %v3332
    %v3334 = vpop.xlane.xlu0 %3333
    %v3335 = vsel %vm624, %v3317, 0.0
    %3336 = vadd.xlane.f32.xlu0 %v3335
    %v3337 = vpop.xlane.xlu0 %3336
    %v3338 = vmul.f32 %v3322, %v643
    %v3339 = vmul.f32 %v3325, %v643
    %v3340 = vmul.f32 %v3328, %v643
    %v3341 = vmul.f32 %v3331, %v643
    %v3342 = vmul.f32 %v3334, %v643
    %v3343 = vmul.f32 %v3337, %v643
    %v3344 = vsub.f32 %v3312, %v3338
    %v3345 = vsub.f32 %v3313, %v3339
    %v3346 = vsub.f32 %v3314, %v3340
    %v3347 = vsub.f32 %v3315, %v3341
    %v3348 = vsub.f32 %v3316, %v3342
    %v3349 = vsub.f32 %v3317, %v3343
    %v3350 = vmul.f32 %v3344, %v3344
    %v3351 = vmul.f32 %v3345, %v3345
    %v3352 = vmul.f32 %v3346, %v3346
    %v3353 = vmul.f32 %v3347, %v3347
    %v3354 = vmul.f32 %v3348, %v3348
    %v3355 = vmul.f32 %v3349, %v3349
    %v3356 = vsel %vm624, %v3350, 0.0
    %3357 = vadd.xlane.f32.xlu0 %v3356
    %v3358 = vpop.xlane.xlu0 %3357
    %v3359 = vsel %vm624, %v3351, 0.0
    %3360 = vadd.xlane.f32.xlu0 %v3359
    %v3361 = vpop.xlane.xlu0 %3360
    %v3362 = vsel %vm624, %v3352, 0.0
    %3363 = vadd.xlane.f32.xlu0 %v3362
    %v3364 = vpop.xlane.xlu0 %3363
    %v3365 = vsel %vm624, %v3353, 0.0
    %3366 = vadd.xlane.f32.xlu0 %v3365
    %v3367 = vpop.xlane.xlu0 %3366
    %v3368 = vsel %vm624, %v3354, 0.0
    %3369 = vadd.xlane.f32.xlu0 %v3368
    %v3370 = vpop.xlane.xlu0 %3369
    %v3371 = vsel %vm624, %v3355, 0.0
    %3372 = vadd.xlane.f32.xlu0 %v3371
    %v3373 = vpop.xlane.xlu0 %3372
    %v3374 = vmul.f32 %v3358, %v643
    %v3375 = vmul.f32 %v3361, %v643
    %v3376 = vmul.f32 %v3364, %v643
    %v3377 = vmul.f32 %v3367, %v643
    %v3378 = vmul.f32 %v3370, %v643
    %v3379 = vmul.f32 %v3373, %v643
    %v3380 = vadd.f32 %v3374, 1e-06
    %v3381 = vadd.f32 %v3375, 1e-06
    %v3382 = vadd.f32 %v3376, 1e-06
    %v3383 = vadd.f32 %v3377, 1e-06
    %v3384 = vadd.f32 %v3378, 1e-06
    %v3385 = vadd.f32 %v3379, 1e-06
    %v3386 = vrsqrt.pop %v3380
    %v3387 = vrsqrt.pop %v3381
    %v3388 = vrsqrt.pop %v3382
    %v3389 = vrsqrt.pop %v3383
    %v3390 = vrsqrt.pop %v3384
    %v3391 = vrsqrt.pop %v3385
    %v3392 = vmul.f32 %v3344, %v3386
    %v3393 = vmul.f32 %v3345, %v3387
    %v3394 = vmul.f32 %v3346, %v3388
    %v3395 = vmul.f32 %v3347, %v3389
    %v3396 = vmul.f32 %v3348, %v3390
    %v3397 = vmul.f32 %v3349, %v3391
    %v3398 = vlaneseq
    %v3399 = vshrl.u32 %v3398, 7
    %v3400 = vsub.s32 0, %v3399
    %v3401 = vrot.slane %v3318, %v3400
    %v3402 = vmul.f32 %v3392, %v3401
    %v3403 = vmul.f32 %v3393, %v3401
    %v3404 = vmul.f32 %v3394, %v3401
    %v3405 = vmul.f32 %v3395, %v3401
    %v3406 = vmul.f32 %v3396, %v3401
    %v3407 = vmul.f32 %v3397, %v3401
    %v3408 = vlaneseq
    %v3409 = vshrl.u32 %v3408, 7
    %v3410 = vsub.s32 0, %v3409
    %v3411 = vrot.slane %v3319, %v3410
    %v3412 = vadd.f32 %v3402, %v3411
    %v3413 = vadd.f32 %v3403, %v3411
    %v3414 = vadd.f32 %v3404, %v3411
    %v3415 = vadd.f32 %v3405, %v3411
    %v3416 = vadd.f32 %v3406, %v3411
    %v3417 = vadd.f32 %v3407, %v3411
    %v3418 = vpack.c.bf16 %v3413, %v3412
    %v3419 = vpack.c.bf16 %v3415, %v3414
    %v3420 = vpack.c.bf16 %v3417, %v3416
    %s3421 = scalar_lea.vmem %s17, 16
    %v3422 = vld [vmem:[%s3421] sm:$0xf]
    %v3423 = vld [vmem:[%s3421 + $0x4] sm:$0xf]
    %v3424 = vld [vmem:[%s3421 + $0x8] sm:$0xf]
    %v3425 = vld [vmem:[%s3421 + $0xc] sm:$0xf]
    %v3426 = vld [vmem:[%s18 + $0x1] sm:$0x1]
    %v3427 = vlaneseq
    %v3428 = vshrl.u32 %v3427, 7
    %v3429 = vsub.s32 0, %v3428
    %v3430 = vrot.slane %v3426, %v3429
    %v3435 = vunpack.c.l.b16 %v3422
    %v3436 = vunpack.c.l.b16 %v3423
    %v3437 = vunpack.c.l.b16 %v3424
    %v3438 = vunpack.c.l.b16 %v3425
    %v3439 = vpack.c.b16 %v3436, %v3435
    %v3440 = vpack.c.b16 %v3438, %v3437
    %v3444 = vsel %vm624, %v3418, 0
    %v3447 = vsel %vm624, %v3419, 0
    %v3450 = vsel %vm624, %v3420, 0
    %3452 = vmatprep.subr.bf16.mxu0 0
    %3453 = vmatpush1.bf16.msra.mxu0 0
    %3454 = vmatprep.subr.bf16.mxu0 0
    %3455 = vmatpush1.bf16.msra.mxu0 0
    %3456 = vmatprep.subr.bf16.mxu0 0
    %3457 = vmatpush1.bf16.msra.mxu0 0
    %3458 = vmatprep.subr.bf16.mxu0 0
    %3459 = vmatpush1.bf16.msra.mxu0 0
    %3460 = vmatprep.subr.bf16.mxu0 0
    %3461 = vmatpush1.bf16.msra.mxu0 0
    %3462 = vmatprep.subr.bf16.mxu0 0
    %3463 = vmatpush1.bf16.msra.mxu0 0
    %3464 = vmatprep.subr.bf16.mxu0 0
    %3465 = vmatpush1.bf16.msra.mxu0 %v3440
    %3466 = vmatprep.subr.bf16.mxu0 0
    %3467 = vmatpush1.bf16.msra.mxu0 %v3439
    %3468 = vmatprep.subr.bf16.mxu0 0
    %3469 = vmatpush2.bf16.msra.mxu0 0
    %3470 = vmatprep.subr.bf16.mxu0 0
    %3471 = vmatpush2.bf16.msra.mxu0 0
    %3472 = vmatprep.subr.bf16.mxu0 0
    %3473 = vmatpush2.bf16.msra.mxu0 0
    %3474 = vmatprep.subr.bf16.mxu0 0
    %3475 = vmatpush2.bf16.msra.mxu0 0
    %3476 = vmatprep.subr.bf16.mxu0 0
    %3477 = vmatpush2.bf16.msra.mxu0 0
    %3478 = vmatprep.subr.bf16.mxu0 0
    %3479 = vmatpush2.bf16.msra.mxu0 0
    %3480 = vmatprep.subr.bf16.mxu0 0
    %3481 = vmatpush2.bf16.msra.mxu0 0
    %3482 = vmatprep.subr.bf16.mxu0 0
    %3483 = vmatpush2.bf16.msra.mxu0 0
    %3484 = vmatprep.mubr.bf16.mxu0 0
    %3485 = vmatmul.mubr.bf16.gmra.mxu0 %v3444
    %v3486 = vpop.f32.mrf.mxu0
    %v3487 = vadd.f32 %v3430, %v3486
    %v3488 = vpop.f32.mrf.mxu0
    %v3489 = vpop.f32.mrf.mxu0
    %v3490 = vadd.f32 %v3430, %v3489
    %v3491 = vpop.f32.mrf.mxu0
    %3492 = vmatprep.mubr.bf16.mxu0 0
    %3493 = vmatmul.mubr.bf16.gmra.mxu0 %v3447
    %v3494 = vpop.f32.mrf.mxu0
    %v3495 = vadd.f32 %v3430, %v3494
    %v3496 = vpop.f32.mrf.mxu0
    %v3497 = vpop.f32.mrf.mxu0
    %v3498 = vadd.f32 %v3430, %v3497
    %v3499 = vpop.f32.mrf.mxu0
    %3500 = vmatprep.mubr.bf16.mxu0 0
    %3501 = vmatmul.mubr.bf16.gmra.mxu0 %v3450
    %v3502 = vpop.f32.mrf.mxu0
    %v3503 = vadd.f32 %v3430, %v3502
    %v3504 = vpop.f32.mrf.mxu0
    %v3505 = vpop.f32.mrf.mxu0
    %v3506 = vadd.f32 %v3430, %v3505
    %v3507 = vpop.f32.mrf.mxu0
    %3508 = vdwg.mxu0
    %v3509 = vmul.f32 %v3487, %v3487
    %v3510 = vmul.f32 %v3490, %v3490
    %v3511 = vmul.f32 %v3495, %v3495
    %v3512 = vmul.f32 %v3498, %v3498
    %v3513 = vmul.f32 %v3503, %v3503
    %v3514 = vmul.f32 %v3506, %v3506
    %v3515 = vmul.f32 %v3487, %v3509
    %v3516 = vmul.f32 %v3490, %v3510
    %v3517 = vmul.f32 %v3495, %v3511
    %v3518 = vmul.f32 %v3498, %v3512
    %v3519 = vmul.f32 %v3503, %v3513
    %v3520 = vmul.f32 %v3506, %v3514
    %v3521 = vmul.f32 %v3515, 0.044715
    %v3522 = vmul.f32 %v3516, 0.044715
    %v3523 = vmul.f32 %v3517, 0.044715
    %v3524 = vmul.f32 %v3518, 0.044715
    %v3525 = vmul.f32 %v3519, 0.044715
    %v3526 = vmul.f32 %v3520, 0.044715
    %v3527 = vadd.f32 %v3487, %v3521
    %v3528 = vadd.f32 %v3490, %v3522
    %v3529 = vadd.f32 %v3495, %v3523
    %v3530 = vadd.f32 %v3498, %v3524
    %v3531 = vadd.f32 %v3503, %v3525
    %v3532 = vadd.f32 %v3506, %v3526
    %v3533 = vmul.f32 %v3527, 0.7978846
    %v3534 = vmul.f32 %v3528, 0.7978846
    %v3535 = vmul.f32 %v3529, 0.7978846
    %v3536 = vmul.f32 %v3530, 0.7978846
    %v3537 = vmul.f32 %v3531, 0.7978846
    %v3538 = vmul.f32 %v3532, 0.7978846
    %v3539 = vtanh.pop %v3533
    %v3540 = vtanh.pop %v3534
    %v3541 = vtanh.pop %v3535
    %v3542 = vtanh.pop %v3536
    %v3543 = vtanh.pop %v3537
    %v3544 = vtanh.pop %v3538
    %v3545 = vadd.f32 %v3539, 1.0
    %v3546 = vadd.f32 %v3540, 1.0
    %v3547 = vadd.f32 %v3541, 1.0
    %v3548 = vadd.f32 %v3542, 1.0
    %v3549 = vadd.f32 %v3543, 1.0
    %v3550 = vadd.f32 %v3544, 1.0
    %v3551 = vmul.f32 %v3545, 0.5
    %v3552 = vmul.f32 %v3546, 0.5
    %v3553 = vmul.f32 %v3547, 0.5
    %v3554 = vmul.f32 %v3548, 0.5
    %v3555 = vmul.f32 %v3549, 0.5
    %v3556 = vmul.f32 %v3550, 0.5
    %v3557 = vmul.f32 %v3487, %v3551
    %v3558 = vmul.f32 %v3490, %v3552
    %v3559 = vmul.f32 %v3495, %v3553
    %v3560 = vmul.f32 %v3498, %v3554
    %v3561 = vmul.f32 %v3503, %v3555
    %v3562 = vmul.f32 %v3506, %v3556
    %v3563 = vpack.c.bf16 %v3558, %v3557
    %v3564 = vpack.c.bf16 %v3560, %v3559
    %v3565 = vpack.c.bf16 %v3562, %v3561
    %s3566 = scalar_lea.vmem %s19, 64
    %v3567 = vld [vmem:[%s3566] sm:$0xf]
    %v3568 = vld [vmem:[%s3566 + $0x4] sm:$0xf]
    %v3569 = vld [vmem:[%s3566 + $0x8] sm:$0xf]
    %v3570 = vld [vmem:[%s3566 + $0xc] sm:$0xf]
    %v3571 = vld [vmem:[%s3566 + $0x10] sm:$0xf]
    %v3572 = vld [vmem:[%s3566 + $0x14] sm:$0xf]
    %v3573 = vld [vmem:[%s3566 + $0x18] sm:$0xf]
    %v3574 = vld [vmem:[%s3566 + $0x1c] sm:$0xf]
    %v3575 = vld [vmem:[%s3566 + $0x20] sm:$0xf]
    %v3576 = vld [vmem:[%s3566 + $0x24] sm:$0xf]
    %v3577 = vld [vmem:[%s3566 + $0x28] sm:$0xf]
    %v3578 = vld [vmem:[%s3566 + $0x2c] sm:$0xf]
    %v3579 = vld [vmem:[%s3566 + $0x30] sm:$0xf]
    %v3580 = vld [vmem:[%s3566 + $0x34] sm:$0xf]
    %v3581 = vld [vmem:[%s3566 + $0x38] sm:$0xf]
    %v3582 = vld [vmem:[%s3566 + $0x3c] sm:$0xf]
    %v3583 = vld [vmem:[%s20 + $0x1] sm:$0x1]
    %v3584 = vlaneseq
    %v3585 = vshrl.u32 %v3584, 7
    %v3586 = vsub.s32 0, %v3585
    %v3587 = vrot.slane %v3583, %v3586
    %v3604 = vunpack.c.l.b16 %v3567
    %v3605 = vunpack.c.l.b16 %v3568
    %v3606 = vunpack.c.l.b16 %v3569
    %v3607 = vunpack.c.l.b16 %v3570
    %v3608 = vunpack.c.l.b16 %v3571
    %v3609 = vunpack.c.l.b16 %v3572
    %v3610 = vunpack.c.l.b16 %v3573
    %v3611 = vunpack.c.l.b16 %v3574
    %v3612 = vunpack.c.l.b16 %v3575
    %v3613 = vunpack.c.l.b16 %v3576
    %v3614 = vunpack.c.l.b16 %v3577
    %v3615 = vunpack.c.l.b16 %v3578
    %v3616 = vunpack.c.l.b16 %v3579
    %v3617 = vunpack.c.l.b16 %v3580
    %v3618 = vunpack.c.l.b16 %v3581
    %v3619 = vunpack.c.l.b16 %v3582
    %v3620 = vpack.c.b16 %v3605, %v3604
    %v3621 = vpack.c.b16 %v3607, %v3606
    %v3622 = vpack.c.b16 %v3609, %v3608
    %v3623 = vpack.c.b16 %v3611, %v3610
    %v3624 = vpack.c.b16 %v3613, %v3612
    %v3625 = vpack.c.b16 %v3615, %v3614
    %v3626 = vpack.c.b16 %v3617, %v3616
    %v3627 = vpack.c.b16 %v3619, %v3618
    %3636 = vmatprep.subr.bf16.mxu0 0
    %3637 = vmatpush1.bf16.msra.mxu0 %v3627
    %3638 = vmatprep.subr.bf16.mxu0 0
    %3639 = vmatpush1.bf16.msra.mxu0 %v3626
    %3640 = vmatprep.subr.bf16.mxu0 0
    %3641 = vmatpush1.bf16.msra.mxu0 %v3625
    %3642 = vmatprep.subr.bf16.mxu0 0
    %3643 = vmatpush1.bf16.msra.mxu0 %v3624
    %3644 = vmatprep.subr.bf16.mxu0 0
    %3645 = vmatpush1.bf16.msra.mxu0 %v3623
    %3646 = vmatprep.subr.bf16.mxu0 0
    %3647 = vmatpush1.bf16.msra.mxu0 %v3622
    %3648 = vmatprep.subr.bf16.mxu0 0
    %3649 = vmatpush1.bf16.msra.mxu0 %v3621
    %3650 = vmatprep.subr.bf16.mxu0 0
    %3651 = vmatpush1.bf16.msra.mxu0 %v3620
    %3652 = vmatprep.subr.bf16.mxu0 0
    %3653 = vmatpush2.bf16.msra.mxu0 0
    %3654 = vmatprep.subr.bf16.mxu0 0
    %3655 = vmatpush2.bf16.msra.mxu0 0
    %3656 = vmatprep.subr.bf16.mxu0 0
    %3657 = vmatpush2.bf16.msra.mxu0 0
    %3658 = vmatprep.subr.bf16.mxu0 0
    %3659 = vmatpush2.bf16.msra.mxu0 0
    %3660 = vmatprep.subr.bf16.mxu0 0
    %3661 = vmatpush2.bf16.msra.mxu0 0
    %3662 = vmatprep.subr.bf16.mxu0 0
    %3663 = vmatpush2.bf16.msra.mxu0 0
    %3664 = vmatprep.subr.bf16.mxu0 0
    %3665 = vmatpush2.bf16.msra.mxu0 0
    %3666 = vmatprep.subr.bf16.mxu0 0
    %3667 = vmatpush2.bf16.msra.mxu0 0
    %3668 = vmatprep.mubr.bf16.mxu0 0
    %3669 = vmatmul.mubr.bf16.gmra.mxu0 %v3563
    %v3670 = vpop.f32.mrf.mxu0
    %v3671 = vadd.f32 %v3587, %v3670
    %v3672 = vpop.f32.mrf.mxu0
    %v3673 = vpop.f32.mrf.mxu0
    %v3674 = vadd.f32 %v3587, %v3673
    %v3675 = vpop.f32.mrf.mxu0
    %3676 = vmatprep.mubr.bf16.mxu0 0
    %3677 = vmatmul.mubr.bf16.gmra.mxu0 %v3564
    %v3678 = vpop.f32.mrf.mxu0
    %v3679 = vadd.f32 %v3587, %v3678
    %v3680 = vpop.f32.mrf.mxu0
    %v3681 = vpop.f32.mrf.mxu0
    %v3682 = vadd.f32 %v3587, %v3681
    %v3683 = vpop.f32.mrf.mxu0
    %3684 = vmatprep.mubr.bf16.mxu0 0
    %3685 = vmatmul.mubr.bf16.gmra.mxu0 %v3565
    %v3686 = vpop.f32.mrf.mxu0
    %v3687 = vadd.f32 %v3587, %v3686
    %v3688 = vpop.f32.mrf.mxu0
    %v3689 = vpop.f32.mrf.mxu0
    %v3690 = vadd.f32 %v3587, %v3689
    %v3691 = vpop.f32.mrf.mxu0
    %3692 = vdwg.mxu0
    %v3693 = vadd.f32 %v3312, %v3671
    %v3694 = vadd.f32 %v3313, %v3674
    %v3695 = vadd.f32 %v3314, %v3679
    %v3696 = vadd.f32 %v3315, %v3682
    %v3697 = vadd.f32 %v3316, %v3687
    %v3698 = vadd.f32 %v3317, %v3690
    %v3699 = vld [vmem:[%s5 + $0x2] sm:$0x1]
    %v3700 = vld [vmem:[%s6 + $0x2] sm:$0x1]
    %v3701 = vsel %vm624, %v3693, 0.0
    %3702 = vadd.xlane.f32.xlu0 %v3701
    %v3703 = vpop.xlane.xlu0 %3702
    %v3704 = vsel %vm624, %v3694, 0.0
    %3705 = vadd.xlane.f32.xlu0 %v3704
    %v3706 = vpop.xlane.xlu0 %3705
    %v3707 = vsel %vm624, %v3695, 0.0
    %3708 = vadd.xlane.f32.xlu0 %v3707
    %v3709 = vpop.xlane.xlu0 %3708
    %v3710 = vsel %vm624, %v3696, 0.0
    %3711 = vadd.xlane.f32.xlu0 %v3710
    %v3712 = vpop.xlane.xlu0 %3711
    %v3713 = vsel %vm624, %v3697, 0.0
    %3714 = vadd.xlane.f32.xlu0 %v3713
    %v3715 = vpop.xlane.xlu0 %3714
    %v3716 = vsel %vm624, %v3698, 0.0
    %3717 = vadd.xlane.f32.xlu0 %v3716
    %v3718 = vpop.xlane.xlu0 %3717
    %v3719 = vmul.f32 %v3703, %v643
    %v3720 = vmul.f32 %v3706, %v643
    %v3721 = vmul.f32 %v3709, %v643
    %v3722 = vmul.f32 %v3712, %v643
    %v3723 = vmul.f32 %v3715, %v643
    %v3724 = vmul.f32 %v3718, %v643
    %v3725 = vsub.f32 %v3693, %v3719
    %v3726 = vsub.f32 %v3694, %v3720
    %v3727 = vsub.f32 %v3695, %v3721
    %v3728 = vsub.f32 %v3696, %v3722
    %v3729 = vsub.f32 %v3697, %v3723
    %v3730 = vsub.f32 %v3698, %v3724
    %v3731 = vmul.f32 %v3725, %v3725
    %v3732 = vmul.f32 %v3726, %v3726
    %v3733 = vmul.f32 %v3727, %v3727
    %v3734 = vmul.f32 %v3728, %v3728
    %v3735 = vmul.f32 %v3729, %v3729
    %v3736 = vmul.f32 %v3730, %v3730
    %v3737 = vsel %vm624, %v3731, 0.0
    %3738 = vadd.xlane.f32.xlu0 %v3737
    %v3739 = vpop.xlane.xlu0 %3738
    %v3740 = vsel %vm624, %v3732, 0.0
    %3741 = vadd.xlane.f32.xlu0 %v3740
    %v3742 = vpop.xlane.xlu0 %3741
    %v3743 = vsel %vm624, %v3733, 0.0
    %3744 = vadd.xlane.f32.xlu0 %v3743
    %v3745 = vpop.xlane.xlu0 %3744
    %v3746 = vsel %vm624, %v3734, 0.0
    %3747 = vadd.xlane.f32.xlu0 %v3746
    %v3748 = vpop.xlane.xlu0 %3747
    %v3749 = vsel %vm624, %v3735, 0.0
    %3750 = vadd.xlane.f32.xlu0 %v3749
    %v3751 = vpop.xlane.xlu0 %3750
    %v3752 = vsel %vm624, %v3736, 0.0
    %3753 = vadd.xlane.f32.xlu0 %v3752
    %v3754 = vpop.xlane.xlu0 %3753
    %v3755 = vmul.f32 %v3739, %v643
    %v3756 = vmul.f32 %v3742, %v643
    %v3757 = vmul.f32 %v3745, %v643
    %v3758 = vmul.f32 %v3748, %v643
    %v3759 = vmul.f32 %v3751, %v643
    %v3760 = vmul.f32 %v3754, %v643
    %v3761 = vadd.f32 %v3755, 1e-06
    %v3762 = vadd.f32 %v3756, 1e-06
    %v3763 = vadd.f32 %v3757, 1e-06
    %v3764 = vadd.f32 %v3758, 1e-06
    %v3765 = vadd.f32 %v3759, 1e-06
    %v3766 = vadd.f32 %v3760, 1e-06
    %v3767 = vrsqrt.pop %v3761
    %v3768 = vrsqrt.pop %v3762
    %v3769 = vrsqrt.pop %v3763
    %v3770 = vrsqrt.pop %v3764
    %v3771 = vrsqrt.pop %v3765
    %v3772 = vrsqrt.pop %v3766
    %v3773 = vmul.f32 %v3725, %v3767
    %v3774 = vmul.f32 %v3726, %v3768
    %v3775 = vmul.f32 %v3727, %v3769
    %v3776 = vmul.f32 %v3728, %v3770
    %v3777 = vmul.f32 %v3729, %v3771
    %v3778 = vmul.f32 %v3730, %v3772
    %v3779 = vlaneseq
    %v3780 = vshrl.u32 %v3779, 7
    %v3781 = vsub.s32 0, %v3780
    %v3782 = vrot.slane %v3699, %v3781
    %v3783 = vmul.f32 %v3773, %v3782
    %v3784 = vmul.f32 %v3774, %v3782
    %v3785 = vmul.f32 %v3775, %v3782
    %v3786 = vmul.f32 %v3776, %v3782
    %v3787 = vmul.f32 %v3777, %v3782
    %v3788 = vmul.f32 %v3778, %v3782
    %v3789 = vlaneseq
    %v3790 = vshrl.u32 %v3789, 7
    %v3791 = vsub.s32 0, %v3790
    %v3792 = vrot.slane %v3700, %v3791
    %v3793 = vadd.f32 %v3783, %v3792
    %v3794 = vadd.f32 %v3784, %v3792
    %v3795 = vadd.f32 %v3785, %v3792
    %v3796 = vadd.f32 %v3786, %v3792
    %v3797 = vadd.f32 %v3787, %v3792
    %v3798 = vadd.f32 %v3788, %v3792
    %v3799 = vpack.c.bf16 %v3794, %v3793
    %v3800 = vpack.c.bf16 %v3796, %v3795
    %v3801 = vpack.c.bf16 %v3798, %v3797
    %s3802 = scalar_lea.vmem %s7, 32
    %v3803 = vld [vmem:[%s3802] sm:$0xf]
    %v3804 = vld [vmem:[%s3802 + $0x4] sm:$0xf]
    %v3805 = vld [vmem:[%s3802 + $0x8] sm:$0xf]
    %v3806 = vld [vmem:[%s3802 + $0xc] sm:$0xf]
    %v3807 = vld [vmem:[%s10 + $0x2] sm:$0x1]
    %v3808 = vlaneseq
    %v3809 = vshrl.u32 %v3808, 7
    %v3810 = vsub.s32 0, %v3809
    %v3811 = vrot.slane %v3807, %v3810
    %v3816 = vunpack.c.l.b16 %v3803
    %v3817 = vunpack.c.l.b16 %v3804
    %v3818 = vunpack.c.l.b16 %v3805
    %v3819 = vunpack.c.l.b16 %v3806
    %v3820 = vpack.c.b16 %v3817, %v3816
    %v3821 = vpack.c.b16 %v3819, %v3818
    %v3825 = vsel %vm624, %v3799, 0
    %v3828 = vsel %vm624, %v3800, 0
    %v3831 = vsel %vm624, %v3801, 0
    %3833 = vmatprep.subr.bf16.mxu0 0
    %3834 = vmatpush1.bf16.msra.mxu0 0
    %3835 = vmatprep.subr.bf16.mxu0 0
    %3836 = vmatpush1.bf16.msra.mxu0 0
    %3837 = vmatprep.subr.bf16.mxu0 0
    %3838 = vmatpush1.bf16.msra.mxu0 0
    %3839 = vmatprep.subr.bf16.mxu0 0
    %3840 = vmatpush1.bf16.msra.mxu0 0
    %3841 = vmatprep.subr.bf16.mxu0 0
    %3842 = vmatpush1.bf16.msra.mxu0 0
    %3843 = vmatprep.subr.bf16.mxu0 0
    %3844 = vmatpush1.bf16.msra.mxu0 0
    %3845 = vmatprep.subr.bf16.mxu0 0
    %3846 = vmatpush1.bf16.msra.mxu0 %v3821
    %3847 = vmatprep.subr.bf16.mxu0 0
    %3848 = vmatpush1.bf16.msra.mxu0 %v3820
    %3849 = vmatprep.subr.bf16.mxu0 0
    %3850 = vmatpush2.bf16.msra.mxu0 0
    %3851 = vmatprep.subr.bf16.mxu0 0
    %3852 = vmatpush2.bf16.msra.mxu0 0
    %3853 = vmatprep.subr.bf16.mxu0 0
    %3854 = vmatpush2.bf16.msra.mxu0 0
    %3855 = vmatprep.subr.bf16.mxu0 0
    %3856 = vmatpush2.bf16.msra.mxu0 0
    %3857 = vmatprep.subr.bf16.mxu0 0
    %3858 = vmatpush2.bf16.msra.mxu0 0
    %3859 = vmatprep.subr.bf16.mxu0 0
    %3860 = vmatpush2.bf16.msra.mxu0 0
    %3861 = vmatprep.subr.bf16.mxu0 0
    %3862 = vmatpush2.bf16.msra.mxu0 0
    %3863 = vmatprep.subr.bf16.mxu0 0
    %3864 = vmatpush2.bf16.msra.mxu0 0
    %3865 = vmatprep.mubr.bf16.mxu0 0
    %3866 = vmatmul.mubr.bf16.gmra.mxu0 %v3825
    %v3867 = vpop.f32.mrf.mxu0
    %v3868 = vadd.f32 %v3811, %v3867
    %v3869 = vpop.f32.mrf.mxu0
    %v3870 = vpop.f32.mrf.mxu0
    %v3871 = vadd.f32 %v3811, %v3870
    %v3872 = vpop.f32.mrf.mxu0
    %3873 = vmatprep.mubr.bf16.mxu0 0
    %3874 = vmatmul.mubr.bf16.gmra.mxu0 %v3828
    %v3875 = vpop.f32.mrf.mxu0
    %v3876 = vadd.f32 %v3811, %v3875
    %v3877 = vpop.f32.mrf.mxu0
    %v3878 = vpop.f32.mrf.mxu0
    %v3879 = vadd.f32 %v3811, %v3878
    %v3880 = vpop.f32.mrf.mxu0
    %3881 = vmatprep.mubr.bf16.mxu0 0
    %3882 = vmatmul.mubr.bf16.gmra.mxu0 %v3831
    %v3883 = vpop.f32.mrf.mxu0
    %v3884 = vadd.f32 %v3811, %v3883
    %v3885 = vpop.f32.mrf.mxu0
    %v3886 = vpop.f32.mrf.mxu0
    %v3887 = vadd.f32 %v3811, %v3886
    %v3888 = vpop.f32.mrf.mxu0
    %3889 = vdwg.mxu0
    %s3890 = scalar_lea.vmem %s8, 32
    %v3891 = vld [vmem:[%s3890] sm:$0xf]
    %v3892 = vld [vmem:[%s3890 + $0x4] sm:$0xf]
    %v3893 = vld [vmem:[%s3890 + $0x8] sm:$0xf]
    %v3894 = vld [vmem:[%s3890 + $0xc] sm:$0xf]
    %v3895 = vld [vmem:[%s11 + $0x2] sm:$0x1]
    %v3896 = vlaneseq
    %v3897 = vshrl.u32 %v3896, 7
    %v3898 = vsub.s32 0, %v3897
    %v3899 = vrot.slane %v3895, %v3898
    %v3904 = vunpack.c.l.b16 %v3891
    %v3905 = vunpack.c.l.b16 %v3892
    %v3906 = vunpack.c.l.b16 %v3893
    %v3907 = vunpack.c.l.b16 %v3894
    %v3908 = vpack.c.b16 %v3905, %v3904
    %v3909 = vpack.c.b16 %v3907, %v3906
    %3912 = vmatprep.subr.bf16.mxu0 0
    %3913 = vmatpush1.bf16.msra.mxu0 0
    %3914 = vmatprep.subr.bf16.mxu0 0
    %3915 = vmatpush1.bf16.msra.mxu0 0
    %3916 = vmatprep.subr.bf16.mxu0 0
    %3917 = vmatpush1.bf16.msra.mxu0 0
    %3918 = vmatprep.subr.bf16.mxu0 0
    %3919 = vmatpush1.bf16.msra.mxu0 0
    %3920 = vmatprep.subr.bf16.mxu0 0
    %3921 = vmatpush1.bf16.msra.mxu0 0
    %3922 = vmatprep.subr.bf16.mxu0 0
    %3923 = vmatpush1.bf16.msra.mxu0 0
    %3924 = vmatprep.subr.bf16.mxu0 0
    %3925 = vmatpush1.bf16.msra.mxu0 %v3909
    %3926 = vmatprep.subr.bf16.mxu0 0
    %3927 = vmatpush1.bf16.msra.mxu0 %v3908
    %3928 = vmatprep.subr.bf16.mxu0 0
    %3929 = vmatpush2.bf16.msra.mxu0 0
    %3930 = vmatprep.subr.bf16.mxu0 0
    %3931 = vmatpush2.bf16.msra.mxu0 0
    %3932 = vmatprep.subr.bf16.mxu0 0
    %3933 = vmatpush2.bf16.msra.mxu0 0
    %3934 = vmatprep.subr.bf16.mxu0 0
    %3935 = vmatpush2.bf16.msra.mxu0 0
    %3936 = vmatprep.subr.bf16.mxu0 0
    %3937 = vmatpush2.bf16.msra.mxu0 0
    %3938 = vmatprep.subr.bf16.mxu0 0
    %3939 = vmatpush2.bf16.msra.mxu0 0
    %3940 = vmatprep.subr.bf16.mxu0 0
    %3941 = vmatpush2.bf16.msra.mxu0 0
    %3942 = vmatprep.subr.bf16.mxu0 0
    %3943 = vmatpush2.bf16.msra.mxu0 0
    %3944 = vmatprep.mubr.bf16.mxu0 0
    %3945 = vmatmul.mubr.bf16.gmra.mxu0 %v3825
    %v3946 = vpop.f32.mrf.mxu0
    %v3947 = vadd.f32 %v3899, %v3946
    %v3948 = vpop.f32.mrf.mxu0
    %v3949 = vpop.f32.mrf.mxu0
    %v3950 = vadd.f32 %v3899, %v3949
    %v3951 = vpop.f32.mrf.mxu0
    %3952 = vmatprep.mubr.bf16.mxu0 0
    %3953 = vmatmul.mubr.bf16.gmra.mxu0 %v3828
    %v3954 = vpop.f32.mrf.mxu0
    %v3955 = vadd.f32 %v3899, %v3954
    %v3956 = vpop.f32.mrf.mxu0
    %v3957 = vpop.f32.mrf.mxu0
    %v3958 = vadd.f32 %v3899, %v3957
    %v3959 = vpop.f32.mrf.mxu0
    %3960 = vmatprep.mubr.bf16.mxu0 0
    %3961 = vmatmul.mubr.bf16.gmra.mxu0 %v3831
    %v3962 = vpop.f32.mrf.mxu0
    %v3963 = vadd.f32 %v3899, %v3962
    %v3964 = vpop.f32.mrf.mxu0
    %v3965 = vpop.f32.mrf.mxu0
    %v3966 = vadd.f32 %v3899, %v3965
    %v3967 = vpop.f32.mrf.mxu0
    %3968 = vdwg.mxu0
    %s3969 = scalar_lea.vmem %s9, 32
    %v3970 = vld [vmem:[%s3969] sm:$0xf]
    %v3971 = vld [vmem:[%s3969 + $0x4] sm:$0xf]
    %v3972 = vld [vmem:[%s3969 + $0x8] sm:$0xf]
    %v3973 = vld [vmem:[%s3969 + $0xc] sm:$0xf]
    %v3974 = vld [vmem:[%s12 + $0x2] sm:$0x1]
    %v3975 = vlaneseq
    %v3976 = vshrl.u32 %v3975, 7
    %v3977 = vsub.s32 0, %v3976
    %v3978 = vrot.slane %v3974, %v3977
    %v3983 = vunpack.c.l.b16 %v3970
    %v3984 = vunpack.c.l.b16 %v3971
    %v3985 = vunpack.c.l.b16 %v3972
    %v3986 = vunpack.c.l.b16 %v3973
    %v3987 = vpack.c.b16 %v3984, %v3983
    %v3988 = vpack.c.b16 %v3986, %v3985
    %3991 = vmatprep.subr.bf16.mxu0 0
    %3992 = vmatpush1.bf16.msra.mxu0 0
    %3993 = vmatprep.subr.bf16.mxu0 0
    %3994 = vmatpush1.bf16.msra.mxu0 0
    %3995 = vmatprep.subr.bf16.mxu0 0
    %3996 = vmatpush1.bf16.msra.mxu0 0
    %3997 = vmatprep.subr.bf16.mxu0 0
    %3998 = vmatpush1.bf16.msra.mxu0 0
    %3999 = vmatprep.subr.bf16.mxu0 0
    %4000 = vmatpush1.bf16.msra.mxu0 0
    %4001 = vmatprep.subr.bf16.mxu0 0
    %4002 = vmatpush1.bf16.msra.mxu0 0
    %4003 = vmatprep.subr.bf16.mxu0 0
    %4004 = vmatpush1.bf16.msra.mxu0 %v3988
    %4005 = vmatprep.subr.bf16.mxu0 0
    %4006 = vmatpush1.bf16.msra.mxu0 %v3987
    %4007 = vmatprep.subr.bf16.mxu0 0
    %4008 = vmatpush2.bf16.msra.mxu0 0
    %4009 = vmatprep.subr.bf16.mxu0 0
    %4010 = vmatpush2.bf16.msra.mxu0 0
    %4011 = vmatprep.subr.bf16.mxu0 0
    %4012 = vmatpush2.bf16.msra.mxu0 0
    %4013 = vmatprep.subr.bf16.mxu0 0
    %4014 = vmatpush2.bf16.msra.mxu0 0
    %4015 = vmatprep.subr.bf16.mxu0 0
    %4016 = vmatpush2.bf16.msra.mxu0 0
    %4017 = vmatprep.subr.bf16.mxu0 0
    %4018 = vmatpush2.bf16.msra.mxu0 0
    %4019 = vmatprep.subr.bf16.mxu0 0
    %4020 = vmatpush2.bf16.msra.mxu0 0
    %4021 = vmatprep.subr.bf16.mxu0 0
    %4022 = vmatpush2.bf16.msra.mxu0 0
    %4023 = vmatprep.mubr.bf16.mxu0 0
    %4024 = vmatmul.mubr.bf16.gmra.mxu0 %v3825
    %v4025 = vpop.f32.mrf.mxu0
    %v4026 = vadd.f32 %v3978, %v4025
    %v4027 = vpop.f32.mrf.mxu0
    %v4028 = vpop.f32.mrf.mxu0
    %v4029 = vadd.f32 %v3978, %v4028
    %v4030 = vpop.f32.mrf.mxu0
    %4031 = vmatprep.mubr.bf16.mxu0 0
    %4032 = vmatmul.mubr.bf16.gmra.mxu0 %v3828
    %v4033 = vpop.f32.mrf.mxu0
    %v4034 = vadd.f32 %v3978, %v4033
    %v4035 = vpop.f32.mrf.mxu0
    %v4036 = vpop.f32.mrf.mxu0
    %v4037 = vadd.f32 %v3978, %v4036
    %v4038 = vpop.f32.mrf.mxu0
    %4039 = vmatprep.mubr.bf16.mxu0 0
    %4040 = vmatmul.mubr.bf16.gmra.mxu0 %v3831
    %v4041 = vpop.f32.mrf.mxu0
    %v4042 = vadd.f32 %v3978, %v4041
    %v4043 = vpop.f32.mrf.mxu0
    %v4044 = vpop.f32.mrf.mxu0
    %v4045 = vadd.f32 %v3978, %v4044
    %v4046 = vpop.f32.mrf.mxu0
    %4047 = vdwg.mxu0
    %v4048 = vpack.c.bf16 %v3871, %v3868
    %v4049 = vpack.c.bf16 %v3876, %v3876
    %v4050 = vpack.c.bf16 %v3884, %v3879
    %v4051 = vpack.c.bf16 %v3887, %v3887
    %v4052 = vpack.c.bf16 %v3950, %v3947
    %v4053 = vpack.c.bf16 %v3955, %v3955
    %v4054 = vpack.c.bf16 %v3963, %v3958
    %v4055 = vpack.c.bf16 %v3966, %v3966
    %v4056 = vpack.c.bf16 %v4029, %v4026
    %v4057 = vpack.c.bf16 %v4034, %v4034
    %v4058 = vpack.c.bf16 %v4042, %v4037
    %v4059 = vpack.c.bf16 %v4045, %v4045
    %v4061 = vsel %vm982, %v4048, 0
    %v4064 = vsel %vm982, %v4049, 0
    %v4067 = vsel %vm982, %v4052, 0
    %v4070 = vsel %vm982, %v4053, 0
    %4072 = vmatprep.subr.bf16.mxu0 0
    %4073 = vmatpush1.bf16.xpose.msra.mxu0 0
    %4074 = vmatprep.subr.bf16.mxu0 0
    %4075 = vmatpush1.bf16.xpose.msra.mxu0 0
    %4076 = vmatprep.subr.bf16.mxu0 0
    %4077 = vmatpush1.bf16.xpose.msra.mxu0 0
    %4078 = vmatprep.subr.bf16.mxu0 0
    %4079 = vmatpush1.bf16.xpose.msra.mxu0 0
    %4080 = vmatprep.subr.bf16.mxu0 0
    %4081 = vmatpush1.bf16.xpose.msra.mxu0 0
    %4082 = vmatprep.subr.bf16.mxu0 0
    %4083 = vmatpush1.bf16.xpose.msra.mxu0 0
    %4084 = vmatprep.subr.bf16.mxu0 0
    %4085 = vmatpush1.bf16.xpose.msra.mxu0 %v4070
    %4086 = vmatprep.subr.bf16.mxu0 0
    %4087 = vmatpush1.bf16.xpose.msra.mxu0 %v4067
    %4088 = vmatprep.subr.bf16.mxu0 0
    %4089 = vmatpush2.bf16.xpose.msra.mxu0 0
    %4090 = vmatprep.subr.bf16.mxu0 0
    %4091 = vmatpush2.bf16.xpose.msra.mxu0 0
    %4092 = vmatprep.subr.bf16.mxu0 0
    %4093 = vmatpush2.bf16.xpose.msra.mxu0 0
    %4094 = vmatprep.subr.bf16.mxu0 0
    %4095 = vmatpush2.bf16.xpose.msra.mxu0 0
    %4096 = vmatprep.subr.bf16.mxu0 0
    %4097 = vmatpush2.bf16.xpose.msra.mxu0 0
    %4098 = vmatprep.subr.bf16.mxu0 0
    %4099 = vmatpush2.bf16.xpose.msra.mxu0 0
    %4100 = vmatprep.subr.bf16.mxu0 0
    %4101 = vmatpush2.bf16.xpose.msra.mxu0 0
    %4102 = vmatprep.subr.bf16.mxu0 0
    %4103 = vmatpush2.bf16.xpose.msra.mxu0 0
    %4104 = vmatprep.mubr.bf16.mxu0 0
    %4105 = vmatmul.mubr.bf16.gmra.mxu0 %v4061
    %v4106 = vpop.f32.mrf.mxu0
    %v4107 = vadd.f32 0.0, %v4106
    %v4108 = vpop.f32.mrf.mxu0
    %v4109 = vpop.f32.mrf.mxu0
    %v4110 = vadd.f32 0.0, %v4109
    %v4111 = vpop.f32.mrf.mxu0
    %4112 = vmatprep.mubr.bf16.mxu0 0
    %4113 = vmatmul.mubr.bf16.gmra.mxu0 %v4064
    %v4114 = vpop.f32.mrf.mxu0
    %v4115 = vadd.f32 0.0, %v4114
    %v4116 = vpop.f32.mrf.mxu0
    %v4117 = vpop.f32.mrf.mxu0
    %v4118 = vpop.f32.mrf.mxu0
    %4119 = vdwg.mxu0
    %v4121 = vsel %vm982, %v4050, 0
    %v4124 = vsel %vm982, %v4051, 0
    %v4127 = vsel %vm982, %v4054, 0
    %v4130 = vsel %vm982, %v4055, 0
    %4132 = vmatprep.subr.bf16.mxu0 0
    %4133 = vmatpush1.bf16.xpose.msra.mxu0 0
    %4134 = vmatprep.subr.bf16.mxu0 0
    %4135 = vmatpush1.bf16.xpose.msra.mxu0 0
    %4136 = vmatprep.subr.bf16.mxu0 0
    %4137 = vmatpush1.bf16.xpose.msra.mxu0 0
    %4138 = vmatprep.subr.bf16.mxu0 0
    %4139 = vmatpush1.bf16.xpose.msra.mxu0 0
    %4140 = vmatprep.subr.bf16.mxu0 0
    %4141 = vmatpush1.bf16.xpose.msra.mxu0 0
    %4142 = vmatprep.subr.bf16.mxu0 0
    %4143 = vmatpush1.bf16.xpose.msra.mxu0 0
    %4144 = vmatprep.subr.bf16.mxu0 0
    %4145 = vmatpush1.bf16.xpose.msra.mxu0 %v4130
    %4146 = vmatprep.subr.bf16.mxu0 0
    %4147 = vmatpush1.bf16.xpose.msra.mxu0 %v4127
    %4148 = vmatprep.subr.bf16.mxu0 0
    %4149 = vmatpush2.bf16.xpose.msra.mxu0 0
    %4150 = vmatprep.subr.bf16.mxu0 0
    %4151 = vmatpush2.bf16.xpose.msra.mxu0 0
    %4152 = vmatprep.subr.bf16.mxu0 0
    %4153 = vmatpush2.bf16.xpose.msra.mxu0 0
    %4154 = vmatprep.subr.bf16.mxu0 0
    %4155 = vmatpush2.bf16.xpose.msra.mxu0 0
    %4156 = vmatprep.subr.bf16.mxu0 0
    %4157 = vmatpush2.bf16.xpose.msra.mxu0 0
    %4158 = vmatprep.subr.bf16.mxu0 0
    %4159 = vmatpush2.bf16.xpose.msra.mxu0 0
    %4160 = vmatprep.subr.bf16.mxu0 0
    %4161 = vmatpush2.bf16.xpose.msra.mxu0 0
    %4162 = vmatprep.subr.bf16.mxu0 0
    %4163 = vmatpush2.bf16.xpose.msra.mxu0 0
    %4164 = vmatprep.mubr.bf16.mxu0 0
    %4165 = vmatmul.mubr.bf16.gmra.mxu0 %v4121
    %v4166 = vpop.f32.mrf.mxu0
    %v4167 = vadd.f32 0.0, %v4166
    %v4168 = vpop.f32.mrf.mxu0
    %v4169 = vpop.f32.mrf.mxu0
    %v4170 = vadd.f32 0.0, %v4169
    %v4171 = vpop.f32.mrf.mxu0
    %4172 = vmatprep.mubr.bf16.mxu0 0
    %4173 = vmatmul.mubr.bf16.gmra.mxu0 %v4124
    %v4174 = vpop.f32.mrf.mxu0
    %v4175 = vadd.f32 0.0, %v4174
    %v4176 = vpop.f32.mrf.mxu0
    %v4177 = vpop.f32.mrf.mxu0
    %v4178 = vpop.f32.mrf.mxu0
    %4179 = vdwg.mxu0
    %v4180 = vmul.f32 %v4107, 0.25
    %v4181 = vmul.f32 %v4110, 0.25
    %v4182 = vmul.f32 %v4115, 0.25
    %v4183 = vmul.f32 %v4167, 0.25
    %v4184 = vmul.f32 %v4170, 0.25
    %v4185 = vmul.f32 %v4175, 0.25
    %v4186 = vadd.f32 %v4180, %v621
    %v4187 = vadd.f32 %v4181, %v621
    %v4188 = vadd.f32 %v4182, %v621
    %v4189 = vadd.f32 %v4183, %v621
    %v4190 = vadd.f32 %v4184, %v621
    %v4191 = vadd.f32 %v4185, %v621
    %v4192 = vsel %vm1115, %v4186, -inf
    %4193 = vmax.xlane.f32.xlu0 %v4192
    %v4194 = vpop.xlane.xlu0 %4193
    %v4195 = vsel %vm1115, %v4187, -inf
    %4196 = vmax.xlane.f32.xlu0 %v4195
    %v4197 = vpop.xlane.xlu0 %4196
    %v4198 = vsel %vm1115, %v4188, -inf
    %4199 = vmax.xlane.f32.xlu0 %v4198
    %v4200 = vpop.xlane.xlu0 %4199
    %v4201 = vsel %vm1115, %v4189, -inf
    %4202 = vmax.xlane.f32.xlu0 %v4201
    %v4203 = vpop.xlane.xlu0 %4202
    %v4204 = vsel %vm1115, %v4190, -inf
    %4205 = vmax.xlane.f32.xlu0 %v4204
    %v4206 = vpop.xlane.xlu0 %4205
    %v4207 = vsel %vm1115, %v4191, -inf
    %4208 = vmax.xlane.f32.xlu0 %v4207
    %v4209 = vpop.xlane.xlu0 %4208
    %v4210 = vsub.f32 %v4186, %v4194
    %v4211 = vsub.f32 %v4187, %v4197
    %v4212 = vsub.f32 %v4188, %v4200
    %v4213 = vsub.f32 %v4189, %v4203
    %v4214 = vsub.f32 %v4190, %v4206
    %v4215 = vsub.f32 %v4191, %v4209
    %v4216 = vmul.f32 %v4210, 1.442695
    %v4217 = vpow.pop %v4216
    %v4218 = vmul.f32 %v4211, 1.442695
    %v4219 = vpow.pop %v4218
    %v4220 = vmul.f32 %v4212, 1.442695
    %v4221 = vpow.pop %v4220
    %v4222 = vmul.f32 %v4213, 1.442695
    %v4223 = vpow.pop %v4222
    %v4224 = vmul.f32 %v4214, 1.442695
    %v4225 = vpow.pop %v4224
    %v4226 = vmul.f32 %v4215, 1.442695
    %v4227 = vpow.pop %v4226
    %v4228 = vsel %vm1115, %v4217, 0.0
    %4229 = vadd.xlane.f32.xlu0 %v4228
    %v4230 = vpop.xlane.xlu0 %4229
    %v4231 = vsel %vm1115, %v4219, 0.0
    %4232 = vadd.xlane.f32.xlu0 %v4231
    %v4233 = vpop.xlane.xlu0 %4232
    %v4234 = vsel %vm1115, %v4221, 0.0
    %4235 = vadd.xlane.f32.xlu0 %v4234
    %v4236 = vpop.xlane.xlu0 %4235
    %v4237 = vsel %vm1115, %v4223, 0.0
    %4238 = vadd.xlane.f32.xlu0 %v4237
    %v4239 = vpop.xlane.xlu0 %4238
    %v4240 = vsel %vm1115, %v4225, 0.0
    %4241 = vadd.xlane.f32.xlu0 %v4240
    %v4242 = vpop.xlane.xlu0 %4241
    %v4243 = vsel %vm1115, %v4227, 0.0
    %4244 = vadd.xlane.f32.xlu0 %v4243
    %v4245 = vpop.xlane.xlu0 %4244
    %v4246 = vrcp.pop %v4230
    %v4247 = vrcp.pop %v4233
    %v4248 = vrcp.pop %v4236
    %v4249 = vrcp.pop %v4239
    %v4250 = vrcp.pop %v4242
    %v4251 = vrcp.pop %v4245
    %v4252 = vmul.f32 %v4217, %v4246
    %v4253 = vmul.f32 %v4219, %v4247
    %v4254 = vmul.f32 %v4221, %v4248
    %v4255 = vmul.f32 %v4223, %v4249
    %v4256 = vmul.f32 %v4225, %v4250
    %v4257 = vmul.f32 %v4227, %v4251
    %v4258 = vpack.c.bf16 %v4253, %v4252
    %v4259 = vpack.c.bf16 %v4254, %v4254
    %v4260 = vpack.c.bf16 %v4256, %v4255
    %v4261 = vpack.c.bf16 %v4257, %v4257
    %v4263 = vsel %vm1115, %v4258, 0
    %v4266 = vsel %vm1115, %v4259, 0
    %v4269 = vsel %vm1192, %v4057, 0
    %4271 = vmatprep.subr.bf16.mxu0 0
    %4272 = vmatpush1.bf16.msra.mxu0 0
    %4273 = vmatprep.subr.bf16.mxu0 0
    %4274 = vmatpush1.bf16.msra.mxu0 0
    %4275 = vmatprep.subr.bf16.mxu0 0
    %4276 = vmatpush1.bf16.msra.mxu0 0
    %4277 = vmatprep.subr.bf16.mxu0 0
    %4278 = vmatpush1.bf16.msra.mxu0 0
    %4279 = vmatprep.subr.bf16.mxu0 0
    %4280 = vmatpush1.bf16.msra.mxu0 0
    %4281 = vmatprep.subr.bf16.mxu0 0
    %4282 = vmatpush1.bf16.msra.mxu0 0
    %4283 = vmatprep.subr.bf16.mxu0 0
    %4284 = vmatpush1.bf16.msra.mxu0 %v4269
    %4285 = vmatprep.subr.bf16.mxu0 0
    %4286 = vmatpush1.bf16.msra.mxu0 %v4056
    %4287 = vmatprep.subr.bf16.mxu0 0
    %4288 = vmatpush2.bf16.msra.mxu0 0
    %4289 = vmatprep.subr.bf16.mxu0 0
    %4290 = vmatpush2.bf16.msra.mxu0 0
    %4291 = vmatprep.subr.bf16.mxu0 0
    %4292 = vmatpush2.bf16.msra.mxu0 0
    %4293 = vmatprep.subr.bf16.mxu0 0
    %4294 = vmatpush2.bf16.msra.mxu0 0
    %4295 = vmatprep.subr.bf16.mxu0 0
    %4296 = vmatpush2.bf16.msra.mxu0 0
    %4297 = vmatprep.subr.bf16.mxu0 0
    %4298 = vmatpush2.bf16.msra.mxu0 0
    %4299 = vmatprep.subr.bf16.mxu0 0
    %4300 = vmatpush2.bf16.msra.mxu0 0
    %4301 = vmatprep.subr.bf16.mxu0 0
    %4302 = vmatpush2.bf16.msra.mxu0 0
    %4303 = vmatprep.mubr.bf16.mxu0 0
    %4304 = vmatmul.mubr.bf16.gmra.mxu0 %v4263
    %v4305 = vpop.f32.mrf.mxu0
    %v4306 = vadd.f32 0.0, %v4305
    %v4307 = vpop.f32.mrf.mxu0
    %v4308 = vpop.f32.mrf.mxu0
    %v4309 = vadd.f32 0.0, %v4308
    %v4310 = vpop.f32.mrf.mxu0
    %4311 = vmatprep.mubr.bf16.mxu0 0
    %4312 = vmatmul.mubr.bf16.gmra.mxu0 %v4266
    %v4313 = vpop.f32.mrf.mxu0
    %v4314 = vadd.f32 0.0, %v4313
    %v4315 = vpop.f32.mrf.mxu0
    %v4316 = vpop.f32.mrf.mxu0
    %v4317 = vpop.f32.mrf.mxu0
    %4318 = vdwg.mxu0
    %v4320 = vsel %vm1115, %v4260, 0
    %v4323 = vsel %vm1115, %v4261, 0
    %v4326 = vsel %vm1192, %v4059, 0
    %4328 = vmatprep.subr.bf16.mxu0 0
    %4329 = vmatpush1.bf16.msra.mxu0 0
    %4330 = vmatprep.subr.bf16.mxu0 0
    %4331 = vmatpush1.bf16.msra.mxu0 0
    %4332 = vmatprep.subr.bf16.mxu0 0
    %4333 = vmatpush1.bf16.msra.mxu0 0
    %4334 = vmatprep.subr.bf16.mxu0 0
    %4335 = vmatpush1.bf16.msra.mxu0 0
    %4336 = vmatprep.subr.bf16.mxu0 0
    %4337 = vmatpush1.bf16.msra.mxu0 0
    %4338 = vmatprep.subr.bf16.mxu0 0
    %4339 = vmatpush1.bf16.msra.mxu0 0
    %4340 = vmatprep.subr.bf16.mxu0 0
    %4341 = vmatpush1.bf16.msra.mxu0 %v4326
    %4342 = vmatprep.subr.bf16.mxu0 0
    %4343 = vmatpush1.bf16.msra.mxu0 %v4058
    %4344 = vmatprep.subr.bf16.mxu0 0
    %4345 = vmatpush2.bf16.msra.mxu0 0
    %4346 = vmatprep.subr.bf16.mxu0 0
    %4347 = vmatpush2.bf16.msra.mxu0 0
    %4348 = vmatprep.subr.bf16.mxu0 0
    %4349 = vmatpush2.bf16.msra.mxu0 0
    %4350 = vmatprep.subr.bf16.mxu0 0
    %4351 = vmatpush2.bf16.msra.mxu0 0
    %4352 = vmatprep.subr.bf16.mxu0 0
    %4353 = vmatpush2.bf16.msra.mxu0 0
    %4354 = vmatprep.subr.bf16.mxu0 0
    %4355 = vmatpush2.bf16.msra.mxu0 0
    %4356 = vmatprep.subr.bf16.mxu0 0
    %4357 = vmatpush2.bf16.msra.mxu0 0
    %4358 = vmatprep.subr.bf16.mxu0 0
    %4359 = vmatpush2.bf16.msra.mxu0 0
    %4360 = vmatprep.mubr.bf16.mxu0 0
    %4361 = vmatmul.mubr.bf16.gmra.mxu0 %v4320
    %v4362 = vpop.f32.mrf.mxu0
    %v4363 = vadd.f32 0.0, %v4362
    %v4364 = vpop.f32.mrf.mxu0
    %v4365 = vpop.f32.mrf.mxu0
    %v4366 = vadd.f32 0.0, %v4365
    %v4367 = vpop.f32.mrf.mxu0
    %4368 = vmatprep.mubr.bf16.mxu0 0
    %4369 = vmatmul.mubr.bf16.gmra.mxu0 %v4323
    %v4370 = vpop.f32.mrf.mxu0
    %v4371 = vadd.f32 0.0, %v4370
    %v4372 = vpop.f32.mrf.mxu0
    %v4373 = vpop.f32.mrf.mxu0
    %v4374 = vpop.f32.mrf.mxu0
    %4375 = vdwg.mxu0
    %4378 = vrot.lane.b32.xlu0 %v4048, 112
    %v4379 = vpop.permute.xlu0 %4378
    %4380 = vrot.lane.b32.xlu0 %v4049, 112
    %v4381 = vpop.permute.xlu0 %4380
    %4384 = vrot.lane.b32.xlu0 %v4052, 112
    %v4385 = vpop.permute.xlu0 %4384
    %4386 = vrot.lane.b32.xlu0 %v4053, 112
    %v4387 = vpop.permute.xlu0 %4386
    %v4389 = vsel %vm982, %v4379, 0
    %v4392 = vsel %vm982, %v4381, 0
    %v4395 = vsel %vm982, %v4385, 0
    %v4398 = vsel %vm982, %v4387, 0
    %4400 = vmatprep.subr.bf16.mxu0 0
    %4401 = vmatpush1.bf16.xpose.msra.mxu0 0
    %4402 = vmatprep.subr.bf16.mxu0 0
    %4403 = vmatpush1.bf16.xpose.msra.mxu0 0
    %4404 = vmatprep.subr.bf16.mxu0 0
    %4405 = vmatpush1.bf16.xpose.msra.mxu0 0
    %4406 = vmatprep.subr.bf16.mxu0 0
    %4407 = vmatpush1.bf16.xpose.msra.mxu0 0
    %4408 = vmatprep.subr.bf16.mxu0 0
    %4409 = vmatpush1.bf16.xpose.msra.mxu0 0
    %4410 = vmatprep.subr.bf16.mxu0 0
    %4411 = vmatpush1.bf16.xpose.msra.mxu0 0
    %4412 = vmatprep.subr.bf16.mxu0 0
    %4413 = vmatpush1.bf16.xpose.msra.mxu0 %v4398
    %4414 = vmatprep.subr.bf16.mxu0 0
    %4415 = vmatpush1.bf16.xpose.msra.mxu0 %v4395
    %4416 = vmatprep.subr.bf16.mxu0 0
    %4417 = vmatpush2.bf16.xpose.msra.mxu0 0
    %4418 = vmatprep.subr.bf16.mxu0 0
    %4419 = vmatpush2.bf16.xpose.msra.mxu0 0
    %4420 = vmatprep.subr.bf16.mxu0 0
    %4421 = vmatpush2.bf16.xpose.msra.mxu0 0
    %4422 = vmatprep.subr.bf16.mxu0 0
    %4423 = vmatpush2.bf16.xpose.msra.mxu0 0
    %4424 = vmatprep.subr.bf16.mxu0 0
    %4425 = vmatpush2.bf16.xpose.msra.mxu0 0
    %4426 = vmatprep.subr.bf16.mxu0 0
    %4427 = vmatpush2.bf16.xpose.msra.mxu0 0
    %4428 = vmatprep.subr.bf16.mxu0 0
    %4429 = vmatpush2.bf16.xpose.msra.mxu0 0
    %4430 = vmatprep.subr.bf16.mxu0 0
    %4431 = vmatpush2.bf16.xpose.msra.mxu0 0
    %4432 = vmatprep.mubr.bf16.mxu0 0
    %4433 = vmatmul.mubr.bf16.gmra.mxu0 %v4389
    %v4434 = vpop.f32.mrf.mxu0
    %v4435 = vadd.f32 0.0, %v4434
    %v4436 = vpop.f32.mrf.mxu0
    %v4437 = vpop.f32.mrf.mxu0
    %v4438 = vadd.f32 0.0, %v4437
    %v4439 = vpop.f32.mrf.mxu0
    %4440 = vmatprep.mubr.bf16.mxu0 0
    %4441 = vmatmul.mubr.bf16.gmra.mxu0 %v4392
    %v4442 = vpop.f32.mrf.mxu0
    %v4443 = vadd.f32 0.0, %v4442
    %v4444 = vpop.f32.mrf.mxu0
    %v4445 = vpop.f32.mrf.mxu0
    %v4446 = vpop.f32.mrf.mxu0
    %4447 = vdwg.mxu0
    %4450 = vrot.lane.b32.xlu0 %v4050, 112
    %v4451 = vpop.permute.xlu0 %4450
    %4452 = vrot.lane.b32.xlu0 %v4051, 112
    %v4453 = vpop.permute.xlu0 %4452
    %4456 = vrot.lane.b32.xlu0 %v4054, 112
    %v4457 = vpop.permute.xlu0 %4456
    %4458 = vrot.lane.b32.xlu0 %v4055, 112
    %v4459 = vpop.permute.xlu0 %4458
    %v4461 = vsel %vm982, %v4451, 0
    %v4464 = vsel %vm982, %v4453, 0
    %v4467 = vsel %vm982, %v4457, 0
    %v4470 = vsel %vm982, %v4459, 0
    %4472 = vmatprep.subr.bf16.mxu0 0
    %4473 = vmatpush1.bf16.xpose.msra.mxu0 0
    %4474 = vmatprep.subr.bf16.mxu0 0
    %4475 = vmatpush1.bf16.xpose.msra.mxu0 0
    %4476 = vmatprep.subr.bf16.mxu0 0
    %4477 = vmatpush1.bf16.xpose.msra.mxu0 0
    %4478 = vmatprep.subr.bf16.mxu0 0
    %4479 = vmatpush1.bf16.xpose.msra.mxu0 0
    %4480 = vmatprep.subr.bf16.mxu0 0
    %4481 = vmatpush1.bf16.xpose.msra.mxu0 0
    %4482 = vmatprep.subr.bf16.mxu0 0
    %4483 = vmatpush1.bf16.xpose.msra.mxu0 0
    %4484 = vmatprep.subr.bf16.mxu0 0
    %4485 = vmatpush1.bf16.xpose.msra.mxu0 %v4470
    %4486 = vmatprep.subr.bf16.mxu0 0
    %4487 = vmatpush1.bf16.xpose.msra.mxu0 %v4467
    %4488 = vmatprep.subr.bf16.mxu0 0
    %4489 = vmatpush2.bf16.xpose.msra.mxu0 0
    %4490 = vmatprep.subr.bf16.mxu0 0
    %4491 = vmatpush2.bf16.xpose.msra.mxu0 0
    %4492 = vmatprep.subr.bf16.mxu0 0
    %4493 = vmatpush2.bf16.xpose.msra.mxu0 0
    %4494 = vmatprep.subr.bf16.mxu0 0
    %4495 = vmatpush2.bf16.xpose.msra.mxu0 0
    %4496 = vmatprep.subr.bf16.mxu0 0
    %4497 = vmatpush2.bf16.xpose.msra.mxu0 0
    %4498 = vmatprep.subr.bf16.mxu0 0
    %4499 = vmatpush2.bf16.xpose.msra.mxu0 0
    %4500 = vmatprep.subr.bf16.mxu0 0
    %4501 = vmatpush2.bf16.xpose.msra.mxu0 0
    %4502 = vmatprep.subr.bf16.mxu0 0
    %4503 = vmatpush2.bf16.xpose.msra.mxu0 0
    %4504 = vmatprep.mubr.bf16.mxu0 0
    %4505 = vmatmul.mubr.bf16.gmra.mxu0 %v4461
    %v4506 = vpop.f32.mrf.mxu0
    %v4507 = vadd.f32 0.0, %v4506
    %v4508 = vpop.f32.mrf.mxu0
    %v4509 = vpop.f32.mrf.mxu0
    %v4510 = vadd.f32 0.0, %v4509
    %v4511 = vpop.f32.mrf.mxu0
    %4512 = vmatprep.mubr.bf16.mxu0 0
    %4513 = vmatmul.mubr.bf16.gmra.mxu0 %v4464
    %v4514 = vpop.f32.mrf.mxu0
    %v4515 = vadd.f32 0.0, %v4514
    %v4516 = vpop.f32.mrf.mxu0
    %v4517 = vpop.f32.mrf.mxu0
    %v4518 = vpop.f32.mrf.mxu0
    %4519 = vdwg.mxu0
    %v4520 = vmul.f32 %v4435, 0.25
    %v4521 = vmul.f32 %v4438, 0.25
    %v4522 = vmul.f32 %v4443, 0.25
    %v4523 = vmul.f32 %v4507, 0.25
    %v4524 = vmul.f32 %v4510, 0.25
    %v4525 = vmul.f32 %v4515, 0.25
    %v4526 = vadd.f32 %v4520, %v621
    %v4527 = vadd.f32 %v4521, %v621
    %v4528 = vadd.f32 %v4522, %v621
    %v4529 = vadd.f32 %v4523, %v621
    %v4530 = vadd.f32 %v4524, %v621
    %v4531 = vadd.f32 %v4525, %v621
    %v4532 = vsel %vm1115, %v4526, -inf
    %4533 = vmax.xlane.f32.xlu0 %v4532
    %v4534 = vpop.xlane.xlu0 %4533
    %v4535 = vsel %vm1115, %v4527, -inf
    %4536 = vmax.xlane.f32.xlu0 %v4535
    %v4537 = vpop.xlane.xlu0 %4536
    %v4538 = vsel %vm1115, %v4528, -inf
    %4539 = vmax.xlane.f32.xlu0 %v4538
    %v4540 = vpop.xlane.xlu0 %4539
    %v4541 = vsel %vm1115, %v4529, -inf
    %4542 = vmax.xlane.f32.xlu0 %v4541
    %v4543 = vpop.xlane.xlu0 %4542
    %v4544 = vsel %vm1115, %v4530, -inf
    %4545 = vmax.xlane.f32.xlu0 %v4544
    %v4546 = vpop.xlane.xlu0 %4545
    %v4547 = vsel %vm1115, %v4531, -inf
    %4548 = vmax.xlane.f32.xlu0 %v4547
    %v4549 = vpop.xlane.xlu0 %4548
    %v4550 = vsub.f32 %v4526, %v4534
    %v4551 = vsub.f32 %v4527, %v4537
    %v4552 = vsub.f32 %v4528, %v4540
    %v4553 = vsub.f32 %v4529, %v4543
    %v4554 = vsub.f32 %v4530, %v4546
    %v4555 = vsub.f32 %v4531, %v4549
    %v4556 = vmul.f32 %v4550, 1.442695
    %v4557 = vpow.pop %v4556
    %v4558 = vmul.f32 %v4551, 1.442695
    %v4559 = vpow.pop %v4558
    %v4560 = vmul.f32 %v4552, 1.442695
    %v4561 = vpow.pop %v4560
    %v4562 = vmul.f32 %v4553, 1.442695
    %v4563 = vpow.pop %v4562
    %v4564 = vmul.f32 %v4554, 1.442695
    %v4565 = vpow.pop %v4564
    %v4566 = vmul.f32 %v4555, 1.442695
    %v4567 = vpow.pop %v4566
    %v4568 = vsel %vm1115, %v4557, 0.0
    %4569 = vadd.xlane.f32.xlu0 %v4568
    %v4570 = vpop.xlane.xlu0 %4569
    %v4571 = vsel %vm1115, %v4559, 0.0
    %4572 = vadd.xlane.f32.xlu0 %v4571
    %v4573 = vpop.xlane.xlu0 %4572
    %v4574 = vsel %vm1115, %v4561, 0.0
    %4575 = vadd.xlane.f32.xlu0 %v4574
    %v4576 = vpop.xlane.xlu0 %4575
    %v4577 = vsel %vm1115, %v4563, 0.0
    %4578 = vadd.xlane.f32.xlu0 %v4577
    %v4579 = vpop.xlane.xlu0 %4578
    %v4580 = vsel %vm1115, %v4565, 0.0
    %4581 = vadd.xlane.f32.xlu0 %v4580
    %v4582 = vpop.xlane.xlu0 %4581
    %v4583 = vsel %vm1115, %v4567, 0.0
    %4584 = vadd.xlane.f32.xlu0 %v4583
    %v4585 = vpop.xlane.xlu0 %4584
    %v4586 = vrcp.pop %v4570
    %v4587 = vrcp.pop %v4573
    %v4588 = vrcp.pop %v4576
    %v4589 = vrcp.pop %v4579
    %v4590 = vrcp.pop %v4582
    %v4591 = vrcp.pop %v4585
    %v4592 = vmul.f32 %v4557, %v4586
    %v4593 = vmul.f32 %v4559, %v4587
    %v4594 = vmul.f32 %v4561, %v4588
    %v4595 = vmul.f32 %v4563, %v4589
    %v4596 = vmul.f32 %v4565, %v4590
    %v4597 = vmul.f32 %v4567, %v4591
    %v4598 = vpack.c.bf16 %v4593, %v4592
    %v4599 = vpack.c.bf16 %v4594, %v4594
    %v4600 = vpack.c.bf16 %v4596, %v4595
    %v4601 = vpack.c.bf16 %v4597, %v4597
    %4604 = vrot.lane.b32.xlu0 %v4056, 112
    %v4605 = vpop.permute.xlu0 %4604
    %4606 = vrot.lane.b32.xlu0 %v4057, 112
    %v4607 = vpop.permute.xlu0 %4606
    %v4610 = vsel %vm1115, %v4598, 0
    %v4613 = vsel %vm1115, %v4599, 0
    %v4616 = vsel %vm1192, %v4607, 0
    %4618 = vmatprep.subr.bf16.mxu0 0
    %4619 = vmatpush1.bf16.msra.mxu0 0
    %4620 = vmatprep.subr.bf16.mxu0 0
    %4621 = vmatpush1.bf16.msra.mxu0 0
    %4622 = vmatprep.subr.bf16.mxu0 0
    %4623 = vmatpush1.bf16.msra.mxu0 0
    %4624 = vmatprep.subr.bf16.mxu0 0
    %4625 = vmatpush1.bf16.msra.mxu0 0
    %4626 = vmatprep.subr.bf16.mxu0 0
    %4627 = vmatpush1.bf16.msra.mxu0 0
    %4628 = vmatprep.subr.bf16.mxu0 0
    %4629 = vmatpush1.bf16.msra.mxu0 0
    %4630 = vmatprep.subr.bf16.mxu0 0
    %4631 = vmatpush1.bf16.msra.mxu0 %v4616
    %4632 = vmatprep.subr.bf16.mxu0 0
    %4633 = vmatpush1.bf16.msra.mxu0 %v4605
    %4634 = vmatprep.subr.bf16.mxu0 0
    %4635 = vmatpush2.bf16.msra.mxu0 0
    %4636 = vmatprep.subr.bf16.mxu0 0
    %4637 = vmatpush2.bf16.msra.mxu0 0
    %4638 = vmatprep.subr.bf16.mxu0 0
    %4639 = vmatpush2.bf16.msra.mxu0 0
    %4640 = vmatprep.subr.bf16.mxu0 0
    %4641 = vmatpush2.bf16.msra.mxu0 0
    %4642 = vmatprep.subr.bf16.mxu0 0
    %4643 = vmatpush2.bf16.msra.mxu0 0
    %4644 = vmatprep.subr.bf16.mxu0 0
    %4645 = vmatpush2.bf16.msra.mxu0 0
    %4646 = vmatprep.subr.bf16.mxu0 0
    %4647 = vmatpush2.bf16.msra.mxu0 0
    %4648 = vmatprep.subr.bf16.mxu0 0
    %4649 = vmatpush2.bf16.msra.mxu0 0
    %4650 = vmatprep.mubr.bf16.mxu0 0
    %4651 = vmatmul.mubr.bf16.gmra.mxu0 %v4610
    %v4652 = vpop.f32.mrf.mxu0
    %v4653 = vadd.f32 0.0, %v4652
    %v4654 = vpop.f32.mrf.mxu0
    %v4655 = vpop.f32.mrf.mxu0
    %v4656 = vadd.f32 0.0, %v4655
    %v4657 = vpop.f32.mrf.mxu0
    %4658 = vmatprep.mubr.bf16.mxu0 0
    %4659 = vmatmul.mubr.bf16.gmra.mxu0 %v4613
    %v4660 = vpop.f32.mrf.mxu0
    %v4661 = vadd.f32 0.0, %v4660
    %v4662 = vpop.f32.mrf.mxu0
    %v4663 = vpop.f32.mrf.mxu0
    %v4664 = vpop.f32.mrf.mxu0
    %4665 = vdwg.mxu0
    %4668 = vrot.lane.b32.xlu0 %v4058, 112
    %v4669 = vpop.permute.xlu0 %4668
    %4670 = vrot.lane.b32.xlu0 %v4059, 112
    %v4671 = vpop.permute.xlu0 %4670
    %v4674 = vsel %vm1115, %v4600, 0
    %v4677 = vsel %vm1115, %v4601, 0
    %v4680 = vsel %vm1192, %v4671, 0
    %4682 = vmatprep.subr.bf16.mxu0 0
    %4683 = vmatpush1.bf16.msra.mxu0 0
    %4684 = vmatprep.subr.bf16.mxu0 0
    %4685 = vmatpush1.bf16.msra.mxu0 0
    %4686 = vmatprep.subr.bf16.mxu0 0
    %4687 = vmatpush1.bf16.msra.mxu0 0
    %4688 = vmatprep.subr.bf16.mxu0 0
    %4689 = vmatpush1.bf16.msra.mxu0 0
    %4690 = vmatprep.subr.bf16.mxu0 0
    %4691 = vmatpush1.bf16.msra.mxu0 0
    %4692 = vmatprep.subr.bf16.mxu0 0
    %4693 = vmatpush1.bf16.msra.mxu0 0
    %4694 = vmatprep.subr.bf16.mxu0 0
    %4695 = vmatpush1.bf16.msra.mxu0 %v4680
    %4696 = vmatprep.subr.bf16.mxu0 0
    %4697 = vmatpush1.bf16.msra.mxu0 %v4669
    %4698 = vmatprep.subr.bf16.mxu0 0
    %4699 = vmatpush2.bf16.msra.mxu0 0
    %4700 = vmatprep.subr.bf16.mxu0 0
    %4701 = vmatpush2.bf16.msra.mxu0 0
    %4702 = vmatprep.subr.bf16.mxu0 0
    %4703 = vmatpush2.bf16.msra.mxu0 0
    %4704 = vmatprep.subr.bf16.mxu0 0
    %4705 = vmatpush2.bf16.msra.mxu0 0
    %4706 = vmatprep.subr.bf16.mxu0 0
    %4707 = vmatpush2.bf16.msra.mxu0 0
    %4708 = vmatprep.subr.bf16.mxu0 0
    %4709 = vmatpush2.bf16.msra.mxu0 0
    %4710 = vmatprep.subr.bf16.mxu0 0
    %4711 = vmatpush2.bf16.msra.mxu0 0
    %4712 = vmatprep.subr.bf16.mxu0 0
    %4713 = vmatpush2.bf16.msra.mxu0 0
    %4714 = vmatprep.mubr.bf16.mxu0 0
    %4715 = vmatmul.mubr.bf16.gmra.mxu0 %v4674
    %v4716 = vpop.f32.mrf.mxu0
    %v4717 = vadd.f32 0.0, %v4716
    %v4718 = vpop.f32.mrf.mxu0
    %v4719 = vpop.f32.mrf.mxu0
    %v4720 = vadd.f32 0.0, %v4719
    %v4721 = vpop.f32.mrf.mxu0
    %4722 = vmatprep.mubr.bf16.mxu0 0
    %4723 = vmatmul.mubr.bf16.gmra.mxu0 %v4677
    %v4724 = vpop.f32.mrf.mxu0
    %v4725 = vadd.f32 0.0, %v4724
    %v4726 = vpop.f32.mrf.mxu0
    %v4727 = vpop.f32.mrf.mxu0
    %v4728 = vpop.f32.mrf.mxu0
    %4729 = vdwg.mxu0
    %4736 = vrot.lane.b32.xlu0 %v4653, 16
    %v4737 = vpop.permute.xlu0 %4736
    %4738 = vrot.lane.b32.xlu0 %v4656, 16
    %v4739 = vpop.permute.xlu0 %4738
    %4740 = vrot.lane.b32.xlu0 %v4661, 16
    %v4741 = vpop.permute.xlu0 %4740
    %4742 = vrot.lane.b32.xlu0 %v4717, 16
    %v4743 = vpop.permute.xlu0 %4742
    %4744 = vrot.lane.b32.xlu0 %v4720, 16
    %v4745 = vpop.permute.xlu0 %4744
    %4746 = vrot.lane.b32.xlu0 %v4725, 16
    %v4747 = vpop.permute.xlu0 %4746
    %v4754 = vsel %vm982, %v4306, %v4737
    %v4755 = vsel %vm982, %v4309, %v4739
    %v4756 = vsel %vm982, %v4314, %v4741
    %v4757 = vsel %vm982, %v4363, %v4743
    %v4758 = vsel %vm982, %v4366, %v4745
    %v4759 = vsel %vm982, %v4371, %v4747
    %v4760 = vpack.c.bf16 %v4755, %v4754
    %v4761 = vpack.c.bf16 %v4757, %v4756
    %v4762 = vpack.c.bf16 %v4759, %v4758
    %s4763 = scalar_lea.vmem %s13, 32
    %v4764 = vld [vmem:[%s4763] sm:$0xf]
    %v4765 = vld [vmem:[%s4763 + $0x4] sm:$0xf]
    %v4766 = vld [vmem:[%s4763 + $0x8] sm:$0xf]
    %v4767 = vld [vmem:[%s4763 + $0xc] sm:$0xf]
    %v4768 = vld [vmem:[%s14 + $0x2] sm:$0x1]
    %v4769 = vlaneseq
    %v4770 = vshrl.u32 %v4769, 7
    %v4771 = vsub.s32 0, %v4770
    %v4772 = vrot.slane %v4768, %v4771
    %v4777 = vunpack.c.l.b16 %v4764
    %v4778 = vunpack.c.l.b16 %v4765
    %v4779 = vunpack.c.l.b16 %v4766
    %v4780 = vunpack.c.l.b16 %v4767
    %v4781 = vpack.c.b16 %v4778, %v4777
    %v4782 = vpack.c.b16 %v4780, %v4779
    %v4786 = vsel %vm624, %v4760, 0
    %v4789 = vsel %vm624, %v4761, 0
    %v4792 = vsel %vm624, %v4762, 0
    %4794 = vmatprep.subr.bf16.mxu0 0
    %4795 = vmatpush1.bf16.msra.mxu0 0
    %4796 = vmatprep.subr.bf16.mxu0 0
    %4797 = vmatpush1.bf16.msra.mxu0 0
    %4798 = vmatprep.subr.bf16.mxu0 0
    %4799 = vmatpush1.bf16.msra.mxu0 0
    %4800 = vmatprep.subr.bf16.mxu0 0
    %4801 = vmatpush1.bf16.msra.mxu0 0
    %4802 = vmatprep.subr.bf16.mxu0 0
    %4803 = vmatpush1.bf16.msra.mxu0 0
    %4804 = vmatprep.subr.bf16.mxu0 0
    %4805 = vmatpush1.bf16.msra.mxu0 0
    %4806 = vmatprep.subr.bf16.mxu0 0
    %4807 = vmatpush1.bf16.msra.mxu0 %v4782
    %4808 = vmatprep.subr.bf16.mxu0 0
    %4809 = vmatpush1.bf16.msra.mxu0 %v4781
    %4810 = vmatprep.subr.bf16.mxu0 0
    %4811 = vmatpush2.bf16.msra.mxu0 0
    %4812 = vmatprep.subr.bf16.mxu0 0
    %4813 = vmatpush2.bf16.msra.mxu0 0
    %4814 = vmatprep.subr.bf16.mxu0 0
    %4815 = vmatpush2.bf16.msra.mxu0 0
    %4816 = vmatprep.subr.bf16.mxu0 0
    %4817 = vmatpush2.bf16.msra.mxu0 0
    %4818 = vmatprep.subr.bf16.mxu0 0
    %4819 = vmatpush2.bf16.msra.mxu0 0
    %4820 = vmatprep.subr.bf16.mxu0 0
    %4821 = vmatpush2.bf16.msra.mxu0 0
    %4822 = vmatprep.subr.bf16.mxu0 0
    %4823 = vmatpush2.bf16.msra.mxu0 0
    %4824 = vmatprep.subr.bf16.mxu0 0
    %4825 = vmatpush2.bf16.msra.mxu0 0
    %4826 = vmatprep.mubr.bf16.mxu0 0
    %4827 = vmatmul.mubr.bf16.gmra.mxu0 %v4786
    %v4828 = vpop.f32.mrf.mxu0
    %v4829 = vadd.f32 %v4772, %v4828
    %v4830 = vpop.f32.mrf.mxu0
    %v4831 = vpop.f32.mrf.mxu0
    %v4832 = vadd.f32 %v4772, %v4831
    %v4833 = vpop.f32.mrf.mxu0
    %4834 = vmatprep.mubr.bf16.mxu0 0
    %4835 = vmatmul.mubr.bf16.gmra.mxu0 %v4789
    %v4836 = vpop.f32.mrf.mxu0
    %v4837 = vadd.f32 %v4772, %v4836
    %v4838 = vpop.f32.mrf.mxu0
    %v4839 = vpop.f32.mrf.mxu0
    %v4840 = vadd.f32 %v4772, %v4839
    %v4841 = vpop.f32.mrf.mxu0
    %4842 = vmatprep.mubr.bf16.mxu0 0
    %4843 = vmatmul.mubr.bf16.gmra.mxu0 %v4792
    %v4844 = vpop.f32.mrf.mxu0
    %v4845 = vadd.f32 %v4772, %v4844
    %v4846 = vpop.f32.mrf.mxu0
    %v4847 = vpop.f32.mrf.mxu0
    %v4848 = vadd.f32 %v4772, %v4847
    %v4849 = vpop.f32.mrf.mxu0
    %4850 = vdwg.mxu0
    %v4851 = vadd.f32 %v3693, %v4829
    %v4852 = vadd.f32 %v3694, %v4832
    %v4853 = vadd.f32 %v3695, %v4837
    %v4854 = vadd.f32 %v3696, %v4840
    %v4855 = vadd.f32 %v3697, %v4845
    %v4856 = vadd.f32 %v3698, %v4848
    %v4857 = vld [vmem:[%s15 + $0x2] sm:$0x1]
    %v4858 = vld [vmem:[%s16 + $0x2] sm:$0x1]
    %v4859 = vsel %vm624, %v4851, 0.0
    %4860 = vadd.xlane.f32.xlu0 %v4859
    %v4861 = vpop.xlane.xlu0 %4860
    %v4862 = vsel %vm624, %v4852, 0.0
    %4863 = vadd.xlane.f32.xlu0 %v4862
    %v4864 = vpop.xlane.xlu0 %4863
    %v4865 = vsel %vm624, %v4853, 0.0
    %4866 = vadd.xlane.f32.xlu0 %v4865
    %v4867 = vpop.xlane.xlu0 %4866
    %v4868 = vsel %vm624, %v4854, 0.0
    %4869 = vadd.xlane.f32.xlu0 %v4868
    %v4870 = vpop.xlane.xlu0 %4869
    %v4871 = vsel %vm624, %v4855, 0.0
    %4872 = vadd.xlane.f32.xlu0 %v4871
    %v4873 = vpop.xlane.xlu0 %4872
    %v4874 = vsel %vm624, %v4856, 0.0
    %4875 = vadd.xlane.f32.xlu0 %v4874
    %v4876 = vpop.xlane.xlu0 %4875
    %v4877 = vmul.f32 %v4861, %v643
    %v4878 = vmul.f32 %v4864, %v643
    %v4879 = vmul.f32 %v4867, %v643
    %v4880 = vmul.f32 %v4870, %v643
    %v4881 = vmul.f32 %v4873, %v643
    %v4882 = vmul.f32 %v4876, %v643
    %v4883 = vsub.f32 %v4851, %v4877
    %v4884 = vsub.f32 %v4852, %v4878
    %v4885 = vsub.f32 %v4853, %v4879
    %v4886 = vsub.f32 %v4854, %v4880
    %v4887 = vsub.f32 %v4855, %v4881
    %v4888 = vsub.f32 %v4856, %v4882
    %v4889 = vmul.f32 %v4883, %v4883
    %v4890 = vmul.f32 %v4884, %v4884
    %v4891 = vmul.f32 %v4885, %v4885
    %v4892 = vmul.f32 %v4886, %v4886
    %v4893 = vmul.f32 %v4887, %v4887
    %v4894 = vmul.f32 %v4888, %v4888
    %v4895 = vsel %vm624, %v4889, 0.0
    %4896 = vadd.xlane.f32.xlu0 %v4895
    %v4897 = vpop.xlane.xlu0 %4896
    %v4898 = vsel %vm624, %v4890, 0.0
    %4899 = vadd.xlane.f32.xlu0 %v4898
    %v4900 = vpop.xlane.xlu0 %4899
    %v4901 = vsel %vm624, %v4891, 0.0
    %4902 = vadd.xlane.f32.xlu0 %v4901
    %v4903 = vpop.xlane.xlu0 %4902
    %v4904 = vsel %vm624, %v4892, 0.0
    %4905 = vadd.xlane.f32.xlu0 %v4904
    %v4906 = vpop.xlane.xlu0 %4905
    %v4907 = vsel %vm624, %v4893, 0.0
    %4908 = vadd.xlane.f32.xlu0 %v4907
    %v4909 = vpop.xlane.xlu0 %4908
    %v4910 = vsel %vm624, %v4894, 0.0
    %4911 = vadd.xlane.f32.xlu0 %v4910
    %v4912 = vpop.xlane.xlu0 %4911
    %v4913 = vmul.f32 %v4897, %v643
    %v4914 = vmul.f32 %v4900, %v643
    %v4915 = vmul.f32 %v4903, %v643
    %v4916 = vmul.f32 %v4906, %v643
    %v4917 = vmul.f32 %v4909, %v643
    %v4918 = vmul.f32 %v4912, %v643
    %v4919 = vadd.f32 %v4913, 1e-06
    %v4920 = vadd.f32 %v4914, 1e-06
    %v4921 = vadd.f32 %v4915, 1e-06
    %v4922 = vadd.f32 %v4916, 1e-06
    %v4923 = vadd.f32 %v4917, 1e-06
    %v4924 = vadd.f32 %v4918, 1e-06
    %v4925 = vrsqrt.pop %v4919
    %v4926 = vrsqrt.pop %v4920
    %v4927 = vrsqrt.pop %v4921
    %v4928 = vrsqrt.pop %v4922
    %v4929 = vrsqrt.pop %v4923
    %v4930 = vrsqrt.pop %v4924
    %v4931 = vmul.f32 %v4883, %v4925
    %v4932 = vmul.f32 %v4884, %v4926
    %v4933 = vmul.f32 %v4885, %v4927
    %v4934 = vmul.f32 %v4886, %v4928
    %v4935 = vmul.f32 %v4887, %v4929
    %v4936 = vmul.f32 %v4888, %v4930
    %v4937 = vlaneseq
    %v4938 = vshrl.u32 %v4937, 7
    %v4939 = vsub.s32 0, %v4938
    %v4940 = vrot.slane %v4857, %v4939
    %v4941 = vmul.f32 %v4931, %v4940
    %v4942 = vmul.f32 %v4932, %v4940
    %v4943 = vmul.f32 %v4933, %v4940
    %v4944 = vmul.f32 %v4934, %v4940
    %v4945 = vmul.f32 %v4935, %v4940
    %v4946 = vmul.f32 %v4936, %v4940
    %v4947 = vlaneseq
    %v4948 = vshrl.u32 %v4947, 7
    %v4949 = vsub.s32 0, %v4948
    %v4950 = vrot.slane %v4858, %v4949
    %v4951 = vadd.f32 %v4941, %v4950
    %v4952 = vadd.f32 %v4942, %v4950
    %v4953 = vadd.f32 %v4943, %v4950
    %v4954 = vadd.f32 %v4944, %v4950
    %v4955 = vadd.f32 %v4945, %v4950
    %v4956 = vadd.f32 %v4946, %v4950
    %v4957 = vpack.c.bf16 %v4952, %v4951
    %v4958 = vpack.c.bf16 %v4954, %v4953
    %v4959 = vpack.c.bf16 %v4956, %v4955
    %s4960 = scalar_lea.vmem %s17, 32
    %v4961 = vld [vmem:[%s4960] sm:$0xf]
    %v4962 = vld [vmem:[%s4960 + $0x4] sm:$0xf]
    %v4963 = vld [vmem:[%s4960 + $0x8] sm:$0xf]
    %v4964 = vld [vmem:[%s4960 + $0xc] sm:$0xf]
    %v4965 = vld [vmem:[%s18 + $0x2] sm:$0x1]
    %v4966 = vlaneseq
    %v4967 = vshrl.u32 %v4966, 7
    %v4968 = vsub.s32 0, %v4967
    %v4969 = vrot.slane %v4965, %v4968
    %v4974 = vunpack.c.l.b16 %v4961
    %v4975 = vunpack.c.l.b16 %v4962
    %v4976 = vunpack.c.l.b16 %v4963
    %v4977 = vunpack.c.l.b16 %v4964
    %v4978 = vpack.c.b16 %v4975, %v4974
    %v4979 = vpack.c.b16 %v4977, %v4976
    %v4983 = vsel %vm624, %v4957, 0
    %v4986 = vsel %vm624, %v4958, 0
    %v4989 = vsel %vm624, %v4959, 0
    %4991 = vmatprep.subr.bf16.mxu0 0
    %4992 = vmatpush1.bf16.msra.mxu0 0
    %4993 = vmatprep.subr.bf16.mxu0 0
    %4994 = vmatpush1.bf16.msra.mxu0 0
    %4995 = vmatprep.subr.bf16.mxu0 0
    %4996 = vmatpush1.bf16.msra.mxu0 0
    %4997 = vmatprep.subr.bf16.mxu0 0
    %4998 = vmatpush1.bf16.msra.mxu0 0
    %4999 = vmatprep.subr.bf16.mxu0 0
    %5000 = vmatpush1.bf16.msra.mxu0 0
    %5001 = vmatprep.subr.bf16.mxu0 0
    %5002 = vmatpush1.bf16.msra.mxu0 0
    %5003 = vmatprep.subr.bf16.mxu0 0
    %5004 = vmatpush1.bf16.msra.mxu0 %v4979
    %5005 = vmatprep.subr.bf16.mxu0 0
    %5006 = vmatpush1.bf16.msra.mxu0 %v4978
    %5007 = vmatprep.subr.bf16.mxu0 0
    %5008 = vmatpush2.bf16.msra.mxu0 0
    %5009 = vmatprep.subr.bf16.mxu0 0
    %5010 = vmatpush2.bf16.msra.mxu0 0
    %5011 = vmatprep.subr.bf16.mxu0 0
    %5012 = vmatpush2.bf16.msra.mxu0 0
    %5013 = vmatprep.subr.bf16.mxu0 0
    %5014 = vmatpush2.bf16.msra.mxu0 0
    %5015 = vmatprep.subr.bf16.mxu0 0
    %5016 = vmatpush2.bf16.msra.mxu0 0
    %5017 = vmatprep.subr.bf16.mxu0 0
    %5018 = vmatpush2.bf16.msra.mxu0 0
    %5019 = vmatprep.subr.bf16.mxu0 0
    %5020 = vmatpush2.bf16.msra.mxu0 0
    %5021 = vmatprep.subr.bf16.mxu0 0
    %5022 = vmatpush2.bf16.msra.mxu0 0
    %5023 = vmatprep.mubr.bf16.mxu0 0
    %5024 = vmatmul.mubr.bf16.gmra.mxu0 %v4983
    %v5025 = vpop.f32.mrf.mxu0
    %v5026 = vadd.f32 %v4969, %v5025
    %v5027 = vpop.f32.mrf.mxu0
    %v5028 = vpop.f32.mrf.mxu0
    %v5029 = vadd.f32 %v4969, %v5028
    %v5030 = vpop.f32.mrf.mxu0
    %5031 = vmatprep.mubr.bf16.mxu0 0
    %5032 = vmatmul.mubr.bf16.gmra.mxu0 %v4986
    %v5033 = vpop.f32.mrf.mxu0
    %v5034 = vadd.f32 %v4969, %v5033
    %v5035 = vpop.f32.mrf.mxu0
    %v5036 = vpop.f32.mrf.mxu0
    %v5037 = vadd.f32 %v4969, %v5036
    %v5038 = vpop.f32.mrf.mxu0
    %5039 = vmatprep.mubr.bf16.mxu0 0
    %5040 = vmatmul.mubr.bf16.gmra.mxu0 %v4989
    %v5041 = vpop.f32.mrf.mxu0
    %v5042 = vadd.f32 %v4969, %v5041
    %v5043 = vpop.f32.mrf.mxu0
    %v5044 = vpop.f32.mrf.mxu0
    %v5045 = vadd.f32 %v4969, %v5044
    %v5046 = vpop.f32.mrf.mxu0
    %5047 = vdwg.mxu0
    %v5048 = vmul.f32 %v5026, %v5026
    %v5049 = vmul.f32 %v5029, %v5029
    %v5050 = vmul.f32 %v5034, %v5034
    %v5051 = vmul.f32 %v5037, %v5037
    %v5052 = vmul.f32 %v5042, %v5042
    %v5053 = vmul.f32 %v5045, %v5045
    %v5054 = vmul.f32 %v5026, %v5048
    %v5055 = vmul.f32 %v5029, %v5049
    %v5056 = vmul.f32 %v5034, %v5050
    %v5057 = vmul.f32 %v5037, %v5051
    %v5058 = vmul.f32 %v5042, %v5052
    %v5059 = vmul.f32 %v5045, %v5053
    %v5060 = vmul.f32 %v5054, 0.044715
    %v5061 = vmul.f32 %v5055, 0.044715
    %v5062 = vmul.f32 %v5056, 0.044715
    %v5063 = vmul.f32 %v5057, 0.044715
    %v5064 = vmul.f32 %v5058, 0.044715
    %v5065 = vmul.f32 %v5059, 0.044715
    %v5066 = vadd.f32 %v5026, %v5060
    %v5067 = vadd.f32 %v5029, %v5061
    %v5068 = vadd.f32 %v5034, %v5062
    %v5069 = vadd.f32 %v5037, %v5063
    %v5070 = vadd.f32 %v5042, %v5064
    %v5071 = vadd.f32 %v5045, %v5065
    %v5072 = vmul.f32 %v5066, 0.7978846
    %v5073 = vmul.f32 %v5067, 0.7978846
    %v5074 = vmul.f32 %v5068, 0.7978846
    %v5075 = vmul.f32 %v5069, 0.7978846
    %v5076 = vmul.f32 %v5070, 0.7978846
    %v5077 = vmul.f32 %v5071, 0.7978846
    %v5078 = vtanh.pop %v5072
    %v5079 = vtanh.pop %v5073
    %v5080 = vtanh.pop %v5074
    %v5081 = vtanh.pop %v5075
    %v5082 = vtanh.pop %v5076
    %v5083 = vtanh.pop %v5077
    %v5084 = vadd.f32 %v5078, 1.0
    %v5085 = vadd.f32 %v5079, 1.0
    %v5086 = vadd.f32 %v5080, 1.0
    %v5087 = vadd.f32 %v5081, 1.0
    %v5088 = vadd.f32 %v5082, 1.0
    %v5089 = vadd.f32 %v5083, 1.0
    %v5090 = vmul.f32 %v5084, 0.5
    %v5091 = vmul.f32 %v5085, 0.5
    %v5092 = vmul.f32 %v5086, 0.5
    %v5093 = vmul.f32 %v5087, 0.5
    %v5094 = vmul.f32 %v5088, 0.5
    %v5095 = vmul.f32 %v5089, 0.5
    %v5096 = vmul.f32 %v5026, %v5090
    %v5097 = vmul.f32 %v5029, %v5091
    %v5098 = vmul.f32 %v5034, %v5092
    %v5099 = vmul.f32 %v5037, %v5093
    %v5100 = vmul.f32 %v5042, %v5094
    %v5101 = vmul.f32 %v5045, %v5095
    %v5102 = vpack.c.bf16 %v5097, %v5096
    %v5103 = vpack.c.bf16 %v5099, %v5098
    %v5104 = vpack.c.bf16 %v5101, %v5100
    %s5105 = scalar_lea.vmem %s19, 128
    %v5106 = vld [vmem:[%s5105] sm:$0xf]
    %v5107 = vld [vmem:[%s5105 + $0x4] sm:$0xf]
    %v5108 = vld [vmem:[%s5105 + $0x8] sm:$0xf]
    %v5109 = vld [vmem:[%s5105 + $0xc] sm:$0xf]
    %v5110 = vld [vmem:[%s5105 + $0x10] sm:$0xf]
    %v5111 = vld [vmem:[%s5105 + $0x14] sm:$0xf]
    %v5112 = vld [vmem:[%s5105 + $0x18] sm:$0xf]
    %v5113 = vld [vmem:[%s5105 + $0x1c] sm:$0xf]
    %v5114 = vld [vmem:[%s5105 + $0x20] sm:$0xf]
    %v5115 = vld [vmem:[%s5105 + $0x24] sm:$0xf]
    %v5116 = vld [vmem:[%s5105 + $0x28] sm:$0xf]
    %v5117 = vld [vmem:[%s5105 + $0x2c] sm:$0xf]
    %v5118 = vld [vmem:[%s5105 + $0x30] sm:$0xf]
    %v5119 = vld [vmem:[%s5105 + $0x34] sm:$0xf]
    %v5120 = vld [vmem:[%s5105 + $0x38] sm:$0xf]
    %v5121 = vld [vmem:[%s5105 + $0x3c] sm:$0xf]
    %v5122 = vld [vmem:[%s20 + $0x2] sm:$0x1]
    %v5123 = vlaneseq
    %v5124 = vshrl.u32 %v5123, 7
    %v5125 = vsub.s32 0, %v5124
    %v5126 = vrot.slane %v5122, %v5125
    %v5143 = vunpack.c.l.b16 %v5106
    %v5144 = vunpack.c.l.b16 %v5107
    %v5145 = vunpack.c.l.b16 %v5108
    %v5146 = vunpack.c.l.b16 %v5109
    %v5147 = vunpack.c.l.b16 %v5110
    %v5148 = vunpack.c.l.b16 %v5111
    %v5149 = vunpack.c.l.b16 %v5112
    %v5150 = vunpack.c.l.b16 %v5113
    %v5151 = vunpack.c.l.b16 %v5114
    %v5152 = vunpack.c.l.b16 %v5115
    %v5153 = vunpack.c.l.b16 %v5116
    %v5154 = vunpack.c.l.b16 %v5117
    %v5155 = vunpack.c.l.b16 %v5118
    %v5156 = vunpack.c.l.b16 %v5119
    %v5157 = vunpack.c.l.b16 %v5120
    %v5158 = vunpack.c.l.b16 %v5121
    %v5159 = vpack.c.b16 %v5144, %v5143
    %v5160 = vpack.c.b16 %v5146, %v5145
    %v5161 = vpack.c.b16 %v5148, %v5147
    %v5162 = vpack.c.b16 %v5150, %v5149
    %v5163 = vpack.c.b16 %v5152, %v5151
    %v5164 = vpack.c.b16 %v5154, %v5153
    %v5165 = vpack.c.b16 %v5156, %v5155
    %v5166 = vpack.c.b16 %v5158, %v5157
    %5175 = vmatprep.subr.bf16.mxu0 0
    %5176 = vmatpush1.bf16.msra.mxu0 %v5166
    %5177 = vmatprep.subr.bf16.mxu0 0
    %5178 = vmatpush1.bf16.msra.mxu0 %v5165
    %5179 = vmatprep.subr.bf16.mxu0 0
    %5180 = vmatpush1.bf16.msra.mxu0 %v5164
    %5181 = vmatprep.subr.bf16.mxu0 0
    %5182 = vmatpush1.bf16.msra.mxu0 %v5163
    %5183 = vmatprep.subr.bf16.mxu0 0
    %5184 = vmatpush1.bf16.msra.mxu0 %v5162
    %5185 = vmatprep.subr.bf16.mxu0 0
    %5186 = vmatpush1.bf16.msra.mxu0 %v5161
    %5187 = vmatprep.subr.bf16.mxu0 0
    %5188 = vmatpush1.bf16.msra.mxu0 %v5160
    %5189 = vmatprep.subr.bf16.mxu0 0
    %5190 = vmatpush1.bf16.msra.mxu0 %v5159
    %5191 = vmatprep.subr.bf16.mxu0 0
    %5192 = vmatpush2.bf16.msra.mxu0 0
    %5193 = vmatprep.subr.bf16.mxu0 0
    %5194 = vmatpush2.bf16.msra.mxu0 0
    %5195 = vmatprep.subr.bf16.mxu0 0
    %5196 = vmatpush2.bf16.msra.mxu0 0
    %5197 = vmatprep.subr.bf16.mxu0 0
    %5198 = vmatpush2.bf16.msra.mxu0 0
    %5199 = vmatprep.subr.bf16.mxu0 0
    %5200 = vmatpush2.bf16.msra.mxu0 0
    %5201 = vmatprep.subr.bf16.mxu0 0
    %5202 = vmatpush2.bf16.msra.mxu0 0
    %5203 = vmatprep.subr.bf16.mxu0 0
    %5204 = vmatpush2.bf16.msra.mxu0 0
    %5205 = vmatprep.subr.bf16.mxu0 0
    %5206 = vmatpush2.bf16.msra.mxu0 0
    %5207 = vmatprep.mubr.bf16.mxu0 0
    %5208 = vmatmul.mubr.bf16.gmra.mxu0 %v5102
    %v5209 = vpop.f32.mrf.mxu0
    %v5210 = vadd.f32 %v5126, %v5209
    %v5211 = vpop.f32.mrf.mxu0
    %v5212 = vpop.f32.mrf.mxu0
    %v5213 = vadd.f32 %v5126, %v5212
    %v5214 = vpop.f32.mrf.mxu0
    %5215 = vmatprep.mubr.bf16.mxu0 0
    %5216 = vmatmul.mubr.bf16.gmra.mxu0 %v5103
    %v5217 = vpop.f32.mrf.mxu0
    %v5218 = vadd.f32 %v5126, %v5217
    %v5219 = vpop.f32.mrf.mxu0
    %v5220 = vpop.f32.mrf.mxu0
    %v5221 = vadd.f32 %v5126, %v5220
    %v5222 = vpop.f32.mrf.mxu0
    %5223 = vmatprep.mubr.bf16.mxu0 0
    %5224 = vmatmul.mubr.bf16.gmra.mxu0 %v5104
    %v5225 = vpop.f32.mrf.mxu0
    %v5226 = vadd.f32 %v5126, %v5225
    %v5227 = vpop.f32.mrf.mxu0
    %v5228 = vpop.f32.mrf.mxu0
    %v5229 = vadd.f32 %v5126, %v5228
    %v5230 = vpop.f32.mrf.mxu0
    %5231 = vdwg.mxu0
    %v5232 = vadd.f32 %v4851, %v5210
    %v5233 = vadd.f32 %v4852, %v5213
    %v5234 = vadd.f32 %v4853, %v5218
    %v5235 = vadd.f32 %v4854, %v5221
    %v5236 = vadd.f32 %v4855, %v5226
    %v5237 = vadd.f32 %v4856, %v5229
    %v5238 = vld [vmem:[%s5 + $0x3] sm:$0x1]
    %v5239 = vld [vmem:[%s6 + $0x3] sm:$0x1]
    %v5240 = vsel %vm624, %v5232, 0.0
    %5241 = vadd.xlane.f32.xlu0 %v5240
    %v5242 = vpop.xlane.xlu0 %5241
    %v5243 = vsel %vm624, %v5233, 0.0
    %5244 = vadd.xlane.f32.xlu0 %v5243
    %v5245 = vpop.xlane.xlu0 %5244
    %v5246 = vsel %vm624, %v5234, 0.0
    %5247 = vadd.xlane.f32.xlu0 %v5246
    %v5248 = vpop.xlane.xlu0 %5247
    %v5249 = vsel %vm624, %v5235, 0.0
    %5250 = vadd.xlane.f32.xlu0 %v5249
    %v5251 = vpop.xlane.xlu0 %5250
    %v5252 = vsel %vm624, %v5236, 0.0
    %5253 = vadd.xlane.f32.xlu0 %v5252
    %v5254 = vpop.xlane.xlu0 %5253
    %v5255 = vsel %vm624, %v5237, 0.0
    %5256 = vadd.xlane.f32.xlu0 %v5255
    %v5257 = vpop.xlane.xlu0 %5256
    %v5258 = vmul.f32 %v5242, %v643
    %v5259 = vmul.f32 %v5245, %v643
    %v5260 = vmul.f32 %v5248, %v643
    %v5261 = vmul.f32 %v5251, %v643
    %v5262 = vmul.f32 %v5254, %v643
    %v5263 = vmul.f32 %v5257, %v643
    %v5264 = vsub.f32 %v5232, %v5258
    %v5265 = vsub.f32 %v5233, %v5259
    %v5266 = vsub.f32 %v5234, %v5260
    %v5267 = vsub.f32 %v5235, %v5261
    %v5268 = vsub.f32 %v5236, %v5262
    %v5269 = vsub.f32 %v5237, %v5263
    %v5270 = vmul.f32 %v5264, %v5264
    %v5271 = vmul.f32 %v5265, %v5265
    %v5272 = vmul.f32 %v5266, %v5266
    %v5273 = vmul.f32 %v5267, %v5267
    %v5274 = vmul.f32 %v5268, %v5268
    %v5275 = vmul.f32 %v5269, %v5269
    %v5276 = vsel %vm624, %v5270, 0.0
    %5277 = vadd.xlane.f32.xlu0 %v5276
    %v5278 = vpop.xlane.xlu0 %5277
    %v5279 = vsel %vm624, %v5271, 0.0
    %5280 = vadd.xlane.f32.xlu0 %v5279
    %v5281 = vpop.xlane.xlu0 %5280
    %v5282 = vsel %vm624, %v5272, 0.0
    %5283 = vadd.xlane.f32.xlu0 %v5282
    %v5284 = vpop.xlane.xlu0 %5283
    %v5285 = vsel %vm624, %v5273, 0.0
    %5286 = vadd.xlane.f32.xlu0 %v5285
    %v5287 = vpop.xlane.xlu0 %5286
    %v5288 = vsel %vm624, %v5274, 0.0
    %5289 = vadd.xlane.f32.xlu0 %v5288
    %v5290 = vpop.xlane.xlu0 %5289
    %v5291 = vsel %vm624, %v5275, 0.0
    %5292 = vadd.xlane.f32.xlu0 %v5291
    %v5293 = vpop.xlane.xlu0 %5292
    %v5294 = vmul.f32 %v5278, %v643
    %v5295 = vmul.f32 %v5281, %v643
    %v5296 = vmul.f32 %v5284, %v643
    %v5297 = vmul.f32 %v5287, %v643
    %v5298 = vmul.f32 %v5290, %v643
    %v5299 = vmul.f32 %v5293, %v643
    %v5300 = vadd.f32 %v5294, 1e-06
    %v5301 = vadd.f32 %v5295, 1e-06
    %v5302 = vadd.f32 %v5296, 1e-06
    %v5303 = vadd.f32 %v5297, 1e-06
    %v5304 = vadd.f32 %v5298, 1e-06
    %v5305 = vadd.f32 %v5299, 1e-06
    %v5306 = vrsqrt.pop %v5300
    %v5307 = vrsqrt.pop %v5301
    %v5308 = vrsqrt.pop %v5302
    %v5309 = vrsqrt.pop %v5303
    %v5310 = vrsqrt.pop %v5304
    %v5311 = vrsqrt.pop %v5305
    %v5312 = vmul.f32 %v5264, %v5306
    %v5313 = vmul.f32 %v5265, %v5307
    %v5314 = vmul.f32 %v5266, %v5308
    %v5315 = vmul.f32 %v5267, %v5309
    %v5316 = vmul.f32 %v5268, %v5310
    %v5317 = vmul.f32 %v5269, %v5311
    %v5318 = vlaneseq
    %v5319 = vshrl.u32 %v5318, 7
    %v5320 = vsub.s32 0, %v5319
    %v5321 = vrot.slane %v5238, %v5320
    %v5322 = vmul.f32 %v5312, %v5321
    %v5323 = vmul.f32 %v5313, %v5321
    %v5324 = vmul.f32 %v5314, %v5321
    %v5325 = vmul.f32 %v5315, %v5321
    %v5326 = vmul.f32 %v5316, %v5321
    %v5327 = vmul.f32 %v5317, %v5321
    %v5328 = vlaneseq
    %v5329 = vshrl.u32 %v5328, 7
    %v5330 = vsub.s32 0, %v5329
    %v5331 = vrot.slane %v5239, %v5330
    %v5332 = vadd.f32 %v5322, %v5331
    %v5333 = vadd.f32 %v5323, %v5331
    %v5334 = vadd.f32 %v5324, %v5331
    %v5335 = vadd.f32 %v5325, %v5331
    %v5336 = vadd.f32 %v5326, %v5331
    %v5337 = vadd.f32 %v5327, %v5331
    %v5338 = vpack.c.bf16 %v5333, %v5332
    %v5339 = vpack.c.bf16 %v5335, %v5334
    %v5340 = vpack.c.bf16 %v5337, %v5336
    %s5341 = scalar_lea.vmem %s7, 48
    %v5342 = vld [vmem:[%s5341] sm:$0xf]
    %v5343 = vld [vmem:[%s5341 + $0x4] sm:$0xf]
    %v5344 = vld [vmem:[%s5341 + $0x8] sm:$0xf]
    %v5345 = vld [vmem:[%s5341 + $0xc] sm:$0xf]
    %v5346 = vld [vmem:[%s10 + $0x3] sm:$0x1]
    %v5347 = vlaneseq
    %v5348 = vshrl.u32 %v5347, 7
    %v5349 = vsub.s32 0, %v5348
    %v5350 = vrot.slane %v5346, %v5349
    %v5355 = vunpack.c.l.b16 %v5342
    %v5356 = vunpack.c.l.b16 %v5343
    %v5357 = vunpack.c.l.b16 %v5344
    %v5358 = vunpack.c.l.b16 %v5345
    %v5359 = vpack.c.b16 %v5356, %v5355
    %v5360 = vpack.c.b16 %v5358, %v5357
    %v5364 = vsel %vm624, %v5338, 0
    %v5367 = vsel %vm624, %v5339, 0
    %v5370 = vsel %vm624, %v5340, 0
    %5372 = vmatprep.subr.bf16.mxu0 0
    %5373 = vmatpush1.bf16.msra.mxu0 0
    %5374 = vmatprep.subr.bf16.mxu0 0
    %5375 = vmatpush1.bf16.msra.mxu0 0
    %5376 = vmatprep.subr.bf16.mxu0 0
    %5377 = vmatpush1.bf16.msra.mxu0 0
    %5378 = vmatprep.subr.bf16.mxu0 0
    %5379 = vmatpush1.bf16.msra.mxu0 0
    %5380 = vmatprep.subr.bf16.mxu0 0
    %5381 = vmatpush1.bf16.msra.mxu0 0
    %5382 = vmatprep.subr.bf16.mxu0 0
    %5383 = vmatpush1.bf16.msra.mxu0 0
    %5384 = vmatprep.subr.bf16.mxu0 0
    %5385 = vmatpush1.bf16.msra.mxu0 %v5360
    %5386 = vmatprep.subr.bf16.mxu0 0
    %5387 = vmatpush1.bf16.msra.mxu0 %v5359
    %5388 = vmatprep.subr.bf16.mxu0 0
    %5389 = vmatpush2.bf16.msra.mxu0 0
    %5390 = vmatprep.subr.bf16.mxu0 0
    %5391 = vmatpush2.bf16.msra.mxu0 0
    %5392 = vmatprep.subr.bf16.mxu0 0
    %5393 = vmatpush2.bf16.msra.mxu0 0
    %5394 = vmatprep.subr.bf16.mxu0 0
    %5395 = vmatpush2.bf16.msra.mxu0 0
    %5396 = vmatprep.subr.bf16.mxu0 0
    %5397 = vmatpush2.bf16.msra.mxu0 0
    %5398 = vmatprep.subr.bf16.mxu0 0
    %5399 = vmatpush2.bf16.msra.mxu0 0
    %5400 = vmatprep.subr.bf16.mxu0 0
    %5401 = vmatpush2.bf16.msra.mxu0 0
    %5402 = vmatprep.subr.bf16.mxu0 0
    %5403 = vmatpush2.bf16.msra.mxu0 0
    %5404 = vmatprep.mubr.bf16.mxu0 0
    %5405 = vmatmul.mubr.bf16.gmra.mxu0 %v5364
    %v5406 = vpop.f32.mrf.mxu0
    %v5407 = vadd.f32 %v5350, %v5406
    %v5408 = vpop.f32.mrf.mxu0
    %v5409 = vpop.f32.mrf.mxu0
    %v5410 = vadd.f32 %v5350, %v5409
    %v5411 = vpop.f32.mrf.mxu0
    %5412 = vmatprep.mubr.bf16.mxu0 0
    %5413 = vmatmul.mubr.bf16.gmra.mxu0 %v5367
    %v5414 = vpop.f32.mrf.mxu0
    %v5415 = vadd.f32 %v5350, %v5414
    %v5416 = vpop.f32.mrf.mxu0
    %v5417 = vpop.f32.mrf.mxu0
    %v5418 = vadd.f32 %v5350, %v5417
    %v5419 = vpop.f32.mrf.mxu0
    %5420 = vmatprep.mubr.bf16.mxu0 0
    %5421 = vmatmul.mubr.bf16.gmra.mxu0 %v5370
    %v5422 = vpop.f32.mrf.mxu0
    %v5423 = vadd.f32 %v5350, %v5422
    %v5424 = vpop.f32.mrf.mxu0
    %v5425 = vpop.f32.mrf.mxu0
    %v5426 = vadd.f32 %v5350, %v5425
    %v5427 = vpop.f32.mrf.mxu0
    %5428 = vdwg.mxu0
    %s5429 = scalar_lea.vmem %s8, 48
    %v5430 = vld [vmem:[%s5429] sm:$0xf]
    %v5431 = vld [vmem:[%s5429 + $0x4] sm:$0xf]
    %v5432 = vld [vmem:[%s5429 + $0x8] sm:$0xf]
    %v5433 = vld [vmem:[%s5429 + $0xc] sm:$0xf]
    %v5434 = vld [vmem:[%s11 + $0x3] sm:$0x1]
    %v5435 = vlaneseq
    %v5436 = vshrl.u32 %v5435, 7
    %v5437 = vsub.s32 0, %v5436
    %v5438 = vrot.slane %v5434, %v5437
    %v5443 = vunpack.c.l.b16 %v5430
    %v5444 = vunpack.c.l.b16 %v5431
    %v5445 = vunpack.c.l.b16 %v5432
    %v5446 = vunpack.c.l.b16 %v5433
    %v5447 = vpack.c.b16 %v5444, %v5443
    %v5448 = vpack.c.b16 %v5446, %v5445
    %5451 = vmatprep.subr.bf16.mxu0 0
    %5452 = vmatpush1.bf16.msra.mxu0 0
    %5453 = vmatprep.subr.bf16.mxu0 0
    %5454 = vmatpush1.bf16.msra.mxu0 0
    %5455 = vmatprep.subr.bf16.mxu0 0
    %5456 = vmatpush1.bf16.msra.mxu0 0
    %5457 = vmatprep.subr.bf16.mxu0 0
    %5458 = vmatpush1.bf16.msra.mxu0 0
    %5459 = vmatprep.subr.bf16.mxu0 0
    %5460 = vmatpush1.bf16.msra.mxu0 0
    %5461 = vmatprep.subr.bf16.mxu0 0
    %5462 = vmatpush1.bf16.msra.mxu0 0
    %5463 = vmatprep.subr.bf16.mxu0 0
    %5464 = vmatpush1.bf16.msra.mxu0 %v5448
    %5465 = vmatprep.subr.bf16.mxu0 0
    %5466 = vmatpush1.bf16.msra.mxu0 %v5447
    %5467 = vmatprep.subr.bf16.mxu0 0
    %5468 = vmatpush2.bf16.msra.mxu0 0
    %5469 = vmatprep.subr.bf16.mxu0 0
    %5470 = vmatpush2.bf16.msra.mxu0 0
    %5471 = vmatprep.subr.bf16.mxu0 0
    %5472 = vmatpush2.bf16.msra.mxu0 0
    %5473 = vmatprep.subr.bf16.mxu0 0
    %5474 = vmatpush2.bf16.msra.mxu0 0
    %5475 = vmatprep.subr.bf16.mxu0 0
    %5476 = vmatpush2.bf16.msra.mxu0 0
    %5477 = vmatprep.subr.bf16.mxu0 0
    %5478 = vmatpush2.bf16.msra.mxu0 0
    %5479 = vmatprep.subr.bf16.mxu0 0
    %5480 = vmatpush2.bf16.msra.mxu0 0
    %5481 = vmatprep.subr.bf16.mxu0 0
    %5482 = vmatpush2.bf16.msra.mxu0 0
    %5483 = vmatprep.mubr.bf16.mxu0 0
    %5484 = vmatmul.mubr.bf16.gmra.mxu0 %v5364
    %v5485 = vpop.f32.mrf.mxu0
    %v5486 = vadd.f32 %v5438, %v5485
    %v5487 = vpop.f32.mrf.mxu0
    %v5488 = vpop.f32.mrf.mxu0
    %v5489 = vadd.f32 %v5438, %v5488
    %v5490 = vpop.f32.mrf.mxu0
    %5491 = vmatprep.mubr.bf16.mxu0 0
    %5492 = vmatmul.mubr.bf16.gmra.mxu0 %v5367
    %v5493 = vpop.f32.mrf.mxu0
    %v5494 = vadd.f32 %v5438, %v5493
    %v5495 = vpop.f32.mrf.mxu0
    %v5496 = vpop.f32.mrf.mxu0
    %v5497 = vadd.f32 %v5438, %v5496
    %v5498 = vpop.f32.mrf.mxu0
    %5499 = vmatprep.mubr.bf16.mxu0 0
    %5500 = vmatmul.mubr.bf16.gmra.mxu0 %v5370
    %v5501 = vpop.f32.mrf.mxu0
    %v5502 = vadd.f32 %v5438, %v5501
    %v5503 = vpop.f32.mrf.mxu0
    %v5504 = vpop.f32.mrf.mxu0
    %v5505 = vadd.f32 %v5438, %v5504
    %v5506 = vpop.f32.mrf.mxu0
    %5507 = vdwg.mxu0
    %s5508 = scalar_lea.vmem %s9, 48
    %v5509 = vld [vmem:[%s5508] sm:$0xf]
    %v5510 = vld [vmem:[%s5508 + $0x4] sm:$0xf]
    %v5511 = vld [vmem:[%s5508 + $0x8] sm:$0xf]
    %v5512 = vld [vmem:[%s5508 + $0xc] sm:$0xf]
    %v5513 = vld [vmem:[%s12 + $0x3] sm:$0x1]
    %v5514 = vlaneseq
    %v5515 = vshrl.u32 %v5514, 7
    %v5516 = vsub.s32 0, %v5515
    %v5517 = vrot.slane %v5513, %v5516
    %v5522 = vunpack.c.l.b16 %v5509
    %v5523 = vunpack.c.l.b16 %v5510
    %v5524 = vunpack.c.l.b16 %v5511
    %v5525 = vunpack.c.l.b16 %v5512
    %v5526 = vpack.c.b16 %v5523, %v5522
    %v5527 = vpack.c.b16 %v5525, %v5524
    %5530 = vmatprep.subr.bf16.mxu0 0
    %5531 = vmatpush1.bf16.msra.mxu0 0
    %5532 = vmatprep.subr.bf16.mxu0 0
    %5533 = vmatpush1.bf16.msra.mxu0 0
    %5534 = vmatprep.subr.bf16.mxu0 0
    %5535 = vmatpush1.bf16.msra.mxu0 0
    %5536 = vmatprep.subr.bf16.mxu0 0
    %5537 = vmatpush1.bf16.msra.mxu0 0
    %5538 = vmatprep.subr.bf16.mxu0 0
    %5539 = vmatpush1.bf16.msra.mxu0 0
    %5540 = vmatprep.subr.bf16.mxu0 0
    %5541 = vmatpush1.bf16.msra.mxu0 0
    %5542 = vmatprep.subr.bf16.mxu0 0
    %5543 = vmatpush1.bf16.msra.mxu0 %v5527
    %5544 = vmatprep.subr.bf16.mxu0 0
    %5545 = vmatpush1.bf16.msra.mxu0 %v5526
    %5546 = vmatprep.subr.bf16.mxu0 0
    %5547 = vmatpush2.bf16.msra.mxu0 0
    %5548 = vmatprep.subr.bf16.mxu0 0
    %5549 = vmatpush2.bf16.msra.mxu0 0
    %5550 = vmatprep.subr.bf16.mxu0 0
    %5551 = vmatpush2.bf16.msra.mxu0 0
    %5552 = vmatprep.subr.bf16.mxu0 0
    %5553 = vmatpush2.bf16.msra.mxu0 0
    %5554 = vmatprep.subr.bf16.mxu0 0
    %5555 = vmatpush2.bf16.msra.mxu0 0
    %5556 = vmatprep.subr.bf16.mxu0 0
    %5557 = vmatpush2.bf16.msra.mxu0 0
    %5558 = vmatprep.subr.bf16.mxu0 0
    %5559 = vmatpush2.bf16.msra.mxu0 0
    %5560 = vmatprep.subr.bf16.mxu0 0
    %5561 = vmatpush2.bf16.msra.mxu0 0
    %5562 = vmatprep.mubr.bf16.mxu0 0
    %5563 = vmatmul.mubr.bf16.gmra.mxu0 %v5364
    %v5564 = vpop.f32.mrf.mxu0
    %v5565 = vadd.f32 %v5517, %v5564
    %v5566 = vpop.f32.mrf.mxu0
    %v5567 = vpop.f32.mrf.mxu0
    %v5568 = vadd.f32 %v5517, %v5567
    %v5569 = vpop.f32.mrf.mxu0
    %5570 = vmatprep.mubr.bf16.mxu0 0
    %5571 = vmatmul.mubr.bf16.gmra.mxu0 %v5367
    %v5572 = vpop.f32.mrf.mxu0
    %v5573 = vadd.f32 %v5517, %v5572
    %v5574 = vpop.f32.mrf.mxu0
    %v5575 = vpop.f32.mrf.mxu0
    %v5576 = vadd.f32 %v5517, %v5575
    %v5577 = vpop.f32.mrf.mxu0
    %5578 = vmatprep.mubr.bf16.mxu0 0
    %5579 = vmatmul.mubr.bf16.gmra.mxu0 %v5370
    %v5580 = vpop.f32.mrf.mxu0
    %v5581 = vadd.f32 %v5517, %v5580
    %v5582 = vpop.f32.mrf.mxu0
    %v5583 = vpop.f32.mrf.mxu0
    %v5584 = vadd.f32 %v5517, %v5583
    %v5585 = vpop.f32.mrf.mxu0
    %5586 = vdwg.mxu0
    %v5587 = vpack.c.bf16 %v5410, %v5407
    %v5588 = vpack.c.bf16 %v5415, %v5415
    %v5589 = vpack.c.bf16 %v5423, %v5418
    %v5590 = vpack.c.bf16 %v5426, %v5426
    %v5591 = vpack.c.bf16 %v5489, %v5486
    %v5592 = vpack.c.bf16 %v5494, %v5494
    %v5593 = vpack.c.bf16 %v5502, %v5497
    %v5594 = vpack.c.bf16 %v5505, %v5505
    %v5595 = vpack.c.bf16 %v5568, %v5565
    %v5596 = vpack.c.bf16 %v5573, %v5573
    %v5597 = vpack.c.bf16 %v5581, %v5576
    %v5598 = vpack.c.bf16 %v5584, %v5584
    %v5600 = vsel %vm982, %v5587, 0
    %v5603 = vsel %vm982, %v5588, 0
    %v5606 = vsel %vm982, %v5591, 0
    %v5609 = vsel %vm982, %v5592, 0
    %5611 = vmatprep.subr.bf16.mxu0 0
    %5612 = vmatpush1.bf16.xpose.msra.mxu0 0
    %5613 = vmatprep.subr.bf16.mxu0 0
    %5614 = vmatpush1.bf16.xpose.msra.mxu0 0
    %5615 = vmatprep.subr.bf16.mxu0 0
    %5616 = vmatpush1.bf16.xpose.msra.mxu0 0
    %5617 = vmatprep.subr.bf16.mxu0 0
    %5618 = vmatpush1.bf16.xpose.msra.mxu0 0
    %5619 = vmatprep.subr.bf16.mxu0 0
    %5620 = vmatpush1.bf16.xpose.msra.mxu0 0
    %5621 = vmatprep.subr.bf16.mxu0 0
    %5622 = vmatpush1.bf16.xpose.msra.mxu0 0
    %5623 = vmatprep.subr.bf16.mxu0 0
    %5624 = vmatpush1.bf16.xpose.msra.mxu0 %v5609
    %5625 = vmatprep.subr.bf16.mxu0 0
    %5626 = vmatpush1.bf16.xpose.msra.mxu0 %v5606
    %5627 = vmatprep.subr.bf16.mxu0 0
    %5628 = vmatpush2.bf16.xpose.msra.mxu0 0
    %5629 = vmatprep.subr.bf16.mxu0 0
    %5630 = vmatpush2.bf16.xpose.msra.mxu0 0
    %5631 = vmatprep.subr.bf16.mxu0 0
    %5632 = vmatpush2.bf16.xpose.msra.mxu0 0
    %5633 = vmatprep.subr.bf16.mxu0 0
    %5634 = vmatpush2.bf16.xpose.msra.mxu0 0
    %5635 = vmatprep.subr.bf16.mxu0 0
    %5636 = vmatpush2.bf16.xpose.msra.mxu0 0
    %5637 = vmatprep.subr.bf16.mxu0 0
    %5638 = vmatpush2.bf16.xpose.msra.mxu0 0
    %5639 = vmatprep.subr.bf16.mxu0 0
    %5640 = vmatpush2.bf16.xpose.msra.mxu0 0
    %5641 = vmatprep.subr.bf16.mxu0 0
    %5642 = vmatpush2.bf16.xpose.msra.mxu0 0
    %5643 = vmatprep.mubr.bf16.mxu0 0
    %5644 = vmatmul.mubr.bf16.gmra.mxu0 %v5600
    %v5645 = vpop.f32.mrf.mxu0
    %v5646 = vadd.f32 0.0, %v5645
    %v5647 = vpop.f32.mrf.mxu0
    %v5648 = vpop.f32.mrf.mxu0
    %v5649 = vadd.f32 0.0, %v5648
    %v5650 = vpop.f32.mrf.mxu0
    %5651 = vmatprep.mubr.bf16.mxu0 0
    %5652 = vmatmul.mubr.bf16.gmra.mxu0 %v5603
    %v5653 = vpop.f32.mrf.mxu0
    %v5654 = vadd.f32 0.0, %v5653
    %v5655 = vpop.f32.mrf.mxu0
    %v5656 = vpop.f32.mrf.mxu0
    %v5657 = vpop.f32.mrf.mxu0
    %5658 = vdwg.mxu0
    %v5660 = vsel %vm982, %v5589, 0
    %v5663 = vsel %vm982, %v5590, 0
    %v5666 = vsel %vm982, %v5593, 0
    %v5669 = vsel %vm982, %v5594, 0
    %5671 = vmatprep.subr.bf16.mxu0 0
    %5672 = vmatpush1.bf16.xpose.msra.mxu0 0
    %5673 = vmatprep.subr.bf16.mxu0 0
    %5674 = vmatpush1.bf16.xpose.msra.mxu0 0
    %5675 = vmatprep.subr.bf16.mxu0 0
    %5676 = vmatpush1.bf16.xpose.msra.mxu0 0
    %5677 = vmatprep.subr.bf16.mxu0 0
    %5678 = vmatpush1.bf16.xpose.msra.mxu0 0
    %5679 = vmatprep.subr.bf16.mxu0 0
    %5680 = vmatpush1.bf16.xpose.msra.mxu0 0
    %5681 = vmatprep.subr.bf16.mxu0 0
    %5682 = vmatpush1.bf16.xpose.msra.mxu0 0
    %5683 = vmatprep.subr.bf16.mxu0 0
    %5684 = vmatpush1.bf16.xpose.msra.mxu0 %v5669
    %5685 = vmatprep.subr.bf16.mxu0 0
    %5686 = vmatpush1.bf16.xpose.msra.mxu0 %v5666
    %5687 = vmatprep.subr.bf16.mxu0 0
    %5688 = vmatpush2.bf16.xpose.msra.mxu0 0
    %5689 = vmatprep.subr.bf16.mxu0 0
    %5690 = vmatpush2.bf16.xpose.msra.mxu0 0
    %5691 = vmatprep.subr.bf16.mxu0 0
    %5692 = vmatpush2.bf16.xpose.msra.mxu0 0
    %5693 = vmatprep.subr.bf16.mxu0 0
    %5694 = vmatpush2.bf16.xpose.msra.mxu0 0
    %5695 = vmatprep.subr.bf16.mxu0 0
    %5696 = vmatpush2.bf16.xpose.msra.mxu0 0
    %5697 = vmatprep.subr.bf16.mxu0 0
    %5698 = vmatpush2.bf16.xpose.msra.mxu0 0
    %5699 = vmatprep.subr.bf16.mxu0 0
    %5700 = vmatpush2.bf16.xpose.msra.mxu0 0
    %5701 = vmatprep.subr.bf16.mxu0 0
    %5702 = vmatpush2.bf16.xpose.msra.mxu0 0
    %5703 = vmatprep.mubr.bf16.mxu0 0
    %5704 = vmatmul.mubr.bf16.gmra.mxu0 %v5660
    %v5705 = vpop.f32.mrf.mxu0
    %v5706 = vadd.f32 0.0, %v5705
    %v5707 = vpop.f32.mrf.mxu0
    %v5708 = vpop.f32.mrf.mxu0
    %v5709 = vadd.f32 0.0, %v5708
    %v5710 = vpop.f32.mrf.mxu0
    %5711 = vmatprep.mubr.bf16.mxu0 0
    %5712 = vmatmul.mubr.bf16.gmra.mxu0 %v5663
    %v5713 = vpop.f32.mrf.mxu0
    %v5714 = vadd.f32 0.0, %v5713
    %v5715 = vpop.f32.mrf.mxu0
    %v5716 = vpop.f32.mrf.mxu0
    %v5717 = vpop.f32.mrf.mxu0
    %5718 = vdwg.mxu0
    %v5719 = vmul.f32 %v5646, 0.25
    %v5720 = vmul.f32 %v5649, 0.25
    %v5721 = vmul.f32 %v5654, 0.25
    %v5722 = vmul.f32 %v5706, 0.25
    %v5723 = vmul.f32 %v5709, 0.25
    %v5724 = vmul.f32 %v5714, 0.25
    %v5725 = vadd.f32 %v5719, %v621
    %v5726 = vadd.f32 %v5720, %v621
    %v5727 = vadd.f32 %v5721, %v621
    %v5728 = vadd.f32 %v5722, %v621
    %v5729 = vadd.f32 %v5723, %v621
    %v5730 = vadd.f32 %v5724, %v621
    %v5731 = vsel %vm1115, %v5725, -inf
    %5732 = vmax.xlane.f32.xlu0 %v5731
    %v5733 = vpop.xlane.xlu0 %5732
    %v5734 = vsel %vm1115, %v5726, -inf
    %5735 = vmax.xlane.f32.xlu0 %v5734
    %v5736 = vpop.xlane.xlu0 %5735
    %v5737 = vsel %vm1115, %v5727, -inf
    %5738 = vmax.xlane.f32.xlu0 %v5737
    %v5739 = vpop.xlane.xlu0 %5738
    %v5740 = vsel %vm1115, %v5728, -inf
    %5741 = vmax.xlane.f32.xlu0 %v5740
    %v5742 = vpop.xlane.xlu0 %5741
    %v5743 = vsel %vm1115, %v5729, -inf
    %5744 = vmax.xlane.f32.xlu0 %v5743
    %v5745 = vpop.xlane.xlu0 %5744
    %v5746 = vsel %vm1115, %v5730, -inf
    %5747 = vmax.xlane.f32.xlu0 %v5746
    %v5748 = vpop.xlane.xlu0 %5747
    %v5749 = vsub.f32 %v5725, %v5733
    %v5750 = vsub.f32 %v5726, %v5736
    %v5751 = vsub.f32 %v5727, %v5739
    %v5752 = vsub.f32 %v5728, %v5742
    %v5753 = vsub.f32 %v5729, %v5745
    %v5754 = vsub.f32 %v5730, %v5748
    %v5755 = vmul.f32 %v5749, 1.442695
    %v5756 = vpow.pop %v5755
    %v5757 = vmul.f32 %v5750, 1.442695
    %v5758 = vpow.pop %v5757
    %v5759 = vmul.f32 %v5751, 1.442695
    %v5760 = vpow.pop %v5759
    %v5761 = vmul.f32 %v5752, 1.442695
    %v5762 = vpow.pop %v5761
    %v5763 = vmul.f32 %v5753, 1.442695
    %v5764 = vpow.pop %v5763
    %v5765 = vmul.f32 %v5754, 1.442695
    %v5766 = vpow.pop %v5765
    %v5767 = vsel %vm1115, %v5756, 0.0
    %5768 = vadd.xlane.f32.xlu0 %v5767
    %v5769 = vpop.xlane.xlu0 %5768
    %v5770 = vsel %vm1115, %v5758, 0.0
    %5771 = vadd.xlane.f32.xlu0 %v5770
    %v5772 = vpop.xlane.xlu0 %5771
    %v5773 = vsel %vm1115, %v5760, 0.0
    %5774 = vadd.xlane.f32.xlu0 %v5773
    %v5775 = vpop.xlane.xlu0 %5774
    %v5776 = vsel %vm1115, %v5762, 0.0
    %5777 = vadd.xlane.f32.xlu0 %v5776
    %v5778 = vpop.xlane.xlu0 %5777
    %v5779 = vsel %vm1115, %v5764, 0.0
    %5780 = vadd.xlane.f32.xlu0 %v5779
    %v5781 = vpop.xlane.xlu0 %5780
    %v5782 = vsel %vm1115, %v5766, 0.0
    %5783 = vadd.xlane.f32.xlu0 %v5782
    %v5784 = vpop.xlane.xlu0 %5783
    %v5785 = vrcp.pop %v5769
    %v5786 = vrcp.pop %v5772
    %v5787 = vrcp.pop %v5775
    %v5788 = vrcp.pop %v5778
    %v5789 = vrcp.pop %v5781
    %v5790 = vrcp.pop %v5784
    %v5791 = vmul.f32 %v5756, %v5785
    %v5792 = vmul.f32 %v5758, %v5786
    %v5793 = vmul.f32 %v5760, %v5787
    %v5794 = vmul.f32 %v5762, %v5788
    %v5795 = vmul.f32 %v5764, %v5789
    %v5796 = vmul.f32 %v5766, %v5790
    %v5797 = vpack.c.bf16 %v5792, %v5791
    %v5798 = vpack.c.bf16 %v5793, %v5793
    %v5799 = vpack.c.bf16 %v5795, %v5794
    %v5800 = vpack.c.bf16 %v5796, %v5796
    %v5802 = vsel %vm1115, %v5797, 0
    %v5805 = vsel %vm1115, %v5798, 0
    %v5808 = vsel %vm1192, %v5596, 0
    %5810 = vmatprep.subr.bf16.mxu0 0
    %5811 = vmatpush1.bf16.msra.mxu0 0
    %5812 = vmatprep.subr.bf16.mxu0 0
    %5813 = vmatpush1.bf16.msra.mxu0 0
    %5814 = vmatprep.subr.bf16.mxu0 0
    %5815 = vmatpush1.bf16.msra.mxu0 0
    %5816 = vmatprep.subr.bf16.mxu0 0
    %5817 = vmatpush1.bf16.msra.mxu0 0
    %5818 = vmatprep.subr.bf16.mxu0 0
    %5819 = vmatpush1.bf16.msra.mxu0 0
    %5820 = vmatprep.subr.bf16.mxu0 0
    %5821 = vmatpush1.bf16.msra.mxu0 0
    %5822 = vmatprep.subr.bf16.mxu0 0
    %5823 = vmatpush1.bf16.msra.mxu0 %v5808
    %5824 = vmatprep.subr.bf16.mxu0 0
    %5825 = vmatpush1.bf16.msra.mxu0 %v5595
    %5826 = vmatprep.subr.bf16.mxu0 0
    %5827 = vmatpush2.bf16.msra.mxu0 0
    %5828 = vmatprep.subr.bf16.mxu0 0
    %5829 = vmatpush2.bf16.msra.mxu0 0
    %5830 = vmatprep.subr.bf16.mxu0 0
    %5831 = vmatpush2.bf16.msra.mxu0 0
    %5832 = vmatprep.subr.bf16.mxu0 0
    %5833 = vmatpush2.bf16.msra.mxu0 0
    %5834 = vmatprep.subr.bf16.mxu0 0
    %5835 = vmatpush2.bf16.msra.mxu0 0
    %5836 = vmatprep.subr.bf16.mxu0 0
    %5837 = vmatpush2.bf16.msra.mxu0 0
    %5838 = vmatprep.subr.bf16.mxu0 0
    %5839 = vmatpush2.bf16.msra.mxu0 0
    %5840 = vmatprep.subr.bf16.mxu0 0
    %5841 = vmatpush2.bf16.msra.mxu0 0
    %5842 = vmatprep.mubr.bf16.mxu0 0
    %5843 = vmatmul.mubr.bf16.gmra.mxu0 %v5802
    %v5844 = vpop.f32.mrf.mxu0
    %v5845 = vadd.f32 0.0, %v5844
    %v5846 = vpop.f32.mrf.mxu0
    %v5847 = vpop.f32.mrf.mxu0
    %v5848 = vadd.f32 0.0, %v5847
    %v5849 = vpop.f32.mrf.mxu0
    %5850 = vmatprep.mubr.bf16.mxu0 0
    %5851 = vmatmul.mubr.bf16.gmra.mxu0 %v5805
    %v5852 = vpop.f32.mrf.mxu0
    %v5853 = vadd.f32 0.0, %v5852
    %v5854 = vpop.f32.mrf.mxu0
    %v5855 = vpop.f32.mrf.mxu0
    %v5856 = vpop.f32.mrf.mxu0
    %5857 = vdwg.mxu0
    %v5859 = vsel %vm1115, %v5799, 0
    %v5862 = vsel %vm1115, %v5800, 0
    %v5865 = vsel %vm1192, %v5598, 0
    %5867 = vmatprep.subr.bf16.mxu0 0
    %5868 = vmatpush1.bf16.msra.mxu0 0
    %5869 = vmatprep.subr.bf16.mxu0 0
    %5870 = vmatpush1.bf16.msra.mxu0 0
    %5871 = vmatprep.subr.bf16.mxu0 0
    %5872 = vmatpush1.bf16.msra.mxu0 0
    %5873 = vmatprep.subr.bf16.mxu0 0
    %5874 = vmatpush1.bf16.msra.mxu0 0
    %5875 = vmatprep.subr.bf16.mxu0 0
    %5876 = vmatpush1.bf16.msra.mxu0 0
    %5877 = vmatprep.subr.bf16.mxu0 0
    %5878 = vmatpush1.bf16.msra.mxu0 0
    %5879 = vmatprep.subr.bf16.mxu0 0
    %5880 = vmatpush1.bf16.msra.mxu0 %v5865
    %5881 = vmatprep.subr.bf16.mxu0 0
    %5882 = vmatpush1.bf16.msra.mxu0 %v5597
    %5883 = vmatprep.subr.bf16.mxu0 0
    %5884 = vmatpush2.bf16.msra.mxu0 0
    %5885 = vmatprep.subr.bf16.mxu0 0
    %5886 = vmatpush2.bf16.msra.mxu0 0
    %5887 = vmatprep.subr.bf16.mxu0 0
    %5888 = vmatpush2.bf16.msra.mxu0 0
    %5889 = vmatprep.subr.bf16.mxu0 0
    %5890 = vmatpush2.bf16.msra.mxu0 0
    %5891 = vmatprep.subr.bf16.mxu0 0
    %5892 = vmatpush2.bf16.msra.mxu0 0
    %5893 = vmatprep.subr.bf16.mxu0 0
    %5894 = vmatpush2.bf16.msra.mxu0 0
    %5895 = vmatprep.subr.bf16.mxu0 0
    %5896 = vmatpush2.bf16.msra.mxu0 0
    %5897 = vmatprep.subr.bf16.mxu0 0
    %5898 = vmatpush2.bf16.msra.mxu0 0
    %5899 = vmatprep.mubr.bf16.mxu0 0
    %5900 = vmatmul.mubr.bf16.gmra.mxu0 %v5859
    %v5901 = vpop.f32.mrf.mxu0
    %v5902 = vadd.f32 0.0, %v5901
    %v5903 = vpop.f32.mrf.mxu0
    %v5904 = vpop.f32.mrf.mxu0
    %v5905 = vadd.f32 0.0, %v5904
    %v5906 = vpop.f32.mrf.mxu0
    %5907 = vmatprep.mubr.bf16.mxu0 0
    %5908 = vmatmul.mubr.bf16.gmra.mxu0 %v5862
    %v5909 = vpop.f32.mrf.mxu0
    %v5910 = vadd.f32 0.0, %v5909
    %v5911 = vpop.f32.mrf.mxu0
    %v5912 = vpop.f32.mrf.mxu0
    %v5913 = vpop.f32.mrf.mxu0
    %5914 = vdwg.mxu0
    %5917 = vrot.lane.b32.xlu0 %v5587, 112
    %v5918 = vpop.permute.xlu0 %5917
    %5919 = vrot.lane.b32.xlu0 %v5588, 112
    %v5920 = vpop.permute.xlu0 %5919
    %5923 = vrot.lane.b32.xlu0 %v5591, 112
    %v5924 = vpop.permute.xlu0 %5923
    %5925 = vrot.lane.b32.xlu0 %v5592, 112
    %v5926 = vpop.permute.xlu0 %5925
    %v5928 = vsel %vm982, %v5918, 0
    %v5931 = vsel %vm982, %v5920, 0
    %v5934 = vsel %vm982, %v5924, 0
    %v5937 = vsel %vm982, %v5926, 0
    %5939 = vmatprep.subr.bf16.mxu0 0
    %5940 = vmatpush1.bf16.xpose.msra.mxu0 0
    %5941 = vmatprep.subr.bf16.mxu0 0
    %5942 = vmatpush1.bf16.xpose.msra.mxu0 0
    %5943 = vmatprep.subr.bf16.mxu0 0
    %5944 = vmatpush1.bf16.xpose.msra.mxu0 0
    %5945 = vmatprep.subr.bf16.mxu0 0
    %5946 = vmatpush1.bf16.xpose.msra.mxu0 0
    %5947 = vmatprep.subr.bf16.mxu0 0
    %5948 = vmatpush1.bf16.xpose.msra.mxu0 0
    %5949 = vmatprep.subr.bf16.mxu0 0
    %5950 = vmatpush1.bf16.xpose.msra.mxu0 0
    %5951 = vmatprep.subr.bf16.mxu0 0
    %5952 = vmatpush1.bf16.xpose.msra.mxu0 %v5937
    %5953 = vmatprep.subr.bf16.mxu0 0
    %5954 = vmatpush1.bf16.xpose.msra.mxu0 %v5934
    %5955 = vmatprep.subr.bf16.mxu0 0
    %5956 = vmatpush2.bf16.xpose.msra.mxu0 0
    %5957 = vmatprep.subr.bf16.mxu0 0
    %5958 = vmatpush2.bf16.xpose.msra.mxu0 0
    %5959 = vmatprep.subr.bf16.mxu0 0
    %5960 = vmatpush2.bf16.xpose.msra.mxu0 0
    %5961 = vmatprep.subr.bf16.mxu0 0
    %5962 = vmatpush2.bf16.xpose.msra.mxu0 0
    %5963 = vmatprep.subr.bf16.mxu0 0
    %5964 = vmatpush2.bf16.xpose.msra.mxu0 0
    %5965 = vmatprep.subr.bf16.mxu0 0
    %5966 = vmatpush2.bf16.xpose.msra.mxu0 0
    %5967 = vmatprep.subr.bf16.mxu0 0
    %5968 = vmatpush2.bf16.xpose.msra.mxu0 0
    %5969 = vmatprep.subr.bf16.mxu0 0
    %5970 = vmatpush2.bf16.xpose.msra.mxu0 0
    %5971 = vmatprep.mubr.bf16.mxu0 0
    %5972 = vmatmul.mubr.bf16.gmra.mxu0 %v5928
    %v5973 = vpop.f32.mrf.mxu0
    %v5974 = vadd.f32 0.0, %v5973
    %v5975 = vpop.f32.mrf.mxu0
    %v5976 = vpop.f32.mrf.mxu0
    %v5977 = vadd.f32 0.0, %v5976
    %v5978 = vpop.f32.mrf.mxu0
    %5979 = vmatprep.mubr.bf16.mxu0 0
    %5980 = vmatmul.mubr.bf16.gmra.mxu0 %v5931
    %v5981 = vpop.f32.mrf.mxu0
    %v5982 = vadd.f32 0.0, %v5981
    %v5983 = vpop.f32.mrf.mxu0
    %v5984 = vpop.f32.mrf.mxu0
    %v5985 = vpop.f32.mrf.mxu0
    %5986 = vdwg.mxu0
    %5989 = vrot.lane.b32.xlu0 %v5589, 112
    %v5990 = vpop.permute.xlu0 %5989
    %5991 = vrot.lane.b32.xlu0 %v5590, 112
    %v5992 = vpop.permute.xlu0 %5991
    %5995 = vrot.lane.b32.xlu0 %v5593, 112
    %v5996 = vpop.permute.xlu0 %5995
    %5997 = vrot.lane.b32.xlu0 %v5594, 112
    %v5998 = vpop.permute.xlu0 %5997
    %v6000 = vsel %vm982, %v5990, 0
    %v6003 = vsel %vm982, %v5992, 0
    %v6006 = vsel %vm982, %v5996, 0
    %v6009 = vsel %vm982, %v5998, 0
    %6011 = vmatprep.subr.bf16.mxu0 0
    %6012 = vmatpush1.bf16.xpose.msra.mxu0 0
    %6013 = vmatprep.subr.bf16.mxu0 0
    %6014 = vmatpush1.bf16.xpose.msra.mxu0 0
    %6015 = vmatprep.subr.bf16.mxu0 0
    %6016 = vmatpush1.bf16.xpose.msra.mxu0 0
    %6017 = vmatprep.subr.bf16.mxu0 0
    %6018 = vmatpush1.bf16.xpose.msra.mxu0 0
    %6019 = vmatprep.subr.bf16.mxu0 0
    %6020 = vmatpush1.bf16.xpose.msra.mxu0 0
    %6021 = vmatprep.subr.bf16.mxu0 0
    %6022 = vmatpush1.bf16.xpose.msra.mxu0 0
    %6023 = vmatprep.subr.bf16.mxu0 0
    %6024 = vmatpush1.bf16.xpose.msra.mxu0 %v6009
    %6025 = vmatprep.subr.bf16.mxu0 0
    %6026 = vmatpush1.bf16.xpose.msra.mxu0 %v6006
    %6027 = vmatprep.subr.bf16.mxu0 0
    %6028 = vmatpush2.bf16.xpose.msra.mxu0 0
    %6029 = vmatprep.subr.bf16.mxu0 0
    %6030 = vmatpush2.bf16.xpose.msra.mxu0 0
    %6031 = vmatprep.subr.bf16.mxu0 0
    %6032 = vmatpush2.bf16.xpose.msra.mxu0 0
    %6033 = vmatprep.subr.bf16.mxu0 0
    %6034 = vmatpush2.bf16.xpose.msra.mxu0 0
    %6035 = vmatprep.subr.bf16.mxu0 0
    %6036 = vmatpush2.bf16.xpose.msra.mxu0 0
    %6037 = vmatprep.subr.bf16.mxu0 0
    %6038 = vmatpush2.bf16.xpose.msra.mxu0 0
    %6039 = vmatprep.subr.bf16.mxu0 0
    %6040 = vmatpush2.bf16.xpose.msra.mxu0 0
    %6041 = vmatprep.subr.bf16.mxu0 0
    %6042 = vmatpush2.bf16.xpose.msra.mxu0 0
    %6043 = vmatprep.mubr.bf16.mxu0 0
    %6044 = vmatmul.mubr.bf16.gmra.mxu0 %v6000
    %v6045 = vpop.f32.mrf.mxu0
    %v6046 = vadd.f32 0.0, %v6045
    %v6047 = vpop.f32.mrf.mxu0
    %v6048 = vpop.f32.mrf.mxu0
    %v6049 = vadd.f32 0.0, %v6048
    %v6050 = vpop.f32.mrf.mxu0
    %6051 = vmatprep.mubr.bf16.mxu0 0
    %6052 = vmatmul.mubr.bf16.gmra.mxu0 %v6003
    %v6053 = vpop.f32.mrf.mxu0
    %v6054 = vadd.f32 0.0, %v6053
    %v6055 = vpop.f32.mrf.mxu0
    %v6056 = vpop.f32.mrf.mxu0
    %v6057 = vpop.f32.mrf.mxu0
    %6058 = vdwg.mxu0
    %v6059 = vmul.f32 %v5974, 0.25
    %v6060 = vmul.f32 %v5977, 0.25
    %v6061 = vmul.f32 %v5982, 0.25
    %v6062 = vmul.f32 %v6046, 0.25
    %v6063 = vmul.f32 %v6049, 0.25
    %v6064 = vmul.f32 %v6054, 0.25
    %v6065 = vadd.f32 %v6059, %v621
    %v6066 = vadd.f32 %v6060, %v621
    %v6067 = vadd.f32 %v6061, %v621
    %v6068 = vadd.f32 %v6062, %v621
    %v6069 = vadd.f32 %v6063, %v621
    %v6070 = vadd.f32 %v6064, %v621
    %v6071 = vsel %vm1115, %v6065, -inf
    %6072 = vmax.xlane.f32.xlu0 %v6071
    %v6073 = vpop.xlane.xlu0 %6072
    %v6074 = vsel %vm1115, %v6066, -inf
    %6075 = vmax.xlane.f32.xlu0 %v6074
    %v6076 = vpop.xlane.xlu0 %6075
    %v6077 = vsel %vm1115, %v6067, -inf
    %6078 = vmax.xlane.f32.xlu0 %v6077
    %v6079 = vpop.xlane.xlu0 %6078
    %v6080 = vsel %vm1115, %v6068, -inf
    %6081 = vmax.xlane.f32.xlu0 %v6080
    %v6082 = vpop.xlane.xlu0 %6081
    %v6083 = vsel %vm1115, %v6069, -inf
    %6084 = vmax.xlane.f32.xlu0 %v6083
    %v6085 = vpop.xlane.xlu0 %6084
    %v6086 = vsel %vm1115, %v6070, -inf
    %6087 = vmax.xlane.f32.xlu0 %v6086
    %v6088 = vpop.xlane.xlu0 %6087
    %v6089 = vsub.f32 %v6065, %v6073
    %v6090 = vsub.f32 %v6066, %v6076
    %v6091 = vsub.f32 %v6067, %v6079
    %v6092 = vsub.f32 %v6068, %v6082
    %v6093 = vsub.f32 %v6069, %v6085
    %v6094 = vsub.f32 %v6070, %v6088
    %v6095 = vmul.f32 %v6089, 1.442695
    %v6096 = vpow.pop %v6095
    %v6097 = vmul.f32 %v6090, 1.442695
    %v6098 = vpow.pop %v6097
    %v6099 = vmul.f32 %v6091, 1.442695
    %v6100 = vpow.pop %v6099
    %v6101 = vmul.f32 %v6092, 1.442695
    %v6102 = vpow.pop %v6101
    %v6103 = vmul.f32 %v6093, 1.442695
    %v6104 = vpow.pop %v6103
    %v6105 = vmul.f32 %v6094, 1.442695
    %v6106 = vpow.pop %v6105
    %v6107 = vsel %vm1115, %v6096, 0.0
    %6108 = vadd.xlane.f32.xlu0 %v6107
    %v6109 = vpop.xlane.xlu0 %6108
    %v6110 = vsel %vm1115, %v6098, 0.0
    %6111 = vadd.xlane.f32.xlu0 %v6110
    %v6112 = vpop.xlane.xlu0 %6111
    %v6113 = vsel %vm1115, %v6100, 0.0
    %6114 = vadd.xlane.f32.xlu0 %v6113
    %v6115 = vpop.xlane.xlu0 %6114
    %v6116 = vsel %vm1115, %v6102, 0.0
    %6117 = vadd.xlane.f32.xlu0 %v6116
    %v6118 = vpop.xlane.xlu0 %6117
    %v6119 = vsel %vm1115, %v6104, 0.0
    %6120 = vadd.xlane.f32.xlu0 %v6119
    %v6121 = vpop.xlane.xlu0 %6120
    %v6122 = vsel %vm1115, %v6106, 0.0
    %6123 = vadd.xlane.f32.xlu0 %v6122
    %v6124 = vpop.xlane.xlu0 %6123
    %v6125 = vrcp.pop %v6109
    %v6126 = vrcp.pop %v6112
    %v6127 = vrcp.pop %v6115
    %v6128 = vrcp.pop %v6118
    %v6129 = vrcp.pop %v6121
    %v6130 = vrcp.pop %v6124
    %v6131 = vmul.f32 %v6096, %v6125
    %v6132 = vmul.f32 %v6098, %v6126
    %v6133 = vmul.f32 %v6100, %v6127
    %v6134 = vmul.f32 %v6102, %v6128
    %v6135 = vmul.f32 %v6104, %v6129
    %v6136 = vmul.f32 %v6106, %v6130
    %v6137 = vpack.c.bf16 %v6132, %v6131
    %v6138 = vpack.c.bf16 %v6133, %v6133
    %v6139 = vpack.c.bf16 %v6135, %v6134
    %v6140 = vpack.c.bf16 %v6136, %v6136
    %6143 = vrot.lane.b32.xlu0 %v5595, 112
    %v6144 = vpop.permute.xlu0 %6143
    %6145 = vrot.lane.b32.xlu0 %v5596, 112
    %v6146 = vpop.permute.xlu0 %6145
    %v6149 = vsel %vm1115, %v6137, 0
    %v6152 = vsel %vm1115, %v6138, 0
    %v6155 = vsel %vm1192, %v6146, 0
    %6157 = vmatprep.subr.bf16.mxu0 0
    %6158 = vmatpush1.bf16.msra.mxu0 0
    %6159 = vmatprep.subr.bf16.mxu0 0
    %6160 = vmatpush1.bf16.msra.mxu0 0
    %6161 = vmatprep.subr.bf16.mxu0 0
    %6162 = vmatpush1.bf16.msra.mxu0 0
    %6163 = vmatprep.subr.bf16.mxu0 0
    %6164 = vmatpush1.bf16.msra.mxu0 0
    %6165 = vmatprep.subr.bf16.mxu0 0
    %6166 = vmatpush1.bf16.msra.mxu0 0
    %6167 = vmatprep.subr.bf16.mxu0 0
    %6168 = vmatpush1.bf16.msra.mxu0 0
    %6169 = vmatprep.subr.bf16.mxu0 0
    %6170 = vmatpush1.bf16.msra.mxu0 %v6155
    %6171 = vmatprep.subr.bf16.mxu0 0
    %6172 = vmatpush1.bf16.msra.mxu0 %v6144
    %6173 = vmatprep.subr.bf16.mxu0 0
    %6174 = vmatpush2.bf16.msra.mxu0 0
    %6175 = vmatprep.subr.bf16.mxu0 0
    %6176 = vmatpush2.bf16.msra.mxu0 0
    %6177 = vmatprep.subr.bf16.mxu0 0
    %6178 = vmatpush2.bf16.msra.mxu0 0
    %6179 = vmatprep.subr.bf16.mxu0 0
    %6180 = vmatpush2.bf16.msra.mxu0 0
    %6181 = vmatprep.subr.bf16.mxu0 0
    %6182 = vmatpush2.bf16.msra.mxu0 0
    %6183 = vmatprep.subr.bf16.mxu0 0
    %6184 = vmatpush2.bf16.msra.mxu0 0
    %6185 = vmatprep.subr.bf16.mxu0 0
    %6186 = vmatpush2.bf16.msra.mxu0 0
    %6187 = vmatprep.subr.bf16.mxu0 0
    %6188 = vmatpush2.bf16.msra.mxu0 0
    %6189 = vmatprep.mubr.bf16.mxu0 0
    %6190 = vmatmul.mubr.bf16.gmra.mxu0 %v6149
    %v6191 = vpop.f32.mrf.mxu0
    %v6192 = vadd.f32 0.0, %v6191
    %v6193 = vpop.f32.mrf.mxu0
    %v6194 = vpop.f32.mrf.mxu0
    %v6195 = vadd.f32 0.0, %v6194
    %v6196 = vpop.f32.mrf.mxu0
    %6197 = vmatprep.mubr.bf16.mxu0 0
    %6198 = vmatmul.mubr.bf16.gmra.mxu0 %v6152
    %v6199 = vpop.f32.mrf.mxu0
    %v6200 = vadd.f32 0.0, %v6199
    %v6201 = vpop.f32.mrf.mxu0
    %v6202 = vpop.f32.mrf.mxu0
    %v6203 = vpop.f32.mrf.mxu0
    %6204 = vdwg.mxu0
    %6207 = vrot.lane.b32.xlu0 %v5597, 112
    %v6208 = vpop.permute.xlu0 %6207
    %6209 = vrot.lane.b32.xlu0 %v5598, 112
    %v6210 = vpop.permute.xlu0 %6209
    %v6213 = vsel %vm1115, %v6139, 0
    %v6216 = vsel %vm1115, %v6140, 0
    %v6219 = vsel %vm1192, %v6210, 0
    %6221 = vmatprep.subr.bf16.mxu0 0
    %6222 = vmatpush1.bf16.msra.mxu0 0
    %6223 = vmatprep.subr.bf16.mxu0 0
    %6224 = vmatpush1.bf16.msra.mxu0 0
    %6225 = vmatprep.subr.bf16.mxu0 0
    %6226 = vmatpush1.bf16.msra.mxu0 0
    %6227 = vmatprep.subr.bf16.mxu0 0
    %6228 = vmatpush1.bf16.msra.mxu0 0
    %6229 = vmatprep.subr.bf16.mxu0 0
    %6230 = vmatpush1.bf16.msra.mxu0 0
    %6231 = vmatprep.subr.bf16.mxu0 0
    %6232 = vmatpush1.bf16.msra.mxu0 0
    %6233 = vmatprep.subr.bf16.mxu0 0
    %6234 = vmatpush1.bf16.msra.mxu0 %v6219
    %6235 = vmatprep.subr.bf16.mxu0 0
    %6236 = vmatpush1.bf16.msra.mxu0 %v6208
    %6237 = vmatprep.subr.bf16.mxu0 0
    %6238 = vmatpush2.bf16.msra.mxu0 0
    %6239 = vmatprep.subr.bf16.mxu0 0
    %6240 = vmatpush2.bf16.msra.mxu0 0
    %6241 = vmatprep.subr.bf16.mxu0 0
    %6242 = vmatpush2.bf16.msra.mxu0 0
    %6243 = vmatprep.subr.bf16.mxu0 0
    %6244 = vmatpush2.bf16.msra.mxu0 0
    %6245 = vmatprep.subr.bf16.mxu0 0
    %6246 = vmatpush2.bf16.msra.mxu0 0
    %6247 = vmatprep.subr.bf16.mxu0 0
    %6248 = vmatpush2.bf16.msra.mxu0 0
    %6249 = vmatprep.subr.bf16.mxu0 0
    %6250 = vmatpush2.bf16.msra.mxu0 0
    %6251 = vmatprep.subr.bf16.mxu0 0
    %6252 = vmatpush2.bf16.msra.mxu0 0
    %6253 = vmatprep.mubr.bf16.mxu0 0
    %6254 = vmatmul.mubr.bf16.gmra.mxu0 %v6213
    %v6255 = vpop.f32.mrf.mxu0
    %v6256 = vadd.f32 0.0, %v6255
    %v6257 = vpop.f32.mrf.mxu0
    %v6258 = vpop.f32.mrf.mxu0
    %v6259 = vadd.f32 0.0, %v6258
    %v6260 = vpop.f32.mrf.mxu0
    %6261 = vmatprep.mubr.bf16.mxu0 0
    %6262 = vmatmul.mubr.bf16.gmra.mxu0 %v6216
    %v6263 = vpop.f32.mrf.mxu0
    %v6264 = vadd.f32 0.0, %v6263
    %v6265 = vpop.f32.mrf.mxu0
    %v6266 = vpop.f32.mrf.mxu0
    %v6267 = vpop.f32.mrf.mxu0
    %6268 = vdwg.mxu0
    %6275 = vrot.lane.b32.xlu0 %v6192, 16
    %v6276 = vpop.permute.xlu0 %6275
    %6277 = vrot.lane.b32.xlu0 %v6195, 16
    %v6278 = vpop.permute.xlu0 %6277
    %6279 = vrot.lane.b32.xlu0 %v6200, 16
    %v6280 = vpop.permute.xlu0 %6279
    %6281 = vrot.lane.b32.xlu0 %v6256, 16
    %v6282 = vpop.permute.xlu0 %6281
    %6283 = vrot.lane.b32.xlu0 %v6259, 16
    %v6284 = vpop.permute.xlu0 %6283
    %6285 = vrot.lane.b32.xlu0 %v6264, 16
    %v6286 = vpop.permute.xlu0 %6285
    %v6293 = vsel %vm982, %v5845, %v6276
    %v6294 = vsel %vm982, %v5848, %v6278
    %v6295 = vsel %vm982, %v5853, %v6280
    %v6296 = vsel %vm982, %v5902, %v6282
    %v6297 = vsel %vm982, %v5905, %v6284
    %v6298 = vsel %vm982, %v5910, %v6286
    %v6299 = vpack.c.bf16 %v6294, %v6293
    %v6300 = vpack.c.bf16 %v6296, %v6295
    %v6301 = vpack.c.bf16 %v6298, %v6297
    %s6302 = scalar_lea.vmem %s13, 48
    %v6303 = vld [vmem:[%s6302] sm:$0xf]
    %v6304 = vld [vmem:[%s6302 + $0x4] sm:$0xf]
    %v6305 = vld [vmem:[%s6302 + $0x8] sm:$0xf]
    %v6306 = vld [vmem:[%s6302 + $0xc] sm:$0xf]
    %v6307 = vld [vmem:[%s14 + $0x3] sm:$0x1]
    %v6308 = vlaneseq
    %v6309 = vshrl.u32 %v6308, 7
    %v6310 = vsub.s32 0, %v6309
    %v6311 = vrot.slane %v6307, %v6310
    %v6316 = vunpack.c.l.b16 %v6303
    %v6317 = vunpack.c.l.b16 %v6304
    %v6318 = vunpack.c.l.b16 %v6305
    %v6319 = vunpack.c.l.b16 %v6306
    %v6320 = vpack.c.b16 %v6317, %v6316
    %v6321 = vpack.c.b16 %v6319, %v6318
    %v6325 = vsel %vm624, %v6299, 0
    %v6328 = vsel %vm624, %v6300, 0
    %v6331 = vsel %vm624, %v6301, 0
    %6333 = vmatprep.subr.bf16.mxu0 0
    %6334 = vmatpush1.bf16.msra.mxu0 0
    %6335 = vmatprep.subr.bf16.mxu0 0
    %6336 = vmatpush1.bf16.msra.mxu0 0
    %6337 = vmatprep.subr.bf16.mxu0 0
    %6338 = vmatpush1.bf16.msra.mxu0 0
    %6339 = vmatprep.subr.bf16.mxu0 0
    %6340 = vmatpush1.bf16.msra.mxu0 0
    %6341 = vmatprep.subr.bf16.mxu0 0
    %6342 = vmatpush1.bf16.msra.mxu0 0
    %6343 = vmatprep.subr.bf16.mxu0 0
    %6344 = vmatpush1.bf16.msra.mxu0 0
    %6345 = vmatprep.subr.bf16.mxu0 0
    %6346 = vmatpush1.bf16.msra.mxu0 %v6321
    %6347 = vmatprep.subr.bf16.mxu0 0
    %6348 = vmatpush1.bf16.msra.mxu0 %v6320
    %6349 = vmatprep.subr.bf16.mxu0 0
    %6350 = vmatpush2.bf16.msra.mxu0 0
    %6351 = vmatprep.subr.bf16.mxu0 0
    %6352 = vmatpush2.bf16.msra.mxu0 0
    %6353 = vmatprep.subr.bf16.mxu0 0
    %6354 = vmatpush2.bf16.msra.mxu0 0
    %6355 = vmatprep.subr.bf16.mxu0 0
    %6356 = vmatpush2.bf16.msra.mxu0 0
    %6357 = vmatprep.subr.bf16.mxu0 0
    %6358 = vmatpush2.bf16.msra.mxu0 0
    %6359 = vmatprep.subr.bf16.mxu0 0
    %6360 = vmatpush2.bf16.msra.mxu0 0
    %6361 = vmatprep.subr.bf16.mxu0 0
    %6362 = vmatpush2.bf16.msra.mxu0 0
    %6363 = vmatprep.subr.bf16.mxu0 0
    %6364 = vmatpush2.bf16.msra.mxu0 0
    %6365 = vmatprep.mubr.bf16.mxu0 0
    %6366 = vmatmul.mubr.bf16.gmra.mxu0 %v6325
    %v6367 = vpop.f32.mrf.mxu0
    %v6368 = vadd.f32 %v6311, %v6367
    %v6369 = vpop.f32.mrf.mxu0
    %v6370 = vpop.f32.mrf.mxu0
    %v6371 = vadd.f32 %v6311, %v6370
    %v6372 = vpop.f32.mrf.mxu0
    %6373 = vmatprep.mubr.bf16.mxu0 0
    %6374 = vmatmul.mubr.bf16.gmra.mxu0 %v6328
    %v6375 = vpop.f32.mrf.mxu0
    %v6376 = vadd.f32 %v6311, %v6375
    %v6377 = vpop.f32.mrf.mxu0
    %v6378 = vpop.f32.mrf.mxu0
    %v6379 = vadd.f32 %v6311, %v6378
    %v6380 = vpop.f32.mrf.mxu0
    %6381 = vmatprep.mubr.bf16.mxu0 0
    %6382 = vmatmul.mubr.bf16.gmra.mxu0 %v6331
    %v6383 = vpop.f32.mrf.mxu0
    %v6384 = vadd.f32 %v6311, %v6383
    %v6385 = vpop.f32.mrf.mxu0
    %v6386 = vpop.f32.mrf.mxu0
    %v6387 = vadd.f32 %v6311, %v6386
    %v6388 = vpop.f32.mrf.mxu0
    %6389 = vdwg.mxu0
    %v6390 = vadd.f32 %v5232, %v6368
    %v6391 = vadd.f32 %v5233, %v6371
    %v6392 = vadd.f32 %v5234, %v6376
    %v6393 = vadd.f32 %v5235, %v6379
    %v6394 = vadd.f32 %v5236, %v6384
    %v6395 = vadd.f32 %v5237, %v6387
    %v6396 = vld [vmem:[%s15 + $0x3] sm:$0x1]
    %v6397 = vld [vmem:[%s16 + $0x3] sm:$0x1]
    %v6398 = vsel %vm624, %v6390, 0.0
    %6399 = vadd.xlane.f32.xlu0 %v6398
    %v6400 = vpop.xlane.xlu0 %6399
    %v6401 = vsel %vm624, %v6391, 0.0
    %6402 = vadd.xlane.f32.xlu0 %v6401
    %v6403 = vpop.xlane.xlu0 %6402
    %v6404 = vsel %vm624, %v6392, 0.0
    %6405 = vadd.xlane.f32.xlu0 %v6404
    %v6406 = vpop.xlane.xlu0 %6405
    %v6407 = vsel %vm624, %v6393, 0.0
    %6408 = vadd.xlane.f32.xlu0 %v6407
    %v6409 = vpop.xlane.xlu0 %6408
    %v6410 = vsel %vm624, %v6394, 0.0
    %6411 = vadd.xlane.f32.xlu0 %v6410
    %v6412 = vpop.xlane.xlu0 %6411
    %v6413 = vsel %vm624, %v6395, 0.0
    %6414 = vadd.xlane.f32.xlu0 %v6413
    %v6415 = vpop.xlane.xlu0 %6414
    %v6416 = vmul.f32 %v6400, %v643
    %v6417 = vmul.f32 %v6403, %v643
    %v6418 = vmul.f32 %v6406, %v643
    %v6419 = vmul.f32 %v6409, %v643
    %v6420 = vmul.f32 %v6412, %v643
    %v6421 = vmul.f32 %v6415, %v643
    %v6422 = vsub.f32 %v6390, %v6416
    %v6423 = vsub.f32 %v6391, %v6417
    %v6424 = vsub.f32 %v6392, %v6418
    %v6425 = vsub.f32 %v6393, %v6419
    %v6426 = vsub.f32 %v6394, %v6420
    %v6427 = vsub.f32 %v6395, %v6421
    %v6428 = vmul.f32 %v6422, %v6422
    %v6429 = vmul.f32 %v6423, %v6423
    %v6430 = vmul.f32 %v6424, %v6424
    %v6431 = vmul.f32 %v6425, %v6425
    %v6432 = vmul.f32 %v6426, %v6426
    %v6433 = vmul.f32 %v6427, %v6427
    %v6434 = vsel %vm624, %v6428, 0.0
    %6435 = vadd.xlane.f32.xlu0 %v6434
    %v6436 = vpop.xlane.xlu0 %6435
    %v6437 = vsel %vm624, %v6429, 0.0
    %6438 = vadd.xlane.f32.xlu0 %v6437
    %v6439 = vpop.xlane.xlu0 %6438
    %v6440 = vsel %vm624, %v6430, 0.0
    %6441 = vadd.xlane.f32.xlu0 %v6440
    %v6442 = vpop.xlane.xlu0 %6441
    %v6443 = vsel %vm624, %v6431, 0.0
    %6444 = vadd.xlane.f32.xlu0 %v6443
    %v6445 = vpop.xlane.xlu0 %6444
    %v6446 = vsel %vm624, %v6432, 0.0
    %6447 = vadd.xlane.f32.xlu0 %v6446
    %v6448 = vpop.xlane.xlu0 %6447
    %v6449 = vsel %vm624, %v6433, 0.0
    %6450 = vadd.xlane.f32.xlu0 %v6449
    %v6451 = vpop.xlane.xlu0 %6450
    %v6452 = vmul.f32 %v6436, %v643
    %v6453 = vmul.f32 %v6439, %v643
    %v6454 = vmul.f32 %v6442, %v643
    %v6455 = vmul.f32 %v6445, %v643
    %v6456 = vmul.f32 %v6448, %v643
    %v6457 = vmul.f32 %v6451, %v643
    %v6458 = vadd.f32 %v6452, 1e-06
    %v6459 = vadd.f32 %v6453, 1e-06
    %v6460 = vadd.f32 %v6454, 1e-06
    %v6461 = vadd.f32 %v6455, 1e-06
    %v6462 = vadd.f32 %v6456, 1e-06
    %v6463 = vadd.f32 %v6457, 1e-06
    %v6464 = vrsqrt.pop %v6458
    %v6465 = vrsqrt.pop %v6459
    %v6466 = vrsqrt.pop %v6460
    %v6467 = vrsqrt.pop %v6461
    %v6468 = vrsqrt.pop %v6462
    %v6469 = vrsqrt.pop %v6463
    %v6470 = vmul.f32 %v6422, %v6464
    %v6471 = vmul.f32 %v6423, %v6465
    %v6472 = vmul.f32 %v6424, %v6466
    %v6473 = vmul.f32 %v6425, %v6467
    %v6474 = vmul.f32 %v6426, %v6468
    %v6475 = vmul.f32 %v6427, %v6469
    %v6476 = vlaneseq
    %v6477 = vshrl.u32 %v6476, 7
    %v6478 = vsub.s32 0, %v6477
    %v6479 = vrot.slane %v6396, %v6478
    %v6480 = vmul.f32 %v6470, %v6479
    %v6481 = vmul.f32 %v6471, %v6479
    %v6482 = vmul.f32 %v6472, %v6479
    %v6483 = vmul.f32 %v6473, %v6479
    %v6484 = vmul.f32 %v6474, %v6479
    %v6485 = vmul.f32 %v6475, %v6479
    %v6486 = vlaneseq
    %v6487 = vshrl.u32 %v6486, 7
    %v6488 = vsub.s32 0, %v6487
    %v6489 = vrot.slane %v6397, %v6488
    %v6490 = vadd.f32 %v6480, %v6489
    %v6491 = vadd.f32 %v6481, %v6489
    %v6492 = vadd.f32 %v6482, %v6489
    %v6493 = vadd.f32 %v6483, %v6489
    %v6494 = vadd.f32 %v6484, %v6489
    %v6495 = vadd.f32 %v6485, %v6489
    %v6496 = vpack.c.bf16 %v6491, %v6490
    %v6497 = vpack.c.bf16 %v6493, %v6492
    %v6498 = vpack.c.bf16 %v6495, %v6494
    %s6499 = scalar_lea.vmem %s17, 48
    %v6500 = vld [vmem:[%s6499] sm:$0xf]
    %v6501 = vld [vmem:[%s6499 + $0x4] sm:$0xf]
    %v6502 = vld [vmem:[%s6499 + $0x8] sm:$0xf]
    %v6503 = vld [vmem:[%s6499 + $0xc] sm:$0xf]
    %v6504 = vld [vmem:[%s18 + $0x3] sm:$0x1]
    %v6505 = vlaneseq
    %v6506 = vshrl.u32 %v6505, 7
    %v6507 = vsub.s32 0, %v6506
    %v6508 = vrot.slane %v6504, %v6507
    %v6513 = vunpack.c.l.b16 %v6500
    %v6514 = vunpack.c.l.b16 %v6501
    %v6515 = vunpack.c.l.b16 %v6502
    %v6516 = vunpack.c.l.b16 %v6503
    %v6517 = vpack.c.b16 %v6514, %v6513
    %v6518 = vpack.c.b16 %v6516, %v6515
    %v6522 = vsel %vm624, %v6496, 0
    %v6525 = vsel %vm624, %v6497, 0
    %v6528 = vsel %vm624, %v6498, 0
    %6530 = vmatprep.subr.bf16.mxu0 0
    %6531 = vmatpush1.bf16.msra.mxu0 0
    %6532 = vmatprep.subr.bf16.mxu0 0
    %6533 = vmatpush1.bf16.msra.mxu0 0
    %6534 = vmatprep.subr.bf16.mxu0 0
    %6535 = vmatpush1.bf16.msra.mxu0 0
    %6536 = vmatprep.subr.bf16.mxu0 0
    %6537 = vmatpush1.bf16.msra.mxu0 0
    %6538 = vmatprep.subr.bf16.mxu0 0
    %6539 = vmatpush1.bf16.msra.mxu0 0
    %6540 = vmatprep.subr.bf16.mxu0 0
    %6541 = vmatpush1.bf16.msra.mxu0 0
    %6542 = vmatprep.subr.bf16.mxu0 0
    %6543 = vmatpush1.bf16.msra.mxu0 %v6518
    %6544 = vmatprep.subr.bf16.mxu0 0
    %6545 = vmatpush1.bf16.msra.mxu0 %v6517
    %6546 = vmatprep.subr.bf16.mxu0 0
    %6547 = vmatpush2.bf16.msra.mxu0 0
    %6548 = vmatprep.subr.bf16.mxu0 0
    %6549 = vmatpush2.bf16.msra.mxu0 0
    %6550 = vmatprep.subr.bf16.mxu0 0
    %6551 = vmatpush2.bf16.msra.mxu0 0
    %6552 = vmatprep.subr.bf16.mxu0 0
    %6553 = vmatpush2.bf16.msra.mxu0 0
    %6554 = vmatprep.subr.bf16.mxu0 0
    %6555 = vmatpush2.bf16.msra.mxu0 0
    %6556 = vmatprep.subr.bf16.mxu0 0
    %6557 = vmatpush2.bf16.msra.mxu0 0
    %6558 = vmatprep.subr.bf16.mxu0 0
    %6559 = vmatpush2.bf16.msra.mxu0 0
    %6560 = vmatprep.subr.bf16.mxu0 0
    %6561 = vmatpush2.bf16.msra.mxu0 0
    %6562 = vmatprep.mubr.bf16.mxu0 0
    %6563 = vmatmul.mubr.bf16.gmra.mxu0 %v6522
    %v6564 = vpop.f32.mrf.mxu0
    %v6565 = vadd.f32 %v6508, %v6564
    %v6566 = vpop.f32.mrf.mxu0
    %v6567 = vpop.f32.mrf.mxu0
    %v6568 = vadd.f32 %v6508, %v6567
    %v6569 = vpop.f32.mrf.mxu0
    %6570 = vmatprep.mubr.bf16.mxu0 0
    %6571 = vmatmul.mubr.bf16.gmra.mxu0 %v6525
    %v6572 = vpop.f32.mrf.mxu0
    %v6573 = vadd.f32 %v6508, %v6572
    %v6574 = vpop.f32.mrf.mxu0
    %v6575 = vpop.f32.mrf.mxu0
    %v6576 = vadd.f32 %v6508, %v6575
    %v6577 = vpop.f32.mrf.mxu0
    %6578 = vmatprep.mubr.bf16.mxu0 0
    %6579 = vmatmul.mubr.bf16.gmra.mxu0 %v6528
    %v6580 = vpop.f32.mrf.mxu0
    %v6581 = vadd.f32 %v6508, %v6580
    %v6582 = vpop.f32.mrf.mxu0
    %v6583 = vpop.f32.mrf.mxu0
    %v6584 = vadd.f32 %v6508, %v6583
    %v6585 = vpop.f32.mrf.mxu0
    %6586 = vdwg.mxu0
    %v6587 = vmul.f32 %v6565, %v6565
    %v6588 = vmul.f32 %v6568, %v6568
    %v6589 = vmul.f32 %v6573, %v6573
    %v6590 = vmul.f32 %v6576, %v6576
    %v6591 = vmul.f32 %v6581, %v6581
    %v6592 = vmul.f32 %v6584, %v6584
    %v6593 = vmul.f32 %v6565, %v6587
    %v6594 = vmul.f32 %v6568, %v6588
    %v6595 = vmul.f32 %v6573, %v6589
    %v6596 = vmul.f32 %v6576, %v6590
    %v6597 = vmul.f32 %v6581, %v6591
    %v6598 = vmul.f32 %v6584, %v6592
    %v6599 = vmul.f32 %v6593, 0.044715
    %v6600 = vmul.f32 %v6594, 0.044715
    %v6601 = vmul.f32 %v6595, 0.044715
    %v6602 = vmul.f32 %v6596, 0.044715
    %v6603 = vmul.f32 %v6597, 0.044715
    %v6604 = vmul.f32 %v6598, 0.044715
    %v6605 = vadd.f32 %v6565, %v6599
    %v6606 = vadd.f32 %v6568, %v6600
    %v6607 = vadd.f32 %v6573, %v6601
    %v6608 = vadd.f32 %v6576, %v6602
    %v6609 = vadd.f32 %v6581, %v6603
    %v6610 = vadd.f32 %v6584, %v6604
    %v6611 = vmul.f32 %v6605, 0.7978846
    %v6612 = vmul.f32 %v6606, 0.7978846
    %v6613 = vmul.f32 %v6607, 0.7978846
    %v6614 = vmul.f32 %v6608, 0.7978846
    %v6615 = vmul.f32 %v6609, 0.7978846
    %v6616 = vmul.f32 %v6610, 0.7978846
    %v6617 = vtanh.pop %v6611
    %v6618 = vtanh.pop %v6612
    %v6619 = vtanh.pop %v6613
    %v6620 = vtanh.pop %v6614
    %v6621 = vtanh.pop %v6615
    %v6622 = vtanh.pop %v6616
    %v6623 = vadd.f32 %v6617, 1.0
    %v6624 = vadd.f32 %v6618, 1.0
    %v6625 = vadd.f32 %v6619, 1.0
    %v6626 = vadd.f32 %v6620, 1.0
    %v6627 = vadd.f32 %v6621, 1.0
    %v6628 = vadd.f32 %v6622, 1.0
    %v6629 = vmul.f32 %v6623, 0.5
    %v6630 = vmul.f32 %v6624, 0.5
    %v6631 = vmul.f32 %v6625, 0.5
    %v6632 = vmul.f32 %v6626, 0.5
    %v6633 = vmul.f32 %v6627, 0.5
    %v6634 = vmul.f32 %v6628, 0.5
    %v6635 = vmul.f32 %v6565, %v6629
    %v6636 = vmul.f32 %v6568, %v6630
    %v6637 = vmul.f32 %v6573, %v6631
    %v6638 = vmul.f32 %v6576, %v6632
    %v6639 = vmul.f32 %v6581, %v6633
    %v6640 = vmul.f32 %v6584, %v6634
    %v6641 = vpack.c.bf16 %v6636, %v6635
    %v6642 = vpack.c.bf16 %v6638, %v6637
    %v6643 = vpack.c.bf16 %v6640, %v6639
    %s6644 = scalar_lea.vmem %s19, 192
    %v6645 = vld [vmem:[%s6644] sm:$0xf]
    %v6646 = vld [vmem:[%s6644 + $0x4] sm:$0xf]
    %v6647 = vld [vmem:[%s6644 + $0x8] sm:$0xf]
    %v6648 = vld [vmem:[%s6644 + $0xc] sm:$0xf]
    %v6649 = vld [vmem:[%s6644 + $0x10] sm:$0xf]
    %v6650 = vld [vmem:[%s6644 + $0x14] sm:$0xf]
    %v6651 = vld [vmem:[%s6644 + $0x18] sm:$0xf]
    %v6652 = vld [vmem:[%s6644 + $0x1c] sm:$0xf]
    %v6653 = vld [vmem:[%s6644 + $0x20] sm:$0xf]
    %v6654 = vld [vmem:[%s6644 + $0x24] sm:$0xf]
    %v6655 = vld [vmem:[%s6644 + $0x28] sm:$0xf]
    %v6656 = vld [vmem:[%s6644 + $0x2c] sm:$0xf]
    %v6657 = vld [vmem:[%s6644 + $0x30] sm:$0xf]
    %v6658 = vld [vmem:[%s6644 + $0x34] sm:$0xf]
    %v6659 = vld [vmem:[%s6644 + $0x38] sm:$0xf]
    %v6660 = vld [vmem:[%s6644 + $0x3c] sm:$0xf]
    %v6661 = vld [vmem:[%s20 + $0x3] sm:$0x1]
    %v6662 = vlaneseq
    %v6663 = vshrl.u32 %v6662, 7
    %v6664 = vsub.s32 0, %v6663
    %v6665 = vrot.slane %v6661, %v6664
    %v6682 = vunpack.c.l.b16 %v6645
    %v6683 = vunpack.c.l.b16 %v6646
    %v6684 = vunpack.c.l.b16 %v6647
    %v6685 = vunpack.c.l.b16 %v6648
    %v6686 = vunpack.c.l.b16 %v6649
    %v6687 = vunpack.c.l.b16 %v6650
    %v6688 = vunpack.c.l.b16 %v6651
    %v6689 = vunpack.c.l.b16 %v6652
    %v6690 = vunpack.c.l.b16 %v6653
    %v6691 = vunpack.c.l.b16 %v6654
    %v6692 = vunpack.c.l.b16 %v6655
    %v6693 = vunpack.c.l.b16 %v6656
    %v6694 = vunpack.c.l.b16 %v6657
    %v6695 = vunpack.c.l.b16 %v6658
    %v6696 = vunpack.c.l.b16 %v6659
    %v6697 = vunpack.c.l.b16 %v6660
    %v6698 = vpack.c.b16 %v6683, %v6682
    %v6699 = vpack.c.b16 %v6685, %v6684
    %v6700 = vpack.c.b16 %v6687, %v6686
    %v6701 = vpack.c.b16 %v6689, %v6688
    %v6702 = vpack.c.b16 %v6691, %v6690
    %v6703 = vpack.c.b16 %v6693, %v6692
    %v6704 = vpack.c.b16 %v6695, %v6694
    %v6705 = vpack.c.b16 %v6697, %v6696
    %6714 = vmatprep.subr.bf16.mxu0 0
    %6715 = vmatpush1.bf16.msra.mxu0 %v6705
    %6716 = vmatprep.subr.bf16.mxu0 0
    %6717 = vmatpush1.bf16.msra.mxu0 %v6704
    %6718 = vmatprep.subr.bf16.mxu0 0
    %6719 = vmatpush1.bf16.msra.mxu0 %v6703
    %6720 = vmatprep.subr.bf16.mxu0 0
    %6721 = vmatpush1.bf16.msra.mxu0 %v6702
    %6722 = vmatprep.subr.bf16.mxu0 0
    %6723 = vmatpush1.bf16.msra.mxu0 %v6701
    %6724 = vmatprep.subr.bf16.mxu0 0
    %6725 = vmatpush1.bf16.msra.mxu0 %v6700
    %6726 = vmatprep.subr.bf16.mxu0 0
    %6727 = vmatpush1.bf16.msra.mxu0 %v6699
    %6728 = vmatprep.subr.bf16.mxu0 0
    %6729 = vmatpush1.bf16.msra.mxu0 %v6698
    %6730 = vmatprep.subr.bf16.mxu0 0
    %6731 = vmatpush2.bf16.msra.mxu0 0
    %6732 = vmatprep.subr.bf16.mxu0 0
    %6733 = vmatpush2.bf16.msra.mxu0 0
    %6734 = vmatprep.subr.bf16.mxu0 0
    %6735 = vmatpush2.bf16.msra.mxu0 0
    %6736 = vmatprep.subr.bf16.mxu0 0
    %6737 = vmatpush2.bf16.msra.mxu0 0
    %6738 = vmatprep.subr.bf16.mxu0 0
    %6739 = vmatpush2.bf16.msra.mxu0 0
    %6740 = vmatprep.subr.bf16.mxu0 0
    %6741 = vmatpush2.bf16.msra.mxu0 0
    %6742 = vmatprep.subr.bf16.mxu0 0
    %6743 = vmatpush2.bf16.msra.mxu0 0
    %6744 = vmatprep.subr.bf16.mxu0 0
    %6745 = vmatpush2.bf16.msra.mxu0 0
    %6746 = vmatprep.mubr.bf16.mxu0 0
    %6747 = vmatmul.mubr.bf16.gmra.mxu0 %v6641
    %v6748 = vpop.f32.mrf.mxu0
    %v6749 = vadd.f32 %v6665, %v6748
    %v6750 = vpop.f32.mrf.mxu0
    %v6751 = vpop.f32.mrf.mxu0
    %v6752 = vadd.f32 %v6665, %v6751
    %v6753 = vpop.f32.mrf.mxu0
    %6754 = vmatprep.mubr.bf16.mxu0 0
    %6755 = vmatmul.mubr.bf16.gmra.mxu0 %v6642
    %v6756 = vpop.f32.mrf.mxu0
    %v6757 = vpop.f32.mrf.mxu0
    %v6758 = vpop.f32.mrf.mxu0
    %v6759 = vadd.f32 %v6665, %v6758
    %v6760 = vpop.f32.mrf.mxu0
    %6761 = vmatprep.mubr.bf16.mxu0 0
    %6762 = vmatmul.mubr.bf16.gmra.mxu0 %v6643
    %v6763 = vpop.f32.mrf.mxu0
    %v6764 = vadd.f32 %v6665, %v6763
    %v6765 = vpop.f32.mrf.mxu0
    %v6766 = vpop.f32.mrf.mxu0
    %v6767 = vpop.f32.mrf.mxu0
    %6768 = vdwg.mxu0
    %v6769 = vadd.f32 %v6390, %v6749
    %v6770 = vadd.f32 %v6391, %v6752
    %v6771 = vadd.f32 %v6393, %v6759
    %v6772 = vadd.f32 %v6394, %v6764
    %v6773 = vld [vmem:[%s21] sm:$0x1]
    %v6774 = vld [vmem:[%s22] sm:$0x1]
    %v6776 = vlaneseq
    %v6777 = vshrl.u32 %v6776, 7
    %v6778 = vsub.s32 0, %v6777
    %v6779 = vrot.slane %v6773, %v6778
    %v6781 = vmul.f32 %v2234, %v6779
    %v6782 = vmul.f32 %v2235, %v6779
    %v6783 = vmul.f32 %v2237, %v6779
    %v6784 = vmul.f32 %v2238, %v6779
    %v6786 = vlaneseq
    %v6787 = vshrl.u32 %v6786, 7
    %v6788 = vsub.s32 0, %v6787
    %v6789 = vrot.slane %v6774, %v6788
    %v6791 = vadd.f32 %v6781, %v6789
    %v6792 = vadd.f32 %v6782, %v6789
    %v6793 = vadd.f32 %v6783, %v6789
    %v6794 = vadd.f32 %v6784, %v6789
    %v6795 = vmul.f32 %v3773, %v6779
    %v6796 = vmul.f32 %v3774, %v6779
    %v6797 = vmul.f32 %v3776, %v6779
    %v6798 = vmul.f32 %v3777, %v6779
    %v6799 = vadd.f32 %v6795, %v6789
    %v6800 = vadd.f32 %v6796, %v6789
    %v6801 = vadd.f32 %v6797, %v6789
    %v6802 = vadd.f32 %v6798, %v6789
    %v6803 = vmul.f32 %v5312, %v6779
    %v6804 = vmul.f32 %v5313, %v6779
    %v6805 = vmul.f32 %v5315, %v6779
    %v6806 = vmul.f32 %v5316, %v6779
    %v6807 = vadd.f32 %v6803, %v6789
    %v6808 = vadd.f32 %v6804, %v6789
    %v6809 = vadd.f32 %v6805, %v6789
    %v6810 = vadd.f32 %v6806, %v6789
    %v6811 = vsel %vm624, %v6769, 0.0
    %6812 = vadd.xlane.f32.xlu0 %v6811
    %v6813 = vpop.xlane.xlu0 %6812
    %v6814 = vsel %vm624, %v6770, 0.0
    %6815 = vadd.xlane.f32.xlu0 %v6814
    %v6816 = vpop.xlane.xlu0 %6815
    %v6817 = vsel %vm624, %v6771, 0.0
    %6818 = vadd.xlane.f32.xlu0 %v6817
    %v6819 = vpop.xlane.xlu0 %6818
    %v6820 = vsel %vm624, %v6772, 0.0
    %6821 = vadd.xlane.f32.xlu0 %v6820
    %v6822 = vpop.xlane.xlu0 %6821
    %v6823 = vmul.f32 %v6813, %v643
    %v6824 = vmul.f32 %v6816, %v643
    %v6825 = vmul.f32 %v6819, %v643
    %v6826 = vmul.f32 %v6822, %v643
    %v6827 = vsub.f32 %v6769, %v6823
    %v6828 = vsub.f32 %v6770, %v6824
    %v6829 = vsub.f32 %v6771, %v6825
    %v6830 = vsub.f32 %v6772, %v6826
    %v6831 = vmul.f32 %v6827, %v6827
    %v6832 = vmul.f32 %v6828, %v6828
    %v6833 = vmul.f32 %v6829, %v6829
    %v6834 = vmul.f32 %v6830, %v6830
    %v6835 = vsel %vm624, %v6831, 0.0
    %6836 = vadd.xlane.f32.xlu0 %v6835
    %v6837 = vpop.xlane.xlu0 %6836
    %v6838 = vsel %vm624, %v6832, 0.0
    %6839 = vadd.xlane.f32.xlu0 %v6838
    %v6840 = vpop.xlane.xlu0 %6839
    %v6841 = vsel %vm624, %v6833, 0.0
    %6842 = vadd.xlane.f32.xlu0 %v6841
    %v6843 = vpop.xlane.xlu0 %6842
    %v6844 = vsel %vm624, %v6834, 0.0
    %6845 = vadd.xlane.f32.xlu0 %v6844
    %v6846 = vpop.xlane.xlu0 %6845
    %v6847 = vmul.f32 %v6837, %v643
    %v6848 = vmul.f32 %v6840, %v643
    %v6849 = vmul.f32 %v6843, %v643
    %v6850 = vmul.f32 %v6846, %v643
    %v6851 = vadd.f32 %v6847, 1e-06
    %v6852 = vadd.f32 %v6848, 1e-06
    %v6853 = vadd.f32 %v6849, 1e-06
    %v6854 = vadd.f32 %v6850, 1e-06
    %v6855 = vrsqrt.pop %v6851
    %v6856 = vrsqrt.pop %v6852
    %v6857 = vrsqrt.pop %v6853
    %v6858 = vrsqrt.pop %v6854
    %v6859 = vmul.f32 %v6827, %v6855
    %v6860 = vmul.f32 %v6828, %v6856
    %v6861 = vmul.f32 %v6829, %v6857
    %v6862 = vmul.f32 %v6830, %v6858
    %v6863 = vmul.f32 %v6859, %v6779
    %v6864 = vmul.f32 %v6860, %v6779
    %v6865 = vmul.f32 %v6861, %v6779
    %v6866 = vmul.f32 %v6862, %v6779
    %v6867 = vadd.f32 %v6863, %v6789
    %v6868 = vadd.f32 %v6864, %v6789
    %v6869 = vadd.f32 %v6865, %v6789
    %v6870 = vadd.f32 %v6866, %v6789
    %6875 = vrot.lane.b32.xlu0 %v6799, 32
    %v6876 = vpop.permute.xlu0 %6875
    %6877 = vrot.lane.b32.xlu0 %v6800, 32
    %v6878 = vpop.permute.xlu0 %6877
    %6879 = vrot.lane.b32.xlu0 %v6801, 32
    %v6880 = vpop.permute.xlu0 %6879
    %6881 = vrot.lane.b32.xlu0 %v6802, 32
    %v6882 = vpop.permute.xlu0 %6881
    %6891 = vrot.lane.b32.xlu0 %v6807, 64
    %v6892 = vpop.permute.xlu0 %6891
    %6893 = vrot.lane.b32.xlu0 %v6808, 64
    %v6894 = vpop.permute.xlu0 %6893
    %6895 = vrot.lane.b32.xlu0 %v6809, 64
    %v6896 = vpop.permute.xlu0 %6895
    %6897 = vrot.lane.b32.xlu0 %v6810, 64
    %v6898 = vpop.permute.xlu0 %6897
    %6907 = vrot.lane.b32.xlu0 %v6867, 96
    %v6908 = vpop.permute.xlu0 %6907
    %6909 = vrot.lane.b32.xlu0 %v6868, 96
    %v6910 = vpop.permute.xlu0 %6909
    %6911 = vrot.lane.b32.xlu0 %v6869, 96
    %v6912 = vpop.permute.xlu0 %6911
    %6913 = vrot.lane.b32.xlu0 %v6870, 96
    %v6914 = vpop.permute.xlu0 %6913
    %v6919 = vsel %vm624, %v6791, %v6876
    %v6920 = vsel %vm624, %v6792, %v6878
    %v6921 = vsel %vm624, %v6793, %v6880
    %v6922 = vsel %vm624, %v6794, %v6882
    %vm6923 = vcmask 523264
    %v6924 = vsel %vm6923, %v6919, %v6892
    %v6925 = vsel %vm6923, %v6920, %v6894
    %v6926 = vsel %vm6923, %v6921, %v6896
    %v6927 = vsel %vm6923, %v6922, %v6898
    %vm6928 = vcmask 785408
    %v6929 = vsel %vm6928, %v6924, %v6908
    %v6930 = vsel %vm6928, %v6925, %v6910
    %v6931 = vsel %vm6928, %v6926, %v6912
    %v6932 = vsel %vm6928, %v6927, %v6914
    %v6933 = vadd.f32 %v6929, %v6930
    %v6934 = vadd.f32 %v6933, %v6931
    %v6935 = vadd.f32 %v6934, %v6932
    %v6936 = vrot.slane %v6935, 4
    %v6937 = vadd.f32 %v6935, %v6936
    %v6938 = vrot.slane %v6937, 2
    %v6939 = vadd.f32 %v6937, %v6938
    %v6940 = vrot.slane %v6939, 1
    %v6941 = vadd.f32 %v6939, %v6940
    %v6942 = vmul.f32 %v6941, %v643
    %v6943 = vsub.f32 %v6929, %v6942
    %v6944 = vsub.f32 %v6930, %v6942
    %v6945 = vsub.f32 %v6931, %v6942
    %v6946 = vsub.f32 %v6932, %v6942
    %v6947 = vmul.f32 %v6943, %v6943
    %v6948 = vmul.f32 %v6944, %v6944
    %v6949 = vmul.f32 %v6945, %v6945
    %v6950 = vmul.f32 %v6946, %v6946
    %v6951 = vadd.f32 %v6947, %v6948
    %v6952 = vadd.f32 %v6951, %v6949
    %v6953 = vadd.f32 %v6952, %v6950
    %v6954 = vrot.slane %v6953, 4
    %v6955 = vadd.f32 %v6953, %v6954
    %v6956 = vrot.slane %v6955, 2
    %v6957 = vadd.f32 %v6955, %v6956
    %v6958 = vrot.slane %v6957, 1
    %v6959 = vadd.f32 %v6957, %v6958
    %v6960 = vmul.f32 %v6959, %v643
    %v6961 = vadd.f32 %v6960, 1e-05
    %v6962 = vrsqrt.pop %v6961
    %v6963 = vmul.f32 %v6943, %v6962
    %v6964 = vmul.f32 %v6944, %v6962
    %v6965 = vmul.f32 %v6945, %v6962
    %v6966 = vmul.f32 %v6946, %v6962
    %v6967 = vld [vmem:[%s23] sm:$0x1]
    %v6969 = vlaneseq
    %v6970 = vshrl.u32 %v6969, 7
    %v6971 = vsub.s32 0, %v6970
    %v6972 = vrot.slane %v6967, %v6971
    %v6974 = vmul.f32 %v6963, %v6972
    %v6975 = vmul.f32 %v6964, %v6972
    %v6976 = vmul.f32 %v6965, %v6972
    %v6977 = vmul.f32 %v6966, %v6972
    %v6978 = vld [vmem:[%s24] sm:$0x1]
    %v6980 = vlaneseq
    %v6981 = vshrl.u32 %v6980, 7
    %v6982 = vsub.s32 0, %v6981
    %v6983 = vrot.slane %v6978, %v6982
    %v6985 = vadd.f32 %v6974, %v6983
    %v6986 = vadd.f32 %v6975, %v6983
    %v6987 = vadd.f32 %v6976, %v6983
    %v6988 = vadd.f32 %v6977, %v6983
    %v6989 = vpack.c.bf16 %v6986, %v6985
    %v6990 = vpack.c.bf16 %v6988, %v6987
    %v6991 = vld [vmem:[%s25] sm:$0xf]
    %v6992 = vld [vmem:[%s25 + $0x4] sm:$0xf]
    %v6993 = vld [vmem:[%s25 + $0x8] sm:$0xf]
    %v6994 = vld [vmem:[%s25 + $0xc] sm:$0xf]
    %v6995 = vld [vmem:[%s25 + $0x10] sm:$0xf]
    %v6996 = vld [vmem:[%s25 + $0x14] sm:$0xf]
    %v6997 = vld [vmem:[%s25 + $0x18] sm:$0xf]
    %v6998 = vld [vmem:[%s25 + $0x1c] sm:$0xf]
    %v6999 = vld [vmem:[%s25 + $0x20] sm:$0xf]
    %v7000 = vld [vmem:[%s25 + $0x24] sm:$0xf]
    %v7001 = vld [vmem:[%s25 + $0x28] sm:$0xf]
    %v7002 = vld [vmem:[%s25 + $0x2c] sm:$0xf]
    %v7003 = vld [vmem:[%s25 + $0x30] sm:$0xf]
    %v7004 = vld [vmem:[%s25 + $0x34] sm:$0xf]
    %v7005 = vld [vmem:[%s25 + $0x38] sm:$0xf]
    %v7006 = vld [vmem:[%s25 + $0x3c] sm:$0xf]
    %v7007 = vld [vmem:[%s26] sm:$0x1]
    %v7009 = vlaneseq
    %v7010 = vshrl.u32 %v7009, 7
    %v7011 = vsub.s32 0, %v7010
    %v7012 = vrot.slane %v7007, %v7011
    %v7030 = vunpack.c.l.b16 %v6991
    %v7031 = vunpack.c.l.b16 %v6992
    %v7032 = vunpack.c.l.b16 %v6993
    %v7033 = vunpack.c.l.b16 %v6994
    %v7034 = vunpack.c.l.b16 %v6995
    %v7035 = vunpack.c.l.b16 %v6996
    %v7036 = vunpack.c.l.b16 %v6997
    %v7037 = vunpack.c.l.b16 %v6998
    %v7038 = vunpack.c.l.b16 %v6999
    %v7039 = vunpack.c.l.b16 %v7000
    %v7040 = vunpack.c.l.b16 %v7001
    %v7041 = vunpack.c.l.b16 %v7002
    %v7042 = vunpack.c.l.b16 %v7003
    %v7043 = vunpack.c.l.b16 %v7004
    %v7044 = vunpack.c.l.b16 %v7005
    %v7045 = vunpack.c.l.b16 %v7006
    %v7046 = vpack.c.b16 %v7031, %v7030
    %v7047 = vpack.c.b16 %v7033, %v7032
    %v7048 = vpack.c.b16 %v7035, %v7034
    %v7049 = vpack.c.b16 %v7037, %v7036
    %v7050 = vpack.c.b16 %v7039, %v7038
    %v7051 = vpack.c.b16 %v7041, %v7040
    %v7052 = vpack.c.b16 %v7043, %v7042
    %v7053 = vpack.c.b16 %v7045, %v7044
    %7062 = vmatprep.subr.bf16.mxu0 0
    %7063 = vmatpush1.bf16.msra.mxu0 %v7053
    %7064 = vmatprep.subr.bf16.mxu0 0
    %7065 = vmatpush1.bf16.msra.mxu0 %v7052
    %7066 = vmatprep.subr.bf16.mxu0 0
    %7067 = vmatpush1.bf16.msra.mxu0 %v7051
    %7068 = vmatprep.subr.bf16.mxu0 0
    %7069 = vmatpush1.bf16.msra.mxu0 %v7050
    %7070 = vmatprep.subr.bf16.mxu0 0
    %7071 = vmatpush1.bf16.msra.mxu0 %v7049
    %7072 = vmatprep.subr.bf16.mxu0 0
    %7073 = vmatpush1.bf16.msra.mxu0 %v7048
    %7074 = vmatprep.subr.bf16.mxu0 0
    %7075 = vmatpush1.bf16.msra.mxu0 %v7047
    %7076 = vmatprep.subr.bf16.mxu0 0
    %7077 = vmatpush1.bf16.msra.mxu0 %v7046
    %7078 = vmatprep.subr.bf16.mxu0 0
    %7079 = vmatpush2.bf16.msra.mxu0 0
    %7080 = vmatprep.subr.bf16.mxu0 0
    %7081 = vmatpush2.bf16.msra.mxu0 0
    %7082 = vmatprep.subr.bf16.mxu0 0
    %7083 = vmatpush2.bf16.msra.mxu0 0
    %7084 = vmatprep.subr.bf16.mxu0 0
    %7085 = vmatpush2.bf16.msra.mxu0 0
    %7086 = vmatprep.subr.bf16.mxu0 0
    %7087 = vmatpush2.bf16.msra.mxu0 0
    %7088 = vmatprep.subr.bf16.mxu0 0
    %7089 = vmatpush2.bf16.msra.mxu0 0
    %7090 = vmatprep.subr.bf16.mxu0 0
    %7091 = vmatpush2.bf16.msra.mxu0 0
    %7092 = vmatprep.subr.bf16.mxu0 0
    %7093 = vmatpush2.bf16.msra.mxu0 0
    %7094 = vmatprep.mubr.bf16.mxu0 0
    %7095 = vmatmul.mubr.bf16.gmra.mxu0 %v6989
    %v7096 = vpop.f32.mrf.mxu0
    %v7097 = vadd.f32 %v7012, %v7096
    %v7098 = vpop.f32.mrf.mxu0
    %v7099 = vpop.f32.mrf.mxu0
    %v7100 = vadd.f32 %v7012, %v7099
    %v7101 = vpop.f32.mrf.mxu0
    %7102 = vmatprep.mubr.bf16.mxu0 0
    %7103 = vmatmul.mubr.bf16.gmra.mxu0 %v6990
    %v7104 = vpop.f32.mrf.mxu0
    %v7105 = vadd.f32 %v7012, %v7104
    %v7106 = vpop.f32.mrf.mxu0
    %v7107 = vpop.f32.mrf.mxu0
    %v7108 = vadd.f32 %v7012, %v7107
    %v7109 = vpop.f32.mrf.mxu0
    %7110 = vdwg.mxu0
    %7111 = vst [vmem:[#allocation2] sm:$0xff] %v7097
    %7112 = vst [vmem:[#allocation2 + $0x8] sm:$0xff] %v7100
    %7113 = vst [vmem:[#allocation2 + $0x10] sm:$0xff] %v7105
    %7114 = vst [vmem:[#allocation2 + $0x18] sm:$0xff] %v7108
    // Predicated region
    $region110: #{dinov2_segmentation_forward.1} parent=1 // pred_check
      _
    $region111: #{dinov2_segmentation_forward.1} parent=1 // pred_check_branch
      %7116 = sbr.rel (0) target = $region113
    $region112: #{dinov2_segmentation_forward.1} parent=1 // pred_region
      %s7118 = ssub.s32 512, 512
      %7119 = vsyncadd [#allocation3], %s7118
      %s7120 = sshll.u32 [#allocation2], 4
      %s7121 = int_to_ptr.vmem [resolvable:$true] %s7120
      %7126 = dma.vmem_to_hbm [thread:$0]  %s7121, 512, %s27, [#allocation3], 128, 128, 8
    $region113: #{dinov2_segmentation_forward.1} parent=1 // pred_fallthru
      _
    // Predicated region
    $region114: #{dinov2_segmentation_forward.1} parent=1 // pred_check
      _
    $region115: #{dinov2_segmentation_forward.1} parent=1 // pred_check_branch
      %7128 = sbr.rel (0) target = $region117
    $region116: #{dinov2_segmentation_forward.1} parent=1 // pred_region
      %7129 = dma.done [#allocation3], 512
    $region117: #{dinov2_segmentation_forward.1} parent=1 // pred_fallthru
      _
    %7130 = vsyncpa [#allocation3], 1

</llo_original>
